<compile_context>
chip_gen: v7x
topology: tpu7x:2x2x1
jax: 0.10.0
libtpu: 0.0.40
codegen_flags: <defaults>
</compile_context>

<pallas_src>
import math
import numpy as np

import jax
import jax.numpy as jnp
from jax.experimental import pallas as pl
from jax.experimental.pallas import tpu as pltpu

_BN_EPS = 1e-5
NCLASS = 10

# ---- static geometry (depth=10, widen=1, CIFAR 32x32) -----------------------
# Stage s activations are stored channel-major as (C, L_s) with the padded
# spatial grid (H+2, W+2) flattened row-major into the lane axis.
H1, W1 = 32, 32; WP1 = W1 + 2; M1 = H1 * WP1      # compute-space cols: 1088
L1 = 1280                                          # >= (H1+2)*WP1 + 2, mult 128
H2, W2 = 16, 16; WP2 = W2 + 2; M2 = H2 * WP2      # 288
L2 = 384
H3, W3 = 8,  8;  WP3 = W3 + 2; M3 = H3 * WP3      # 80
L3 = 128


# -----------------------------------------------------------------------------
# Fused kernel: one grid step == one image, everything resident in VMEM.
# -----------------------------------------------------------------------------
def _wrn_fused_kernel(
        x_ref,
        w1_ref, w11_ref, w12_ref, w21_ref, w22_ref, wsc2_ref,
        w31_ref, w32_ref, wsc3_ref,
        bn0_ref, bn1_ref, bn2_ref, bn3_ref, bn4_ref, bn5_ref, bn6_ref,
        fcw_ref, fcb_ref,
        s12_ref, s23_ref,
        m1_ref, m2_ref, m3_ref,
        out_ref,
        a0_buf, a1_buf, a2_buf, a3_buf, a4_buf, a5_buf):
    f32 = jnp.float32
    bf16 = jnp.bfloat16

    def conv3x3(src_ref, w_ref, Wp, M):
        """3x3 conv (pad=1) as ONE MXU matmul with K = 9*Cin (tap-stacked)."""
        src = src_ref[...]                                       # (Cin, L) f32
        taps = [src[:, kh * Wp + kw: kh * Wp + kw + M]
                for kh in range(3) for kw in range(3)]           # 9 x (Cin, M)
        patches = jnp.concatenate(taps, axis=0).astype(bf16)     # (9*Cin, M)
        return jnp.dot(w_ref[...], patches,
                       preferred_element_type=f32)               # (Cout, M)

    def bn_relu(z, bn_ref):                                      # folded BN+ReLU
        return jnp.maximum(z * bn_ref[:, 0:1] + bn_ref[:, 1:2], 0.0)

    def write_padded(dst_ref, act, mask_ref, Wp, M):
        # shift compute-space cols (h*Wp+w) into the padded grid ((h+1)*Wp+w+1);
        # garbage columns (w >= W) are zeroed so they land on pad positions as 0.
        dst_ref[:, Wp + 1: Wp + 1 + M] = act * mask_ref[...]

    # zero the pad lanes of the partially-written buffers (trivial VMEM stores)
    a0_buf[...] = jnp.zeros(a0_buf.shape, f32)
    a1_buf[...] = jnp.zeros(a1_buf.shape, f32)
    a2_buf[...] = jnp.zeros(a2_buf.shape, f32)
    a4_buf[...] = jnp.zeros(a4_buf.shape, f32)

    # ---------------- stage 1 : 32x32 ----------------
    z0 = conv3x3(x_ref, w1_ref, WP1, M1)          # conv1 (3->16), raw
    a0 = bn_relu(z0, bn0_ref)                     # block1.bn1 + relu
    write_padded(a0_buf, a0, m1_ref, WP1, M1)

    z1 = conv3x3(a0_buf, w11_ref, WP1, M1)        # block1.conv1
    a1 = bn_relu(z1, bn1_ref)                     # block1.bn2 + relu
    write_padded(a1_buf, a1, m1_ref, WP1, M1)

    z2 = conv3x3(a1_buf, w12_ref, WP1, M1)        # block1.conv2
    r1 = z0 + z2                                  # block1 output (identity res)
    a2 = bn_relu(r1, bn2_ref)                     # block2.bn1 + relu
    write_padded(a2_buf, a2, m1_ref, WP1, M1)

    # ---------------- stage 1 -> 2 (stride 2) ----------------
    s12 = s12_ref[...]                            # one-hot (M1, L2)
    z3 = conv3x3(a2_buf, w21_ref, WP1, M1)        # block2.conv1 on stride-1 grid
    a3 = bn_relu(z3, bn3_ref)                     # block2.bn2 + relu
    # stride-2 subsample + scatter into the zero-padded 16x16 layout (one dot)
    a3_buf[...] = jnp.dot(a3.astype(bf16), s12, preferred_element_type=f32)
    a2s = jnp.dot(a2.astype(bf16), s12, preferred_element_type=f32)   # (16, L2)
    sc2 = jnp.dot(wsc2_ref[...], a2s.astype(bf16),
                  preferred_element_type=f32)     # block2.convShortcut (32, L2)

    # ---------------- stage 2 : 16x16 ----------------
    z4 = conv3x3(a3_buf, w22_ref, WP2, M2)        # block2.conv2
    r2 = z4 + sc2[:, WP2 + 1: WP2 + 1 + M2]       # block2 output
    a4 = bn_relu(r2, bn4_ref)                     # block3.bn1 + relu
    write_padded(a4_buf, a4, m2_ref, WP2, M2)

    # ---------------- stage 2 -> 3 (stride 2) ----------------
    s23 = s23_ref[...]                            # one-hot (M2, L3)
    z5 = conv3x3(a4_buf, w31_ref, WP2, M2)        # block3.conv1
    a5 = bn_relu(z5, bn5_ref)                     # block3.bn2 + relu
    a5_buf[...] = jnp.dot(a5.astype(bf16), s23, preferred_element_type=f32)
    a4s = jnp.dot(a4.astype(bf16), s23, preferred_element_type=f32)   # (32, L3)
    sc3 = jnp.dot(wsc3_ref[...], a4s.astype(bf16),
                  preferred_element_type=f32)     # block3.convShortcut (64, L3)

    # ---------------- stage 3 : 8x8 ----------------
    z6 = conv3x3(a5_buf, w32_ref, WP3, M3)        # block3.conv2
    r3 = z6 + sc3[:, WP3 + 1: WP3 + 1 + M3]       # block3 output
    a6 = bn_relu(r3, bn6_ref)                     # final bn1 + relu

    # ---------------- head : avg_pool2d(8) + fc ----------------
    # fc(avg_pool(a6)) == (fc_w @ a6) averaged over the 64 valid columns
    t = jnp.dot(fcw_ref[...], a6, preferred_element_type=f32)        # (10, M3)
    logits = (jnp.sum(t * m3_ref[...], axis=1, keepdims=True)
              * (1.0 / float(H3 * W3)) + fcb_ref[...])               # (10, 1)
    out_ref[...] = logits


# -----------------------------------------------------------------------------
# Wrapper: one pallas_call for the whole forward pass.
# -----------------------------------------------------------------------------
_PARAM_ORDER = ["w1", "w_b1c1", "w_b1c2", "w_b2c1", "w_b2c2", "w_sc2",
                "w_b3c1", "w_b3c2", "w_sc3",
                "bn0", "bn1", "bn2", "bn3", "bn4", "bn5", "bn6",
                "fc_w", "fc_b", "S12", "S23", "mask1", "mask2", "mask3"]


@jax.jit
def wideresnet_forward(params, x_nchw):
    N = x_nchw.shape[0]
    # one-time input glue: channel-pad 3->8 (sublane alignment), spatial zero
    # pad 1, flatten to channel-major padded-flat layout, lane-pad to L1.
    x = x_nchw.astype(jnp.float32)
    x = jnp.pad(x, ((0, 0), (0, 8 - x.shape[1]), (1, 1), (1, 1)))   # (N,8,34,34)
    x = x.reshape(N, 8, (H1 + 2) * WP1)
    x = jnp.pad(x, ((0, 0), (0, 0), (0, L1 - (H1 + 2) * WP1)))      # (N,8,L1)

    args = [x] + [params[k] for k in _PARAM_ORDER]

    def rep_spec(a):
        return pl.BlockSpec(a.shape, lambda n: (0,) * a.ndim)

    in_specs = ([pl.BlockSpec((None, 8, L1), lambda n: (n, 0, 0))]
                + [rep_spec(params[k]) for k in _PARAM_ORDER])

    out = pl.pallas_call(
        _wrn_fused_kernel,
        out_shape=jax.ShapeDtypeStruct((N, NCLASS, 1), jnp.float32),
        grid_spec=pltpu.PrefetchScalarGridSpec(
            num_scalar_prefetch=0,
            grid=(N,),
            in_specs=in_specs,
            out_specs=pl.BlockSpec((None, NCLASS, 1), lambda n: (n, 0, 0)),
            scratch_shapes=[
                pltpu.VMEM((16, L1), jnp.float32),   # a0 (block1.conv1 input)
                pltpu.VMEM((16, L1), jnp.float32),   # a1 (block1.conv2 input)
                pltpu.VMEM((16, L1), jnp.float32),   # a2 (block2.conv1 input)
                pltpu.VMEM((32, L2), jnp.float32),   # a3 (block2.conv2 input)
                pltpu.VMEM((32, L2), jnp.float32),   # a4 (block3.conv1 input)
                pltpu.VMEM((64, L3), jnp.float32),   # a5 (block3.conv2 input)
            ],
        ),
        compiler_params=pltpu.CompilerParams(
            dimension_semantics=("parallel",)),
    )(*args)
    return out.reshape(N, NCLASS)


# -----------------------------------------------------------------------------
# Parameter construction (matches module __init__ shapes/init, eval-mode BN).
# -----------------------------------------------------------------------------
def _conv_weight(key, cout, cin, k):
    std = math.sqrt(2.0 / (k * k * cout))               # matches module __init__
    return std * jax.random.normal(key, (cout, cin, k, k), jnp.float32)


def _stack3x3(w_oihw):
    # (Cout, Cin, 3, 3) -> (Cout, 9*Cin), rows ordered (kh, kw, ci) to match the
    # kernel's tap-stacked patches.
    co, ci = w_oihw.shape[0], w_oihw.shape[1]
    return jnp.transpose(w_oihw, (0, 2, 3, 1)).reshape(co, 9 * ci).astype(jnp.bfloat16)


def _bn_pack(c):
    gamma = jnp.ones((c,), jnp.float32)
    beta = jnp.zeros((c,), jnp.float32)
    mean = jnp.zeros((c,), jnp.float32)
    var = jnp.ones((c,), jnp.float32)
    scale = gamma / jnp.sqrt(var + _BN_EPS)
    shift = beta - mean * scale
    return jnp.stack([scale, shift], axis=1)             # (C, 2)


def _sel_matrix(n_dst, wp_src, m_src, wp_dst, l_dst):
    # one-hot (m_src, l_dst): src col 2h*wp_src+2w -> dst padded col (h+1)*wp_dst+(w+1)
    s = np.zeros((m_src, l_dst), np.float32)
    for h in range(n_dst):
        for w in range(n_dst):
            s[2 * h * wp_src + 2 * w, (h + 1) * wp_dst + (w + 1)] = 1.0
    return jnp.asarray(s, jnp.bfloat16)


def _col_mask(h, w, wp):
    m = np.zeros((h, wp), np.float32)
    m[:, :w] = 1.0
    return jnp.asarray(m.reshape(1, h * wp))


def init_params(key, depth=10, widen_factor=1, num_classes=NCLASS):
    assert (depth - 4) % 6 == 0
    assert (depth - 4) // 6 == 1, "this fused Pallas port is specialized to depth=10"
    assert widen_factor == 1, "specialized to widen_factor=1"
    nC = [16, 16 * widen_factor, 32 * widen_factor, 64 * widen_factor]
    ks = iter(jax.random.split(key, 12))
    p = {}
    w1 = _conv_weight(next(ks), nC[0], 3, 3)             # real Cin=3
    w1 = jnp.pad(w1, ((0, 0), (0, 8 - 3), (0, 0), (0, 0)))  # zero-pad Cin->8
    p["w1"] = _stack3x3(w1)
    p["w_b1c1"] = _stack3x3(_conv_weight(next(ks), nC[1], nC[0], 3))
    p["w_b1c2"] = _stack3x3(_conv_weight(next(ks), nC[1], nC[1], 3))
    p["w_b2c1"] = _stack3x3(_conv_weight(next(ks), nC[2], nC[1], 3))
    p["w_b2c2"] = _stack3x3(_conv_weight(next(ks), nC[2], nC[2], 3))
    p["w_sc2"] = _conv_weight(next(ks), nC[2], nC[1], 1)[:, :, 0, 0].astype(jnp.bfloat16)
    p["w_b3c1"] = _stack3x3(_conv_weight(next(ks), nC[3], nC[2], 3))
    p["w_b3c2"] = _stack3x3(_conv_weight(next(ks), nC[3], nC[3], 3))
    p["w_sc3"] = _conv_weight(next(ks), nC[3], nC[2], 1)[:, :, 0, 0].astype(jnp.bfloat16)
    # folded BatchNorms (eval mode, module __init__ statistics)
    p["bn0"] = _bn_pack(nC[0])     # block1.bn1
    p["bn1"] = _bn_pack(nC[1])     # block1.bn2
    p["bn2"] = _bn_pack(nC[1])     # block2.bn1
    p["bn3"] = _bn_pack(nC[2])     # block2.bn2
    p["bn4"] = _bn_pack(nC[2])     # block3.bn1
    p["bn5"] = _bn_pack(nC[3])     # block3.bn2
    p["bn6"] = _bn_pack(nC[3])     # model.bn1 (final)
    bound = 1.0 / math.sqrt(nC[3])
    p["fc_w"] = jax.random.uniform(next(ks), (num_classes, nC[3]),
                                   jnp.float32, -bound, bound)
    p["fc_b"] = jnp.zeros((num_classes, 1), jnp.float32)  # zeroed in __init__
    # stride-2 "subsample + scatter into next padded grid" one-hot matrices
    p["S12"] = _sel_matrix(H2, WP1, M1, WP2, L2)
    p["S23"] = _sel_matrix(H3, WP2, M2, WP3, L3)
    # valid-column masks (compute-space columns with w < W)
    p["mask1"] = _col_mask(H1, W1, WP1)
    p["mask2"] = _col_mask(H2, W2, WP2)
    p["mask3"] = _col_mask(H3, W3, WP3)
    return p
    # TODO(synk): training-mode BatchNorm (batch statistics) is not implemented;
    # BN is folded from eval-mode __init__ stats as in the previous version.


# -----------------------------------------------------------------------------
if __name__ == "__main__":
    key = jax.random.PRNGKey(0)
    pkey, xkey = jax.random.split(key)

    params = init_params(pkey, depth=10, widen_factor=1, num_classes=NCLASS)

    # CIFAR-style input: batch=2, 3 channels, 32x32.
    x = jax.random.normal(xkey, (2, 3, 32, 32), jnp.float32)

    logits = jax.block_until_ready(wideresnet_forward(params, x))
    assert logits.shape == (2, NCLASS)
    assert bool(jnp.all(jnp.isfinite(logits)))
    print("KERNEL_OK")
</pallas_src>

<mosaic_0001>
module attributes {stable_mosaic.version = 11 : i64} {
  func.func @_wrn_fused_kernel(%arg0: i32, %arg1: memref<1x8x1280xf32, #tpu.memory_space<vmem>>, %arg2: memref<16x72xbf16, #tpu.memory_space<vmem>>, %arg3: memref<16x144xbf16, #tpu.memory_space<vmem>>, %arg4: memref<16x144xbf16, #tpu.memory_space<vmem>>, %arg5: memref<32x144xbf16, #tpu.memory_space<vmem>>, %arg6: memref<32x288xbf16, #tpu.memory_space<vmem>>, %arg7: memref<32x16xbf16, #tpu.memory_space<vmem>>, %arg8: memref<64x288xbf16, #tpu.memory_space<vmem>>, %arg9: memref<64x576xbf16, #tpu.memory_space<vmem>>, %arg10: memref<64x32xbf16, #tpu.memory_space<vmem>>, %arg11: memref<16x2xf32, #tpu.memory_space<vmem>>, %arg12: memref<16x2xf32, #tpu.memory_space<vmem>>, %arg13: memref<16x2xf32, #tpu.memory_space<vmem>>, %arg14: memref<32x2xf32, #tpu.memory_space<vmem>>, %arg15: memref<32x2xf32, #tpu.memory_space<vmem>>, %arg16: memref<64x2xf32, #tpu.memory_space<vmem>>, %arg17: memref<64x2xf32, #tpu.memory_space<vmem>>, %arg18: memref<10x64xf32, #tpu.memory_space<vmem>>, %arg19: memref<10x1xf32, #tpu.memory_space<vmem>>, %arg20: memref<1088x384xbf16, #tpu.memory_space<vmem>>, %arg21: memref<288x128xbf16, #tpu.memory_space<vmem>>, %arg22: memref<1x1088xf32, #tpu.memory_space<vmem>>, %arg23: memref<1x288xf32, #tpu.memory_space<vmem>>, %arg24: memref<1x80xf32, #tpu.memory_space<vmem>>, %arg25: memref<1x10x1xf32, #tpu.memory_space<vmem>>, %arg26: memref<16x1280xf32, #tpu.memory_space<vmem>>, %arg27: memref<16x1280xf32, #tpu.memory_space<vmem>>, %arg28: memref<16x1280xf32, #tpu.memory_space<vmem>>, %arg29: memref<32x384xf32, #tpu.memory_space<vmem>>, %arg30: memref<32x384xf32, #tpu.memory_space<vmem>>, %arg31: memref<64x128xf32, #tpu.memory_space<vmem>>) attributes {dimension_semantics = [#tpu.dimension_semantics<parallel>], iteration_bounds = array<i64: 2>, scalar_prefetch = 0 : i64, scratch_operands = 6 : i64, tpu.core_type = #tpu.core_type<tc>, window_params = [{transform_indices = @transform_0, window_bounds = array<i64: 1, 8, 1280>}, {pipeline_mode = #tpu.pipeline_mode<synchronous>, transform_indices = @transform_1, window_bounds = array<i64: 16, 72>}, {pipeline_mode = #tpu.pipeline_mode<synchronous>, transform_indices = @transform_2, window_bounds = array<i64: 16, 144>}, {pipeline_mode = #tpu.pipeline_mode<synchronous>, transform_indices = @transform_3, window_bounds = array<i64: 16, 144>}, {pipeline_mode = #tpu.pipeline_mode<synchronous>, transform_indices = @transform_4, window_bounds = array<i64: 32, 144>}, {pipeline_mode = #tpu.pipeline_mode<synchronous>, transform_indices = @transform_5, window_bounds = array<i64: 32, 288>}, {pipeline_mode = #tpu.pipeline_mode<synchronous>, transform_indices = @transform_6, window_bounds = array<i64: 32, 16>}, {pipeline_mode = #tpu.pipeline_mode<synchronous>, transform_indices = @transform_7, window_bounds = array<i64: 64, 288>}, {pipeline_mode = #tpu.pipeline_mode<synchronous>, transform_indices = @transform_8, window_bounds = array<i64: 64, 576>}, {pipeline_mode = #tpu.pipeline_mode<synchronous>, transform_indices = @transform_9, window_bounds = array<i64: 64, 32>}, {pipeline_mode = #tpu.pipeline_mode<synchronous>, transform_indices = @transform_10, window_bounds = array<i64: 16, 2>}, {pipeline_mode = #tpu.pipeline_mode<synchronous>, transform_indices = @transform_11, window_bounds = array<i64: 16, 2>}, {pipeline_mode = #tpu.pipeline_mode<synchronous>, transform_indices = @transform_12, window_bounds = array<i64: 16, 2>}, {pipeline_mode = #tpu.pipeline_mode<synchronous>, transform_indices = @transform_13, window_bounds = array<i64: 32, 2>}, {pipeline_mode = #tpu.pipeline_mode<synchronous>, transform_indices = @transform_14, window_bounds = array<i64: 32, 2>}, {pipeline_mode = #tpu.pipeline_mode<synchronous>, transform_indices = @transform_15, window_bounds = array<i64: 64, 2>}, {pipeline_mode = #tpu.pipeline_mode<synchronous>, transform_indices = @transform_16, window_bounds = array<i64: 64, 2>}, {pipeline_mode = #tpu.pipeline_mode<synchronous>, transform_indices = @transform_17, window_bounds = array<i64: 10, 64>}, {pipeline_mode = #tpu.pipeline_mode<synchronous>, transform_indices = @transform_18, window_bounds = array<i64: 10, 1>}, {pipeline_mode = #tpu.pipeline_mode<synchronous>, transform_indices = @transform_19, window_bounds = array<i64: 1088, 384>}, {pipeline_mode = #tpu.pipeline_mode<synchronous>, transform_indices = @transform_20, window_bounds = array<i64: 288, 128>}, {pipeline_mode = #tpu.pipeline_mode<synchronous>, transform_indices = @transform_21, window_bounds = array<i64: 1, 1088>}, {pipeline_mode = #tpu.pipeline_mode<synchronous>, transform_indices = @transform_22, window_bounds = array<i64: 1, 288>}, {pipeline_mode = #tpu.pipeline_mode<synchronous>, transform_indices = @transform_23, window_bounds = array<i64: 1, 80>}, {transform_indices = @transform_24, window_bounds = array<i64: 1, 10, 1>}]} {
    %cst = arith.constant 0.000000e+00 : f32
    %0 = vector.broadcast %cst : f32 to vector<16x1280xf32>
    %c0 = arith.constant 0 : index
    %c0_0 = arith.constant 0 : index
    %1 = vector.load %arg26[%c0, %c0_0] : memref<16x1280xf32, #tpu.memory_space<vmem>>, vector<16x1280xf32>
    tpu.vector_store %arg26[%c0, %c0_0], %0 {strides = array<i32>} : memref<16x1280xf32, #tpu.memory_space<vmem>>, vector<16x1280xf32>,
    %cst_1 = arith.constant 0.000000e+00 : f32
    %2 = vector.broadcast %cst_1 : f32 to vector<16x1280xf32>
    %c0_2 = arith.constant 0 : index
    %c0_3 = arith.constant 0 : index
    %3 = vector.load %arg27[%c0_2, %c0_3] : memref<16x1280xf32, #tpu.memory_space<vmem>>, vector<16x1280xf32>
    tpu.vector_store %arg27[%c0_2, %c0_3], %2 {strides = array<i32>} : memref<16x1280xf32, #tpu.memory_space<vmem>>, vector<16x1280xf32>,
    %cst_4 = arith.constant 0.000000e+00 : f32
    %4 = vector.broadcast %cst_4 : f32 to vector<16x1280xf32>
    %c0_5 = arith.constant 0 : index
    %c0_6 = arith.constant 0 : index
    %5 = vector.load %arg28[%c0_5, %c0_6] : memref<16x1280xf32, #tpu.memory_space<vmem>>, vector<16x1280xf32>
    tpu.vector_store %arg28[%c0_5, %c0_6], %4 {strides = array<i32>} : memref<16x1280xf32, #tpu.memory_space<vmem>>, vector<16x1280xf32>,
    %cst_7 = arith.constant 0.000000e+00 : f32
    %6 = vector.broadcast %cst_7 : f32 to vector<32x384xf32>
    %c0_8 = arith.constant 0 : index
    %c0_9 = arith.constant 0 : index
    %7 = vector.load %arg30[%c0_8, %c0_9] : memref<32x384xf32, #tpu.memory_space<vmem>>, vector<32x384xf32>
    tpu.vector_store %arg30[%c0_8, %c0_9], %6 {strides = array<i32>} : memref<32x384xf32, #tpu.memory_space<vmem>>, vector<32x384xf32>,
    %c0_10 = arith.constant 0 : index
    %c0_11 = arith.constant 0 : index
    %c0_12 = arith.constant 0 : index
    %8 = vector.load %arg1[%c0_10, %c0_11, %c0_12] : memref<1x8x1280xf32, #tpu.memory_space<vmem>>, vector<1x8x1280xf32>
    %9 = vector.shape_cast %8 : vector<1x8x1280xf32> to vector<8x1280xf32>
    %10 = vector.extract_strided_slice %9 {offsets = [0, 0], sizes = [8, 1088], strides = [1, 1]} : vector<8x1280xf32> to vector<8x1088xf32>
    %11 = vector.extract_strided_slice %9 {offsets = [0, 1], sizes = [8, 1088], strides = [1, 1]} : vector<8x1280xf32> to vector<8x1088xf32>
    %12 = vector.extract_strided_slice %9 {offsets = [0, 2], sizes = [8, 1088], strides = [1, 1]} : vector<8x1280xf32> to vector<8x1088xf32>
    %13 = vector.extract_strided_slice %9 {offsets = [0, 34], sizes = [8, 1088], strides = [1, 1]} : vector<8x1280xf32> to vector<8x1088xf32>
    %14 = vector.extract_strided_slice %9 {offsets = [0, 35], sizes = [8, 1088], strides = [1, 1]} : vector<8x1280xf32> to vector<8x1088xf32>
    %15 = vector.extract_strided_slice %9 {offsets = [0, 36], sizes = [8, 1088], strides = [1, 1]} : vector<8x1280xf32> to vector<8x1088xf32>
    %16 = vector.extract_strided_slice %9 {offsets = [0, 68], sizes = [8, 1088], strides = [1, 1]} : vector<8x1280xf32> to vector<8x1088xf32>
    %17 = vector.extract_strided_slice %9 {offsets = [0, 69], sizes = [8, 1088], strides = [1, 1]} : vector<8x1280xf32> to vector<8x1088xf32>
    %18 = vector.extract_strided_slice %9 {offsets = [0, 70], sizes = [8, 1088], strides = [1, 1]} : vector<8x1280xf32> to vector<8x1088xf32>
    %19 = tpu.concatenate %10, %11, %12, %13, %14, %15, %16, %17, %18 in 0 : vector<8x1088xf32>, vector<8x1088xf32>, vector<8x1088xf32>, vector<8x1088xf32>, vector<8x1088xf32>, vector<8x1088xf32>, vector<8x1088xf32>, vector<8x1088xf32>, vector<8x1088xf32> -> vector<72x1088xf32>
    %20 = arith.truncf %19 : vector<72x1088xf32> to vector<72x1088xbf16>
    %c0_13 = arith.constant 0 : index
    %c0_14 = arith.constant 0 : index
    %21 = vector.load %arg2[%c0_13, %c0_14] : memref<16x72xbf16, #tpu.memory_space<vmem>>, vector<16x72xbf16>
    %cst_15 = arith.constant dense<0.000000e+00> : vector<16x1088xf32>
    %22 = tpu.matmul %21, %20, %cst_15 {dimension_numbers = #tpu.dot_dimension_numbers<[1], [0], [0], [1], [0, 0, 1, 1], [], []>} : vector<16x72xbf16>, vector<72x1088xbf16>, vector<16x1088xf32> -> vector<16x1088xf32>
    %c0_16 = arith.constant 0 : index
    %c0_17 = arith.constant 0 : index
    %23 = vector.load %arg11[%c0_16, %c0_17] : memref<16x2xf32, #tpu.memory_space<vmem>>, vector<16x1xf32>
    %24 = vector.broadcast %23 : vector<16x1xf32> to vector<16x1088xf32>
    %25 = arith.mulf %22, %24 : vector<16x1088xf32>
    %c0_18 = arith.constant 0 : index
    %c1 = arith.constant 1 : index
    %26 = vector.load %arg11[%c0_18, %c1] : memref<16x2xf32, #tpu.memory_space<vmem>>, vector<16x1xf32>
    %27 = vector.broadcast %26 : vector<16x1xf32> to vector<16x1088xf32>
    %28 = arith.addf %25, %27 : vector<16x1088xf32>
    %cst_19 = arith.constant 0.000000e+00 : f32
    %29 = vector.broadcast %cst_19 : f32 to vector<16x1088xf32>
    %30 = arith.maximumf %28, %29 : vector<16x1088xf32>
    %c0_20 = arith.constant 0 : index
    %c0_21 = arith.constant 0 : index
    %31 = vector.load %arg22[%c0_20, %c0_21] : memref<1x1088xf32, #tpu.memory_space<vmem>>, vector<1x1088xf32>
    %32 = vector.broadcast %31 : vector<1x1088xf32> to vector<16x1088xf32>
    %33 = arith.mulf %30, %32 : vector<16x1088xf32>
    %c0_22 = arith.constant 0 : index
    %c35 = arith.constant 35 : index
    %34 = vector.load %arg26[%c0_22, %c35] : memref<16x1280xf32, #tpu.memory_space<vmem>>, vector<16x1088xf32>
    tpu.vector_store %arg26[%c0_22, %c35], %33 {strides = array<i32>} : memref<16x1280xf32, #tpu.memory_space<vmem>>, vector<16x1088xf32>,
    %c0_23 = arith.constant 0 : index
    %c0_24 = arith.constant 0 : index
    %35 = vector.load %arg26[%c0_23, %c0_24] : memref<16x1280xf32, #tpu.memory_space<vmem>>, vector<16x1280xf32>
    %36 = vector.extract_strided_slice %35 {offsets = [0, 0], sizes = [16, 1088], strides = [1, 1]} : vector<16x1280xf32> to vector<16x1088xf32>
    %37 = vector.extract_strided_slice %35 {offsets = [0, 1], sizes = [16, 1088], strides = [1, 1]} : vector<16x1280xf32> to vector<16x1088xf32>
    %38 = vector.extract_strided_slice %35 {offsets = [0, 2], sizes = [16, 1088], strides = [1, 1]} : vector<16x1280xf32> to vector<16x1088xf32>
    %39 = vector.extract_strided_slice %35 {offsets = [0, 34], sizes = [16, 1088], strides = [1, 1]} : vector<16x1280xf32> to vector<16x1088xf32>
    %40 = vector.extract_strided_slice %35 {offsets = [0, 35], sizes = [16, 1088], strides = [1, 1]} : vector<16x1280xf32> to vector<16x1088xf32>
    %41 = vector.extract_strided_slice %35 {offsets = [0, 36], sizes = [16, 1088], strides = [1, 1]} : vector<16x1280xf32> to vector<16x1088xf32>
    %42 = vector.extract_strided_slice %35 {offsets = [0, 68], sizes = [16, 1088], strides = [1, 1]} : vector<16x1280xf32> to vector<16x1088xf32>
    %43 = vector.extract_strided_slice %35 {offsets = [0, 69], sizes = [16, 1088], strides = [1, 1]} : vector<16x1280xf32> to vector<16x1088xf32>
    %44 = vector.extract_strided_slice %35 {offsets = [0, 70], sizes = [16, 1088], strides = [1, 1]} : vector<16x1280xf32> to vector<16x1088xf32>
    %45 = tpu.concatenate %36, %37, %38, %39, %40, %41, %42, %43, %44 in 0 : vector<16x1088xf32>, vector<16x1088xf32>, vector<16x1088xf32>, vector<16x1088xf32>, vector<16x1088xf32>, vector<16x1088xf32>, vector<16x1088xf32>, vector<16x1088xf32>, vector<16x1088xf32> -> vector<144x1088xf32>
    %46 = arith.truncf %45 : vector<144x1088xf32> to vector<144x1088xbf16>
    %c0_25 = arith.constant 0 : index
    %c0_26 = arith.constant 0 : index
    %47 = vector.load %arg3[%c0_25, %c0_26] : memref<16x144xbf16, #tpu.memory_space<vmem>>, vector<16x144xbf16>
    %cst_27 = arith.constant dense<0.000000e+00> : vector<16x1088xf32>
    %48 = tpu.matmul %47, %46, %cst_27 {dimension_numbers = #tpu.dot_dimension_numbers<[1], [0], [0], [1], [0, 0, 1, 1], [], []>} : vector<16x144xbf16>, vector<144x1088xbf16>, vector<16x1088xf32> -> vector<16x1088xf32>
    %c0_28 = arith.constant 0 : index
    %c0_29 = arith.constant 0 : index
    %49 = vector.load %arg12[%c0_28, %c0_29] : memref<16x2xf32, #tpu.memory_space<vmem>>, vector<16x1xf32>
    %50 = vector.broadcast %49 : vector<16x1xf32> to vector<16x1088xf32>
    %51 = arith.mulf %48, %50 : vector<16x1088xf32>
    %c0_30 = arith.constant 0 : index
    %c1_31 = arith.constant 1 : index
    %52 = vector.load %arg12[%c0_30, %c1_31] : memref<16x2xf32, #tpu.memory_space<vmem>>, vector<16x1xf32>
    %53 = vector.broadcast %52 : vector<16x1xf32> to vector<16x1088xf32>
    %54 = arith.addf %51, %53 : vector<16x1088xf32>
    %cst_32 = arith.constant 0.000000e+00 : f32
    %55 = vector.broadcast %cst_32 : f32 to vector<16x1088xf32>
    %56 = arith.maximumf %54, %55 : vector<16x1088xf32>
    %c0_33 = arith.constant 0 : index
    %c0_34 = arith.constant 0 : index
    %57 = vector.load %arg22[%c0_33, %c0_34] : memref<1x1088xf32, #tpu.memory_space<vmem>>, vector<1x1088xf32>
    %58 = vector.broadcast %57 : vector<1x1088xf32> to vector<16x1088xf32>
    %59 = arith.mulf %56, %58 : vector<16x1088xf32>
    %c0_35 = arith.constant 0 : index
    %c35_36 = arith.constant 35 : index
    %60 = vector.load %arg27[%c0_35, %c35_36] : memref<16x1280xf32, #tpu.memory_space<vmem>>, vector<16x1088xf32>
    tpu.vector_store %arg27[%c0_35, %c35_36], %59 {strides = array<i32>} : memref<16x1280xf32, #tpu.memory_space<vmem>>, vector<16x1088xf32>,
    %c0_37 = arith.constant 0 : index
    %c0_38 = arith.constant 0 : index
    %61 = vector.load %arg27[%c0_37, %c0_38] : memref<16x1280xf32, #tpu.memory_space<vmem>>, vector<16x1280xf32>
    %62 = vector.extract_strided_slice %61 {offsets = [0, 0], sizes = [16, 1088], strides = [1, 1]} : vector<16x1280xf32> to vector<16x1088xf32>
    %63 = vector.extract_strided_slice %61 {offsets = [0, 1], sizes = [16, 1088], strides = [1, 1]} : vector<16x1280xf32> to vector<16x1088xf32>
    %64 = vector.extract_strided_slice %61 {offsets = [0, 2], sizes = [16, 1088], strides = [1, 1]} : vector<16x1280xf32> to vector<16x1088xf32>
    %65 = vector.extract_strided_slice %61 {offsets = [0, 34], sizes = [16, 1088], strides = [1, 1]} : vector<16x1280xf32> to vector<16x1088xf32>
    %66 = vector.extract_strided_slice %61 {offsets = [0, 35], sizes = [16, 1088], strides = [1, 1]} : vector<16x1280xf32> to vector<16x1088xf32>
    %67 = vector.extract_strided_slice %61 {offsets = [0, 36], sizes = [16, 1088], strides = [1, 1]} : vector<16x1280xf32> to vector<16x1088xf32>
    %68 = vector.extract_strided_slice %61 {offsets = [0, 68], sizes = [16, 1088], strides = [1, 1]} : vector<16x1280xf32> to vector<16x1088xf32>
    %69 = vector.extract_strided_slice %61 {offsets = [0, 69], sizes = [16, 1088], strides = [1, 1]} : vector<16x1280xf32> to vector<16x1088xf32>
    %70 = vector.extract_strided_slice %61 {offsets = [0, 70], sizes = [16, 1088], strides = [1, 1]} : vector<16x1280xf32> to vector<16x1088xf32>
    %71 = tpu.concatenate %62, %63, %64, %65, %66, %67, %68, %69, %70 in 0 : vector<16x1088xf32>, vector<16x1088xf32>, vector<16x1088xf32>, vector<16x1088xf32>, vector<16x1088xf32>, vector<16x1088xf32>, vector<16x1088xf32>, vector<16x1088xf32>, vector<16x1088xf32> -> vector<144x1088xf32>
    %72 = arith.truncf %71 : vector<144x1088xf32> to vector<144x1088xbf16>
    %c0_39 = arith.constant 0 : index
    %c0_40 = arith.constant 0 : index
    %73 = vector.load %arg4[%c0_39, %c0_40] : memref<16x144xbf16, #tpu.memory_space<vmem>>, vector<16x144xbf16>
    %cst_41 = arith.constant dense<0.000000e+00> : vector<16x1088xf32>
    %74 = tpu.matmul %73, %72, %cst_41 {dimension_numbers = #tpu.dot_dimension_numbers<[1], [0], [0], [1], [0, 0, 1, 1], [], []>} : vector<16x144xbf16>, vector<144x1088xbf16>, vector<16x1088xf32> -> vector<16x1088xf32>
    %75 = arith.addf %22, %74 : vector<16x1088xf32>
    %c0_42 = arith.constant 0 : index
    %c0_43 = arith.constant 0 : index
    %76 = vector.load %arg13[%c0_42, %c0_43] : memref<16x2xf32, #tpu.memory_space<vmem>>, vector<16x1xf32>
    %77 = vector.broadcast %76 : vector<16x1xf32> to vector<16x1088xf32>
    %78 = arith.mulf %75, %77 : vector<16x1088xf32>
    %c0_44 = arith.constant 0 : index
    %c1_45 = arith.constant 1 : index
    %79 = vector.load %arg13[%c0_44, %c1_45] : memref<16x2xf32, #tpu.memory_space<vmem>>, vector<16x1xf32>
    %80 = vector.broadcast %79 : vector<16x1xf32> to vector<16x1088xf32>
    %81 = arith.addf %78, %80 : vector<16x1088xf32>
    %cst_46 = arith.constant 0.000000e+00 : f32
    %82 = vector.broadcast %cst_46 : f32 to vector<16x1088xf32>
    %83 = arith.maximumf %81, %82 : vector<16x1088xf32>
    %c0_47 = arith.constant 0 : index
    %c0_48 = arith.constant 0 : index
    %84 = vector.load %arg22[%c0_47, %c0_48] : memref<1x1088xf32, #tpu.memory_space<vmem>>, vector<1x1088xf32>
    %85 = vector.broadcast %84 : vector<1x1088xf32> to vector<16x1088xf32>
    %86 = arith.mulf %83, %85 : vector<16x1088xf32>
    %c0_49 = arith.constant 0 : index
    %c35_50 = arith.constant 35 : index
    %87 = vector.load %arg28[%c0_49, %c35_50] : memref<16x1280xf32, #tpu.memory_space<vmem>>, vector<16x1088xf32>
    tpu.vector_store %arg28[%c0_49, %c35_50], %86 {strides = array<i32>} : memref<16x1280xf32, #tpu.memory_space<vmem>>, vector<16x1088xf32>,
    %c0_51 = arith.constant 0 : index
    %c0_52 = arith.constant 0 : index
    %88 = vector.load %arg20[%c0_51, %c0_52] : memref<1088x384xbf16, #tpu.memory_space<vmem>>, vector<1088x384xbf16>
    %c0_53 = arith.constant 0 : index
    %c0_54 = arith.constant 0 : index
    %89 = vector.load %arg28[%c0_53, %c0_54] : memref<16x1280xf32, #tpu.memory_space<vmem>>, vector<16x1280xf32>
    %90 = vector.extract_strided_slice %89 {offsets = [0, 0], sizes = [16, 1088], strides = [1, 1]} : vector<16x1280xf32> to vector<16x1088xf32>
    %91 = vector.extract_strided_slice %89 {offsets = [0, 1], sizes = [16, 1088], strides = [1, 1]} : vector<16x1280xf32> to vector<16x1088xf32>
    %92 = vector.extract_strided_slice %89 {offsets = [0, 2], sizes = [16, 1088], strides = [1, 1]} : vector<16x1280xf32> to vector<16x1088xf32>
    %93 = vector.extract_strided_slice %89 {offsets = [0, 34], sizes = [16, 1088], strides = [1, 1]} : vector<16x1280xf32> to vector<16x1088xf32>
    %94 = vector.extract_strided_slice %89 {offsets = [0, 35], sizes = [16, 1088], strides = [1, 1]} : vector<16x1280xf32> to vector<16x1088xf32>
    %95 = vector.extract_strided_slice %89 {offsets = [0, 36], sizes = [16, 1088], strides = [1, 1]} : vector<16x1280xf32> to vector<16x1088xf32>
    %96 = vector.extract_strided_slice %89 {offsets = [0, 68], sizes = [16, 1088], strides = [1, 1]} : vector<16x1280xf32> to vector<16x1088xf32>
    %97 = vector.extract_strided_slice %89 {offsets = [0, 69], sizes = [16, 1088], strides = [1, 1]} : vector<16x1280xf32> to vector<16x1088xf32>
    %98 = vector.extract_strided_slice %89 {offsets = [0, 70], sizes = [16, 1088], strides = [1, 1]} : vector<16x1280xf32> to vector<16x1088xf32>
    %99 = tpu.concatenate %90, %91, %92, %93, %94, %95, %96, %97, %98 in 0 : vector<16x1088xf32>, vector<16x1088xf32>, vector<16x1088xf32>, vector<16x1088xf32>, vector<16x1088xf32>, vector<16x1088xf32>, vector<16x1088xf32>, vector<16x1088xf32>, vector<16x1088xf32> -> vector<144x1088xf32>
    %100 = arith.truncf %99 : vector<144x1088xf32> to vector<144x1088xbf16>
    %c0_55 = arith.constant 0 : index
    %c0_56 = arith.constant 0 : index
    %101 = vector.load %arg5[%c0_55, %c0_56] : memref<32x144xbf16, #tpu.memory_space<vmem>>, vector<32x144xbf16>
    %cst_57 = arith.constant dense<0.000000e+00> : vector<32x1088xf32>
    %102 = tpu.matmul %101, %100, %cst_57 {dimension_numbers = #tpu.dot_dimension_numbers<[1], [0], [0], [1], [0, 0, 1, 1], [], []>} : vector<32x144xbf16>, vector<144x1088xbf16>, vector<32x1088xf32> -> vector<32x1088xf32>
    %c0_58 = arith.constant 0 : index
    %c0_59 = arith.constant 0 : index
    %103 = vector.load %arg14[%c0_58, %c0_59] : memref<32x2xf32, #tpu.memory_space<vmem>>, vector<32x1xf32>
    %104 = vector.broadcast %103 : vector<32x1xf32> to vector<32x1088xf32>
    %105 = arith.mulf %102, %104 : vector<32x1088xf32>
    %c0_60 = arith.constant 0 : index
    %c1_61 = arith.constant 1 : index
    %106 = vector.load %arg14[%c0_60, %c1_61] : memref<32x2xf32, #tpu.memory_space<vmem>>, vector<32x1xf32>
    %107 = vector.broadcast %106 : vector<32x1xf32> to vector<32x1088xf32>
    %108 = arith.addf %105, %107 : vector<32x1088xf32>
    %cst_62 = arith.constant 0.000000e+00 : f32
    %109 = vector.broadcast %cst_62 : f32 to vector<32x1088xf32>
    %110 = arith.maximumf %108, %109 : vector<32x1088xf32>
    %111 = arith.truncf %110 : vector<32x1088xf32> to vector<32x1088xbf16>
    %cst_63 = arith.constant dense<0.000000e+00> : vector<32x384xf32>
    %112 = tpu.matmul %111, %88, %cst_63 {dimension_numbers = #tpu.dot_dimension_numbers<[1], [0], [0], [1], [0, 0, 1, 1], [], []>} : vector<32x1088xbf16>, vector<1088x384xbf16>, vector<32x384xf32> -> vector<32x384xf32>
    %c0_64 = arith.constant 0 : index
    %c0_65 = arith.constant 0 : index
    %113 = vector.load %arg29[%c0_64, %c0_65] : memref<32x384xf32, #tpu.memory_space<vmem>>, vector<32x384xf32>
    tpu.vector_store %arg29[%c0_64, %c0_65], %112 {strides = array<i32>} : memref<32x384xf32, #tpu.memory_space<vmem>>, vector<32x384xf32>,
    %114 = arith.truncf %83 : vector<16x1088xf32> to vector<16x1088xbf16>
    %cst_66 = arith.constant dense<0.000000e+00> : vector<16x384xf32>
    %115 = tpu.matmul %114, %88, %cst_66 {dimension_numbers = #tpu.dot_dimension_numbers<[1], [0], [0], [1], [0, 0, 1, 1], [], []>} : vector<16x1088xbf16>, vector<1088x384xbf16>, vector<16x384xf32> -> vector<16x384xf32>
    %c0_67 = arith.constant 0 : index
    %c0_68 = arith.constant 0 : index
    %116 = vector.load %arg7[%c0_67, %c0_68] : memref<32x16xbf16, #tpu.memory_space<vmem>>, vector<32x16xbf16>
    %117 = arith.truncf %115 : vector<16x384xf32> to vector<16x384xbf16>
    %cst_69 = arith.constant dense<0.000000e+00> : vector<32x384xf32>
    %118 = tpu.matmul %116, %117, %cst_69 {dimension_numbers = #tpu.dot_dimension_numbers<[1], [0], [0], [1], [0, 0, 1, 1], [], []>} : vector<32x16xbf16>, vector<16x384xbf16>, vector<32x384xf32> -> vector<32x384xf32>
    %c0_70 = arith.constant 0 : index
    %c0_71 = arith.constant 0 : index
    %119 = vector.load %arg29[%c0_70, %c0_71] : memref<32x384xf32, #tpu.memory_space<vmem>>, vector<32x384xf32>
    %120 = vector.extract_strided_slice %119 {offsets = [0, 0], sizes = [32, 288], strides = [1, 1]} : vector<32x384xf32> to vector<32x288xf32>
    %121 = vector.extract_strided_slice %119 {offsets = [0, 1], sizes = [32, 288], strides = [1, 1]} : vector<32x384xf32> to vector<32x288xf32>
    %122 = vector.extract_strided_slice %119 {offsets = [0, 2], sizes = [32, 288], strides = [1, 1]} : vector<32x384xf32> to vector<32x288xf32>
    %123 = vector.extract_strided_slice %119 {offsets = [0, 18], sizes = [32, 288], strides = [1, 1]} : vector<32x384xf32> to vector<32x288xf32>
    %124 = vector.extract_strided_slice %119 {offsets = [0, 19], sizes = [32, 288], strides = [1, 1]} : vector<32x384xf32> to vector<32x288xf32>
    %125 = vector.extract_strided_slice %119 {offsets = [0, 20], sizes = [32, 288], strides = [1, 1]} : vector<32x384xf32> to vector<32x288xf32>
    %126 = vector.extract_strided_slice %119 {offsets = [0, 36], sizes = [32, 288], strides = [1, 1]} : vector<32x384xf32> to vector<32x288xf32>
    %127 = vector.extract_strided_slice %119 {offsets = [0, 37], sizes = [32, 288], strides = [1, 1]} : vector<32x384xf32> to vector<32x288xf32>
    %128 = vector.extract_strided_slice %119 {offsets = [0, 38], sizes = [32, 288], strides = [1, 1]} : vector<32x384xf32> to vector<32x288xf32>
    %129 = tpu.concatenate %120, %121, %122, %123, %124, %125, %126, %127, %128 in 0 : vector<32x288xf32>, vector<32x288xf32>, vector<32x288xf32>, vector<32x288xf32>, vector<32x288xf32>, vector<32x288xf32>, vector<32x288xf32>, vector<32x288xf32>, vector<32x288xf32> -> vector<288x288xf32>
    %130 = arith.truncf %129 : vector<288x288xf32> to vector<288x288xbf16>
    %c0_72 = arith.constant 0 : index
    %c0_73 = arith.constant 0 : index
    %131 = vector.load %arg6[%c0_72, %c0_73] : memref<32x288xbf16, #tpu.memory_space<vmem>>, vector<32x288xbf16>
    %cst_74 = arith.constant dense<0.000000e+00> : vector<32x288xf32>
    %132 = tpu.matmul %131, %130, %cst_74 {dimension_numbers = #tpu.dot_dimension_numbers<[1], [0], [0], [1], [0, 0, 1, 1], [], []>} : vector<32x288xbf16>, vector<288x288xbf16>, vector<32x288xf32> -> vector<32x288xf32>
    %133 = vector.extract_strided_slice %118 {offsets = [0, 19], sizes = [32, 288], strides = [1, 1]} : vector<32x384xf32> to vector<32x288xf32>
    %134 = arith.addf %132, %133 : vector<32x288xf32>
    %c0_75 = arith.constant 0 : index
    %c0_76 = arith.constant 0 : index
    %135 = vector.load %arg15[%c0_75, %c0_76] : memref<32x2xf32, #tpu.memory_space<vmem>>, vector<32x1xf32>
    %136 = vector.broadcast %135 : vector<32x1xf32> to vector<32x288xf32>
    %137 = arith.mulf %134, %136 : vector<32x288xf32>
    %c0_77 = arith.constant 0 : index
    %c1_78 = arith.constant 1 : index
    %138 = vector.load %arg15[%c0_77, %c1_78] : memref<32x2xf32, #tpu.memory_space<vmem>>, vector<32x1xf32>
    %139 = vector.broadcast %138 : vector<32x1xf32> to vector<32x288xf32>
    %140 = arith.addf %137, %139 : vector<32x288xf32>
    %cst_79 = arith.constant 0.000000e+00 : f32
    %141 = vector.broadcast %cst_79 : f32 to vector<32x288xf32>
    %142 = arith.maximumf %140, %141 : vector<32x288xf32>
    %c0_80 = arith.constant 0 : index
    %c0_81 = arith.constant 0 : index
    %143 = vector.load %arg23[%c0_80, %c0_81] : memref<1x288xf32, #tpu.memory_space<vmem>>, vector<1x288xf32>
    %144 = vector.broadcast %143 : vector<1x288xf32> to vector<32x288xf32>
    %145 = arith.mulf %142, %144 : vector<32x288xf32>
    %c0_82 = arith.constant 0 : index
    %c19 = arith.constant 19 : index
    %146 = vector.load %arg30[%c0_82, %c19] : memref<32x384xf32, #tpu.memory_space<vmem>>, vector<32x288xf32>
    tpu.vector_store %arg30[%c0_82, %c19], %145 {strides = array<i32>} : memref<32x384xf32, #tpu.memory_space<vmem>>, vector<32x288xf32>,
    %c0_83 = arith.constant 0 : index
    %c0_84 = arith.constant 0 : index
    %147 = vector.load %arg21[%c0_83, %c0_84] : memref<288x128xbf16, #tpu.memory_space<vmem>>, vector<288x128xbf16>
    %c0_85 = arith.constant 0 : index
    %c0_86 = arith.constant 0 : index
    %148 = vector.load %arg30[%c0_85, %c0_86] : memref<32x384xf32, #tpu.memory_space<vmem>>, vector<32x384xf32>
    %149 = vector.extract_strided_slice %148 {offsets = [0, 0], sizes = [32, 288], strides = [1, 1]} : vector<32x384xf32> to vector<32x288xf32>
    %150 = vector.extract_strided_slice %148 {offsets = [0, 1], sizes = [32, 288], strides = [1, 1]} : vector<32x384xf32> to vector<32x288xf32>
    %151 = vector.extract_strided_slice %148 {offsets = [0, 2], sizes = [32, 288], strides = [1, 1]} : vector<32x384xf32> to vector<32x288xf32>
    %152 = vector.extract_strided_slice %148 {offsets = [0, 18], sizes = [32, 288], strides = [1, 1]} : vector<32x384xf32> to vector<32x288xf32>
    %153 = vector.extract_strided_slice %148 {offsets = [0, 19], sizes = [32, 288], strides = [1, 1]} : vector<32x384xf32> to vector<32x288xf32>
    %154 = vector.extract_strided_slice %148 {offsets = [0, 20], sizes = [32, 288], strides = [1, 1]} : vector<32x384xf32> to vector<32x288xf32>
    %155 = vector.extract_strided_slice %148 {offsets = [0, 36], sizes = [32, 288], strides = [1, 1]} : vector<32x384xf32> to vector<32x288xf32>
    %156 = vector.extract_strided_slice %148 {offsets = [0, 37], sizes = [32, 288], strides = [1, 1]} : vector<32x384xf32> to vector<32x288xf32>
    %157 = vector.extract_strided_slice %148 {offsets = [0, 38], sizes = [32, 288], strides = [1, 1]} : vector<32x384xf32> to vector<32x288xf32>
    %158 = tpu.concatenate %149, %150, %151, %152, %153, %154, %155, %156, %157 in 0 : vector<32x288xf32>, vector<32x288xf32>, vector<32x288xf32>, vector<32x288xf32>, vector<32x288xf32>, vector<32x288xf32>, vector<32x288xf32>, vector<32x288xf32>, vector<32x288xf32> -> vector<288x288xf32>
    %159 = arith.truncf %158 : vector<288x288xf32> to vector<288x288xbf16>
    %c0_87 = arith.constant 0 : index
    %c0_88 = arith.constant 0 : index
    %160 = vector.load %arg8[%c0_87, %c0_88] : memref<64x288xbf16, #tpu.memory_space<vmem>>, vector<64x288xbf16>
    %cst_89 = arith.constant dense<0.000000e+00> : vector<64x288xf32>
    %161 = tpu.matmul %160, %159, %cst_89 {dimension_numbers = #tpu.dot_dimension_numbers<[1], [0], [0], [1], [0, 0, 1, 1], [], []>} : vector<64x288xbf16>, vector<288x288xbf16>, vector<64x288xf32> -> vector<64x288xf32>
    %c0_90 = arith.constant 0 : index
    %c0_91 = arith.constant 0 : index
    %162 = vector.load %arg16[%c0_90, %c0_91] : memref<64x2xf32, #tpu.memory_space<vmem>>, vector<64x1xf32>
    %163 = vector.broadcast %162 : vector<64x1xf32> to vector<64x288xf32>
    %164 = arith.mulf %161, %163 : vector<64x288xf32>
    %c0_92 = arith.constant 0 : index
    %c1_93 = arith.constant 1 : index
    %165 = vector.load %arg16[%c0_92, %c1_93] : memref<64x2xf32, #tpu.memory_space<vmem>>, vector<64x1xf32>
    %166 = vector.broadcast %165 : vector<64x1xf32> to vector<64x288xf32>
    %167 = arith.addf %164, %166 : vector<64x288xf32>
    %cst_94 = arith.constant 0.000000e+00 : f32
    %168 = vector.broadcast %cst_94 : f32 to vector<64x288xf32>
    %169 = arith.maximumf %167, %168 : vector<64x288xf32>
    %170 = arith.truncf %169 : vector<64x288xf32> to vector<64x288xbf16>
    %cst_95 = arith.constant dense<0.000000e+00> : vector<64x128xf32>
    %171 = tpu.matmul %170, %147, %cst_95 {dimension_numbers = #tpu.dot_dimension_numbers<[1], [0], [0], [1], [0, 0, 1, 1], [], []>} : vector<64x288xbf16>, vector<288x128xbf16>, vector<64x128xf32> -> vector<64x128xf32>
    %c0_96 = arith.constant 0 : index
    %c0_97 = arith.constant 0 : index
    %172 = vector.load %arg31[%c0_96, %c0_97] : memref<64x128xf32, #tpu.memory_space<vmem>>, vector<64x128xf32>
    tpu.vector_store %arg31[%c0_96, %c0_97], %171 {strides = array<i32>} : memref<64x128xf32, #tpu.memory_space<vmem>>, vector<64x128xf32>,
    %173 = arith.truncf %142 : vector<32x288xf32> to vector<32x288xbf16>
    %cst_98 = arith.constant dense<0.000000e+00> : vector<32x128xf32>
    %174 = tpu.matmul %173, %147, %cst_98 {dimension_numbers = #tpu.dot_dimension_numbers<[1], [0], [0], [1], [0, 0, 1, 1], [], []>} : vector<32x288xbf16>, vector<288x128xbf16>, vector<32x128xf32> -> vector<32x128xf32>
    %c0_99 = arith.constant 0 : index
    %c0_100 = arith.constant 0 : index
    %175 = vector.load %arg10[%c0_99, %c0_100] : memref<64x32xbf16, #tpu.memory_space<vmem>>, vector<64x32xbf16>
    %176 = arith.truncf %174 : vector<32x128xf32> to vector<32x128xbf16>
    %cst_101 = arith.constant dense<0.000000e+00> : vector<64x128xf32>
    %177 = tpu.matmul %175, %176, %cst_101 {dimension_numbers = #tpu.dot_dimension_numbers<[1], [0], [0], [1], [0, 0, 1, 1], [], []>} : vector<64x32xbf16>, vector<32x128xbf16>, vector<64x128xf32> -> vector<64x128xf32>
    %c0_102 = arith.constant 0 : index
    %c0_103 = arith.constant 0 : index
    %178 = vector.load %arg31[%c0_102, %c0_103] : memref<64x128xf32, #tpu.memory_space<vmem>>, vector<64x128xf32>
    %179 = vector.extract_strided_slice %178 {offsets = [0, 0], sizes = [64, 80], strides = [1, 1]} : vector<64x128xf32> to vector<64x80xf32>
    %180 = vector.extract_strided_slice %178 {offsets = [0, 1], sizes = [64, 80], strides = [1, 1]} : vector<64x128xf32> to vector<64x80xf32>
    %181 = vector.extract_strided_slice %178 {offsets = [0, 2], sizes = [64, 80], strides = [1, 1]} : vector<64x128xf32> to vector<64x80xf32>
    %182 = vector.extract_strided_slice %178 {offsets = [0, 10], sizes = [64, 80], strides = [1, 1]} : vector<64x128xf32> to vector<64x80xf32>
    %183 = vector.extract_strided_slice %178 {offsets = [0, 11], sizes = [64, 80], strides = [1, 1]} : vector<64x128xf32> to vector<64x80xf32>
    %184 = vector.extract_strided_slice %178 {offsets = [0, 12], sizes = [64, 80], strides = [1, 1]} : vector<64x128xf32> to vector<64x80xf32>
    %185 = vector.extract_strided_slice %178 {offsets = [0, 20], sizes = [64, 80], strides = [1, 1]} : vector<64x128xf32> to vector<64x80xf32>
    %186 = vector.extract_strided_slice %178 {offsets = [0, 21], sizes = [64, 80], strides = [1, 1]} : vector<64x128xf32> to vector<64x80xf32>
    %187 = vector.extract_strided_slice %178 {offsets = [0, 22], sizes = [64, 80], strides = [1, 1]} : vector<64x128xf32> to vector<64x80xf32>
    %188 = tpu.concatenate %179, %180, %181, %182, %183, %184, %185, %186, %187 in 0 : vector<64x80xf32>, vector<64x80xf32>, vector<64x80xf32>, vector<64x80xf32>, vector<64x80xf32>, vector<64x80xf32>, vector<64x80xf32>, vector<64x80xf32>, vector<64x80xf32> -> vector<576x80xf32>
    %189 = arith.truncf %188 : vector<576x80xf32> to vector<576x80xbf16>
    %c0_104 = arith.constant 0 : index
    %c0_105 = arith.constant 0 : index
    %190 = vector.load %arg9[%c0_104, %c0_105] : memref<64x576xbf16, #tpu.memory_space<vmem>>, vector<64x576xbf16>
    %cst_106 = arith.constant dense<0.000000e+00> : vector<64x80xf32>
    %191 = tpu.matmul %190, %189, %cst_106 {dimension_numbers = #tpu.dot_dimension_numbers<[1], [0], [0], [1], [0, 0, 1, 1], [], []>} : vector<64x576xbf16>, vector<576x80xbf16>, vector<64x80xf32> -> vector<64x80xf32>
    %192 = vector.extract_strided_slice %177 {offsets = [0, 11], sizes = [64, 80], strides = [1, 1]} : vector<64x128xf32> to vector<64x80xf32>
    %193 = arith.addf %191, %192 : vector<64x80xf32>
    %c0_107 = arith.constant 0 : index
    %c0_108 = arith.constant 0 : index
    %194 = vector.load %arg17[%c0_107, %c0_108] : memref<64x2xf32, #tpu.memory_space<vmem>>, vector<64x1xf32>
    %195 = vector.broadcast %194 : vector<64x1xf32> to vector<64x80xf32>
    %196 = arith.mulf %193, %195 : vector<64x80xf32>
    %c0_109 = arith.constant 0 : index
    %c1_110 = arith.constant 1 : index
    %197 = vector.load %arg17[%c0_109, %c1_110] : memref<64x2xf32, #tpu.memory_space<vmem>>, vector<64x1xf32>
    %198 = vector.broadcast %197 : vector<64x1xf32> to vector<64x80xf32>
    %199 = arith.addf %196, %198 : vector<64x80xf32>
    %cst_111 = arith.constant 0.000000e+00 : f32
    %200 = vector.broadcast %cst_111 : f32 to vector<64x80xf32>
    %201 = arith.maximumf %199, %200 : vector<64x80xf32>
    %c0_112 = arith.constant 0 : index
    %c0_113 = arith.constant 0 : index
    %202 = vector.load %arg18[%c0_112, %c0_113] : memref<10x64xf32, #tpu.memory_space<vmem>>, vector<10x64xf32>
    %cst_114 = arith.constant dense<0.000000e+00> : vector<10x80xf32>
    %203 = tpu.matmul %202, %201, %cst_114 {dimension_numbers = #tpu.dot_dimension_numbers<[1], [0], [0], [1], [0, 0, 1, 1], [], []>} : vector<10x64xf32>, vector<64x80xf32>, vector<10x80xf32> -> vector<10x80xf32>
    %c0_115 = arith.constant 0 : index
    %c0_116 = arith.constant 0 : index
    %204 = vector.load %arg24[%c0_115, %c0_116] : memref<1x80xf32, #tpu.memory_space<vmem>>, vector<1x80xf32>
    %205 = vector.broadcast %204 : vector<1x80xf32> to vector<10x80xf32>
    %206 = arith.mulf %203, %205 : vector<10x80xf32>
    %cst_117 = arith.constant dense<0.000000e+00> : vector<10xf32>
    %207 = vector.multi_reduction <add>, %206, %cst_117 [1] : vector<10x80xf32> to vector<10xf32>
    %208 = vector.shape_cast %207 : vector<10xf32> to vector<10x1xf32>
    %cst_118 = arith.constant 1.562500e-02 : f32
    %209 = vector.broadcast %cst_118 : f32 to vector<10x1xf32>
    %210 = arith.mulf %208, %209 : vector<10x1xf32>
    %c0_119 = arith.constant 0 : index
    %c0_120 = arith.constant 0 : index
    %211 = vector.load %arg19[%c0_119, %c0_120] : memref<10x1xf32, #tpu.memory_space<vmem>>, vector<10x1xf32>
    %212 = arith.addf %210, %211 : vector<10x1xf32>
    %c0_121 = arith.constant 0 : index
    %c0_122 = arith.constant 0 : index
    %c0_123 = arith.constant 0 : index
    %213 = vector.load %arg25[%c0_121, %c0_122, %c0_123] : memref<1x10x1xf32, #tpu.memory_space<vmem>>, vector<1x10x1xf32>
    %214 = vector.shape_cast %213 : vector<1x10x1xf32> to vector<10x1xf32>
    %215 = vector.shape_cast %212 : vector<10x1xf32> to vector<1x10x1xf32>
    tpu.vector_store %arg25[%c0_121, %c0_122, %c0_123], %215 {strides = array<i32>} : memref<1x10x1xf32, #tpu.memory_space<vmem>>, vector<1x10x1xf32>,
    return
  }
  func.func @transform_0(%arg0: i32) -> (i32, i32, i32) {
    %c0_i32 = arith.constant 0 : i32
    %c0_i32_0 = arith.constant 0 : i32
    %c0_i32_1 = arith.constant 0 : i32
    return %arg0, %c0_i32, %c0_i32_0 : i32, i32, i32
  }
  func.func @transform_1(%arg0: i32) -> (i32, i32) {
    %c0_i32 = arith.constant 0 : i32
    %c0_i32_0 = arith.constant 0 : i32
    %c0_i32_1 = arith.constant 0 : i32
    return %c0_i32, %c0_i32_0 : i32, i32
  }
  func.func @transform_2(%arg0: i32) -> (i32, i32) {
    %c0_i32 = arith.constant 0 : i32
    %c0_i32_0 = arith.constant 0 : i32
    %c0_i32_1 = arith.constant 0 : i32
    return %c0_i32, %c0_i32_0 : i32, i32
  }
  func.func @transform_3(%arg0: i32) -> (i32, i32) {
    %c0_i32 = arith.constant 0 : i32
    %c0_i32_0 = arith.constant 0 : i32
    %c0_i32_1 = arith.constant 0 : i32
    return %c0_i32, %c0_i32_0 : i32, i32
  }
  func.func @transform_4(%arg0: i32) -> (i32, i32) {
    %c0_i32 = arith.constant 0 : i32
    %c0_i32_0 = arith.constant 0 : i32
    %c0_i32_1 = arith.constant 0 : i32
    return %c0_i32, %c0_i32_0 : i32, i32
  }
  func.func @transform_5(%arg0: i32) -> (i32, i32) {
    %c0_i32 = arith.constant 0 : i32
    %c0_i32_0 = arith.constant 0 : i32
    %c0_i32_1 = arith.constant 0 : i32
    return %c0_i32, %c0_i32_0 : i32, i32
  }
  func.func @transform_6(%arg0: i32) -> (i32, i32) {
    %c0_i32 = arith.constant 0 : i32
    %c0_i32_0 = arith.constant 0 : i32
    %c0_i32_1 = arith.constant 0 : i32
    return %c0_i32, %c0_i32_0 : i32, i32
  }
  func.func @transform_7(%arg0: i32) -> (i32, i32) {
    %c0_i32 = arith.constant 0 : i32
    %c0_i32_0 = arith.constant 0 : i32
    %c0_i32_1 = arith.constant 0 : i32
    return %c0_i32, %c0_i32_0 : i32, i32
  }
  func.func @transform_8(%arg0: i32) -> (i32, i32) {
    %c0_i32 = arith.constant 0 : i32
    %c0_i32_0 = arith.constant 0 : i32
    %c0_i32_1 = arith.constant 0 : i32
    return %c0_i32, %c0_i32_0 : i32, i32
  }
  func.func @transform_9(%arg0: i32) -> (i32, i32) {
    %c0_i32 = arith.constant 0 : i32
    %c0_i32_0 = arith.constant 0 : i32
    %c0_i32_1 = arith.constant 0 : i32
    return %c0_i32, %c0_i32_0 : i32, i32
  }
  func.func @transform_10(%arg0: i32) -> (i32, i32) {
    %c0_i32 = arith.constant 0 : i32
    %c0_i32_0 = arith.constant 0 : i32
    %c0_i32_1 = arith.constant 0 : i32
    return %c0_i32, %c0_i32_0 : i32, i32
  }
  func.func @transform_11(%arg0: i32) -> (i32, i32) {
    %c0_i32 = arith.constant 0 : i32
    %c0_i32_0 = arith.constant 0 : i32
    %c0_i32_1 = arith.constant 0 : i32
    return %c0_i32, %c0_i32_0 : i32, i32
  }
  func.func @transform_12(%arg0: i32) -> (i32, i32) {
    %c0_i32 = arith.constant 0 : i32
    %c0_i32_0 = arith.constant 0 : i32
    %c0_i32_1 = arith.constant 0 : i32
    return %c0_i32, %c0_i32_0 : i32, i32
  }
  func.func @transform_13(%arg0: i32) -> (i32, i32) {
    %c0_i32 = arith.constant 0 : i32
    %c0_i32_0 = arith.constant 0 : i32
    %c0_i32_1 = arith.constant 0 : i32
    return %c0_i32, %c0_i32_0 : i32, i32
  }
  func.func @transform_14(%arg0: i32) -> (i32, i32) {
    %c0_i32 = arith.constant 0 : i32
    %c0_i32_0 = arith.constant 0 : i32
    %c0_i32_1 = arith.constant 0 : i32
    return %c0_i32, %c0_i32_0 : i32, i32
  }
  func.func @transform_15(%arg0: i32) -> (i32, i32) {
    %c0_i32 = arith.constant 0 : i32
    %c0_i32_0 = arith.constant 0 : i32
    %c0_i32_1 = arith.constant 0 : i32
    return %c0_i32, %c0_i32_0 : i32, i32
  }
  func.func @transform_16(%arg0: i32) -> (i32, i32) {
    %c0_i32 = arith.constant 0 : i32
    %c0_i32_0 = arith.constant 0 : i32
    %c0_i32_1 = arith.constant 0 : i32
    return %c0_i32, %c0_i32_0 : i32, i32
  }
  func.func @transform_17(%arg0: i32) -> (i32, i32) {
    %c0_i32 = arith.constant 0 : i32
    %c0_i32_0 = arith.constant 0 : i32
    %c0_i32_1 = arith.constant 0 : i32
    return %c0_i32, %c0_i32_0 : i32, i32
  }
  func.func @transform_18(%arg0: i32) -> (i32, i32) {
    %c0_i32 = arith.constant 0 : i32
    %c0_i32_0 = arith.constant 0 : i32
    %c0_i32_1 = arith.constant 0 : i32
    return %c0_i32, %c0_i32_0 : i32, i32
  }
  func.func @transform_19(%arg0: i32) -> (i32, i32) {
    %c0_i32 = arith.constant 0 : i32
    %c0_i32_0 = arith.constant 0 : i32
    %c0_i32_1 = arith.constant 0 : i32
    return %c0_i32, %c0_i32_0 : i32, i32
  }
  func.func @transform_20(%arg0: i32) -> (i32, i32) {
    %c0_i32 = arith.constant 0 : i32
    %c0_i32_0 = arith.constant 0 : i32
    %c0_i32_1 = arith.constant 0 : i32
    return %c0_i32, %c0_i32_0 : i32, i32
  }
  func.func @transform_21(%arg0: i32) -> (i32, i32) {
    %c0_i32 = arith.constant 0 : i32
    %c0_i32_0 = arith.constant 0 : i32
    %c0_i32_1 = arith.constant 0 : i32
    return %c0_i32, %c0_i32_0 : i32, i32
  }
  func.func @transform_22(%arg0: i32) -> (i32, i32) {
    %c0_i32 = arith.constant 0 : i32
    %c0_i32_0 = arith.constant 0 : i32
    %c0_i32_1 = arith.constant 0 : i32
    return %c0_i32, %c0_i32_0 : i32, i32
  }
  func.func @transform_23(%arg0: i32) -> (i32, i32) {
    %c0_i32 = arith.constant 0 : i32
    %c0_i32_0 = arith.constant 0 : i32
    %c0_i32_1 = arith.constant 0 : i32
    return %c0_i32, %c0_i32_0 : i32, i32
  }
  func.func @transform_24(%arg0: i32) -> (i32, i32, i32) {
    %c0_i32 = arith.constant 0 : i32
    %c0_i32_0 = arith.constant 0 : i32
    %c0_i32_1 = arith.constant 0 : i32
    return %arg0, %c0_i32, %c0_i32_0 : i32, i32, i32
  }
}

</mosaic_0001>

<llo_original>
// kernel: wideresnet_forward.1
$region0: #{wideresnet_forward.1}
  #allocation0 [shape = 'u32[]', space=smem, size = 0x4, offset = 0x4, fixed_abs, tag = 'smem constant byte address 0x4 - core index']
  #allocation1 [shape = 'u32[144,128]{1,0:T(1,128)}', space=vmem, size = 0x12000, scoped, tag = 'internal scratch']
  #allocation2 [shape = 'f32[16,1280]{1,0:T(8,128)}', space=vmem, size = 0x14000, scoped, tag = 'scratch operand']
  #allocation3 [shape = 'f32[16,1280]{1,0:T(8,128)}', space=vmem, size = 0x14000, scoped, tag = 'scratch operand']
  #allocation4 [shape = 'f32[16,1280]{1,0:T(8,128)}', space=vmem, size = 0x14000, scoped, tag = 'scratch operand']
  #allocation5 [shape = 'f32[32,384]{1,0:T(8,128)}', space=vmem, size = 0xc000, scoped, tag = 'scratch operand']
  #allocation6 [shape = 'f32[32,384]{1,0:T(8,128)}', space=vmem, size = 0xc000, scoped, tag = 'scratch operand']
  #allocation7 [shape = 'f32[64,128]{1,0:T(8,128)}', space=vmem, size = 0x8000, scoped, tag = 'scratch operand']
  %s0 = inlined_call_operand.vmem [shape: f32[2,8,1280], index: 0, kind: input, shape index: {}]
  %s1 = inlined_call_operand.vmem [shape: bf16[16,72], index: 1, kind: input, shape index: {}]
  %s2 = inlined_call_operand.vmem [shape: bf16[16,144], index: 2, kind: input, shape index: {}]
  %s3 = inlined_call_operand.vmem [shape: bf16[16,144], index: 3, kind: input, shape index: {}]
  %s4 = inlined_call_operand.vmem [shape: bf16[32,144], index: 4, kind: input, shape index: {}]
  %s5 = inlined_call_operand.vmem [shape: bf16[32,288], index: 5, kind: input, shape index: {}]
  %s6 = inlined_call_operand.vmem [shape: bf16[32,16], index: 6, kind: input, shape index: {}]
  %s7 = inlined_call_operand.vmem [shape: bf16[64,288], index: 7, kind: input, shape index: {}]
  %s8 = inlined_call_operand.vmem [shape: bf16[64,576], index: 8, kind: input, shape index: {}]
  %s9 = inlined_call_operand.vmem [shape: bf16[64,32], index: 9, kind: input, shape index: {}]
  %s10 = inlined_call_operand.vmem [shape: f32[16,2], index: 10, kind: input, shape index: {}]
  %s11 = inlined_call_operand.vmem [shape: f32[16,2], index: 11, kind: input, shape index: {}]
  %s12 = inlined_call_operand.vmem [shape: f32[16,2], index: 12, kind: input, shape index: {}]
  %s13 = inlined_call_operand.vmem [shape: f32[32,2], index: 13, kind: input, shape index: {}]
  %s14 = inlined_call_operand.vmem [shape: f32[32,2], index: 14, kind: input, shape index: {}]
  %s15 = inlined_call_operand.vmem [shape: f32[64,2], index: 15, kind: input, shape index: {}]
  %s16 = inlined_call_operand.vmem [shape: f32[64,2], index: 16, kind: input, shape index: {}]
  %s17 = inlined_call_operand.vmem [shape: f32[10,64], index: 17, kind: input, shape index: {}]
  %s18 = inlined_call_operand.vmem [shape: f32[10,1], index: 18, kind: input, shape index: {}]
  %s19 = inlined_call_operand.vmem [shape: bf16[1088,384], index: 19, kind: input, shape index: {}]
  %s20 = inlined_call_operand.vmem [shape: bf16[288,128], index: 20, kind: input, shape index: {}]
  %s21 = inlined_call_operand.vmem [shape: f32[1,1088], index: 21, kind: input, shape index: {}]
  %s22 = inlined_call_operand.vmem [shape: f32[1,288], index: 22, kind: input, shape index: {}]
  %s23 = inlined_call_operand.vmem [shape: f32[1,80], index: 23, kind: input, shape index: {}]
  %s24 = inlined_call_operand.vmem [shape: f32[2,10,1], index: 24, kind: output, shape index: {}]
  %s25 = sld [smem:[#allocation0]]
  $region129: #{wideresnet_forward.1} parent=0
    _
  %s27 = ssub.s32 1, %s25
  %s28 = scalar_select 0, %s27, %s25
  loop: start=0, step=1, limit=4
  $region2: #{wideresnet_forward.1} parent=0 // loop_pre_header
    _
  $region3: #{wideresnet_forward.1} parent=0 // loop_header
    %s30 = sphi 0, %s34
    %p31 = scmp.ge.s32.totalorder %s30, 4
    %s40 = sphi 0, %s42
    %s43 = sphi 0, %s40
    %s44 = sphi 0, %s43
    %s60 = sphi 0, %s44
    %s64 = sphi 0, %s64
    %s66 = sphi 0, %s64
    %s67 = sphi 0, %s66
    %s81 = sphi 0, %s67
    %s85 = sphi 0, %s85
    %s87 = sphi 0, %s85
    %s88 = sphi 0, %s87
    %s102 = sphi 0, %s88
    %s106 = sphi 0, %s106
    %s108 = sphi 0, %s106
    %s109 = sphi 0, %s108
    %s123 = sphi 0, %s109
    %s127 = sphi 0, %s127
    %s129 = sphi 0, %s127
    %s130 = sphi 0, %s129
    %s144 = sphi 0, %s130
    %s148 = sphi 0, %s148
    %s150 = sphi 0, %s148
    %s151 = sphi 0, %s150
    %s165 = sphi 0, %s151
    %s169 = sphi 0, %s169
    %s171 = sphi 0, %s169
    %s172 = sphi 0, %s171
    %s186 = sphi 0, %s172
    %s190 = sphi 0, %s190
    %s192 = sphi 0, %s190
    %s193 = sphi 0, %s192
    %s207 = sphi 0, %s193
    %s211 = sphi 0, %s211
    %s213 = sphi 0, %s211
    %s214 = sphi 0, %s213
    %s228 = sphi 0, %s214
    %s232 = sphi 0, %s232
    %s234 = sphi 0, %s232
    %s235 = sphi 0, %s234
    %s249 = sphi 0, %s235
    %s253 = sphi 0, %s253
    %s255 = sphi 0, %s253
    %s256 = sphi 0, %s255
    %s270 = sphi 0, %s256
    %s274 = sphi 0, %s274
    %s276 = sphi 0, %s274
    %s277 = sphi 0, %s276
    %s291 = sphi 0, %s277
    %s295 = sphi 0, %s295
    %s297 = sphi 0, %s295
    %s298 = sphi 0, %s297
    %s312 = sphi 0, %s298
    %s316 = sphi 0, %s316
    %s318 = sphi 0, %s316
    %s319 = sphi 0, %s318
    %s333 = sphi 0, %s319
    %s337 = sphi 0, %s337
    %s339 = sphi 0, %s337
    %s340 = sphi 0, %s339
    %s354 = sphi 0, %s340
    %s358 = sphi 0, %s358
    %s360 = sphi 0, %s358
    %s361 = sphi 0, %s360
    %s375 = sphi 0, %s361
    %s379 = sphi 0, %s379
    %s381 = sphi 0, %s379
    %s382 = sphi 0, %s381
    %s396 = sphi 0, %s382
    %s400 = sphi 0, %s400
    %s402 = sphi 0, %s400
    %s403 = sphi 0, %s402
    %s417 = sphi 0, %s403
    %s421 = sphi 0, %s421
    %s423 = sphi 0, %s421
    %s424 = sphi 0, %s423
    %s438 = sphi 0, %s424
    %s442 = sphi 0, %s442
    %s444 = sphi 0, %s442
    %s445 = sphi 0, %s444
    %s459 = sphi 0, %s445
    %s463 = sphi 0, %s463
    %s465 = sphi 0, %s463
    %s466 = sphi 0, %s465
    %s480 = sphi 0, %s466
    %s484 = sphi 0, %s484
    %s486 = sphi 0, %s484
    %s487 = sphi 0, %s486
    %s501 = sphi 0, %s487
    %s505 = sphi 0, %s505
    %s507 = sphi 0, %s505
    %s508 = sphi 0, %s507
    %s522 = sphi 0, %s508
    %s526 = sphi 0, %s526
    %s528 = sphi 0, %s526
    %s529 = sphi 0, %s528
    %s543 = sphi 0, %s529
    %s549 = sphi 0, %s551
    %s552 = sphi 0, %s549
    %s553 = sphi 0, %s552
    %s569 = sphi 0, %s553
  $region4: #{wideresnet_forward.1} parent=0 // loop_header_branch
    %33 = sbr.rel (%p31) target = $region8
  $region5: #{wideresnet_forward.1} parent=0 // loop_body
    %s35 = ssub.s32 %s30, 1
    %s36 = ssub.s32 %s30, 2
    %s37 = sadd.s32 %s30, 1
    %s38 = ssub.s32 %s30, %s37
    %p39 = scmp.eq.s32.totalorder %s38, 0
    %s41 = sadd.s32 %s40, 1
    %s42 = scalar_select %p39, %s40, %s41
    %p45 = pneg %p39
    %p46 = scmp.eq.s32.totalorder %s30, 1
    %p47 = por %p45, %p46
    %p48 = scmp.ne.s32.totalorder %s40, %s43
    %p49 = scmp.eq.s32.totalorder %s30, 0
    %p50 = por %p48, %p49
    %p51 = scmp.ne.s32.totalorder %s40, %s43
    %p52 = scmp.eq.s32.totalorder %s35, 1
    %p53 = por %p51, %p52
    %p54 = scmp.ne.s32.totalorder %s43, %s44
    %p55 = scmp.eq.s32.totalorder %s35, 0
    %p56 = por %p54, %p55
    %p57 = scmp.ne.s32.totalorder %s43, %s44
    %p58 = scmp.eq.s32.totalorder %s36, 1
    %p59 = por %p57, %p58
    %p61 = scmp.ne.s32.totalorder %s44, %s60
    %p62 = scmp.eq.s32.totalorder %s36, 0
    %p63 = por %p61, %p62
    %s65 = sadd.s32 %s64, 1
    %p68 = scmp.eq.s32.totalorder %s30, 1
    %p69 = scmp.ne.s32.totalorder %s64, %s66
    %p70 = scmp.eq.s32.totalorder %s30, 0
    %p71 = por %p69, %p70
    %p72 = scmp.ne.s32.totalorder %s64, %s66
    %p73 = scmp.eq.s32.totalorder %s35, 1
    %p74 = por %p72, %p73
    %p75 = scmp.ne.s32.totalorder %s66, %s67
    %p76 = scmp.eq.s32.totalorder %s35, 0
    %p77 = por %p75, %p76
    %p78 = scmp.ne.s32.totalorder %s66, %s67
    %p79 = scmp.eq.s32.totalorder %s36, 1
    %p80 = por %p78, %p79
    %p82 = scmp.ne.s32.totalorder %s67, %s81
    %p83 = scmp.eq.s32.totalorder %s36, 0
    %p84 = por %p82, %p83
    %s86 = sadd.s32 %s85, 1
    %p89 = scmp.eq.s32.totalorder %s30, 1
    %p90 = scmp.ne.s32.totalorder %s85, %s87
    %p91 = scmp.eq.s32.totalorder %s30, 0
    %p92 = por %p90, %p91
    %p93 = scmp.ne.s32.totalorder %s85, %s87
    %p94 = scmp.eq.s32.totalorder %s35, 1
    %p95 = por %p93, %p94
    %p96 = scmp.ne.s32.totalorder %s87, %s88
    %p97 = scmp.eq.s32.totalorder %s35, 0
    %p98 = por %p96, %p97
    %p99 = scmp.ne.s32.totalorder %s87, %s88
    %p100 = scmp.eq.s32.totalorder %s36, 1
    %p101 = por %p99, %p100
    %p103 = scmp.ne.s32.totalorder %s88, %s102
    %p104 = scmp.eq.s32.totalorder %s36, 0
    %p105 = por %p103, %p104
    %s107 = sadd.s32 %s106, 1
    %p110 = scmp.eq.s32.totalorder %s30, 1
    %p111 = scmp.ne.s32.totalorder %s106, %s108
    %p112 = scmp.eq.s32.totalorder %s30, 0
    %p113 = por %p111, %p112
    %p114 = scmp.ne.s32.totalorder %s106, %s108
    %p115 = scmp.eq.s32.totalorder %s35, 1
    %p116 = por %p114, %p115
    %p117 = scmp.ne.s32.totalorder %s108, %s109
    %p118 = scmp.eq.s32.totalorder %s35, 0
    %p119 = por %p117, %p118
    %p120 = scmp.ne.s32.totalorder %s108, %s109
    %p121 = scmp.eq.s32.totalorder %s36, 1
    %p122 = por %p120, %p121
    %p124 = scmp.ne.s32.totalorder %s109, %s123
    %p125 = scmp.eq.s32.totalorder %s36, 0
    %p126 = por %p124, %p125
    %s128 = sadd.s32 %s127, 1
    %p131 = scmp.eq.s32.totalorder %s30, 1
    %p132 = scmp.ne.s32.totalorder %s127, %s129
    %p133 = scmp.eq.s32.totalorder %s30, 0
    %p134 = por %p132, %p133
    %p135 = scmp.ne.s32.totalorder %s127, %s129
    %p136 = scmp.eq.s32.totalorder %s35, 1
    %p137 = por %p135, %p136
    %p138 = scmp.ne.s32.totalorder %s129, %s130
    %p139 = scmp.eq.s32.totalorder %s35, 0
    %p140 = por %p138, %p139
    %p141 = scmp.ne.s32.totalorder %s129, %s130
    %p142 = scmp.eq.s32.totalorder %s36, 1
    %p143 = por %p141, %p142
    %p145 = scmp.ne.s32.totalorder %s130, %s144
    %p146 = scmp.eq.s32.totalorder %s36, 0
    %p147 = por %p145, %p146
    %s149 = sadd.s32 %s148, 1
    %p152 = scmp.eq.s32.totalorder %s30, 1
    %p153 = scmp.ne.s32.totalorder %s148, %s150
    %p154 = scmp.eq.s32.totalorder %s30, 0
    %p155 = por %p153, %p154
    %p156 = scmp.ne.s32.totalorder %s148, %s150
    %p157 = scmp.eq.s32.totalorder %s35, 1
    %p158 = por %p156, %p157
    %p159 = scmp.ne.s32.totalorder %s150, %s151
    %p160 = scmp.eq.s32.totalorder %s35, 0
    %p161 = por %p159, %p160
    %p162 = scmp.ne.s32.totalorder %s150, %s151
    %p163 = scmp.eq.s32.totalorder %s36, 1
    %p164 = por %p162, %p163
    %p166 = scmp.ne.s32.totalorder %s151, %s165
    %p167 = scmp.eq.s32.totalorder %s36, 0
    %p168 = por %p166, %p167
    %s170 = sadd.s32 %s169, 1
    %p173 = scmp.eq.s32.totalorder %s30, 1
    %p174 = scmp.ne.s32.totalorder %s169, %s171
    %p175 = scmp.eq.s32.totalorder %s30, 0
    %p176 = por %p174, %p175
    %p177 = scmp.ne.s32.totalorder %s169, %s171
    %p178 = scmp.eq.s32.totalorder %s35, 1
    %p179 = por %p177, %p178
    %p180 = scmp.ne.s32.totalorder %s171, %s172
    %p181 = scmp.eq.s32.totalorder %s35, 0
    %p182 = por %p180, %p181
    %p183 = scmp.ne.s32.totalorder %s171, %s172
    %p184 = scmp.eq.s32.totalorder %s36, 1
    %p185 = por %p183, %p184
    %p187 = scmp.ne.s32.totalorder %s172, %s186
    %p188 = scmp.eq.s32.totalorder %s36, 0
    %p189 = por %p187, %p188
    %s191 = sadd.s32 %s190, 1
    %p194 = scmp.eq.s32.totalorder %s30, 1
    %p195 = scmp.ne.s32.totalorder %s190, %s192
    %p196 = scmp.eq.s32.totalorder %s30, 0
    %p197 = por %p195, %p196
    %p198 = scmp.ne.s32.totalorder %s190, %s192
    %p199 = scmp.eq.s32.totalorder %s35, 1
    %p200 = por %p198, %p199
    %p201 = scmp.ne.s32.totalorder %s192, %s193
    %p202 = scmp.eq.s32.totalorder %s35, 0
    %p203 = por %p201, %p202
    %p204 = scmp.ne.s32.totalorder %s192, %s193
    %p205 = scmp.eq.s32.totalorder %s36, 1
    %p206 = por %p204, %p205
    %p208 = scmp.ne.s32.totalorder %s193, %s207
    %p209 = scmp.eq.s32.totalorder %s36, 0
    %p210 = por %p208, %p209
    %s212 = sadd.s32 %s211, 1
    %p215 = scmp.eq.s32.totalorder %s30, 1
    %p216 = scmp.ne.s32.totalorder %s211, %s213
    %p217 = scmp.eq.s32.totalorder %s30, 0
    %p218 = por %p216, %p217
    %p219 = scmp.ne.s32.totalorder %s211, %s213
    %p220 = scmp.eq.s32.totalorder %s35, 1
    %p221 = por %p219, %p220
    %p222 = scmp.ne.s32.totalorder %s213, %s214
    %p223 = scmp.eq.s32.totalorder %s35, 0
    %p224 = por %p222, %p223
    %p225 = scmp.ne.s32.totalorder %s213, %s214
    %p226 = scmp.eq.s32.totalorder %s36, 1
    %p227 = por %p225, %p226
    %p229 = scmp.ne.s32.totalorder %s214, %s228
    %p230 = scmp.eq.s32.totalorder %s36, 0
    %p231 = por %p229, %p230
    %s233 = sadd.s32 %s232, 1
    %p236 = scmp.eq.s32.totalorder %s30, 1
    %p237 = scmp.ne.s32.totalorder %s232, %s234
    %p238 = scmp.eq.s32.totalorder %s30, 0
    %p239 = por %p237, %p238
    %p240 = scmp.ne.s32.totalorder %s232, %s234
    %p241 = scmp.eq.s32.totalorder %s35, 1
    %p242 = por %p240, %p241
    %p243 = scmp.ne.s32.totalorder %s234, %s235
    %p244 = scmp.eq.s32.totalorder %s35, 0
    %p245 = por %p243, %p244
    %p246 = scmp.ne.s32.totalorder %s234, %s235
    %p247 = scmp.eq.s32.totalorder %s36, 1
    %p248 = por %p246, %p247
    %p250 = scmp.ne.s32.totalorder %s235, %s249
    %p251 = scmp.eq.s32.totalorder %s36, 0
    %p252 = por %p250, %p251
    %s254 = sadd.s32 %s253, 1
    %p257 = scmp.eq.s32.totalorder %s30, 1
    %p258 = scmp.ne.s32.totalorder %s253, %s255
    %p259 = scmp.eq.s32.totalorder %s30, 0
    %p260 = por %p258, %p259
    %p261 = scmp.ne.s32.totalorder %s253, %s255
    %p262 = scmp.eq.s32.totalorder %s35, 1
    %p263 = por %p261, %p262
    %p264 = scmp.ne.s32.totalorder %s255, %s256
    %p265 = scmp.eq.s32.totalorder %s35, 0
    %p266 = por %p264, %p265
    %p267 = scmp.ne.s32.totalorder %s255, %s256
    %p268 = scmp.eq.s32.totalorder %s36, 1
    %p269 = por %p267, %p268
    %p271 = scmp.ne.s32.totalorder %s256, %s270
    %p272 = scmp.eq.s32.totalorder %s36, 0
    %p273 = por %p271, %p272
    %s275 = sadd.s32 %s274, 1
    %p278 = scmp.eq.s32.totalorder %s30, 1
    %p279 = scmp.ne.s32.totalorder %s274, %s276
    %p280 = scmp.eq.s32.totalorder %s30, 0
    %p281 = por %p279, %p280
    %p282 = scmp.ne.s32.totalorder %s274, %s276
    %p283 = scmp.eq.s32.totalorder %s35, 1
    %p284 = por %p282, %p283
    %p285 = scmp.ne.s32.totalorder %s276, %s277
    %p286 = scmp.eq.s32.totalorder %s35, 0
    %p287 = por %p285, %p286
    %p288 = scmp.ne.s32.totalorder %s276, %s277
    %p289 = scmp.eq.s32.totalorder %s36, 1
    %p290 = por %p288, %p289
    %p292 = scmp.ne.s32.totalorder %s277, %s291
    %p293 = scmp.eq.s32.totalorder %s36, 0
    %p294 = por %p292, %p293
    %s296 = sadd.s32 %s295, 1
    %p299 = scmp.eq.s32.totalorder %s30, 1
    %p300 = scmp.ne.s32.totalorder %s295, %s297
    %p301 = scmp.eq.s32.totalorder %s30, 0
    %p302 = por %p300, %p301
    %p303 = scmp.ne.s32.totalorder %s295, %s297
    %p304 = scmp.eq.s32.totalorder %s35, 1
    %p305 = por %p303, %p304
    %p306 = scmp.ne.s32.totalorder %s297, %s298
    %p307 = scmp.eq.s32.totalorder %s35, 0
    %p308 = por %p306, %p307
    %p309 = scmp.ne.s32.totalorder %s297, %s298
    %p310 = scmp.eq.s32.totalorder %s36, 1
    %p311 = por %p309, %p310
    %p313 = scmp.ne.s32.totalorder %s298, %s312
    %p314 = scmp.eq.s32.totalorder %s36, 0
    %p315 = por %p313, %p314
    %s317 = sadd.s32 %s316, 1
    %p320 = scmp.eq.s32.totalorder %s30, 1
    %p321 = scmp.ne.s32.totalorder %s316, %s318
    %p322 = scmp.eq.s32.totalorder %s30, 0
    %p323 = por %p321, %p322
    %p324 = scmp.ne.s32.totalorder %s316, %s318
    %p325 = scmp.eq.s32.totalorder %s35, 1
    %p326 = por %p324, %p325
    %p327 = scmp.ne.s32.totalorder %s318, %s319
    %p328 = scmp.eq.s32.totalorder %s35, 0
    %p329 = por %p327, %p328
    %p330 = scmp.ne.s32.totalorder %s318, %s319
    %p331 = scmp.eq.s32.totalorder %s36, 1
    %p332 = por %p330, %p331
    %p334 = scmp.ne.s32.totalorder %s319, %s333
    %p335 = scmp.eq.s32.totalorder %s36, 0
    %p336 = por %p334, %p335
    %s338 = sadd.s32 %s337, 1
    %p341 = scmp.eq.s32.totalorder %s30, 1
    %p342 = scmp.ne.s32.totalorder %s337, %s339
    %p343 = scmp.eq.s32.totalorder %s30, 0
    %p344 = por %p342, %p343
    %p345 = scmp.ne.s32.totalorder %s337, %s339
    %p346 = scmp.eq.s32.totalorder %s35, 1
    %p347 = por %p345, %p346
    %p348 = scmp.ne.s32.totalorder %s339, %s340
    %p349 = scmp.eq.s32.totalorder %s35, 0
    %p350 = por %p348, %p349
    %p351 = scmp.ne.s32.totalorder %s339, %s340
    %p352 = scmp.eq.s32.totalorder %s36, 1
    %p353 = por %p351, %p352
    %p355 = scmp.ne.s32.totalorder %s340, %s354
    %p356 = scmp.eq.s32.totalorder %s36, 0
    %p357 = por %p355, %p356
    %s359 = sadd.s32 %s358, 1
    %p362 = scmp.eq.s32.totalorder %s30, 1
    %p363 = scmp.ne.s32.totalorder %s358, %s360
    %p364 = scmp.eq.s32.totalorder %s30, 0
    %p365 = por %p363, %p364
    %p366 = scmp.ne.s32.totalorder %s358, %s360
    %p367 = scmp.eq.s32.totalorder %s35, 1
    %p368 = por %p366, %p367
    %p369 = scmp.ne.s32.totalorder %s360, %s361
    %p370 = scmp.eq.s32.totalorder %s35, 0
    %p371 = por %p369, %p370
    %p372 = scmp.ne.s32.totalorder %s360, %s361
    %p373 = scmp.eq.s32.totalorder %s36, 1
    %p374 = por %p372, %p373
    %p376 = scmp.ne.s32.totalorder %s361, %s375
    %p377 = scmp.eq.s32.totalorder %s36, 0
    %p378 = por %p376, %p377
    %s380 = sadd.s32 %s379, 1
    %p383 = scmp.eq.s32.totalorder %s30, 1
    %p384 = scmp.ne.s32.totalorder %s379, %s381
    %p385 = scmp.eq.s32.totalorder %s30, 0
    %p386 = por %p384, %p385
    %p387 = scmp.ne.s32.totalorder %s379, %s381
    %p388 = scmp.eq.s32.totalorder %s35, 1
    %p389 = por %p387, %p388
    %p390 = scmp.ne.s32.totalorder %s381, %s382
    %p391 = scmp.eq.s32.totalorder %s35, 0
    %p392 = por %p390, %p391
    %p393 = scmp.ne.s32.totalorder %s381, %s382
    %p394 = scmp.eq.s32.totalorder %s36, 1
    %p395 = por %p393, %p394
    %p397 = scmp.ne.s32.totalorder %s382, %s396
    %p398 = scmp.eq.s32.totalorder %s36, 0
    %p399 = por %p397, %p398
    %s401 = sadd.s32 %s400, 1
    %p404 = scmp.eq.s32.totalorder %s30, 1
    %p405 = scmp.ne.s32.totalorder %s400, %s402
    %p406 = scmp.eq.s32.totalorder %s30, 0
    %p407 = por %p405, %p406
    %p408 = scmp.ne.s32.totalorder %s400, %s402
    %p409 = scmp.eq.s32.totalorder %s35, 1
    %p410 = por %p408, %p409
    %p411 = scmp.ne.s32.totalorder %s402, %s403
    %p412 = scmp.eq.s32.totalorder %s35, 0
    %p413 = por %p411, %p412
    %p414 = scmp.ne.s32.totalorder %s402, %s403
    %p415 = scmp.eq.s32.totalorder %s36, 1
    %p416 = por %p414, %p415
    %p418 = scmp.ne.s32.totalorder %s403, %s417
    %p419 = scmp.eq.s32.totalorder %s36, 0
    %p420 = por %p418, %p419
    %s422 = sadd.s32 %s421, 1
    %p425 = scmp.eq.s32.totalorder %s30, 1
    %p426 = scmp.ne.s32.totalorder %s421, %s423
    %p427 = scmp.eq.s32.totalorder %s30, 0
    %p428 = por %p426, %p427
    %p429 = scmp.ne.s32.totalorder %s421, %s423
    %p430 = scmp.eq.s32.totalorder %s35, 1
    %p431 = por %p429, %p430
    %p432 = scmp.ne.s32.totalorder %s423, %s424
    %p433 = scmp.eq.s32.totalorder %s35, 0
    %p434 = por %p432, %p433
    %p435 = scmp.ne.s32.totalorder %s423, %s424
    %p436 = scmp.eq.s32.totalorder %s36, 1
    %p437 = por %p435, %p436
    %p439 = scmp.ne.s32.totalorder %s424, %s438
    %p440 = scmp.eq.s32.totalorder %s36, 0
    %p441 = por %p439, %p440
    %s443 = sadd.s32 %s442, 1
    %p446 = scmp.eq.s32.totalorder %s30, 1
    %p447 = scmp.ne.s32.totalorder %s442, %s444
    %p448 = scmp.eq.s32.totalorder %s30, 0
    %p449 = por %p447, %p448
    %p450 = scmp.ne.s32.totalorder %s442, %s444
    %p451 = scmp.eq.s32.totalorder %s35, 1
    %p452 = por %p450, %p451
    %p453 = scmp.ne.s32.totalorder %s444, %s445
    %p454 = scmp.eq.s32.totalorder %s35, 0
    %p455 = por %p453, %p454
    %p456 = scmp.ne.s32.totalorder %s444, %s445
    %p457 = scmp.eq.s32.totalorder %s36, 1
    %p458 = por %p456, %p457
    %p460 = scmp.ne.s32.totalorder %s445, %s459
    %p461 = scmp.eq.s32.totalorder %s36, 0
    %p462 = por %p460, %p461
    %s464 = sadd.s32 %s463, 1
    %p467 = scmp.eq.s32.totalorder %s30, 1
    %p468 = scmp.ne.s32.totalorder %s463, %s465
    %p469 = scmp.eq.s32.totalorder %s30, 0
    %p470 = por %p468, %p469
    %p471 = scmp.ne.s32.totalorder %s463, %s465
    %p472 = scmp.eq.s32.totalorder %s35, 1
    %p473 = por %p471, %p472
    %p474 = scmp.ne.s32.totalorder %s465, %s466
    %p475 = scmp.eq.s32.totalorder %s35, 0
    %p476 = por %p474, %p475
    %p477 = scmp.ne.s32.totalorder %s465, %s466
    %p478 = scmp.eq.s32.totalorder %s36, 1
    %p479 = por %p477, %p478
    %p481 = scmp.ne.s32.totalorder %s466, %s480
    %p482 = scmp.eq.s32.totalorder %s36, 0
    %p483 = por %p481, %p482
    %s485 = sadd.s32 %s484, 1
    %p488 = scmp.eq.s32.totalorder %s30, 1
    %p489 = scmp.ne.s32.totalorder %s484, %s486
    %p490 = scmp.eq.s32.totalorder %s30, 0
    %p491 = por %p489, %p490
    %p492 = scmp.ne.s32.totalorder %s484, %s486
    %p493 = scmp.eq.s32.totalorder %s35, 1
    %p494 = por %p492, %p493
    %p495 = scmp.ne.s32.totalorder %s486, %s487
    %p496 = scmp.eq.s32.totalorder %s35, 0
    %p497 = por %p495, %p496
    %p498 = scmp.ne.s32.totalorder %s486, %s487
    %p499 = scmp.eq.s32.totalorder %s36, 1
    %p500 = por %p498, %p499
    %p502 = scmp.ne.s32.totalorder %s487, %s501
    %p503 = scmp.eq.s32.totalorder %s36, 0
    %p504 = por %p502, %p503
    %s506 = sadd.s32 %s505, 1
    %p509 = scmp.eq.s32.totalorder %s30, 1
    %p510 = scmp.ne.s32.totalorder %s505, %s507
    %p511 = scmp.eq.s32.totalorder %s30, 0
    %p512 = por %p510, %p511
    %p513 = scmp.ne.s32.totalorder %s505, %s507
    %p514 = scmp.eq.s32.totalorder %s35, 1
    %p515 = por %p513, %p514
    %p516 = scmp.ne.s32.totalorder %s507, %s508
    %p517 = scmp.eq.s32.totalorder %s35, 0
    %p518 = por %p516, %p517
    %p519 = scmp.ne.s32.totalorder %s507, %s508
    %p520 = scmp.eq.s32.totalorder %s36, 1
    %p521 = por %p519, %p520
    %p523 = scmp.ne.s32.totalorder %s508, %s522
    %p524 = scmp.eq.s32.totalorder %s36, 0
    %p525 = por %p523, %p524
    %s527 = sadd.s32 %s526, 1
    %p530 = scmp.eq.s32.totalorder %s30, 1
    %p531 = scmp.ne.s32.totalorder %s526, %s528
    %p532 = scmp.eq.s32.totalorder %s30, 0
    %p533 = por %p531, %p532
    %p534 = scmp.ne.s32.totalorder %s526, %s528
    %p535 = scmp.eq.s32.totalorder %s35, 1
    %p536 = por %p534, %p535
    %p537 = scmp.ne.s32.totalorder %s528, %s529
    %p538 = scmp.eq.s32.totalorder %s35, 0
    %p539 = por %p537, %p538
    %p540 = scmp.ne.s32.totalorder %s528, %s529
    %p541 = scmp.eq.s32.totalorder %s36, 1
    %p542 = por %p540, %p541
    %p544 = scmp.ne.s32.totalorder %s529, %s543
    %p545 = scmp.eq.s32.totalorder %s36, 0
    %p546 = por %p544, %p545
    %s547 = ssub.s32 %s30, %s37
    %p548 = scmp.eq.s32.totalorder %s547, 0
    %s550 = sadd.s32 %s549, 1
    %s551 = scalar_select %p548, %s549, %s550
    %p554 = pneg %p548
    %p555 = scmp.eq.s32.totalorder %s30, 1
    %p556 = por %p554, %p555
    %p557 = scmp.ne.s32.totalorder %s549, %s552
    %p558 = scmp.eq.s32.totalorder %s30, 0
    %p559 = por %p557, %p558
    %p560 = scmp.ne.s32.totalorder %s549, %s552
    %p561 = scmp.eq.s32.totalorder %s35, 1
    %p562 = por %p560, %p561
    %p563 = scmp.ne.s32.totalorder %s552, %s553
    %p564 = scmp.eq.s32.totalorder %s35, 0
    %p565 = por %p563, %p564
    %p566 = scmp.ne.s32.totalorder %s552, %s553
    %p567 = scmp.eq.s32.totalorder %s36, 1
    %p568 = por %p566, %p567
    %p570 = scmp.ne.s32.totalorder %s553, %s569
    %p571 = scmp.eq.s32.totalorder %s36, 0
    %p572 = por %p570, %p571
    %p573 = scmp.le.s32.totalorder 1, %s30
    %p574 = scmp.lt.s32.totalorder %s30, 3
    %p575 = pnand %p573, %p574
    %p576 = pneg %p575
    // Predicated region
    $region9: #{wideresnet_forward.1} parent=5 // pred_check
      _
    $region10: #{wideresnet_forward.1} parent=5 // pred_check_branch
      %578 = sbr.rel (%p575) target = $region12
    $region11: #{wideresnet_forward.1} parent=5 // pred_region
      %s579 = ssub.s32 %s30, 1
      // Predicated region
      $region13: #{wideresnet_forward.1} parent=11 // pred_check
        %p580 = pneg %p77
      $region14: #{wideresnet_forward.1} parent=11 // pred_check_branch
        %582 = sbr.rel (%p580) target = $region16
      $region15: #{wideresnet_forward.1} parent=11 // pred_region
        _
      $region16: #{wideresnet_forward.1} parent=11 // pred_fallthru
        _
      // Predicated region
      $region17: #{wideresnet_forward.1} parent=11 // pred_check
        %p583 = pneg %p98
      $region18: #{wideresnet_forward.1} parent=11 // pred_check_branch
        %585 = sbr.rel (%p583) target = $region20
      $region19: #{wideresnet_forward.1} parent=11 // pred_region
        _
      $region20: #{wideresnet_forward.1} parent=11 // pred_fallthru
        _
      // Predicated region
      $region21: #{wideresnet_forward.1} parent=11 // pred_check
        %p586 = pneg %p119
      $region22: #{wideresnet_forward.1} parent=11 // pred_check_branch
        %588 = sbr.rel (%p586) target = $region24
      $region23: #{wideresnet_forward.1} parent=11 // pred_region
        _
      $region24: #{wideresnet_forward.1} parent=11 // pred_fallthru
        _
      // Predicated region
      $region25: #{wideresnet_forward.1} parent=11 // pred_check
        %p589 = pneg %p140
      $region26: #{wideresnet_forward.1} parent=11 // pred_check_branch
        %591 = sbr.rel (%p589) target = $region28
      $region27: #{wideresnet_forward.1} parent=11 // pred_region
        _
      $region28: #{wideresnet_forward.1} parent=11 // pred_fallthru
        _
      // Predicated region
      $region29: #{wideresnet_forward.1} parent=11 // pred_check
        %p592 = pneg %p161
      $region30: #{wideresnet_forward.1} parent=11 // pred_check_branch
        %594 = sbr.rel (%p592) target = $region32
      $region31: #{wideresnet_forward.1} parent=11 // pred_region
        _
      $region32: #{wideresnet_forward.1} parent=11 // pred_fallthru
        _
      // Predicated region
      $region33: #{wideresnet_forward.1} parent=11 // pred_check
        %p595 = pneg %p182
      $region34: #{wideresnet_forward.1} parent=11 // pred_check_branch
        %597 = sbr.rel (%p595) target = $region36
      $region35: #{wideresnet_forward.1} parent=11 // pred_region
        _
      $region36: #{wideresnet_forward.1} parent=11 // pred_fallthru
        _
      // Predicated region
      $region37: #{wideresnet_forward.1} parent=11 // pred_check
        %p598 = pneg %p203
      $region38: #{wideresnet_forward.1} parent=11 // pred_check_branch
        %600 = sbr.rel (%p598) target = $region40
      $region39: #{wideresnet_forward.1} parent=11 // pred_region
        _
      $region40: #{wideresnet_forward.1} parent=11 // pred_fallthru
        _
      // Predicated region
      $region41: #{wideresnet_forward.1} parent=11 // pred_check
        %p601 = pneg %p224
      $region42: #{wideresnet_forward.1} parent=11 // pred_check_branch
        %603 = sbr.rel (%p601) target = $region44
      $region43: #{wideresnet_forward.1} parent=11 // pred_region
        _
      $region44: #{wideresnet_forward.1} parent=11 // pred_fallthru
        _
      // Predicated region
      $region45: #{wideresnet_forward.1} parent=11 // pred_check
        %p604 = pneg %p245
      $region46: #{wideresnet_forward.1} parent=11 // pred_check_branch
        %606 = sbr.rel (%p604) target = $region48
      $region47: #{wideresnet_forward.1} parent=11 // pred_region
        _
      $region48: #{wideresnet_forward.1} parent=11 // pred_fallthru
        _
      // Predicated region
      $region49: #{wideresnet_forward.1} parent=11 // pred_check
        %p607 = pneg %p266
      $region50: #{wideresnet_forward.1} parent=11 // pred_check_branch
        %609 = sbr.rel (%p607) target = $region52
      $region51: #{wideresnet_forward.1} parent=11 // pred_region
        _
      $region52: #{wideresnet_forward.1} parent=11 // pred_fallthru
        _
      // Predicated region
      $region53: #{wideresnet_forward.1} parent=11 // pred_check
        %p610 = pneg %p287
      $region54: #{wideresnet_forward.1} parent=11 // pred_check_branch
        %612 = sbr.rel (%p610) target = $region56
      $region55: #{wideresnet_forward.1} parent=11 // pred_region
        _
      $region56: #{wideresnet_forward.1} parent=11 // pred_fallthru
        _
      // Predicated region
      $region57: #{wideresnet_forward.1} parent=11 // pred_check
        %p613 = pneg %p308
      $region58: #{wideresnet_forward.1} parent=11 // pred_check_branch
        %615 = sbr.rel (%p613) target = $region60
      $region59: #{wideresnet_forward.1} parent=11 // pred_region
        _
      $region60: #{wideresnet_forward.1} parent=11 // pred_fallthru
        _
      // Predicated region
      $region61: #{wideresnet_forward.1} parent=11 // pred_check
        %p616 = pneg %p329
      $region62: #{wideresnet_forward.1} parent=11 // pred_check_branch
        %618 = sbr.rel (%p616) target = $region64
      $region63: #{wideresnet_forward.1} parent=11 // pred_region
        _
      $region64: #{wideresnet_forward.1} parent=11 // pred_fallthru
        _
      // Predicated region
      $region65: #{wideresnet_forward.1} parent=11 // pred_check
        %p619 = pneg %p350
      $region66: #{wideresnet_forward.1} parent=11 // pred_check_branch
        %621 = sbr.rel (%p619) target = $region68
      $region67: #{wideresnet_forward.1} parent=11 // pred_region
        _
      $region68: #{wideresnet_forward.1} parent=11 // pred_fallthru
        _
      // Predicated region
      $region69: #{wideresnet_forward.1} parent=11 // pred_check
        %p622 = pneg %p371
      $region70: #{wideresnet_forward.1} parent=11 // pred_check_branch
        %624 = sbr.rel (%p622) target = $region72
      $region71: #{wideresnet_forward.1} parent=11 // pred_region
        _
      $region72: #{wideresnet_forward.1} parent=11 // pred_fallthru
        _
      // Predicated region
      $region73: #{wideresnet_forward.1} parent=11 // pred_check
        %p625 = pneg %p392
      $region74: #{wideresnet_forward.1} parent=11 // pred_check_branch
        %627 = sbr.rel (%p625) target = $region76
      $region75: #{wideresnet_forward.1} parent=11 // pred_region
        _
      $region76: #{wideresnet_forward.1} parent=11 // pred_fallthru
        _
      // Predicated region
      $region77: #{wideresnet_forward.1} parent=11 // pred_check
        %p628 = pneg %p413
      $region78: #{wideresnet_forward.1} parent=11 // pred_check_branch
        %630 = sbr.rel (%p628) target = $region80
      $region79: #{wideresnet_forward.1} parent=11 // pred_region
        _
      $region80: #{wideresnet_forward.1} parent=11 // pred_fallthru
        _
      // Predicated region
      $region81: #{wideresnet_forward.1} parent=11 // pred_check
        %p631 = pneg %p434
      $region82: #{wideresnet_forward.1} parent=11 // pred_check_branch
        %633 = sbr.rel (%p631) target = $region84
      $region83: #{wideresnet_forward.1} parent=11 // pred_region
        _
      $region84: #{wideresnet_forward.1} parent=11 // pred_fallthru
        _
      // Predicated region
      $region85: #{wideresnet_forward.1} parent=11 // pred_check
        %p634 = pneg %p455
      $region86: #{wideresnet_forward.1} parent=11 // pred_check_branch
        %636 = sbr.rel (%p634) target = $region88
      $region87: #{wideresnet_forward.1} parent=11 // pred_region
        _
      $region88: #{wideresnet_forward.1} parent=11 // pred_fallthru
        _
      // Predicated region
      $region89: #{wideresnet_forward.1} parent=11 // pred_check
        %p637 = pneg %p476
      $region90: #{wideresnet_forward.1} parent=11 // pred_check_branch
        %639 = sbr.rel (%p637) target = $region92
      $region91: #{wideresnet_forward.1} parent=11 // pred_region
        _
      $region92: #{wideresnet_forward.1} parent=11 // pred_fallthru
        _
      // Predicated region
      $region93: #{wideresnet_forward.1} parent=11 // pred_check
        %p640 = pneg %p497
      $region94: #{wideresnet_forward.1} parent=11 // pred_check_branch
        %642 = sbr.rel (%p640) target = $region96
      $region95: #{wideresnet_forward.1} parent=11 // pred_region
        _
      $region96: #{wideresnet_forward.1} parent=11 // pred_fallthru
        _
      // Predicated region
      $region97: #{wideresnet_forward.1} parent=11 // pred_check
        %p643 = pneg %p518
      $region98: #{wideresnet_forward.1} parent=11 // pred_check_branch
        %645 = sbr.rel (%p643) target = $region100
      $region99: #{wideresnet_forward.1} parent=11 // pred_region
        _
      $region100: #{wideresnet_forward.1} parent=11 // pred_fallthru
        _
      // Predicated region
      $region101: #{wideresnet_forward.1} parent=11 // pred_check
        %p646 = pneg %p539
      $region102: #{wideresnet_forward.1} parent=11 // pred_check_branch
        %648 = sbr.rel (%p646) target = $region104
      $region103: #{wideresnet_forward.1} parent=11 // pred_region
        _
      $region104: #{wideresnet_forward.1} parent=11 // pred_fallthru
        _
    $region12: #{wideresnet_forward.1} parent=5 // pred_fallthru
      _
    %p649 = scmp.lt.s32.totalorder %s30, 2
    // Predicated region
    $region105: #{wideresnet_forward.1} parent=5 // pred_check
      %p650 = pneg %p649
    $region106: #{wideresnet_forward.1} parent=5 // pred_check_branch
      %652 = sbr.rel (%p650) target = $region108
    $region107: #{wideresnet_forward.1} parent=5 // pred_region
      // Predicated region
      $region109: #{wideresnet_forward.1} parent=107 // pred_check
        %p653 = pneg %p50
      $region110: #{wideresnet_forward.1} parent=107 // pred_check_branch
        %655 = sbr.rel (%p653) target = $region112
      $region111: #{wideresnet_forward.1} parent=107 // pred_region
        %p656 = scmp.lt.s32.totalorder %s30, 1
        %s657 = scalar_select %p656, %s30, 1
        %s658 = smul.addr %s657, 10
        %s659 = smul.addr %s658, 8
        %s660 = scalar_lea.vmem %s0, %s659
      $region112: #{wideresnet_forward.1} parent=107 // pred_fallthru
        _
    $region108: #{wideresnet_forward.1} parent=5 // pred_fallthru
      _
    %p661 = scmp.le.s32.totalorder 1, %s30
    %p662 = scmp.lt.s32.totalorder %s30, 3
    %p663 = pnand %p661, %p662
    %p664 = pneg %p663
    // Predicated region
    $region113: #{wideresnet_forward.1} parent=5 // pred_check
      _
    $region114: #{wideresnet_forward.1} parent=5 // pred_check_branch
      %666 = sbr.rel (%p663) target = $region116
    $region115: #{wideresnet_forward.1} parent=5 // pred_region
      %s667 = ssub.s32 %s30, 1
      %p668 = scmp.lt.s32.totalorder %s35, 1
      %s669 = scalar_select %p668, %s35, 1
      %s670 = smul.addr %s669, 10
      %s671 = smul.addr %s670, 8
      %s672 = scalar_lea.vmem %s0, %s671
      %p673 = pneg %p56
      %p674 = pneg %p53
      %p675 = pneg %p77
      %p676 = pneg %p74
      %p677 = pneg %p98
      %p678 = pneg %p95
      %p679 = pneg %p119
      %p680 = pneg %p116
      %p681 = pneg %p140
      %p682 = pneg %p137
      %p683 = pneg %p161
      %p684 = pneg %p158
      %p685 = pneg %p182
      %p686 = pneg %p179
      %p687 = pneg %p203
      %p688 = pneg %p200
      %p689 = pneg %p224
      %p690 = pneg %p221
      %p691 = pneg %p245
      %p692 = pneg %p242
      %p693 = pneg %p266
      %p694 = pneg %p263
      %p695 = pneg %p287
      %p696 = pneg %p284
      %p697 = pneg %p308
      %p698 = pneg %p305
      %p699 = pneg %p329
      %p700 = pneg %p326
      %p701 = pneg %p350
      %p702 = pneg %p347
      %p703 = pneg %p371
      %p704 = pneg %p368
      %p705 = pneg %p392
      %p706 = pneg %p389
      %p707 = pneg %p413
      %p708 = pneg %p410
      %p709 = pneg %p434
      %p710 = pneg %p431
      %p711 = pneg %p455
      %p712 = pneg %p452
      %p713 = pneg %p476
      %p714 = pneg %p473
      %p715 = pneg %p497
      %p716 = pneg %p494
      %p717 = pneg %p518
      %p718 = pneg %p515
      %p719 = pneg %p539
      %p720 = pneg %p536
      %p721 = pneg %p565
      %p722 = pneg %p562
      %p723 = scmp.lt.s32.totalorder %s35, 1
      %s724 = scalar_select %p723, %s35, 1
      %s725 = smul.addr %s724, 2
      %s726 = smul.addr %s725, 8
      %s727 = scalar_lea.vmem %s24, %s726
      %p728 = scmp.lt.s32.totalorder %s35, 1
      %s729 = scalar_select %p728, %s35, 1
      %s730 = smul.addr %s729, 10
      %s731 = smul.addr %s730, 8
      %s732 = scalar_lea.vmem %s0, %s731
      %p733 = scmp.lt.s32.totalorder %s35, 1
      %s734 = scalar_select %p733, %s35, 1
      %s735 = smul.addr %s734, 2
      %s736 = smul.addr %s735, 8
      %s737 = scalar_lea.vmem %s24, %s736
      %739 = vst [vmem:[#allocation2] sm:$0xff] 0.0
      %740 = vst [vmem:[#allocation2 + $0x8] sm:$0xff] 0.0
      %741 = vst [vmem:[#allocation2 + $0x10] sm:$0xff] 0.0
      %742 = vst [vmem:[#allocation2 + $0x18] sm:$0xff] 0.0
      %743 = vst [vmem:[#allocation2 + $0x20] sm:$0xff] 0.0
      %744 = vst [vmem:[#allocation2 + $0x28] sm:$0xff] 0.0
      %745 = vst [vmem:[#allocation2 + $0x30] sm:$0xff] 0.0
      %746 = vst [vmem:[#allocation2 + $0x38] sm:$0xff] 0.0
      %747 = vst [vmem:[#allocation2 + $0x40] sm:$0xff] 0.0
      %748 = vst [vmem:[#allocation2 + $0x48] sm:$0xff] 0.0
      %749 = vst [vmem:[#allocation2 + $0x50] sm:$0xff] 0.0
      %750 = vst [vmem:[#allocation2 + $0x58] sm:$0xff] 0.0
      %751 = vst [vmem:[#allocation2 + $0x60] sm:$0xff] 0.0
      %752 = vst [vmem:[#allocation2 + $0x68] sm:$0xff] 0.0
      %753 = vst [vmem:[#allocation2 + $0x70] sm:$0xff] 0.0
      %754 = vst [vmem:[#allocation2 + $0x78] sm:$0xff] 0.0
      %755 = vst [vmem:[#allocation2 + $0x80] sm:$0xff] 0.0
      %756 = vst [vmem:[#allocation2 + $0x88] sm:$0xff] 0.0
      %757 = vst [vmem:[#allocation2 + $0x90] sm:$0xff] 0.0
      %758 = vst [vmem:[#allocation2 + $0x98] sm:$0xff] 0.0
      %759 = vst [vmem:[#allocation3] sm:$0xff] 0.0
      %760 = vst [vmem:[#allocation3 + $0x8] sm:$0xff] 0.0
      %761 = vst [vmem:[#allocation3 + $0x10] sm:$0xff] 0.0
      %762 = vst [vmem:[#allocation3 + $0x18] sm:$0xff] 0.0
      %763 = vst [vmem:[#allocation3 + $0x20] sm:$0xff] 0.0
      %764 = vst [vmem:[#allocation3 + $0x28] sm:$0xff] 0.0
      %765 = vst [vmem:[#allocation3 + $0x30] sm:$0xff] 0.0
      %766 = vst [vmem:[#allocation3 + $0x38] sm:$0xff] 0.0
      %767 = vst [vmem:[#allocation3 + $0x40] sm:$0xff] 0.0
      %768 = vst [vmem:[#allocation3 + $0x48] sm:$0xff] 0.0
      %769 = vst [vmem:[#allocation3 + $0x50] sm:$0xff] 0.0
      %770 = vst [vmem:[#allocation3 + $0x58] sm:$0xff] 0.0
      %771 = vst [vmem:[#allocation3 + $0x60] sm:$0xff] 0.0
      %772 = vst [vmem:[#allocation3 + $0x68] sm:$0xff] 0.0
      %773 = vst [vmem:[#allocation3 + $0x70] sm:$0xff] 0.0
      %774 = vst [vmem:[#allocation3 + $0x78] sm:$0xff] 0.0
      %775 = vst [vmem:[#allocation3 + $0x80] sm:$0xff] 0.0
      %776 = vst [vmem:[#allocation3 + $0x88] sm:$0xff] 0.0
      %777 = vst [vmem:[#allocation3 + $0x90] sm:$0xff] 0.0
      %778 = vst [vmem:[#allocation3 + $0x98] sm:$0xff] 0.0
      %779 = vst [vmem:[#allocation4] sm:$0xff] 0.0
      %780 = vst [vmem:[#allocation4 + $0x8] sm:$0xff] 0.0
      %781 = vst [vmem:[#allocation4 + $0x10] sm:$0xff] 0.0
      %782 = vst [vmem:[#allocation4 + $0x18] sm:$0xff] 0.0
      %783 = vst [vmem:[#allocation4 + $0x20] sm:$0xff] 0.0
      %784 = vst [vmem:[#allocation4 + $0x28] sm:$0xff] 0.0
      %785 = vst [vmem:[#allocation4 + $0x30] sm:$0xff] 0.0
      %786 = vst [vmem:[#allocation4 + $0x38] sm:$0xff] 0.0
      %787 = vst [vmem:[#allocation4 + $0x40] sm:$0xff] 0.0
      %788 = vst [vmem:[#allocation4 + $0x48] sm:$0xff] 0.0
      %789 = vst [vmem:[#allocation4 + $0x50] sm:$0xff] 0.0
      %790 = vst [vmem:[#allocation4 + $0x58] sm:$0xff] 0.0
      %791 = vst [vmem:[#allocation4 + $0x60] sm:$0xff] 0.0
      %792 = vst [vmem:[#allocation4 + $0x68] sm:$0xff] 0.0
      %793 = vst [vmem:[#allocation4 + $0x70] sm:$0xff] 0.0
      %794 = vst [vmem:[#allocation4 + $0x78] sm:$0xff] 0.0
      %795 = vst [vmem:[#allocation4 + $0x80] sm:$0xff] 0.0
      %796 = vst [vmem:[#allocation4 + $0x88] sm:$0xff] 0.0
      %797 = vst [vmem:[#allocation4 + $0x90] sm:$0xff] 0.0
      %798 = vst [vmem:[#allocation4 + $0x98] sm:$0xff] 0.0
      %799 = vst [vmem:[#allocation6] sm:$0xff] 0.0
      %800 = vst [vmem:[#allocation6 + $0x8] sm:$0xff] 0.0
      %801 = vst [vmem:[#allocation6 + $0x10] sm:$0xff] 0.0
      %802 = vst [vmem:[#allocation6 + $0x18] sm:$0xff] 0.0
      %803 = vst [vmem:[#allocation6 + $0x20] sm:$0xff] 0.0
      %804 = vst [vmem:[#allocation6 + $0x28] sm:$0xff] 0.0
      %805 = vst [vmem:[#allocation6 + $0x30] sm:$0xff] 0.0
      %806 = vst [vmem:[#allocation6 + $0x38] sm:$0xff] 0.0
      %807 = vst [vmem:[#allocation6 + $0x40] sm:$0xff] 0.0
      %808 = vst [vmem:[#allocation6 + $0x48] sm:$0xff] 0.0
      %809 = vst [vmem:[#allocation6 + $0x50] sm:$0xff] 0.0
      %810 = vst [vmem:[#allocation6 + $0x58] sm:$0xff] 0.0
      %v811 = vld [vmem:[%s732] sm:$0xff]
      %v812 = vld [vmem:[%s732 + $0x8] sm:$0xff]
      %v813 = vld [vmem:[%s732 + $0x10] sm:$0xff]
      %v814 = vld [vmem:[%s732 + $0x18] sm:$0xff]
      %v815 = vld [vmem:[%s732 + $0x20] sm:$0xff]
      %v816 = vld [vmem:[%s732 + $0x28] sm:$0xff]
      %v817 = vld [vmem:[%s732 + $0x30] sm:$0xff]
      %v818 = vld [vmem:[%s732 + $0x38] sm:$0xff]
      %v819 = vld [vmem:[%s732 + $0x40] sm:$0xff]
      %v820 = vld [vmem:[%s732 + $0x48] sm:$0xff]
      %830 = vrot.lane.b32.xlu0 %v811, 127
      %v831 = vpop.permute.xlu0 %830
      %832 = vrot.lane.b32.xlu0 %v812, 127
      %v833 = vpop.permute.xlu0 %832
      %834 = vrot.lane.b32.xlu0 %v813, 127
      %v835 = vpop.permute.xlu0 %834
      %836 = vrot.lane.b32.xlu0 %v814, 127
      %v837 = vpop.permute.xlu0 %836
      %838 = vrot.lane.b32.xlu0 %v815, 127
      %v839 = vpop.permute.xlu0 %838
      %840 = vrot.lane.b32.xlu0 %v816, 127
      %v841 = vpop.permute.xlu0 %840
      %842 = vrot.lane.b32.xlu0 %v817, 127
      %v843 = vpop.permute.xlu0 %842
      %844 = vrot.lane.b32.xlu0 %v818, 127
      %v845 = vpop.permute.xlu0 %844
      %846 = vrot.lane.b32.xlu0 %v819, 127
      %v847 = vpop.permute.xlu0 %846
      %vm848 = vcmask 1039360
      %v849 = vsel %vm848, %v831, %v833
      %v850 = vsel %vm848, %v833, %v835
      %v851 = vsel %vm848, %v835, %v837
      %v852 = vsel %vm848, %v837, %v839
      %v853 = vsel %vm848, %v839, %v841
      %v854 = vsel %vm848, %v841, %v843
      %v855 = vsel %vm848, %v843, %v845
      %v856 = vsel %vm848, %v845, %v847
      %866 = vrot.lane.b32.xlu0 %v811, 126
      %v867 = vpop.permute.xlu0 %866
      %868 = vrot.lane.b32.xlu0 %v812, 126
      %v869 = vpop.permute.xlu0 %868
      %870 = vrot.lane.b32.xlu0 %v813, 126
      %v871 = vpop.permute.xlu0 %870
      %872 = vrot.lane.b32.xlu0 %v814, 126
      %v873 = vpop.permute.xlu0 %872
      %874 = vrot.lane.b32.xlu0 %v815, 126
      %v875 = vpop.permute.xlu0 %874
      %876 = vrot.lane.b32.xlu0 %v816, 126
      %v877 = vpop.permute.xlu0 %876
      %878 = vrot.lane.b32.xlu0 %v817, 126
      %v879 = vpop.permute.xlu0 %878
      %880 = vrot.lane.b32.xlu0 %v818, 126
      %v881 = vpop.permute.xlu0 %880
      %882 = vrot.lane.b32.xlu0 %v819, 126
      %v883 = vpop.permute.xlu0 %882
      %vm884 = vcmask 1031168
      %v885 = vsel %vm884, %v867, %v869
      %v886 = vsel %vm884, %v869, %v871
      %v887 = vsel %vm884, %v871, %v873
      %v888 = vsel %vm884, %v873, %v875
      %v889 = vsel %vm884, %v875, %v877
      %v890 = vsel %vm884, %v877, %v879
      %v891 = vsel %vm884, %v879, %v881
      %v892 = vsel %vm884, %v881, %v883
      %902 = vrot.lane.b32.xlu0 %v811, 94
      %v903 = vpop.permute.xlu0 %902
      %904 = vrot.lane.b32.xlu0 %v812, 94
      %v905 = vpop.permute.xlu0 %904
      %906 = vrot.lane.b32.xlu0 %v813, 94
      %v907 = vpop.permute.xlu0 %906
      %908 = vrot.lane.b32.xlu0 %v814, 94
      %v909 = vpop.permute.xlu0 %908
      %910 = vrot.lane.b32.xlu0 %v815, 94
      %v911 = vpop.permute.xlu0 %910
      %912 = vrot.lane.b32.xlu0 %v816, 94
      %v913 = vpop.permute.xlu0 %912
      %914 = vrot.lane.b32.xlu0 %v817, 94
      %v915 = vpop.permute.xlu0 %914
      %916 = vrot.lane.b32.xlu0 %v818, 94
      %v917 = vpop.permute.xlu0 %916
      %918 = vrot.lane.b32.xlu0 %v819, 94
      %v919 = vpop.permute.xlu0 %918
      %vm920 = vcmask 769024
      %v921 = vsel %vm920, %v903, %v905
      %v922 = vsel %vm920, %v905, %v907
      %v923 = vsel %vm920, %v907, %v909
      %v924 = vsel %vm920, %v909, %v911
      %v925 = vsel %vm920, %v911, %v913
      %v926 = vsel %vm920, %v913, %v915
      %v927 = vsel %vm920, %v915, %v917
      %v928 = vsel %vm920, %v917, %v919
      %938 = vrot.lane.b32.xlu0 %v811, 93
      %v939 = vpop.permute.xlu0 %938
      %940 = vrot.lane.b32.xlu0 %v812, 93
      %v941 = vpop.permute.xlu0 %940
      %942 = vrot.lane.b32.xlu0 %v813, 93
      %v943 = vpop.permute.xlu0 %942
      %944 = vrot.lane.b32.xlu0 %v814, 93
      %v945 = vpop.permute.xlu0 %944
      %946 = vrot.lane.b32.xlu0 %v815, 93
      %v947 = vpop.permute.xlu0 %946
      %948 = vrot.lane.b32.xlu0 %v816, 93
      %v949 = vpop.permute.xlu0 %948
      %950 = vrot.lane.b32.xlu0 %v817, 93
      %v951 = vpop.permute.xlu0 %950
      %952 = vrot.lane.b32.xlu0 %v818, 93
      %v953 = vpop.permute.xlu0 %952
      %954 = vrot.lane.b32.xlu0 %v819, 93
      %v955 = vpop.permute.xlu0 %954
      %vm956 = vcmask 760832
      %v957 = vsel %vm956, %v939, %v941
      %v958 = vsel %vm956, %v941, %v943
      %v959 = vsel %vm956, %v943, %v945
      %v960 = vsel %vm956, %v945, %v947
      %v961 = vsel %vm956, %v947, %v949
      %v962 = vsel %vm956, %v949, %v951
      %v963 = vsel %vm956, %v951, %v953
      %v964 = vsel %vm956, %v953, %v955
      %974 = vrot.lane.b32.xlu0 %v811, 92
      %v975 = vpop.permute.xlu0 %974
      %976 = vrot.lane.b32.xlu0 %v812, 92
      %v977 = vpop.permute.xlu0 %976
      %978 = vrot.lane.b32.xlu0 %v813, 92
      %v979 = vpop.permute.xlu0 %978
      %980 = vrot.lane.b32.xlu0 %v814, 92
      %v981 = vpop.permute.xlu0 %980
      %982 = vrot.lane.b32.xlu0 %v815, 92
      %v983 = vpop.permute.xlu0 %982
      %984 = vrot.lane.b32.xlu0 %v816, 92
      %v985 = vpop.permute.xlu0 %984
      %986 = vrot.lane.b32.xlu0 %v817, 92
      %v987 = vpop.permute.xlu0 %986
      %988 = vrot.lane.b32.xlu0 %v818, 92
      %v989 = vpop.permute.xlu0 %988
      %990 = vrot.lane.b32.xlu0 %v819, 92
      %v991 = vpop.permute.xlu0 %990
      %vm992 = vcmask 752640
      %v993 = vsel %vm992, %v975, %v977
      %v994 = vsel %vm992, %v977, %v979
      %v995 = vsel %vm992, %v979, %v981
      %v996 = vsel %vm992, %v981, %v983
      %v997 = vsel %vm992, %v983, %v985
      %v998 = vsel %vm992, %v985, %v987
      %v999 = vsel %vm992, %v987, %v989
      %v1000 = vsel %vm992, %v989, %v991
      %1011 = vrot.lane.b32.xlu0 %v811, 60
      %v1012 = vpop.permute.xlu0 %1011
      %1013 = vrot.lane.b32.xlu0 %v812, 60
      %v1014 = vpop.permute.xlu0 %1013
      %1015 = vrot.lane.b32.xlu0 %v813, 60
      %v1016 = vpop.permute.xlu0 %1015
      %1017 = vrot.lane.b32.xlu0 %v814, 60
      %v1018 = vpop.permute.xlu0 %1017
      %1019 = vrot.lane.b32.xlu0 %v815, 60
      %v1020 = vpop.permute.xlu0 %1019
      %1021 = vrot.lane.b32.xlu0 %v816, 60
      %v1022 = vpop.permute.xlu0 %1021
      %1023 = vrot.lane.b32.xlu0 %v817, 60
      %v1024 = vpop.permute.xlu0 %1023
      %1025 = vrot.lane.b32.xlu0 %v818, 60
      %v1026 = vpop.permute.xlu0 %1025
      %1027 = vrot.lane.b32.xlu0 %v819, 60
      %v1028 = vpop.permute.xlu0 %1027
      %1029 = vrot.lane.b32.xlu0 %v820, 60
      %v1030 = vpop.permute.xlu0 %1029
      %vm1031 = vcmask 490496
      %v1032 = vsel %vm1031, %v1012, %v1014
      %v1033 = vsel %vm1031, %v1014, %v1016
      %v1034 = vsel %vm1031, %v1016, %v1018
      %v1035 = vsel %vm1031, %v1018, %v1020
      %v1036 = vsel %vm1031, %v1020, %v1022
      %v1037 = vsel %vm1031, %v1022, %v1024
      %v1038 = vsel %vm1031, %v1024, %v1026
      %v1039 = vsel %vm1031, %v1026, %v1028
      %v1040 = vsel %vm1031, %v1028, %v1030
      %1050 = vrot.lane.b32.xlu0 %v811, 59
      %v1051 = vpop.permute.xlu0 %1050
      %1052 = vrot.lane.b32.xlu0 %v812, 59
      %v1053 = vpop.permute.xlu0 %1052
      %1054 = vrot.lane.b32.xlu0 %v813, 59
      %v1055 = vpop.permute.xlu0 %1054
      %1056 = vrot.lane.b32.xlu0 %v814, 59
      %v1057 = vpop.permute.xlu0 %1056
      %1058 = vrot.lane.b32.xlu0 %v815, 59
      %v1059 = vpop.permute.xlu0 %1058
      %1060 = vrot.lane.b32.xlu0 %v816, 59
      %v1061 = vpop.permute.xlu0 %1060
      %1062 = vrot.lane.b32.xlu0 %v817, 59
      %v1063 = vpop.permute.xlu0 %1062
      %1064 = vrot.lane.b32.xlu0 %v818, 59
      %v1065 = vpop.permute.xlu0 %1064
      %1066 = vrot.lane.b32.xlu0 %v819, 59
      %v1067 = vpop.permute.xlu0 %1066
      %1068 = vrot.lane.b32.xlu0 %v820, 59
      %v1069 = vpop.permute.xlu0 %1068
      %vm1070 = vcmask 482304
      %v1071 = vsel %vm1070, %v1051, %v1053
      %v1072 = vsel %vm1070, %v1053, %v1055
      %v1073 = vsel %vm1070, %v1055, %v1057
      %v1074 = vsel %vm1070, %v1057, %v1059
      %v1075 = vsel %vm1070, %v1059, %v1061
      %v1076 = vsel %vm1070, %v1061, %v1063
      %v1077 = vsel %vm1070, %v1063, %v1065
      %v1078 = vsel %vm1070, %v1065, %v1067
      %v1079 = vsel %vm1070, %v1067, %v1069
      %1089 = vrot.lane.b32.xlu0 %v811, 58
      %v1090 = vpop.permute.xlu0 %1089
      %1091 = vrot.lane.b32.xlu0 %v812, 58
      %v1092 = vpop.permute.xlu0 %1091
      %1093 = vrot.lane.b32.xlu0 %v813, 58
      %v1094 = vpop.permute.xlu0 %1093
      %1095 = vrot.lane.b32.xlu0 %v814, 58
      %v1096 = vpop.permute.xlu0 %1095
      %1097 = vrot.lane.b32.xlu0 %v815, 58
      %v1098 = vpop.permute.xlu0 %1097
      %1099 = vrot.lane.b32.xlu0 %v816, 58
      %v1100 = vpop.permute.xlu0 %1099
      %1101 = vrot.lane.b32.xlu0 %v817, 58
      %v1102 = vpop.permute.xlu0 %1101
      %1103 = vrot.lane.b32.xlu0 %v818, 58
      %v1104 = vpop.permute.xlu0 %1103
      %1105 = vrot.lane.b32.xlu0 %v819, 58
      %v1106 = vpop.permute.xlu0 %1105
      %1107 = vrot.lane.b32.xlu0 %v820, 58
      %v1108 = vpop.permute.xlu0 %1107
      %vm1109 = vcmask 474112
      %v1110 = vsel %vm1109, %v1090, %v1092
      %v1111 = vsel %vm1109, %v1092, %v1094
      %v1112 = vsel %vm1109, %v1094, %v1096
      %v1113 = vsel %vm1109, %v1096, %v1098
      %v1114 = vsel %vm1109, %v1098, %v1100
      %v1115 = vsel %vm1109, %v1100, %v1102
      %v1116 = vsel %vm1109, %v1102, %v1104
      %v1117 = vsel %vm1109, %v1104, %v1106
      %v1118 = vsel %vm1109, %v1106, %v1108
      %v1128 = vpack.c.bf16 %v849, %v811
      %v1129 = vpack.c.bf16 %v850, %v812
      %v1130 = vpack.c.bf16 %v851, %v813
      %v1131 = vpack.c.bf16 %v852, %v814
      %v1132 = vpack.c.bf16 %v853, %v815
      %v1133 = vpack.c.bf16 %v854, %v816
      %v1134 = vpack.c.bf16 %v855, %v817
      %v1135 = vpack.c.bf16 %v856, %v818
      %v1136 = vpack.c.bf16 %v847, %v819
      %v1137 = vpack.c.bf16 %v921, %v885
      %v1138 = vpack.c.bf16 %v922, %v886
      %v1139 = vpack.c.bf16 %v923, %v887
      %v1140 = vpack.c.bf16 %v924, %v888
      %v1141 = vpack.c.bf16 %v925, %v889
      %v1142 = vpack.c.bf16 %v926, %v890
      %v1143 = vpack.c.bf16 %v927, %v891
      %v1144 = vpack.c.bf16 %v928, %v892
      %v1145 = vpack.c.bf16 %v919, %v883
      %v1146 = vpack.c.bf16 %v993, %v957
      %v1147 = vpack.c.bf16 %v994, %v958
      %v1148 = vpack.c.bf16 %v995, %v959
      %v1149 = vpack.c.bf16 %v996, %v960
      %v1150 = vpack.c.bf16 %v997, %v961
      %v1151 = vpack.c.bf16 %v998, %v962
      %v1152 = vpack.c.bf16 %v999, %v963
      %v1153 = vpack.c.bf16 %v1000, %v964
      %v1154 = vpack.c.bf16 %v991, %v955
      %v1155 = vpack.c.bf16 %v1071, %v1032
      %v1156 = vpack.c.bf16 %v1072, %v1033
      %v1157 = vpack.c.bf16 %v1073, %v1034
      %v1158 = vpack.c.bf16 %v1074, %v1035
      %v1159 = vpack.c.bf16 %v1075, %v1036
      %v1160 = vpack.c.bf16 %v1076, %v1037
      %v1161 = vpack.c.bf16 %v1077, %v1038
      %v1162 = vpack.c.bf16 %v1078, %v1039
      %v1163 = vpack.c.bf16 %v1079, %v1040
      %v1164 = vpack.c.bf16 %v1110, %v1110
      %v1165 = vpack.c.bf16 %v1111, %v1111
      %v1166 = vpack.c.bf16 %v1112, %v1112
      %v1167 = vpack.c.bf16 %v1113, %v1113
      %v1168 = vpack.c.bf16 %v1114, %v1114
      %v1169 = vpack.c.bf16 %v1115, %v1115
      %v1170 = vpack.c.bf16 %v1116, %v1116
      %v1171 = vpack.c.bf16 %v1117, %v1117
      %v1172 = vpack.c.bf16 %v1118, %v1118
      %v1173 = vld [vmem:[%s1] sm:$0xf]
      %v1174 = vld [vmem:[%s1 + $0x4] sm:$0xf]
      %v1177 = vunpack.c.l.b16 %v1173
      %v1178 = vunpack.c.l.b16 %v1174
      %v1179 = vpack.c.b16 %v1178, %v1177
      %vm1180 = vcmask 588800
      %v1182 = vsel %vm1180, %v1179, 0
      %vm1184 = vcmask 1043456
      %v1186 = vsel %vm1184, %v1164, 0
      %v1189 = vsel %vm1184, %v1165, 0
      %v1192 = vsel %vm1184, %v1166, 0
      %v1195 = vsel %vm1184, %v1167, 0
      %v1198 = vsel %vm1184, %v1168, 0
      %v1201 = vsel %vm1184, %v1169, 0
      %v1204 = vsel %vm1184, %v1170, 0
      %v1207 = vsel %vm1184, %v1171, 0
      %v1210 = vsel %vm1184, %v1172, 0
      %1212 = vmatprep.subr.bf16.mxu0 %v1129
      %1213 = vmatpush1.bf16.msra.mxu0 %v1128
      %1214 = vmatprep.subr.bf16.mxu0 %v1138
      %1215 = vmatpush1.bf16.msra.mxu0 %v1137
      %1216 = vmatprep.subr.bf16.mxu0 %v1147
      %1217 = vmatpush1.bf16.msra.mxu0 %v1146
      %1218 = vmatprep.subr.bf16.mxu0 %v1156
      %1219 = vmatpush1.bf16.msra.mxu0 %v1155
      %1220 = vmatprep.subr.bf16.mxu0 %v1189
      %1221 = vmatpush1.bf16.msra.mxu0 %v1186
      %1222 = vmatprep.subr.bf16.mxu0 0
      %1223 = vmatpush1.bf16.msra.mxu0 0
      %1224 = vmatprep.subr.bf16.mxu0 0
      %1225 = vmatpush1.bf16.msra.mxu0 0
      %1226 = vmatprep.subr.bf16.mxu0 0
      %1227 = vmatpush1.bf16.msra.mxu0 0
      %1228 = vmatprep.subr.bf16.mxu0 0
      %1229 = vmatpush1.bf16.msra.mxu0 0
      %1230 = vmatprep.subr.bf16.mxu0 0
      %1231 = vmatpush1.bf16.msra.mxu0 0
      %1232 = vmatprep.subr.bf16.mxu0 0
      %1233 = vmatpush1.bf16.msra.mxu0 0
      %1234 = vmatprep.subr.bf16.mxu0 0
      %1235 = vmatpush1.bf16.msra.mxu0 0
      %1236 = vmatprep.subr.bf16.mxu0 0
      %1237 = vmatpush1.bf16.msra.mxu0 0
      %1238 = vmatprep.subr.bf16.mxu0 0
      %1239 = vmatpush1.bf16.msra.mxu0 0
      %1240 = vmatprep.subr.bf16.mxu0 0
      %1241 = vmatpush1.bf16.msra.mxu0 0
      %1242 = vmatprep.subr.bf16.mxu0 0
      %1243 = vmatpush1.bf16.msra.mxu0 0
      %1244 = vmatprep.mubr.bf16.mxu0 0
      %1245 = vmatmul.mubr.bf16.gmra.mrb[0].mxu0 %v1182
      %v1246 = vpop.f32.mrb[0].mxu0
      %v1247 = vadd.f32 0.0, %v1246
      %v1248 = vpop.f32.mrb[0].mxu0
      %v1249 = vadd.f32 0.0, %v1248
      %v1250 = vpop.f32.mrb[0].mxu0
      %v1251 = vadd.f32 0.0, %v1250
      %v1252 = vpop.f32.mrb[0].mxu0
      %v1253 = vadd.f32 0.0, %v1252
      %1254 = vdwg.mxu0
      %1255 = vmatprep.subr.bf16.mxu0 %v1131
      %1256 = vmatpush1.bf16.msra.mxu0 %v1130
      %1257 = vmatprep.subr.bf16.mxu0 %v1140
      %1258 = vmatpush1.bf16.msra.mxu0 %v1139
      %1259 = vmatprep.subr.bf16.mxu0 %v1149
      %1260 = vmatpush1.bf16.msra.mxu0 %v1148
      %1261 = vmatprep.subr.bf16.mxu0 %v1158
      %1262 = vmatpush1.bf16.msra.mxu0 %v1157
      %1263 = vmatprep.subr.bf16.mxu0 %v1195
      %1264 = vmatpush1.bf16.msra.mxu0 %v1192
      %1265 = vmatprep.subr.bf16.mxu0 0
      %1266 = vmatpush1.bf16.msra.mxu0 0
      %1267 = vmatprep.subr.bf16.mxu0 0
      %1268 = vmatpush1.bf16.msra.mxu0 0
      %1269 = vmatprep.subr.bf16.mxu0 0
      %1270 = vmatpush1.bf16.msra.mxu0 0
      %1271 = vmatprep.subr.bf16.mxu0 0
      %1272 = vmatpush1.bf16.msra.mxu0 0
      %1273 = vmatprep.subr.bf16.mxu0 0
      %1274 = vmatpush1.bf16.msra.mxu0 0
      %1275 = vmatprep.subr.bf16.mxu0 0
      %1276 = vmatpush1.bf16.msra.mxu0 0
      %1277 = vmatprep.subr.bf16.mxu0 0
      %1278 = vmatpush1.bf16.msra.mxu0 0
      %1279 = vmatprep.subr.bf16.mxu0 0
      %1280 = vmatpush1.bf16.msra.mxu0 0
      %1281 = vmatprep.subr.bf16.mxu0 0
      %1282 = vmatpush1.bf16.msra.mxu0 0
      %1283 = vmatprep.subr.bf16.mxu0 0
      %1284 = vmatpush1.bf16.msra.mxu0 0
      %1285 = vmatprep.subr.bf16.mxu0 0
      %1286 = vmatpush1.bf16.msra.mxu0 0
      %1287 = vmatprep.mubr.bf16.mxu0 0
      %1288 = vmatmul.mubr.bf16.gmra.mrb[0].mxu0 %v1182
      %v1289 = vpop.f32.mrb[0].mxu0
      %v1290 = vadd.f32 0.0, %v1289
      %v1291 = vpop.f32.mrb[0].mxu0
      %v1292 = vadd.f32 0.0, %v1291
      %v1293 = vpop.f32.mrb[0].mxu0
      %v1294 = vadd.f32 0.0, %v1293
      %v1295 = vpop.f32.mrb[0].mxu0
      %v1296 = vadd.f32 0.0, %v1295
      %1297 = vdwg.mxu0
      %1298 = vmatprep.subr.bf16.mxu0 %v1133
      %1299 = vmatpush1.bf16.msra.mxu0 %v1132
      %1300 = vmatprep.subr.bf16.mxu0 %v1142
      %1301 = vmatpush1.bf16.msra.mxu0 %v1141
      %1302 = vmatprep.subr.bf16.mxu0 %v1151
      %1303 = vmatpush1.bf16.msra.mxu0 %v1150
      %1304 = vmatprep.subr.bf16.mxu0 %v1160
      %1305 = vmatpush1.bf16.msra.mxu0 %v1159
      %1306 = vmatprep.subr.bf16.mxu0 %v1201
      %1307 = vmatpush1.bf16.msra.mxu0 %v1198
      %1308 = vmatprep.subr.bf16.mxu0 0
      %1309 = vmatpush1.bf16.msra.mxu0 0
      %1310 = vmatprep.subr.bf16.mxu0 0
      %1311 = vmatpush1.bf16.msra.mxu0 0
      %1312 = vmatprep.subr.bf16.mxu0 0
      %1313 = vmatpush1.bf16.msra.mxu0 0
      %1314 = vmatprep.subr.bf16.mxu0 0
      %1315 = vmatpush1.bf16.msra.mxu0 0
      %1316 = vmatprep.subr.bf16.mxu0 0
      %1317 = vmatpush1.bf16.msra.mxu0 0
      %1318 = vmatprep.subr.bf16.mxu0 0
      %1319 = vmatpush1.bf16.msra.mxu0 0
      %1320 = vmatprep.subr.bf16.mxu0 0
      %1321 = vmatpush1.bf16.msra.mxu0 0
      %1322 = vmatprep.subr.bf16.mxu0 0
      %1323 = vmatpush1.bf16.msra.mxu0 0
      %1324 = vmatprep.subr.bf16.mxu0 0
      %1325 = vmatpush1.bf16.msra.mxu0 0
      %1326 = vmatprep.subr.bf16.mxu0 0
      %1327 = vmatpush1.bf16.msra.mxu0 0
      %1328 = vmatprep.subr.bf16.mxu0 0
      %1329 = vmatpush1.bf16.msra.mxu0 0
      %1330 = vmatprep.mubr.bf16.mxu0 0
      %1331 = vmatmul.mubr.bf16.gmra.mrb[0].mxu0 %v1182
      %v1332 = vpop.f32.mrb[0].mxu0
      %v1333 = vadd.f32 0.0, %v1332
      %v1334 = vpop.f32.mrb[0].mxu0
      %v1335 = vadd.f32 0.0, %v1334
      %v1336 = vpop.f32.mrb[0].mxu0
      %v1337 = vadd.f32 0.0, %v1336
      %v1338 = vpop.f32.mrb[0].mxu0
      %v1339 = vadd.f32 0.0, %v1338
      %1340 = vdwg.mxu0
      %1341 = vmatprep.subr.bf16.mxu0 %v1135
      %1342 = vmatpush1.bf16.msra.mxu0 %v1134
      %1343 = vmatprep.subr.bf16.mxu0 %v1144
      %1344 = vmatpush1.bf16.msra.mxu0 %v1143
      %1345 = vmatprep.subr.bf16.mxu0 %v1153
      %1346 = vmatpush1.bf16.msra.mxu0 %v1152
      %1347 = vmatprep.subr.bf16.mxu0 %v1162
      %1348 = vmatpush1.bf16.msra.mxu0 %v1161
      %1349 = vmatprep.subr.bf16.mxu0 %v1207
      %1350 = vmatpush1.bf16.msra.mxu0 %v1204
      %1351 = vmatprep.subr.bf16.mxu0 0
      %1352 = vmatpush1.bf16.msra.mxu0 0
      %1353 = vmatprep.subr.bf16.mxu0 0
      %1354 = vmatpush1.bf16.msra.mxu0 0
      %1355 = vmatprep.subr.bf16.mxu0 0
      %1356 = vmatpush1.bf16.msra.mxu0 0
      %1357 = vmatprep.subr.bf16.mxu0 0
      %1358 = vmatpush1.bf16.msra.mxu0 0
      %1359 = vmatprep.subr.bf16.mxu0 0
      %1360 = vmatpush1.bf16.msra.mxu0 0
      %1361 = vmatprep.subr.bf16.mxu0 0
      %1362 = vmatpush1.bf16.msra.mxu0 0
      %1363 = vmatprep.subr.bf16.mxu0 0
      %1364 = vmatpush1.bf16.msra.mxu0 0
      %1365 = vmatprep.subr.bf16.mxu0 0
      %1366 = vmatpush1.bf16.msra.mxu0 0
      %1367 = vmatprep.subr.bf16.mxu0 0
      %1368 = vmatpush1.bf16.msra.mxu0 0
      %1369 = vmatprep.subr.bf16.mxu0 0
      %1370 = vmatpush1.bf16.msra.mxu0 0
      %1371 = vmatprep.subr.bf16.mxu0 0
      %1372 = vmatpush1.bf16.msra.mxu0 0
      %1373 = vmatprep.mubr.bf16.mxu0 0
      %1374 = vmatmul.mubr.bf16.gmra.mrb[0].mxu0 %v1182
      %v1375 = vpop.f32.mrb[0].mxu0
      %v1376 = vadd.f32 0.0, %v1375
      %v1377 = vpop.f32.mrb[0].mxu0
      %v1378 = vadd.f32 0.0, %v1377
      %v1379 = vpop.f32.mrb[0].mxu0
      %v1380 = vadd.f32 0.0, %v1379
      %v1381 = vpop.f32.mrb[0].mxu0
      %v1382 = vadd.f32 0.0, %v1381
      %1383 = vdwg.mxu0
      %1384 = vmatprep.subr.bf16.mxu0 0
      %1385 = vmatpush1.bf16.msra.mxu0 %v1136
      %1386 = vmatprep.subr.bf16.mxu0 0
      %1387 = vmatpush1.bf16.msra.mxu0 %v1145
      %1388 = vmatprep.subr.bf16.mxu0 0
      %1389 = vmatpush1.bf16.msra.mxu0 %v1154
      %1390 = vmatprep.subr.bf16.mxu0 0
      %1391 = vmatpush1.bf16.msra.mxu0 %v1163
      %1392 = vmatprep.subr.bf16.mxu0 0
      %1393 = vmatpush1.bf16.msra.mxu0 %v1210
      %1394 = vmatprep.subr.bf16.mxu0 0
      %1395 = vmatpush1.bf16.msra.mxu0 0
      %1396 = vmatprep.subr.bf16.mxu0 0
      %1397 = vmatpush1.bf16.msra.mxu0 0
      %1398 = vmatprep.subr.bf16.mxu0 0
      %1399 = vmatpush1.bf16.msra.mxu0 0
      %1400 = vmatprep.subr.bf16.mxu0 0
      %1401 = vmatpush1.bf16.msra.mxu0 0
      %1402 = vmatprep.subr.bf16.mxu0 0
      %1403 = vmatpush1.bf16.msra.mxu0 0
      %1404 = vmatprep.subr.bf16.mxu0 0
      %1405 = vmatpush1.bf16.msra.mxu0 0
      %1406 = vmatprep.subr.bf16.mxu0 0
      %1407 = vmatpush1.bf16.msra.mxu0 0
      %1408 = vmatprep.subr.bf16.mxu0 0
      %1409 = vmatpush1.bf16.msra.mxu0 0
      %1410 = vmatprep.subr.bf16.mxu0 0
      %1411 = vmatpush1.bf16.msra.mxu0 0
      %1412 = vmatprep.subr.bf16.mxu0 0
      %1413 = vmatpush1.bf16.msra.mxu0 0
      %1414 = vmatprep.subr.bf16.mxu0 0
      %1415 = vmatpush1.bf16.msra.mxu0 0
      %1416 = vmatprep.mubr.bf16.mxu0 0
      %1417 = vmatmul.mubr.bf16.gmra.mrb[0].mxu0 %v1182
      %v1418 = vpop.f32.mrb[0].mxu0
      %v1419 = vadd.f32 0.0, %v1418
      %v1420 = vpop.f32.mrb[0].mxu0
      %v1421 = vpop.f32.mrb[0].mxu0
      %v1422 = vadd.f32 0.0, %v1421
      %v1423 = vpop.f32.mrb[0].mxu0
      %1424 = vdwg.mxu0
      %v1425 = vld [vmem:[%s10] sm:$0xff]
      %v1426 = vld [vmem:[%s10 + $0x8] sm:$0xff]
      %1428 = vset.pattern.permute.xlu0 0
      %1429 = vperm.xlu0 %1428, %v1425
      %v1430 = vpop.permute.xlu0 %1429
      %1433 = vset.pattern.permute.xlu0 0
      %1434 = vperm.xlu0 %1433, %v1426
      %v1435 = vpop.permute.xlu0 %1434
      %v1437 = vmul.f32 %v1247, %v1430
      %v1438 = vmul.f32 %v1249, %v1430
      %v1439 = vmul.f32 %v1290, %v1430
      %v1440 = vmul.f32 %v1292, %v1430
      %v1441 = vmul.f32 %v1333, %v1430
      %v1442 = vmul.f32 %v1335, %v1430
      %v1443 = vmul.f32 %v1376, %v1430
      %v1444 = vmul.f32 %v1378, %v1430
      %v1445 = vmul.f32 %v1419, %v1430
      %v1446 = vmul.f32 %v1251, %v1435
      %v1447 = vmul.f32 %v1253, %v1435
      %v1448 = vmul.f32 %v1294, %v1435
      %v1449 = vmul.f32 %v1296, %v1435
      %v1450 = vmul.f32 %v1337, %v1435
      %v1451 = vmul.f32 %v1339, %v1435
      %v1452 = vmul.f32 %v1380, %v1435
      %v1453 = vmul.f32 %v1382, %v1435
      %v1454 = vmul.f32 %v1422, %v1435
      %1455 = vset.pattern.permute.xlu0 1
      %1456 = vperm.xlu0 %1455, %v1425
      %v1457 = vpop.permute.xlu0 %1456
      %1459 = vset.pattern.permute.xlu0 1
      %1460 = vperm.xlu0 %1459, %v1426
      %v1461 = vpop.permute.xlu0 %1460
      %v1463 = vadd.f32 %v1437, %v1457
      %v1464 = vadd.f32 %v1438, %v1457
      %v1465 = vadd.f32 %v1439, %v1457
      %v1466 = vadd.f32 %v1440, %v1457
      %v1467 = vadd.f32 %v1441, %v1457
      %v1468 = vadd.f32 %v1442, %v1457
      %v1469 = vadd.f32 %v1443, %v1457
      %v1470 = vadd.f32 %v1444, %v1457
      %v1471 = vadd.f32 %v1445, %v1457
      %v1472 = vadd.f32 %v1446, %v1461
      %v1473 = vadd.f32 %v1447, %v1461
      %v1474 = vadd.f32 %v1448, %v1461
      %v1475 = vadd.f32 %v1449, %v1461
      %v1476 = vadd.f32 %v1450, %v1461
      %v1477 = vadd.f32 %v1451, %v1461
      %v1478 = vadd.f32 %v1452, %v1461
      %v1479 = vadd.f32 %v1453, %v1461
      %v1480 = vadd.f32 %v1454, %v1461
      %v1481 = vmax.f32 %v1463, 0.0
      %v1482 = vmax.f32 %v1464, 0.0
      %v1483 = vmax.f32 %v1465, 0.0
      %v1484 = vmax.f32 %v1466, 0.0
      %v1485 = vmax.f32 %v1467, 0.0
      %v1486 = vmax.f32 %v1468, 0.0
      %v1487 = vmax.f32 %v1469, 0.0
      %v1488 = vmax.f32 %v1470, 0.0
      %v1489 = vmax.f32 %v1471, 0.0
      %v1490 = vmax.f32 %v1472, 0.0
      %v1491 = vmax.f32 %v1473, 0.0
      %v1492 = vmax.f32 %v1474, 0.0
      %v1493 = vmax.f32 %v1475, 0.0
      %v1494 = vmax.f32 %v1476, 0.0
      %v1495 = vmax.f32 %v1477, 0.0
      %v1496 = vmax.f32 %v1478, 0.0
      %v1497 = vmax.f32 %v1479, 0.0
      %v1498 = vmax.f32 %v1480, 0.0
      %v1499 = vld [vmem:[%s21] sm:$0xff]
      %v1500 = vld [vmem:[%s21 + $0x8] sm:$0x1]
      %v1503 = vlaneseq
      %v1504 = vshrl.u32 %v1503, 7
      %v1505 = vsub.s32 0, %v1504
      %v1506 = vrot.slane %v1499, %v1505
      %v1507 = vlaneseq
      %v1508 = vshrl.u32 %v1507, 7
      %v1509 = vsub.s32 1, %v1508
      %v1510 = vrot.slane %v1499, %v1509
      %v1511 = vlaneseq
      %v1512 = vshrl.u32 %v1511, 7
      %v1513 = vsub.s32 2, %v1512
      %v1514 = vrot.slane %v1499, %v1513
      %v1515 = vlaneseq
      %v1516 = vshrl.u32 %v1515, 7
      %v1517 = vsub.s32 3, %v1516
      %v1518 = vrot.slane %v1499, %v1517
      %v1519 = vlaneseq
      %v1520 = vshrl.u32 %v1519, 7
      %v1521 = vsub.s32 4, %v1520
      %v1522 = vrot.slane %v1499, %v1521
      %v1523 = vlaneseq
      %v1524 = vshrl.u32 %v1523, 7
      %v1525 = vsub.s32 5, %v1524
      %v1526 = vrot.slane %v1499, %v1525
      %v1527 = vlaneseq
      %v1528 = vshrl.u32 %v1527, 7
      %v1529 = vsub.s32 6, %v1528
      %v1530 = vrot.slane %v1499, %v1529
      %v1531 = vlaneseq
      %v1532 = vshrl.u32 %v1531, 7
      %v1533 = vsub.s32 7, %v1532
      %v1534 = vrot.slane %v1499, %v1533
      %v1535 = vlaneseq
      %v1536 = vshrl.u32 %v1535, 7
      %v1537 = vsub.s32 0, %v1536
      %v1538 = vrot.slane %v1500, %v1537
      %v1548 = vmul.f32 %v1481, %v1506
      %v1549 = vmul.f32 %v1482, %v1510
      %v1550 = vmul.f32 %v1483, %v1514
      %v1551 = vmul.f32 %v1484, %v1518
      %v1552 = vmul.f32 %v1485, %v1522
      %v1553 = vmul.f32 %v1486, %v1526
      %v1554 = vmul.f32 %v1487, %v1530
      %v1555 = vmul.f32 %v1488, %v1534
      %v1556 = vmul.f32 %v1489, %v1538
      %v1557 = vmul.f32 %v1490, %v1506
      %v1558 = vmul.f32 %v1491, %v1510
      %v1559 = vmul.f32 %v1492, %v1514
      %v1560 = vmul.f32 %v1493, %v1518
      %v1561 = vmul.f32 %v1494, %v1522
      %v1562 = vmul.f32 %v1495, %v1526
      %v1563 = vmul.f32 %v1496, %v1530
      %v1564 = vmul.f32 %v1497, %v1534
      %v1565 = vmul.f32 %v1498, %v1538
      %1584 = vrot.lane.b32.xlu0 %v1548, 35
      %v1585 = vpop.permute.xlu0 %1584
      %1586 = vrot.lane.b32.xlu0 %v1549, 35
      %v1587 = vpop.permute.xlu0 %1586
      %1588 = vrot.lane.b32.xlu0 %v1550, 35
      %v1589 = vpop.permute.xlu0 %1588
      %1590 = vrot.lane.b32.xlu0 %v1551, 35
      %v1591 = vpop.permute.xlu0 %1590
      %1592 = vrot.lane.b32.xlu0 %v1552, 35
      %v1593 = vpop.permute.xlu0 %1592
      %1594 = vrot.lane.b32.xlu0 %v1553, 35
      %v1595 = vpop.permute.xlu0 %1594
      %1596 = vrot.lane.b32.xlu0 %v1554, 35
      %v1597 = vpop.permute.xlu0 %1596
      %1598 = vrot.lane.b32.xlu0 %v1555, 35
      %v1599 = vpop.permute.xlu0 %1598
      %1600 = vrot.lane.b32.xlu0 %v1556, 35
      %v1601 = vpop.permute.xlu0 %1600
      %1602 = vrot.lane.b32.xlu0 %v1557, 35
      %v1603 = vpop.permute.xlu0 %1602
      %1604 = vrot.lane.b32.xlu0 %v1558, 35
      %v1605 = vpop.permute.xlu0 %1604
      %1606 = vrot.lane.b32.xlu0 %v1559, 35
      %v1607 = vpop.permute.xlu0 %1606
      %1608 = vrot.lane.b32.xlu0 %v1560, 35
      %v1609 = vpop.permute.xlu0 %1608
      %1610 = vrot.lane.b32.xlu0 %v1561, 35
      %v1611 = vpop.permute.xlu0 %1610
      %1612 = vrot.lane.b32.xlu0 %v1562, 35
      %v1613 = vpop.permute.xlu0 %1612
      %1614 = vrot.lane.b32.xlu0 %v1563, 35
      %v1615 = vpop.permute.xlu0 %1614
      %1616 = vrot.lane.b32.xlu0 %v1564, 35
      %v1617 = vpop.permute.xlu0 %1616
      %1618 = vrot.lane.b32.xlu0 %v1565, 35
      %v1619 = vpop.permute.xlu0 %1618
      %vm1620 = vcmask 285696
      %v1621 = vsel %vm1620, %v1585, %v1587
      %v1622 = vsel %vm1620, %v1587, %v1589
      %v1623 = vsel %vm1620, %v1589, %v1591
      %v1624 = vsel %vm1620, %v1591, %v1593
      %v1625 = vsel %vm1620, %v1593, %v1595
      %v1626 = vsel %vm1620, %v1595, %v1597
      %v1627 = vsel %vm1620, %v1597, %v1599
      %v1628 = vsel %vm1620, %v1599, %v1601
      %v1629 = vsel %vm1620, %v1603, %v1605
      %v1630 = vsel %vm1620, %v1605, %v1607
      %v1631 = vsel %vm1620, %v1607, %v1609
      %v1632 = vsel %vm1620, %v1609, %v1611
      %v1633 = vsel %vm1620, %v1611, %v1613
      %v1634 = vsel %vm1620, %v1613, %v1615
      %v1635 = vsel %vm1620, %v1615, %v1617
      %v1636 = vsel %vm1620, %v1617, %v1619
      %vm1655 = vcmask 1047832
      %1656 = vst.msk [vmem:[#allocation2] sm:$0xff] %vm1655, %v1585
      %1657 = vst [vmem:[#allocation2 + $0x8] sm:$0xff] %v1621
      %1658 = vst [vmem:[#allocation2 + $0x10] sm:$0xff] %v1622
      %1659 = vst [vmem:[#allocation2 + $0x18] sm:$0xff] %v1623
      %1660 = vst [vmem:[#allocation2 + $0x20] sm:$0xff] %v1624
      %1661 = vst [vmem:[#allocation2 + $0x28] sm:$0xff] %v1625
      %1662 = vst [vmem:[#allocation2 + $0x30] sm:$0xff] %v1626
      %1663 = vst [vmem:[#allocation2 + $0x38] sm:$0xff] %v1627
      %vm1664 = vcmask 809984
      %1665 = vst.msk [vmem:[#allocation2 + $0x40] sm:$0xff] %vm1664, %v1628
      %1666 = vst.msk [vmem:[#allocation2 + $0x50] sm:$0xff] %vm1655, %v1603
      %1667 = vst [vmem:[#allocation2 + $0x58] sm:$0xff] %v1629
      %1668 = vst [vmem:[#allocation2 + $0x60] sm:$0xff] %v1630
      %1669 = vst [vmem:[#allocation2 + $0x68] sm:$0xff] %v1631
      %1670 = vst [vmem:[#allocation2 + $0x70] sm:$0xff] %v1632
      %1671 = vst [vmem:[#allocation2 + $0x78] sm:$0xff] %v1633
      %1672 = vst [vmem:[#allocation2 + $0x80] sm:$0xff] %v1634
      %1673 = vst [vmem:[#allocation2 + $0x88] sm:$0xff] %v1635
      %1674 = vst.msk [vmem:[#allocation2 + $0x90] sm:$0xff] %vm1664, %v1636
      %v1675 = vld [vmem:[#allocation2] sm:$0xff]
      %v1676 = vld [vmem:[#allocation2 + $0x8] sm:$0xff]
      %v1677 = vld [vmem:[#allocation2 + $0x10] sm:$0xff]
      %v1678 = vld [vmem:[#allocation2 + $0x18] sm:$0xff]
      %v1679 = vld [vmem:[#allocation2 + $0x20] sm:$0xff]
      %v1680 = vld [vmem:[#allocation2 + $0x28] sm:$0xff]
      %v1681 = vld [vmem:[#allocation2 + $0x30] sm:$0xff]
      %v1682 = vld [vmem:[#allocation2 + $0x38] sm:$0xff]
      %v1683 = vld [vmem:[#allocation2 + $0x40] sm:$0xff]
      %v1684 = vld [vmem:[#allocation2 + $0x48] sm:$0xff]
      %v1685 = vld [vmem:[#allocation2 + $0x50] sm:$0xff]
      %v1686 = vld [vmem:[#allocation2 + $0x58] sm:$0xff]
      %v1687 = vld [vmem:[#allocation2 + $0x60] sm:$0xff]
      %v1688 = vld [vmem:[#allocation2 + $0x68] sm:$0xff]
      %v1689 = vld [vmem:[#allocation2 + $0x70] sm:$0xff]
      %v1690 = vld [vmem:[#allocation2 + $0x78] sm:$0xff]
      %v1691 = vld [vmem:[#allocation2 + $0x80] sm:$0xff]
      %v1692 = vld [vmem:[#allocation2 + $0x88] sm:$0xff]
      %v1693 = vld [vmem:[#allocation2 + $0x90] sm:$0xff]
      %v1694 = vld [vmem:[#allocation2 + $0x98] sm:$0xff]
      %1713 = vrot.lane.b32.xlu0 %v1675, 127
      %v1714 = vpop.permute.xlu0 %1713
      %1715 = vrot.lane.b32.xlu0 %v1676, 127
      %v1716 = vpop.permute.xlu0 %1715
      %1717 = vrot.lane.b32.xlu0 %v1677, 127
      %v1718 = vpop.permute.xlu0 %1717
      %1719 = vrot.lane.b32.xlu0 %v1678, 127
      %v1720 = vpop.permute.xlu0 %1719
      %1721 = vrot.lane.b32.xlu0 %v1679, 127
      %v1722 = vpop.permute.xlu0 %1721
      %1723 = vrot.lane.b32.xlu0 %v1680, 127
      %v1724 = vpop.permute.xlu0 %1723
      %1725 = vrot.lane.b32.xlu0 %v1681, 127
      %v1726 = vpop.permute.xlu0 %1725
      %1727 = vrot.lane.b32.xlu0 %v1682, 127
      %v1728 = vpop.permute.xlu0 %1727
      %1729 = vrot.lane.b32.xlu0 %v1683, 127
      %v1730 = vpop.permute.xlu0 %1729
      %1731 = vrot.lane.b32.xlu0 %v1685, 127
      %v1732 = vpop.permute.xlu0 %1731
      %1733 = vrot.lane.b32.xlu0 %v1686, 127
      %v1734 = vpop.permute.xlu0 %1733
      %1735 = vrot.lane.b32.xlu0 %v1687, 127
      %v1736 = vpop.permute.xlu0 %1735
      %1737 = vrot.lane.b32.xlu0 %v1688, 127
      %v1738 = vpop.permute.xlu0 %1737
      %1739 = vrot.lane.b32.xlu0 %v1689, 127
      %v1740 = vpop.permute.xlu0 %1739
      %1741 = vrot.lane.b32.xlu0 %v1690, 127
      %v1742 = vpop.permute.xlu0 %1741
      %1743 = vrot.lane.b32.xlu0 %v1691, 127
      %v1744 = vpop.permute.xlu0 %1743
      %1745 = vrot.lane.b32.xlu0 %v1692, 127
      %v1746 = vpop.permute.xlu0 %1745
      %1747 = vrot.lane.b32.xlu0 %v1693, 127
      %v1748 = vpop.permute.xlu0 %1747
      %v1749 = vsel %vm848, %v1714, %v1716
      %v1750 = vsel %vm848, %v1716, %v1718
      %v1751 = vsel %vm848, %v1718, %v1720
      %v1752 = vsel %vm848, %v1720, %v1722
      %v1753 = vsel %vm848, %v1722, %v1724
      %v1754 = vsel %vm848, %v1724, %v1726
      %v1755 = vsel %vm848, %v1726, %v1728
      %v1756 = vsel %vm848, %v1728, %v1730
      %v1757 = vsel %vm848, %v1732, %v1734
      %v1758 = vsel %vm848, %v1734, %v1736
      %v1759 = vsel %vm848, %v1736, %v1738
      %v1760 = vsel %vm848, %v1738, %v1740
      %v1761 = vsel %vm848, %v1740, %v1742
      %v1762 = vsel %vm848, %v1742, %v1744
      %v1763 = vsel %vm848, %v1744, %v1746
      %v1764 = vsel %vm848, %v1746, %v1748
      %1783 = vrot.lane.b32.xlu0 %v1675, 126
      %v1784 = vpop.permute.xlu0 %1783
      %1785 = vrot.lane.b32.xlu0 %v1676, 126
      %v1786 = vpop.permute.xlu0 %1785
      %1787 = vrot.lane.b32.xlu0 %v1677, 126
      %v1788 = vpop.permute.xlu0 %1787
      %1789 = vrot.lane.b32.xlu0 %v1678, 126
      %v1790 = vpop.permute.xlu0 %1789
      %1791 = vrot.lane.b32.xlu0 %v1679, 126
      %v1792 = vpop.permute.xlu0 %1791
      %1793 = vrot.lane.b32.xlu0 %v1680, 126
      %v1794 = vpop.permute.xlu0 %1793
      %1795 = vrot.lane.b32.xlu0 %v1681, 126
      %v1796 = vpop.permute.xlu0 %1795
      %1797 = vrot.lane.b32.xlu0 %v1682, 126
      %v1798 = vpop.permute.xlu0 %1797
      %1799 = vrot.lane.b32.xlu0 %v1683, 126
      %v1800 = vpop.permute.xlu0 %1799
      %1801 = vrot.lane.b32.xlu0 %v1685, 126
      %v1802 = vpop.permute.xlu0 %1801
      %1803 = vrot.lane.b32.xlu0 %v1686, 126
      %v1804 = vpop.permute.xlu0 %1803
      %1805 = vrot.lane.b32.xlu0 %v1687, 126
      %v1806 = vpop.permute.xlu0 %1805
      %1807 = vrot.lane.b32.xlu0 %v1688, 126
      %v1808 = vpop.permute.xlu0 %1807
      %1809 = vrot.lane.b32.xlu0 %v1689, 126
      %v1810 = vpop.permute.xlu0 %1809
      %1811 = vrot.lane.b32.xlu0 %v1690, 126
      %v1812 = vpop.permute.xlu0 %1811
      %1813 = vrot.lane.b32.xlu0 %v1691, 126
      %v1814 = vpop.permute.xlu0 %1813
      %1815 = vrot.lane.b32.xlu0 %v1692, 126
      %v1816 = vpop.permute.xlu0 %1815
      %1817 = vrot.lane.b32.xlu0 %v1693, 126
      %v1818 = vpop.permute.xlu0 %1817
      %v1819 = vsel %vm884, %v1784, %v1786
      %v1820 = vsel %vm884, %v1786, %v1788
      %v1821 = vsel %vm884, %v1788, %v1790
      %v1822 = vsel %vm884, %v1790, %v1792
      %v1823 = vsel %vm884, %v1792, %v1794
      %v1824 = vsel %vm884, %v1794, %v1796
      %v1825 = vsel %vm884, %v1796, %v1798
      %v1826 = vsel %vm884, %v1798, %v1800
      %v1827 = vsel %vm884, %v1802, %v1804
      %v1828 = vsel %vm884, %v1804, %v1806
      %v1829 = vsel %vm884, %v1806, %v1808
      %v1830 = vsel %vm884, %v1808, %v1810
      %v1831 = vsel %vm884, %v1810, %v1812
      %v1832 = vsel %vm884, %v1812, %v1814
      %v1833 = vsel %vm884, %v1814, %v1816
      %v1834 = vsel %vm884, %v1816, %v1818
      %1853 = vrot.lane.b32.xlu0 %v1675, 94
      %v1854 = vpop.permute.xlu0 %1853
      %1855 = vrot.lane.b32.xlu0 %v1676, 94
      %v1856 = vpop.permute.xlu0 %1855
      %1857 = vrot.lane.b32.xlu0 %v1677, 94
      %v1858 = vpop.permute.xlu0 %1857
      %1859 = vrot.lane.b32.xlu0 %v1678, 94
      %v1860 = vpop.permute.xlu0 %1859
      %1861 = vrot.lane.b32.xlu0 %v1679, 94
      %v1862 = vpop.permute.xlu0 %1861
      %1863 = vrot.lane.b32.xlu0 %v1680, 94
      %v1864 = vpop.permute.xlu0 %1863
      %1865 = vrot.lane.b32.xlu0 %v1681, 94
      %v1866 = vpop.permute.xlu0 %1865
      %1867 = vrot.lane.b32.xlu0 %v1682, 94
      %v1868 = vpop.permute.xlu0 %1867
      %1869 = vrot.lane.b32.xlu0 %v1683, 94
      %v1870 = vpop.permute.xlu0 %1869
      %1871 = vrot.lane.b32.xlu0 %v1685, 94
      %v1872 = vpop.permute.xlu0 %1871
      %1873 = vrot.lane.b32.xlu0 %v1686, 94
      %v1874 = vpop.permute.xlu0 %1873
      %1875 = vrot.lane.b32.xlu0 %v1687, 94
      %v1876 = vpop.permute.xlu0 %1875
      %1877 = vrot.lane.b32.xlu0 %v1688, 94
      %v1878 = vpop.permute.xlu0 %1877
      %1879 = vrot.lane.b32.xlu0 %v1689, 94
      %v1880 = vpop.permute.xlu0 %1879
      %1881 = vrot.lane.b32.xlu0 %v1690, 94
      %v1882 = vpop.permute.xlu0 %1881
      %1883 = vrot.lane.b32.xlu0 %v1691, 94
      %v1884 = vpop.permute.xlu0 %1883
      %1885 = vrot.lane.b32.xlu0 %v1692, 94
      %v1886 = vpop.permute.xlu0 %1885
      %1887 = vrot.lane.b32.xlu0 %v1693, 94
      %v1888 = vpop.permute.xlu0 %1887
      %v1889 = vsel %vm920, %v1854, %v1856
      %v1890 = vsel %vm920, %v1856, %v1858
      %v1891 = vsel %vm920, %v1858, %v1860
      %v1892 = vsel %vm920, %v1860, %v1862
      %v1893 = vsel %vm920, %v1862, %v1864
      %v1894 = vsel %vm920, %v1864, %v1866
      %v1895 = vsel %vm920, %v1866, %v1868
      %v1896 = vsel %vm920, %v1868, %v1870
      %v1897 = vsel %vm920, %v1872, %v1874
      %v1898 = vsel %vm920, %v1874, %v1876
      %v1899 = vsel %vm920, %v1876, %v1878
      %v1900 = vsel %vm920, %v1878, %v1880
      %v1901 = vsel %vm920, %v1880, %v1882
      %v1902 = vsel %vm920, %v1882, %v1884
      %v1903 = vsel %vm920, %v1884, %v1886
      %v1904 = vsel %vm920, %v1886, %v1888
      %1923 = vrot.lane.b32.xlu0 %v1675, 93
      %v1924 = vpop.permute.xlu0 %1923
      %1925 = vrot.lane.b32.xlu0 %v1676, 93
      %v1926 = vpop.permute.xlu0 %1925
      %1927 = vrot.lane.b32.xlu0 %v1677, 93
      %v1928 = vpop.permute.xlu0 %1927
      %1929 = vrot.lane.b32.xlu0 %v1678, 93
      %v1930 = vpop.permute.xlu0 %1929
      %1931 = vrot.lane.b32.xlu0 %v1679, 93
      %v1932 = vpop.permute.xlu0 %1931
      %1933 = vrot.lane.b32.xlu0 %v1680, 93
      %v1934 = vpop.permute.xlu0 %1933
      %1935 = vrot.lane.b32.xlu0 %v1681, 93
      %v1936 = vpop.permute.xlu0 %1935
      %1937 = vrot.lane.b32.xlu0 %v1682, 93
      %v1938 = vpop.permute.xlu0 %1937
      %1939 = vrot.lane.b32.xlu0 %v1683, 93
      %v1940 = vpop.permute.xlu0 %1939
      %1941 = vrot.lane.b32.xlu0 %v1685, 93
      %v1942 = vpop.permute.xlu0 %1941
      %1943 = vrot.lane.b32.xlu0 %v1686, 93
      %v1944 = vpop.permute.xlu0 %1943
      %1945 = vrot.lane.b32.xlu0 %v1687, 93
      %v1946 = vpop.permute.xlu0 %1945
      %1947 = vrot.lane.b32.xlu0 %v1688, 93
      %v1948 = vpop.permute.xlu0 %1947
      %1949 = vrot.lane.b32.xlu0 %v1689, 93
      %v1950 = vpop.permute.xlu0 %1949
      %1951 = vrot.lane.b32.xlu0 %v1690, 93
      %v1952 = vpop.permute.xlu0 %1951
      %1953 = vrot.lane.b32.xlu0 %v1691, 93
      %v1954 = vpop.permute.xlu0 %1953
      %1955 = vrot.lane.b32.xlu0 %v1692, 93
      %v1956 = vpop.permute.xlu0 %1955
      %1957 = vrot.lane.b32.xlu0 %v1693, 93
      %v1958 = vpop.permute.xlu0 %1957
      %v1959 = vsel %vm956, %v1924, %v1926
      %v1960 = vsel %vm956, %v1926, %v1928
      %v1961 = vsel %vm956, %v1928, %v1930
      %v1962 = vsel %vm956, %v1930, %v1932
      %v1963 = vsel %vm956, %v1932, %v1934
      %v1964 = vsel %vm956, %v1934, %v1936
      %v1965 = vsel %vm956, %v1936, %v1938
      %v1966 = vsel %vm956, %v1938, %v1940
      %v1967 = vsel %vm956, %v1942, %v1944
      %v1968 = vsel %vm956, %v1944, %v1946
      %v1969 = vsel %vm956, %v1946, %v1948
      %v1970 = vsel %vm956, %v1948, %v1950
      %v1971 = vsel %vm956, %v1950, %v1952
      %v1972 = vsel %vm956, %v1952, %v1954
      %v1973 = vsel %vm956, %v1954, %v1956
      %v1974 = vsel %vm956, %v1956, %v1958
      %1993 = vrot.lane.b32.xlu0 %v1675, 92
      %v1994 = vpop.permute.xlu0 %1993
      %1995 = vrot.lane.b32.xlu0 %v1676, 92
      %v1996 = vpop.permute.xlu0 %1995
      %1997 = vrot.lane.b32.xlu0 %v1677, 92
      %v1998 = vpop.permute.xlu0 %1997
      %1999 = vrot.lane.b32.xlu0 %v1678, 92
      %v2000 = vpop.permute.xlu0 %1999
      %2001 = vrot.lane.b32.xlu0 %v1679, 92
      %v2002 = vpop.permute.xlu0 %2001
      %2003 = vrot.lane.b32.xlu0 %v1680, 92
      %v2004 = vpop.permute.xlu0 %2003
      %2005 = vrot.lane.b32.xlu0 %v1681, 92
      %v2006 = vpop.permute.xlu0 %2005
      %2007 = vrot.lane.b32.xlu0 %v1682, 92
      %v2008 = vpop.permute.xlu0 %2007
      %2009 = vrot.lane.b32.xlu0 %v1683, 92
      %v2010 = vpop.permute.xlu0 %2009
      %2011 = vrot.lane.b32.xlu0 %v1685, 92
      %v2012 = vpop.permute.xlu0 %2011
      %2013 = vrot.lane.b32.xlu0 %v1686, 92
      %v2014 = vpop.permute.xlu0 %2013
      %2015 = vrot.lane.b32.xlu0 %v1687, 92
      %v2016 = vpop.permute.xlu0 %2015
      %2017 = vrot.lane.b32.xlu0 %v1688, 92
      %v2018 = vpop.permute.xlu0 %2017
      %2019 = vrot.lane.b32.xlu0 %v1689, 92
      %v2020 = vpop.permute.xlu0 %2019
      %2021 = vrot.lane.b32.xlu0 %v1690, 92
      %v2022 = vpop.permute.xlu0 %2021
      %2023 = vrot.lane.b32.xlu0 %v1691, 92
      %v2024 = vpop.permute.xlu0 %2023
      %2025 = vrot.lane.b32.xlu0 %v1692, 92
      %v2026 = vpop.permute.xlu0 %2025
      %2027 = vrot.lane.b32.xlu0 %v1693, 92
      %v2028 = vpop.permute.xlu0 %2027
      %v2029 = vsel %vm992, %v1994, %v1996
      %v2030 = vsel %vm992, %v1996, %v1998
      %v2031 = vsel %vm992, %v1998, %v2000
      %v2032 = vsel %vm992, %v2000, %v2002
      %v2033 = vsel %vm992, %v2002, %v2004
      %v2034 = vsel %vm992, %v2004, %v2006
      %v2035 = vsel %vm992, %v2006, %v2008
      %v2036 = vsel %vm992, %v2008, %v2010
      %v2037 = vsel %vm992, %v2012, %v2014
      %v2038 = vsel %vm992, %v2014, %v2016
      %v2039 = vsel %vm992, %v2016, %v2018
      %v2040 = vsel %vm992, %v2018, %v2020
      %v2041 = vsel %vm992, %v2020, %v2022
      %v2042 = vsel %vm992, %v2022, %v2024
      %v2043 = vsel %vm992, %v2024, %v2026
      %v2044 = vsel %vm992, %v2026, %v2028
      %2065 = vrot.lane.b32.xlu0 %v1675, 60
      %v2066 = vpop.permute.xlu0 %2065
      %2067 = vrot.lane.b32.xlu0 %v1676, 60
      %v2068 = vpop.permute.xlu0 %2067
      %2069 = vrot.lane.b32.xlu0 %v1677, 60
      %v2070 = vpop.permute.xlu0 %2069
      %2071 = vrot.lane.b32.xlu0 %v1678, 60
      %v2072 = vpop.permute.xlu0 %2071
      %2073 = vrot.lane.b32.xlu0 %v1679, 60
      %v2074 = vpop.permute.xlu0 %2073
      %2075 = vrot.lane.b32.xlu0 %v1680, 60
      %v2076 = vpop.permute.xlu0 %2075
      %2077 = vrot.lane.b32.xlu0 %v1681, 60
      %v2078 = vpop.permute.xlu0 %2077
      %2079 = vrot.lane.b32.xlu0 %v1682, 60
      %v2080 = vpop.permute.xlu0 %2079
      %2081 = vrot.lane.b32.xlu0 %v1683, 60
      %v2082 = vpop.permute.xlu0 %2081
      %2083 = vrot.lane.b32.xlu0 %v1684, 60
      %v2084 = vpop.permute.xlu0 %2083
      %2085 = vrot.lane.b32.xlu0 %v1685, 60
      %v2086 = vpop.permute.xlu0 %2085
      %2087 = vrot.lane.b32.xlu0 %v1686, 60
      %v2088 = vpop.permute.xlu0 %2087
      %2089 = vrot.lane.b32.xlu0 %v1687, 60
      %v2090 = vpop.permute.xlu0 %2089
      %2091 = vrot.lane.b32.xlu0 %v1688, 60
      %v2092 = vpop.permute.xlu0 %2091
      %2093 = vrot.lane.b32.xlu0 %v1689, 60
      %v2094 = vpop.permute.xlu0 %2093
      %2095 = vrot.lane.b32.xlu0 %v1690, 60
      %v2096 = vpop.permute.xlu0 %2095
      %2097 = vrot.lane.b32.xlu0 %v1691, 60
      %v2098 = vpop.permute.xlu0 %2097
      %2099 = vrot.lane.b32.xlu0 %v1692, 60
      %v2100 = vpop.permute.xlu0 %2099
      %2101 = vrot.lane.b32.xlu0 %v1693, 60
      %v2102 = vpop.permute.xlu0 %2101
      %2103 = vrot.lane.b32.xlu0 %v1694, 60
      %v2104 = vpop.permute.xlu0 %2103
      %v2105 = vsel %vm1031, %v2066, %v2068
      %v2106 = vsel %vm1031, %v2068, %v2070
      %v2107 = vsel %vm1031, %v2070, %v2072
      %v2108 = vsel %vm1031, %v2072, %v2074
      %v2109 = vsel %vm1031, %v2074, %v2076
      %v2110 = vsel %vm1031, %v2076, %v2078
      %v2111 = vsel %vm1031, %v2078, %v2080
      %v2112 = vsel %vm1031, %v2080, %v2082
      %v2113 = vsel %vm1031, %v2082, %v2084
      %v2114 = vsel %vm1031, %v2086, %v2088
      %v2115 = vsel %vm1031, %v2088, %v2090
      %v2116 = vsel %vm1031, %v2090, %v2092
      %v2117 = vsel %vm1031, %v2092, %v2094
      %v2118 = vsel %vm1031, %v2094, %v2096
      %v2119 = vsel %vm1031, %v2096, %v2098
      %v2120 = vsel %vm1031, %v2098, %v2100
      %v2121 = vsel %vm1031, %v2100, %v2102
      %v2122 = vsel %vm1031, %v2102, %v2104
      %2141 = vrot.lane.b32.xlu0 %v1675, 59
      %v2142 = vpop.permute.xlu0 %2141
      %2143 = vrot.lane.b32.xlu0 %v1676, 59
      %v2144 = vpop.permute.xlu0 %2143
      %2145 = vrot.lane.b32.xlu0 %v1677, 59
      %v2146 = vpop.permute.xlu0 %2145
      %2147 = vrot.lane.b32.xlu0 %v1678, 59
      %v2148 = vpop.permute.xlu0 %2147
      %2149 = vrot.lane.b32.xlu0 %v1679, 59
      %v2150 = vpop.permute.xlu0 %2149
      %2151 = vrot.lane.b32.xlu0 %v1680, 59
      %v2152 = vpop.permute.xlu0 %2151
      %2153 = vrot.lane.b32.xlu0 %v1681, 59
      %v2154 = vpop.permute.xlu0 %2153
      %2155 = vrot.lane.b32.xlu0 %v1682, 59
      %v2156 = vpop.permute.xlu0 %2155
      %2157 = vrot.lane.b32.xlu0 %v1683, 59
      %v2158 = vpop.permute.xlu0 %2157
      %2159 = vrot.lane.b32.xlu0 %v1684, 59
      %v2160 = vpop.permute.xlu0 %2159
      %2161 = vrot.lane.b32.xlu0 %v1685, 59
      %v2162 = vpop.permute.xlu0 %2161
      %2163 = vrot.lane.b32.xlu0 %v1686, 59
      %v2164 = vpop.permute.xlu0 %2163
      %2165 = vrot.lane.b32.xlu0 %v1687, 59
      %v2166 = vpop.permute.xlu0 %2165
      %2167 = vrot.lane.b32.xlu0 %v1688, 59
      %v2168 = vpop.permute.xlu0 %2167
      %2169 = vrot.lane.b32.xlu0 %v1689, 59
      %v2170 = vpop.permute.xlu0 %2169
      %2171 = vrot.lane.b32.xlu0 %v1690, 59
      %v2172 = vpop.permute.xlu0 %2171
      %2173 = vrot.lane.b32.xlu0 %v1691, 59
      %v2174 = vpop.permute.xlu0 %2173
      %2175 = vrot.lane.b32.xlu0 %v1692, 59
      %v2176 = vpop.permute.xlu0 %2175
      %2177 = vrot.lane.b32.xlu0 %v1693, 59
      %v2178 = vpop.permute.xlu0 %2177
      %2179 = vrot.lane.b32.xlu0 %v1694, 59
      %v2180 = vpop.permute.xlu0 %2179
      %v2181 = vsel %vm1070, %v2142, %v2144
      %v2182 = vsel %vm1070, %v2144, %v2146
      %v2183 = vsel %vm1070, %v2146, %v2148
      %v2184 = vsel %vm1070, %v2148, %v2150
      %v2185 = vsel %vm1070, %v2150, %v2152
      %v2186 = vsel %vm1070, %v2152, %v2154
      %v2187 = vsel %vm1070, %v2154, %v2156
      %v2188 = vsel %vm1070, %v2156, %v2158
      %v2189 = vsel %vm1070, %v2158, %v2160
      %v2190 = vsel %vm1070, %v2162, %v2164
      %v2191 = vsel %vm1070, %v2164, %v2166
      %v2192 = vsel %vm1070, %v2166, %v2168
      %v2193 = vsel %vm1070, %v2168, %v2170
      %v2194 = vsel %vm1070, %v2170, %v2172
      %v2195 = vsel %vm1070, %v2172, %v2174
      %v2196 = vsel %vm1070, %v2174, %v2176
      %v2197 = vsel %vm1070, %v2176, %v2178
      %v2198 = vsel %vm1070, %v2178, %v2180
      %2217 = vrot.lane.b32.xlu0 %v1675, 58
      %v2218 = vpop.permute.xlu0 %2217
      %2219 = vrot.lane.b32.xlu0 %v1676, 58
      %v2220 = vpop.permute.xlu0 %2219
      %2221 = vrot.lane.b32.xlu0 %v1677, 58
      %v2222 = vpop.permute.xlu0 %2221
      %2223 = vrot.lane.b32.xlu0 %v1678, 58
      %v2224 = vpop.permute.xlu0 %2223
      %2225 = vrot.lane.b32.xlu0 %v1679, 58
      %v2226 = vpop.permute.xlu0 %2225
      %2227 = vrot.lane.b32.xlu0 %v1680, 58
      %v2228 = vpop.permute.xlu0 %2227
      %2229 = vrot.lane.b32.xlu0 %v1681, 58
      %v2230 = vpop.permute.xlu0 %2229
      %2231 = vrot.lane.b32.xlu0 %v1682, 58
      %v2232 = vpop.permute.xlu0 %2231
      %2233 = vrot.lane.b32.xlu0 %v1683, 58
      %v2234 = vpop.permute.xlu0 %2233
      %2235 = vrot.lane.b32.xlu0 %v1684, 58
      %v2236 = vpop.permute.xlu0 %2235
      %2237 = vrot.lane.b32.xlu0 %v1685, 58
      %v2238 = vpop.permute.xlu0 %2237
      %2239 = vrot.lane.b32.xlu0 %v1686, 58
      %v2240 = vpop.permute.xlu0 %2239
      %2241 = vrot.lane.b32.xlu0 %v1687, 58
      %v2242 = vpop.permute.xlu0 %2241
      %2243 = vrot.lane.b32.xlu0 %v1688, 58
      %v2244 = vpop.permute.xlu0 %2243
      %2245 = vrot.lane.b32.xlu0 %v1689, 58
      %v2246 = vpop.permute.xlu0 %2245
      %2247 = vrot.lane.b32.xlu0 %v1690, 58
      %v2248 = vpop.permute.xlu0 %2247
      %2249 = vrot.lane.b32.xlu0 %v1691, 58
      %v2250 = vpop.permute.xlu0 %2249
      %2251 = vrot.lane.b32.xlu0 %v1692, 58
      %v2252 = vpop.permute.xlu0 %2251
      %2253 = vrot.lane.b32.xlu0 %v1693, 58
      %v2254 = vpop.permute.xlu0 %2253
      %2255 = vrot.lane.b32.xlu0 %v1694, 58
      %v2256 = vpop.permute.xlu0 %2255
      %v2257 = vsel %vm1109, %v2218, %v2220
      %v2258 = vsel %vm1109, %v2220, %v2222
      %v2259 = vsel %vm1109, %v2222, %v2224
      %v2260 = vsel %vm1109, %v2224, %v2226
      %v2261 = vsel %vm1109, %v2226, %v2228
      %v2262 = vsel %vm1109, %v2228, %v2230
      %v2263 = vsel %vm1109, %v2230, %v2232
      %v2264 = vsel %vm1109, %v2232, %v2234
      %v2265 = vsel %vm1109, %v2234, %v2236
      %v2266 = vsel %vm1109, %v2238, %v2240
      %v2267 = vsel %vm1109, %v2240, %v2242
      %v2268 = vsel %vm1109, %v2242, %v2244
      %v2269 = vsel %vm1109, %v2244, %v2246
      %v2270 = vsel %vm1109, %v2246, %v2248
      %v2271 = vsel %vm1109, %v2248, %v2250
      %v2272 = vsel %vm1109, %v2250, %v2252
      %v2273 = vsel %vm1109, %v2252, %v2254
      %v2274 = vsel %vm1109, %v2254, %v2256
      %v2293 = vpack.c.bf16 %v1685, %v1675
      %v2294 = vpack.c.bf16 %v1686, %v1676
      %v2295 = vpack.c.bf16 %v1687, %v1677
      %v2296 = vpack.c.bf16 %v1688, %v1678
      %v2297 = vpack.c.bf16 %v1689, %v1679
      %v2298 = vpack.c.bf16 %v1690, %v1680
      %v2299 = vpack.c.bf16 %v1691, %v1681
      %v2300 = vpack.c.bf16 %v1692, %v1682
      %v2301 = vpack.c.bf16 %v1693, %v1683
      %v2302 = vpack.c.bf16 %v1757, %v1749
      %v2303 = vpack.c.bf16 %v1758, %v1750
      %v2304 = vpack.c.bf16 %v1759, %v1751
      %v2305 = vpack.c.bf16 %v1760, %v1752
      %v2306 = vpack.c.bf16 %v1761, %v1753
      %v2307 = vpack.c.bf16 %v1762, %v1754
      %v2308 = vpack.c.bf16 %v1763, %v1755
      %v2309 = vpack.c.bf16 %v1764, %v1756
      %v2310 = vpack.c.bf16 %v1748, %v1730
      %v2311 = vpack.c.bf16 %v1827, %v1819
      %v2312 = vpack.c.bf16 %v1828, %v1820
      %v2313 = vpack.c.bf16 %v1829, %v1821
      %v2314 = vpack.c.bf16 %v1830, %v1822
      %v2315 = vpack.c.bf16 %v1831, %v1823
      %v2316 = vpack.c.bf16 %v1832, %v1824
      %v2317 = vpack.c.bf16 %v1833, %v1825
      %v2318 = vpack.c.bf16 %v1834, %v1826
      %v2319 = vpack.c.bf16 %v1818, %v1800
      %v2320 = vpack.c.bf16 %v1897, %v1889
      %v2321 = vpack.c.bf16 %v1898, %v1890
      %v2322 = vpack.c.bf16 %v1899, %v1891
      %v2323 = vpack.c.bf16 %v1900, %v1892
      %v2324 = vpack.c.bf16 %v1901, %v1893
      %v2325 = vpack.c.bf16 %v1902, %v1894
      %v2326 = vpack.c.bf16 %v1903, %v1895
      %v2327 = vpack.c.bf16 %v1904, %v1896
      %v2328 = vpack.c.bf16 %v1888, %v1870
      %v2329 = vpack.c.bf16 %v1967, %v1959
      %v2330 = vpack.c.bf16 %v1968, %v1960
      %v2331 = vpack.c.bf16 %v1969, %v1961
      %v2332 = vpack.c.bf16 %v1970, %v1962
      %v2333 = vpack.c.bf16 %v1971, %v1963
      %v2334 = vpack.c.bf16 %v1972, %v1964
      %v2335 = vpack.c.bf16 %v1973, %v1965
      %v2336 = vpack.c.bf16 %v1974, %v1966
      %v2337 = vpack.c.bf16 %v1958, %v1940
      %v2338 = vpack.c.bf16 %v2037, %v2029
      %v2339 = vpack.c.bf16 %v2038, %v2030
      %v2340 = vpack.c.bf16 %v2039, %v2031
      %v2341 = vpack.c.bf16 %v2040, %v2032
      %v2342 = vpack.c.bf16 %v2041, %v2033
      %v2343 = vpack.c.bf16 %v2042, %v2034
      %v2344 = vpack.c.bf16 %v2043, %v2035
      %v2345 = vpack.c.bf16 %v2044, %v2036
      %v2346 = vpack.c.bf16 %v2028, %v2010
      %v2347 = vpack.c.bf16 %v2114, %v2105
      %v2348 = vpack.c.bf16 %v2115, %v2106
      %v2349 = vpack.c.bf16 %v2116, %v2107
      %v2350 = vpack.c.bf16 %v2117, %v2108
      %v2351 = vpack.c.bf16 %v2118, %v2109
      %v2352 = vpack.c.bf16 %v2119, %v2110
      %v2353 = vpack.c.bf16 %v2120, %v2111
      %v2354 = vpack.c.bf16 %v2121, %v2112
      %v2355 = vpack.c.bf16 %v2122, %v2113
      %v2356 = vpack.c.bf16 %v2190, %v2181
      %v2357 = vpack.c.bf16 %v2191, %v2182
      %v2358 = vpack.c.bf16 %v2192, %v2183
      %v2359 = vpack.c.bf16 %v2193, %v2184
      %v2360 = vpack.c.bf16 %v2194, %v2185
      %v2361 = vpack.c.bf16 %v2195, %v2186
      %v2362 = vpack.c.bf16 %v2196, %v2187
      %v2363 = vpack.c.bf16 %v2197, %v2188
      %v2364 = vpack.c.bf16 %v2198, %v2189
      %v2365 = vpack.c.bf16 %v2266, %v2257
      %v2366 = vpack.c.bf16 %v2267, %v2258
      %v2367 = vpack.c.bf16 %v2268, %v2259
      %v2368 = vpack.c.bf16 %v2269, %v2260
      %v2369 = vpack.c.bf16 %v2270, %v2261
      %v2370 = vpack.c.bf16 %v2271, %v2262
      %v2371 = vpack.c.bf16 %v2272, %v2263
      %v2372 = vpack.c.bf16 %v2273, %v2264
      %v2373 = vpack.c.bf16 %v2274, %v2265
      %v2374 = vld [vmem:[%s2] sm:$0xff]
      %v2375 = vld [vmem:[%s2 + $0x8] sm:$0xff]
      %v2378 = vunpack.c.l.b16 %v2374
      %v2379 = vunpack.c.h.b16 %v2374
      %v2380 = vunpack.c.l.b16 %v2375
      %v2381 = vunpack.c.h.b16 %v2375
      %v2382 = vpack.c.b16 %v2380, %v2378
      %v2383 = vpack.c.b16 %v2381, %v2379
      %vm2385 = vcmask 130048
      %v2387 = vsel %vm2385, %v2383, 0
      %2389 = vmatprep.subr.bf16.mxu0 %v2294
      %2390 = vmatpush1.bf16.msra.mxu0 %v2293
      %2391 = vmatprep.subr.bf16.mxu0 %v2303
      %2392 = vmatpush1.bf16.msra.mxu0 %v2302
      %2393 = vmatprep.subr.bf16.mxu0 %v2312
      %2394 = vmatpush1.bf16.msra.mxu0 %v2311
      %2395 = vmatprep.subr.bf16.mxu0 %v2321
      %2396 = vmatpush1.bf16.msra.mxu0 %v2320
      %2397 = vmatprep.subr.bf16.mxu0 %v2330
      %2398 = vmatpush1.bf16.msra.mxu0 %v2329
      %2399 = vmatprep.subr.bf16.mxu0 %v2339
      %2400 = vmatpush1.bf16.msra.mxu0 %v2338
      %2401 = vmatprep.subr.bf16.mxu0 %v2348
      %2402 = vmatpush1.bf16.msra.mxu0 %v2347
      %2403 = vmatprep.subr.bf16.mxu0 %v2357
      %2404 = vmatpush1.bf16.msra.mxu0 %v2356
      %2405 = vmatprep.subr.bf16.mxu0 %v2366
      %2406 = vmatpush1.bf16.msra.mxu0 %v2365
      %2407 = vmatprep.subr.bf16.mxu0 0
      %2408 = vmatpush1.bf16.msra.mxu0 0
      %2409 = vmatprep.subr.bf16.mxu0 0
      %2410 = vmatpush1.bf16.msra.mxu0 0
      %2411 = vmatprep.subr.bf16.mxu0 0
      %2412 = vmatpush1.bf16.msra.mxu0 0
      %2413 = vmatprep.subr.bf16.mxu0 0
      %2414 = vmatpush1.bf16.msra.mxu0 0
      %2415 = vmatprep.subr.bf16.mxu0 0
      %2416 = vmatpush1.bf16.msra.mxu0 0
      %2417 = vmatprep.subr.bf16.mxu0 0
      %2418 = vmatpush1.bf16.msra.mxu0 0
      %2419 = vmatprep.subr.bf16.mxu0 0
      %2420 = vmatpush1.bf16.msra.mxu0 0
      %2421 = vmatprep.mubr.bf16.mxu0 %v2387
      %2422 = vmatmul.mubr.bf16.gmra.mrb[0].mxu0 %v2382
      %v2423 = vpop.f32.mrb[0].mxu0
      %v2424 = vadd.f32 0.0, %v2423
      %v2425 = vpop.f32.mrb[0].mxu0
      %v2426 = vadd.f32 0.0, %v2425
      %v2427 = vpop.f32.mrb[0].mxu0
      %v2428 = vadd.f32 0.0, %v2427
      %v2429 = vpop.f32.mrb[0].mxu0
      %v2430 = vadd.f32 0.0, %v2429
      %2431 = vdwg.mxu0
      %2432 = vmatprep.subr.bf16.mxu0 %v2296
      %2433 = vmatpush1.bf16.msra.mxu0 %v2295
      %2434 = vmatprep.subr.bf16.mxu0 %v2305
      %2435 = vmatpush1.bf16.msra.mxu0 %v2304
      %2436 = vmatprep.subr.bf16.mxu0 %v2314
      %2437 = vmatpush1.bf16.msra.mxu0 %v2313
      %2438 = vmatprep.subr.bf16.mxu0 %v2323
      %2439 = vmatpush1.bf16.msra.mxu0 %v2322
      %2440 = vmatprep.subr.bf16.mxu0 %v2332
      %2441 = vmatpush1.bf16.msra.mxu0 %v2331
      %2442 = vmatprep.subr.bf16.mxu0 %v2341
      %2443 = vmatpush1.bf16.msra.mxu0 %v2340
      %2444 = vmatprep.subr.bf16.mxu0 %v2350
      %2445 = vmatpush1.bf16.msra.mxu0 %v2349
      %2446 = vmatprep.subr.bf16.mxu0 %v2359
      %2447 = vmatpush1.bf16.msra.mxu0 %v2358
      %2448 = vmatprep.subr.bf16.mxu0 %v2368
      %2449 = vmatpush1.bf16.msra.mxu0 %v2367
      %2450 = vmatprep.subr.bf16.mxu0 0
      %2451 = vmatpush1.bf16.msra.mxu0 0
      %2452 = vmatprep.subr.bf16.mxu0 0
      %2453 = vmatpush1.bf16.msra.mxu0 0
      %2454 = vmatprep.subr.bf16.mxu0 0
      %2455 = vmatpush1.bf16.msra.mxu0 0
      %2456 = vmatprep.subr.bf16.mxu0 0
      %2457 = vmatpush1.bf16.msra.mxu0 0
      %2458 = vmatprep.subr.bf16.mxu0 0
      %2459 = vmatpush1.bf16.msra.mxu0 0
      %2460 = vmatprep.subr.bf16.mxu0 0
      %2461 = vmatpush1.bf16.msra.mxu0 0
      %2462 = vmatprep.subr.bf16.mxu0 0
      %2463 = vmatpush1.bf16.msra.mxu0 0
      %2464 = vmatprep.mubr.bf16.mxu0 %v2387
      %2465 = vmatmul.mubr.bf16.gmra.mrb[0].mxu0 %v2382
      %v2466 = vpop.f32.mrb[0].mxu0
      %v2467 = vadd.f32 0.0, %v2466
      %v2468 = vpop.f32.mrb[0].mxu0
      %v2469 = vadd.f32 0.0, %v2468
      %v2470 = vpop.f32.mrb[0].mxu0
      %v2471 = vadd.f32 0.0, %v2470
      %v2472 = vpop.f32.mrb[0].mxu0
      %v2473 = vadd.f32 0.0, %v2472
      %2474 = vdwg.mxu0
      %2475 = vmatprep.subr.bf16.mxu0 %v2298
      %2476 = vmatpush1.bf16.msra.mxu0 %v2297
      %2477 = vmatprep.subr.bf16.mxu0 %v2307
      %2478 = vmatpush1.bf16.msra.mxu0 %v2306
      %2479 = vmatprep.subr.bf16.mxu0 %v2316
      %2480 = vmatpush1.bf16.msra.mxu0 %v2315
      %2481 = vmatprep.subr.bf16.mxu0 %v2325
      %2482 = vmatpush1.bf16.msra.mxu0 %v2324
      %2483 = vmatprep.subr.bf16.mxu0 %v2334
      %2484 = vmatpush1.bf16.msra.mxu0 %v2333
      %2485 = vmatprep.subr.bf16.mxu0 %v2343
      %2486 = vmatpush1.bf16.msra.mxu0 %v2342
      %2487 = vmatprep.subr.bf16.mxu0 %v2352
      %2488 = vmatpush1.bf16.msra.mxu0 %v2351
      %2489 = vmatprep.subr.bf16.mxu0 %v2361
      %2490 = vmatpush1.bf16.msra.mxu0 %v2360
      %2491 = vmatprep.subr.bf16.mxu0 %v2370
      %2492 = vmatpush1.bf16.msra.mxu0 %v2369
      %2493 = vmatprep.subr.bf16.mxu0 0
      %2494 = vmatpush1.bf16.msra.mxu0 0
      %2495 = vmatprep.subr.bf16.mxu0 0
      %2496 = vmatpush1.bf16.msra.mxu0 0
      %2497 = vmatprep.subr.bf16.mxu0 0
      %2498 = vmatpush1.bf16.msra.mxu0 0
      %2499 = vmatprep.subr.bf16.mxu0 0
      %2500 = vmatpush1.bf16.msra.mxu0 0
      %2501 = vmatprep.subr.bf16.mxu0 0
      %2502 = vmatpush1.bf16.msra.mxu0 0
      %2503 = vmatprep.subr.bf16.mxu0 0
      %2504 = vmatpush1.bf16.msra.mxu0 0
      %2505 = vmatprep.subr.bf16.mxu0 0
      %2506 = vmatpush1.bf16.msra.mxu0 0
      %2507 = vmatprep.mubr.bf16.mxu0 %v2387
      %2508 = vmatmul.mubr.bf16.gmra.mrb[0].mxu0 %v2382
      %v2509 = vpop.f32.mrb[0].mxu0
      %v2510 = vadd.f32 0.0, %v2509
      %v2511 = vpop.f32.mrb[0].mxu0
      %v2512 = vadd.f32 0.0, %v2511
      %v2513 = vpop.f32.mrb[0].mxu0
      %v2514 = vadd.f32 0.0, %v2513
      %v2515 = vpop.f32.mrb[0].mxu0
      %v2516 = vadd.f32 0.0, %v2515
      %2517 = vdwg.mxu0
      %2518 = vmatprep.subr.bf16.mxu0 %v2300
      %2519 = vmatpush1.bf16.msra.mxu0 %v2299
      %2520 = vmatprep.subr.bf16.mxu0 %v2309
      %2521 = vmatpush1.bf16.msra.mxu0 %v2308
      %2522 = vmatprep.subr.bf16.mxu0 %v2318
      %2523 = vmatpush1.bf16.msra.mxu0 %v2317
      %2524 = vmatprep.subr.bf16.mxu0 %v2327
      %2525 = vmatpush1.bf16.msra.mxu0 %v2326
      %2526 = vmatprep.subr.bf16.mxu0 %v2336
      %2527 = vmatpush1.bf16.msra.mxu0 %v2335
      %2528 = vmatprep.subr.bf16.mxu0 %v2345
      %2529 = vmatpush1.bf16.msra.mxu0 %v2344
      %2530 = vmatprep.subr.bf16.mxu0 %v2354
      %2531 = vmatpush1.bf16.msra.mxu0 %v2353
      %2532 = vmatprep.subr.bf16.mxu0 %v2363
      %2533 = vmatpush1.bf16.msra.mxu0 %v2362
      %2534 = vmatprep.subr.bf16.mxu0 %v2372
      %2535 = vmatpush1.bf16.msra.mxu0 %v2371
      %2536 = vmatprep.subr.bf16.mxu0 0
      %2537 = vmatpush1.bf16.msra.mxu0 0
      %2538 = vmatprep.subr.bf16.mxu0 0
      %2539 = vmatpush1.bf16.msra.mxu0 0
      %2540 = vmatprep.subr.bf16.mxu0 0
      %2541 = vmatpush1.bf16.msra.mxu0 0
      %2542 = vmatprep.subr.bf16.mxu0 0
      %2543 = vmatpush1.bf16.msra.mxu0 0
      %2544 = vmatprep.subr.bf16.mxu0 0
      %2545 = vmatpush1.bf16.msra.mxu0 0
      %2546 = vmatprep.subr.bf16.mxu0 0
      %2547 = vmatpush1.bf16.msra.mxu0 0
      %2548 = vmatprep.subr.bf16.mxu0 0
      %2549 = vmatpush1.bf16.msra.mxu0 0
      %2550 = vmatprep.mubr.bf16.mxu0 %v2387
      %2551 = vmatmul.mubr.bf16.gmra.mrb[0].mxu0 %v2382
      %v2552 = vpop.f32.mrb[0].mxu0
      %v2553 = vadd.f32 0.0, %v2552
      %v2554 = vpop.f32.mrb[0].mxu0
      %v2555 = vadd.f32 0.0, %v2554
      %v2556 = vpop.f32.mrb[0].mxu0
      %v2557 = vadd.f32 0.0, %v2556
      %v2558 = vpop.f32.mrb[0].mxu0
      %v2559 = vadd.f32 0.0, %v2558
      %2560 = vdwg.mxu0
      %2561 = vmatprep.subr.bf16.mxu0 0
      %2562 = vmatpush1.bf16.msra.mxu0 %v2301
      %2563 = vmatprep.subr.bf16.mxu0 0
      %2564 = vmatpush1.bf16.msra.mxu0 %v2310
      %2565 = vmatprep.subr.bf16.mxu0 0
      %2566 = vmatpush1.bf16.msra.mxu0 %v2319
      %2567 = vmatprep.subr.bf16.mxu0 0
      %2568 = vmatpush1.bf16.msra.mxu0 %v2328
      %2569 = vmatprep.subr.bf16.mxu0 0
      %2570 = vmatpush1.bf16.msra.mxu0 %v2337
      %2571 = vmatprep.subr.bf16.mxu0 0
      %2572 = vmatpush1.bf16.msra.mxu0 %v2346
      %2573 = vmatprep.subr.bf16.mxu0 0
      %2574 = vmatpush1.bf16.msra.mxu0 %v2355
      %2575 = vmatprep.subr.bf16.mxu0 0
      %2576 = vmatpush1.bf16.msra.mxu0 %v2364
      %2577 = vmatprep.subr.bf16.mxu0 0
      %2578 = vmatpush1.bf16.msra.mxu0 %v2373
      %2579 = vmatprep.subr.bf16.mxu0 0
      %2580 = vmatpush1.bf16.msra.mxu0 0
      %2581 = vmatprep.subr.bf16.mxu0 0
      %2582 = vmatpush1.bf16.msra.mxu0 0
      %2583 = vmatprep.subr.bf16.mxu0 0
      %2584 = vmatpush1.bf16.msra.mxu0 0
      %2585 = vmatprep.subr.bf16.mxu0 0
      %2586 = vmatpush1.bf16.msra.mxu0 0
      %2587 = vmatprep.subr.bf16.mxu0 0
      %2588 = vmatpush1.bf16.msra.mxu0 0
      %2589 = vmatprep.subr.bf16.mxu0 0
      %2590 = vmatpush1.bf16.msra.mxu0 0
      %2591 = vmatprep.subr.bf16.mxu0 0
      %2592 = vmatpush1.bf16.msra.mxu0 0
      %2593 = vmatprep.mubr.bf16.mxu0 %v2387
      %2594 = vmatmul.mubr.bf16.gmra.mrb[0].mxu0 %v2382
      %v2595 = vpop.f32.mrb[0].mxu0
      %v2596 = vadd.f32 0.0, %v2595
      %v2597 = vpop.f32.mrb[0].mxu0
      %v2598 = vpop.f32.mrb[0].mxu0
      %v2599 = vadd.f32 0.0, %v2598
      %v2600 = vpop.f32.mrb[0].mxu0
      %2601 = vdwg.mxu0
      %v2602 = vld [vmem:[%s11] sm:$0xff]
      %v2603 = vld [vmem:[%s11 + $0x8] sm:$0xff]
      %2605 = vset.pattern.permute.xlu0 0
      %2606 = vperm.xlu0 %2605, %v2602
      %v2607 = vpop.permute.xlu0 %2606
      %2610 = vset.pattern.permute.xlu0 0
      %2611 = vperm.xlu0 %2610, %v2603
      %v2612 = vpop.permute.xlu0 %2611
      %v2614 = vmul.f32 %v2424, %v2607
      %v2615 = vmul.f32 %v2426, %v2607
      %v2616 = vmul.f32 %v2467, %v2607
      %v2617 = vmul.f32 %v2469, %v2607
      %v2618 = vmul.f32 %v2510, %v2607
      %v2619 = vmul.f32 %v2512, %v2607
      %v2620 = vmul.f32 %v2553, %v2607
      %v2621 = vmul.f32 %v2555, %v2607
      %v2622 = vmul.f32 %v2596, %v2607
      %v2623 = vmul.f32 %v2428, %v2612
      %v2624 = vmul.f32 %v2430, %v2612
      %v2625 = vmul.f32 %v2471, %v2612
      %v2626 = vmul.f32 %v2473, %v2612
      %v2627 = vmul.f32 %v2514, %v2612
      %v2628 = vmul.f32 %v2516, %v2612
      %v2629 = vmul.f32 %v2557, %v2612
      %v2630 = vmul.f32 %v2559, %v2612
      %v2631 = vmul.f32 %v2599, %v2612
      %2632 = vset.pattern.permute.xlu0 1
      %2633 = vperm.xlu0 %2632, %v2602
      %v2634 = vpop.permute.xlu0 %2633
      %2636 = vset.pattern.permute.xlu0 1
      %2637 = vperm.xlu0 %2636, %v2603
      %v2638 = vpop.permute.xlu0 %2637
      %v2640 = vadd.f32 %v2614, %v2634
      %v2641 = vadd.f32 %v2615, %v2634
      %v2642 = vadd.f32 %v2616, %v2634
      %v2643 = vadd.f32 %v2617, %v2634
      %v2644 = vadd.f32 %v2618, %v2634
      %v2645 = vadd.f32 %v2619, %v2634
      %v2646 = vadd.f32 %v2620, %v2634
      %v2647 = vadd.f32 %v2621, %v2634
      %v2648 = vadd.f32 %v2622, %v2634
      %v2649 = vadd.f32 %v2623, %v2638
      %v2650 = vadd.f32 %v2624, %v2638
      %v2651 = vadd.f32 %v2625, %v2638
      %v2652 = vadd.f32 %v2626, %v2638
      %v2653 = vadd.f32 %v2627, %v2638
      %v2654 = vadd.f32 %v2628, %v2638
      %v2655 = vadd.f32 %v2629, %v2638
      %v2656 = vadd.f32 %v2630, %v2638
      %v2657 = vadd.f32 %v2631, %v2638
      %v2658 = vmax.f32 %v2640, 0.0
      %v2659 = vmax.f32 %v2641, 0.0
      %v2660 = vmax.f32 %v2642, 0.0
      %v2661 = vmax.f32 %v2643, 0.0
      %v2662 = vmax.f32 %v2644, 0.0
      %v2663 = vmax.f32 %v2645, 0.0
      %v2664 = vmax.f32 %v2646, 0.0
      %v2665 = vmax.f32 %v2647, 0.0
      %v2666 = vmax.f32 %v2648, 0.0
      %v2667 = vmax.f32 %v2649, 0.0
      %v2668 = vmax.f32 %v2650, 0.0
      %v2669 = vmax.f32 %v2651, 0.0
      %v2670 = vmax.f32 %v2652, 0.0
      %v2671 = vmax.f32 %v2653, 0.0
      %v2672 = vmax.f32 %v2654, 0.0
      %v2673 = vmax.f32 %v2655, 0.0
      %v2674 = vmax.f32 %v2656, 0.0
      %v2675 = vmax.f32 %v2657, 0.0
      %v2676 = vld [vmem:[%s21] sm:$0xff]
      %v2677 = vld [vmem:[%s21 + $0x8] sm:$0x1]
      %v2680 = vlaneseq
      %v2681 = vshrl.u32 %v2680, 7
      %v2682 = vsub.s32 0, %v2681
      %v2683 = vrot.slane %v2676, %v2682
      %v2684 = vlaneseq
      %v2685 = vshrl.u32 %v2684, 7
      %v2686 = vsub.s32 1, %v2685
      %v2687 = vrot.slane %v2676, %v2686
      %v2688 = vlaneseq
      %v2689 = vshrl.u32 %v2688, 7
      %v2690 = vsub.s32 2, %v2689
      %v2691 = vrot.slane %v2676, %v2690
      %v2692 = vlaneseq
      %v2693 = vshrl.u32 %v2692, 7
      %v2694 = vsub.s32 3, %v2693
      %v2695 = vrot.slane %v2676, %v2694
      %v2696 = vlaneseq
      %v2697 = vshrl.u32 %v2696, 7
      %v2698 = vsub.s32 4, %v2697
      %v2699 = vrot.slane %v2676, %v2698
      %v2700 = vlaneseq
      %v2701 = vshrl.u32 %v2700, 7
      %v2702 = vsub.s32 5, %v2701
      %v2703 = vrot.slane %v2676, %v2702
      %v2704 = vlaneseq
      %v2705 = vshrl.u32 %v2704, 7
      %v2706 = vsub.s32 6, %v2705
      %v2707 = vrot.slane %v2676, %v2706
      %v2708 = vlaneseq
      %v2709 = vshrl.u32 %v2708, 7
      %v2710 = vsub.s32 7, %v2709
      %v2711 = vrot.slane %v2676, %v2710
      %v2712 = vlaneseq
      %v2713 = vshrl.u32 %v2712, 7
      %v2714 = vsub.s32 0, %v2713
      %v2715 = vrot.slane %v2677, %v2714
      %v2725 = vmul.f32 %v2658, %v2683
      %v2726 = vmul.f32 %v2659, %v2687
      %v2727 = vmul.f32 %v2660, %v2691
      %v2728 = vmul.f32 %v2661, %v2695
      %v2729 = vmul.f32 %v2662, %v2699
      %v2730 = vmul.f32 %v2663, %v2703
      %v2731 = vmul.f32 %v2664, %v2707
      %v2732 = vmul.f32 %v2665, %v2711
      %v2733 = vmul.f32 %v2666, %v2715
      %v2734 = vmul.f32 %v2667, %v2683
      %v2735 = vmul.f32 %v2668, %v2687
      %v2736 = vmul.f32 %v2669, %v2691
      %v2737 = vmul.f32 %v2670, %v2695
      %v2738 = vmul.f32 %v2671, %v2699
      %v2739 = vmul.f32 %v2672, %v2703
      %v2740 = vmul.f32 %v2673, %v2707
      %v2741 = vmul.f32 %v2674, %v2711
      %v2742 = vmul.f32 %v2675, %v2715
      %2761 = vrot.lane.b32.xlu0 %v2725, 35
      %v2762 = vpop.permute.xlu0 %2761
      %2763 = vrot.lane.b32.xlu0 %v2726, 35
      %v2764 = vpop.permute.xlu0 %2763
      %2765 = vrot.lane.b32.xlu0 %v2727, 35
      %v2766 = vpop.permute.xlu0 %2765
      %2767 = vrot.lane.b32.xlu0 %v2728, 35
      %v2768 = vpop.permute.xlu0 %2767
      %2769 = vrot.lane.b32.xlu0 %v2729, 35
      %v2770 = vpop.permute.xlu0 %2769
      %2771 = vrot.lane.b32.xlu0 %v2730, 35
      %v2772 = vpop.permute.xlu0 %2771
      %2773 = vrot.lane.b32.xlu0 %v2731, 35
      %v2774 = vpop.permute.xlu0 %2773
      %2775 = vrot.lane.b32.xlu0 %v2732, 35
      %v2776 = vpop.permute.xlu0 %2775
      %2777 = vrot.lane.b32.xlu0 %v2733, 35
      %v2778 = vpop.permute.xlu0 %2777
      %2779 = vrot.lane.b32.xlu0 %v2734, 35
      %v2780 = vpop.permute.xlu0 %2779
      %2781 = vrot.lane.b32.xlu0 %v2735, 35
      %v2782 = vpop.permute.xlu0 %2781
      %2783 = vrot.lane.b32.xlu0 %v2736, 35
      %v2784 = vpop.permute.xlu0 %2783
      %2785 = vrot.lane.b32.xlu0 %v2737, 35
      %v2786 = vpop.permute.xlu0 %2785
      %2787 = vrot.lane.b32.xlu0 %v2738, 35
      %v2788 = vpop.permute.xlu0 %2787
      %2789 = vrot.lane.b32.xlu0 %v2739, 35
      %v2790 = vpop.permute.xlu0 %2789
      %2791 = vrot.lane.b32.xlu0 %v2740, 35
      %v2792 = vpop.permute.xlu0 %2791
      %2793 = vrot.lane.b32.xlu0 %v2741, 35
      %v2794 = vpop.permute.xlu0 %2793
      %2795 = vrot.lane.b32.xlu0 %v2742, 35
      %v2796 = vpop.permute.xlu0 %2795
      %v2797 = vsel %vm1620, %v2762, %v2764
      %v2798 = vsel %vm1620, %v2764, %v2766
      %v2799 = vsel %vm1620, %v2766, %v2768
      %v2800 = vsel %vm1620, %v2768, %v2770
      %v2801 = vsel %vm1620, %v2770, %v2772
      %v2802 = vsel %vm1620, %v2772, %v2774
      %v2803 = vsel %vm1620, %v2774, %v2776
      %v2804 = vsel %vm1620, %v2776, %v2778
      %v2805 = vsel %vm1620, %v2780, %v2782
      %v2806 = vsel %vm1620, %v2782, %v2784
      %v2807 = vsel %vm1620, %v2784, %v2786
      %v2808 = vsel %vm1620, %v2786, %v2788
      %v2809 = vsel %vm1620, %v2788, %v2790
      %v2810 = vsel %vm1620, %v2790, %v2792
      %v2811 = vsel %vm1620, %v2792, %v2794
      %v2812 = vsel %vm1620, %v2794, %v2796
      %2831 = vst.msk [vmem:[#allocation3] sm:$0xff] %vm1655, %v2762
      %2832 = vst [vmem:[#allocation3 + $0x8] sm:$0xff] %v2797
      %2833 = vst [vmem:[#allocation3 + $0x10] sm:$0xff] %v2798
      %2834 = vst [vmem:[#allocation3 + $0x18] sm:$0xff] %v2799
      %2835 = vst [vmem:[#allocation3 + $0x20] sm:$0xff] %v2800
      %2836 = vst [vmem:[#allocation3 + $0x28] sm:$0xff] %v2801
      %2837 = vst [vmem:[#allocation3 + $0x30] sm:$0xff] %v2802
      %2838 = vst [vmem:[#allocation3 + $0x38] sm:$0xff] %v2803
      %2839 = vst.msk [vmem:[#allocation3 + $0x40] sm:$0xff] %vm1664, %v2804
      %2840 = vst.msk [vmem:[#allocation3 + $0x50] sm:$0xff] %vm1655, %v2780
      %2841 = vst [vmem:[#allocation3 + $0x58] sm:$0xff] %v2805
      %2842 = vst [vmem:[#allocation3 + $0x60] sm:$0xff] %v2806
      %2843 = vst [vmem:[#allocation3 + $0x68] sm:$0xff] %v2807
      %2844 = vst [vmem:[#allocation3 + $0x70] sm:$0xff] %v2808
      %2845 = vst [vmem:[#allocation3 + $0x78] sm:$0xff] %v2809
      %2846 = vst [vmem:[#allocation3 + $0x80] sm:$0xff] %v2810
      %2847 = vst [vmem:[#allocation3 + $0x88] sm:$0xff] %v2811
      %2848 = vst.msk [vmem:[#allocation3 + $0x90] sm:$0xff] %vm1664, %v2812
      %v2849 = vld [vmem:[#allocation3] sm:$0xff]
      %v2850 = vld [vmem:[#allocation3 + $0x8] sm:$0xff]
      %v2851 = vld [vmem:[#allocation3 + $0x10] sm:$0xff]
      %v2852 = vld [vmem:[#allocation3 + $0x18] sm:$0xff]
      %v2853 = vld [vmem:[#allocation3 + $0x20] sm:$0xff]
      %v2854 = vld [vmem:[#allocation3 + $0x28] sm:$0xff]
      %v2855 = vld [vmem:[#allocation3 + $0x30] sm:$0xff]
      %v2856 = vld [vmem:[#allocation3 + $0x38] sm:$0xff]
      %v2857 = vld [vmem:[#allocation3 + $0x40] sm:$0xff]
      %v2858 = vld [vmem:[#allocation3 + $0x48] sm:$0xff]
      %v2859 = vld [vmem:[#allocation3 + $0x50] sm:$0xff]
      %v2860 = vld [vmem:[#allocation3 + $0x58] sm:$0xff]
      %v2861 = vld [vmem:[#allocation3 + $0x60] sm:$0xff]
      %v2862 = vld [vmem:[#allocation3 + $0x68] sm:$0xff]
      %v2863 = vld [vmem:[#allocation3 + $0x70] sm:$0xff]
      %v2864 = vld [vmem:[#allocation3 + $0x78] sm:$0xff]
      %v2865 = vld [vmem:[#allocation3 + $0x80] sm:$0xff]
      %v2866 = vld [vmem:[#allocation3 + $0x88] sm:$0xff]
      %v2867 = vld [vmem:[#allocation3 + $0x90] sm:$0xff]
      %v2868 = vld [vmem:[#allocation3 + $0x98] sm:$0xff]
      %2887 = vrot.lane.b32.xlu0 %v2849, 127
      %v2888 = vpop.permute.xlu0 %2887
      %2889 = vrot.lane.b32.xlu0 %v2850, 127
      %v2890 = vpop.permute.xlu0 %2889
      %2891 = vrot.lane.b32.xlu0 %v2851, 127
      %v2892 = vpop.permute.xlu0 %2891
      %2893 = vrot.lane.b32.xlu0 %v2852, 127
      %v2894 = vpop.permute.xlu0 %2893
      %2895 = vrot.lane.b32.xlu0 %v2853, 127
      %v2896 = vpop.permute.xlu0 %2895
      %2897 = vrot.lane.b32.xlu0 %v2854, 127
      %v2898 = vpop.permute.xlu0 %2897
      %2899 = vrot.lane.b32.xlu0 %v2855, 127
      %v2900 = vpop.permute.xlu0 %2899
      %2901 = vrot.lane.b32.xlu0 %v2856, 127
      %v2902 = vpop.permute.xlu0 %2901
      %2903 = vrot.lane.b32.xlu0 %v2857, 127
      %v2904 = vpop.permute.xlu0 %2903
      %2905 = vrot.lane.b32.xlu0 %v2859, 127
      %v2906 = vpop.permute.xlu0 %2905
      %2907 = vrot.lane.b32.xlu0 %v2860, 127
      %v2908 = vpop.permute.xlu0 %2907
      %2909 = vrot.lane.b32.xlu0 %v2861, 127
      %v2910 = vpop.permute.xlu0 %2909
      %2911 = vrot.lane.b32.xlu0 %v2862, 127
      %v2912 = vpop.permute.xlu0 %2911
      %2913 = vrot.lane.b32.xlu0 %v2863, 127
      %v2914 = vpop.permute.xlu0 %2913
      %2915 = vrot.lane.b32.xlu0 %v2864, 127
      %v2916 = vpop.permute.xlu0 %2915
      %2917 = vrot.lane.b32.xlu0 %v2865, 127
      %v2918 = vpop.permute.xlu0 %2917
      %2919 = vrot.lane.b32.xlu0 %v2866, 127
      %v2920 = vpop.permute.xlu0 %2919
      %2921 = vrot.lane.b32.xlu0 %v2867, 127
      %v2922 = vpop.permute.xlu0 %2921
      %v2923 = vsel %vm848, %v2888, %v2890
      %v2924 = vsel %vm848, %v2890, %v2892
      %v2925 = vsel %vm848, %v2892, %v2894
      %v2926 = vsel %vm848, %v2894, %v2896
      %v2927 = vsel %vm848, %v2896, %v2898
      %v2928 = vsel %vm848, %v2898, %v2900
      %v2929 = vsel %vm848, %v2900, %v2902
      %v2930 = vsel %vm848, %v2902, %v2904
      %v2931 = vsel %vm848, %v2906, %v2908
      %v2932 = vsel %vm848, %v2908, %v2910
      %v2933 = vsel %vm848, %v2910, %v2912
      %v2934 = vsel %vm848, %v2912, %v2914
      %v2935 = vsel %vm848, %v2914, %v2916
      %v2936 = vsel %vm848, %v2916, %v2918
      %v2937 = vsel %vm848, %v2918, %v2920
      %v2938 = vsel %vm848, %v2920, %v2922
      %2957 = vrot.lane.b32.xlu0 %v2849, 126
      %v2958 = vpop.permute.xlu0 %2957
      %2959 = vrot.lane.b32.xlu0 %v2850, 126
      %v2960 = vpop.permute.xlu0 %2959
      %2961 = vrot.lane.b32.xlu0 %v2851, 126
      %v2962 = vpop.permute.xlu0 %2961
      %2963 = vrot.lane.b32.xlu0 %v2852, 126
      %v2964 = vpop.permute.xlu0 %2963
      %2965 = vrot.lane.b32.xlu0 %v2853, 126
      %v2966 = vpop.permute.xlu0 %2965
      %2967 = vrot.lane.b32.xlu0 %v2854, 126
      %v2968 = vpop.permute.xlu0 %2967
      %2969 = vrot.lane.b32.xlu0 %v2855, 126
      %v2970 = vpop.permute.xlu0 %2969
      %2971 = vrot.lane.b32.xlu0 %v2856, 126
      %v2972 = vpop.permute.xlu0 %2971
      %2973 = vrot.lane.b32.xlu0 %v2857, 126
      %v2974 = vpop.permute.xlu0 %2973
      %2975 = vrot.lane.b32.xlu0 %v2859, 126
      %v2976 = vpop.permute.xlu0 %2975
      %2977 = vrot.lane.b32.xlu0 %v2860, 126
      %v2978 = vpop.permute.xlu0 %2977
      %2979 = vrot.lane.b32.xlu0 %v2861, 126
      %v2980 = vpop.permute.xlu0 %2979
      %2981 = vrot.lane.b32.xlu0 %v2862, 126
      %v2982 = vpop.permute.xlu0 %2981
      %2983 = vrot.lane.b32.xlu0 %v2863, 126
      %v2984 = vpop.permute.xlu0 %2983
      %2985 = vrot.lane.b32.xlu0 %v2864, 126
      %v2986 = vpop.permute.xlu0 %2985
      %2987 = vrot.lane.b32.xlu0 %v2865, 126
      %v2988 = vpop.permute.xlu0 %2987
      %2989 = vrot.lane.b32.xlu0 %v2866, 126
      %v2990 = vpop.permute.xlu0 %2989
      %2991 = vrot.lane.b32.xlu0 %v2867, 126
      %v2992 = vpop.permute.xlu0 %2991
      %v2993 = vsel %vm884, %v2958, %v2960
      %v2994 = vsel %vm884, %v2960, %v2962
      %v2995 = vsel %vm884, %v2962, %v2964
      %v2996 = vsel %vm884, %v2964, %v2966
      %v2997 = vsel %vm884, %v2966, %v2968
      %v2998 = vsel %vm884, %v2968, %v2970
      %v2999 = vsel %vm884, %v2970, %v2972
      %v3000 = vsel %vm884, %v2972, %v2974
      %v3001 = vsel %vm884, %v2976, %v2978
      %v3002 = vsel %vm884, %v2978, %v2980
      %v3003 = vsel %vm884, %v2980, %v2982
      %v3004 = vsel %vm884, %v2982, %v2984
      %v3005 = vsel %vm884, %v2984, %v2986
      %v3006 = vsel %vm884, %v2986, %v2988
      %v3007 = vsel %vm884, %v2988, %v2990
      %v3008 = vsel %vm884, %v2990, %v2992
      %3027 = vrot.lane.b32.xlu0 %v2849, 94
      %v3028 = vpop.permute.xlu0 %3027
      %3029 = vrot.lane.b32.xlu0 %v2850, 94
      %v3030 = vpop.permute.xlu0 %3029
      %3031 = vrot.lane.b32.xlu0 %v2851, 94
      %v3032 = vpop.permute.xlu0 %3031
      %3033 = vrot.lane.b32.xlu0 %v2852, 94
      %v3034 = vpop.permute.xlu0 %3033
      %3035 = vrot.lane.b32.xlu0 %v2853, 94
      %v3036 = vpop.permute.xlu0 %3035
      %3037 = vrot.lane.b32.xlu0 %v2854, 94
      %v3038 = vpop.permute.xlu0 %3037
      %3039 = vrot.lane.b32.xlu0 %v2855, 94
      %v3040 = vpop.permute.xlu0 %3039
      %3041 = vrot.lane.b32.xlu0 %v2856, 94
      %v3042 = vpop.permute.xlu0 %3041
      %3043 = vrot.lane.b32.xlu0 %v2857, 94
      %v3044 = vpop.permute.xlu0 %3043
      %3045 = vrot.lane.b32.xlu0 %v2859, 94
      %v3046 = vpop.permute.xlu0 %3045
      %3047 = vrot.lane.b32.xlu0 %v2860, 94
      %v3048 = vpop.permute.xlu0 %3047
      %3049 = vrot.lane.b32.xlu0 %v2861, 94
      %v3050 = vpop.permute.xlu0 %3049
      %3051 = vrot.lane.b32.xlu0 %v2862, 94
      %v3052 = vpop.permute.xlu0 %3051
      %3053 = vrot.lane.b32.xlu0 %v2863, 94
      %v3054 = vpop.permute.xlu0 %3053
      %3055 = vrot.lane.b32.xlu0 %v2864, 94
      %v3056 = vpop.permute.xlu0 %3055
      %3057 = vrot.lane.b32.xlu0 %v2865, 94
      %v3058 = vpop.permute.xlu0 %3057
      %3059 = vrot.lane.b32.xlu0 %v2866, 94
      %v3060 = vpop.permute.xlu0 %3059
      %3061 = vrot.lane.b32.xlu0 %v2867, 94
      %v3062 = vpop.permute.xlu0 %3061
      %v3063 = vsel %vm920, %v3028, %v3030
      %v3064 = vsel %vm920, %v3030, %v3032
      %v3065 = vsel %vm920, %v3032, %v3034
      %v3066 = vsel %vm920, %v3034, %v3036
      %v3067 = vsel %vm920, %v3036, %v3038
      %v3068 = vsel %vm920, %v3038, %v3040
      %v3069 = vsel %vm920, %v3040, %v3042
      %v3070 = vsel %vm920, %v3042, %v3044
      %v3071 = vsel %vm920, %v3046, %v3048
      %v3072 = vsel %vm920, %v3048, %v3050
      %v3073 = vsel %vm920, %v3050, %v3052
      %v3074 = vsel %vm920, %v3052, %v3054
      %v3075 = vsel %vm920, %v3054, %v3056
      %v3076 = vsel %vm920, %v3056, %v3058
      %v3077 = vsel %vm920, %v3058, %v3060
      %v3078 = vsel %vm920, %v3060, %v3062
      %3097 = vrot.lane.b32.xlu0 %v2849, 93
      %v3098 = vpop.permute.xlu0 %3097
      %3099 = vrot.lane.b32.xlu0 %v2850, 93
      %v3100 = vpop.permute.xlu0 %3099
      %3101 = vrot.lane.b32.xlu0 %v2851, 93
      %v3102 = vpop.permute.xlu0 %3101
      %3103 = vrot.lane.b32.xlu0 %v2852, 93
      %v3104 = vpop.permute.xlu0 %3103
      %3105 = vrot.lane.b32.xlu0 %v2853, 93
      %v3106 = vpop.permute.xlu0 %3105
      %3107 = vrot.lane.b32.xlu0 %v2854, 93
      %v3108 = vpop.permute.xlu0 %3107
      %3109 = vrot.lane.b32.xlu0 %v2855, 93
      %v3110 = vpop.permute.xlu0 %3109
      %3111 = vrot.lane.b32.xlu0 %v2856, 93
      %v3112 = vpop.permute.xlu0 %3111
      %3113 = vrot.lane.b32.xlu0 %v2857, 93
      %v3114 = vpop.permute.xlu0 %3113
      %3115 = vrot.lane.b32.xlu0 %v2859, 93
      %v3116 = vpop.permute.xlu0 %3115
      %3117 = vrot.lane.b32.xlu0 %v2860, 93
      %v3118 = vpop.permute.xlu0 %3117
      %3119 = vrot.lane.b32.xlu0 %v2861, 93
      %v3120 = vpop.permute.xlu0 %3119
      %3121 = vrot.lane.b32.xlu0 %v2862, 93
      %v3122 = vpop.permute.xlu0 %3121
      %3123 = vrot.lane.b32.xlu0 %v2863, 93
      %v3124 = vpop.permute.xlu0 %3123
      %3125 = vrot.lane.b32.xlu0 %v2864, 93
      %v3126 = vpop.permute.xlu0 %3125
      %3127 = vrot.lane.b32.xlu0 %v2865, 93
      %v3128 = vpop.permute.xlu0 %3127
      %3129 = vrot.lane.b32.xlu0 %v2866, 93
      %v3130 = vpop.permute.xlu0 %3129
      %3131 = vrot.lane.b32.xlu0 %v2867, 93
      %v3132 = vpop.permute.xlu0 %3131
      %v3133 = vsel %vm956, %v3098, %v3100
      %v3134 = vsel %vm956, %v3100, %v3102
      %v3135 = vsel %vm956, %v3102, %v3104
      %v3136 = vsel %vm956, %v3104, %v3106
      %v3137 = vsel %vm956, %v3106, %v3108
      %v3138 = vsel %vm956, %v3108, %v3110
      %v3139 = vsel %vm956, %v3110, %v3112
      %v3140 = vsel %vm956, %v3112, %v3114
      %v3141 = vsel %vm956, %v3116, %v3118
      %v3142 = vsel %vm956, %v3118, %v3120
      %v3143 = vsel %vm956, %v3120, %v3122
      %v3144 = vsel %vm956, %v3122, %v3124
      %v3145 = vsel %vm956, %v3124, %v3126
      %v3146 = vsel %vm956, %v3126, %v3128
      %v3147 = vsel %vm956, %v3128, %v3130
      %v3148 = vsel %vm956, %v3130, %v3132
      %3167 = vrot.lane.b32.xlu0 %v2849, 92
      %v3168 = vpop.permute.xlu0 %3167
      %3169 = vrot.lane.b32.xlu0 %v2850, 92
      %v3170 = vpop.permute.xlu0 %3169
      %3171 = vrot.lane.b32.xlu0 %v2851, 92
      %v3172 = vpop.permute.xlu0 %3171
      %3173 = vrot.lane.b32.xlu0 %v2852, 92
      %v3174 = vpop.permute.xlu0 %3173
      %3175 = vrot.lane.b32.xlu0 %v2853, 92
      %v3176 = vpop.permute.xlu0 %3175
      %3177 = vrot.lane.b32.xlu0 %v2854, 92
      %v3178 = vpop.permute.xlu0 %3177
      %3179 = vrot.lane.b32.xlu0 %v2855, 92
      %v3180 = vpop.permute.xlu0 %3179
      %3181 = vrot.lane.b32.xlu0 %v2856, 92
      %v3182 = vpop.permute.xlu0 %3181
      %3183 = vrot.lane.b32.xlu0 %v2857, 92
      %v3184 = vpop.permute.xlu0 %3183
      %3185 = vrot.lane.b32.xlu0 %v2859, 92
      %v3186 = vpop.permute.xlu0 %3185
      %3187 = vrot.lane.b32.xlu0 %v2860, 92
      %v3188 = vpop.permute.xlu0 %3187
      %3189 = vrot.lane.b32.xlu0 %v2861, 92
      %v3190 = vpop.permute.xlu0 %3189
      %3191 = vrot.lane.b32.xlu0 %v2862, 92
      %v3192 = vpop.permute.xlu0 %3191
      %3193 = vrot.lane.b32.xlu0 %v2863, 92
      %v3194 = vpop.permute.xlu0 %3193
      %3195 = vrot.lane.b32.xlu0 %v2864, 92
      %v3196 = vpop.permute.xlu0 %3195
      %3197 = vrot.lane.b32.xlu0 %v2865, 92
      %v3198 = vpop.permute.xlu0 %3197
      %3199 = vrot.lane.b32.xlu0 %v2866, 92
      %v3200 = vpop.permute.xlu0 %3199
      %3201 = vrot.lane.b32.xlu0 %v2867, 92
      %v3202 = vpop.permute.xlu0 %3201
      %v3203 = vsel %vm992, %v3168, %v3170
      %v3204 = vsel %vm992, %v3170, %v3172
      %v3205 = vsel %vm992, %v3172, %v3174
      %v3206 = vsel %vm992, %v3174, %v3176
      %v3207 = vsel %vm992, %v3176, %v3178
      %v3208 = vsel %vm992, %v3178, %v3180
      %v3209 = vsel %vm992, %v3180, %v3182
      %v3210 = vsel %vm992, %v3182, %v3184
      %v3211 = vsel %vm992, %v3186, %v3188
      %v3212 = vsel %vm992, %v3188, %v3190
      %v3213 = vsel %vm992, %v3190, %v3192
      %v3214 = vsel %vm992, %v3192, %v3194
      %v3215 = vsel %vm992, %v3194, %v3196
      %v3216 = vsel %vm992, %v3196, %v3198
      %v3217 = vsel %vm992, %v3198, %v3200
      %v3218 = vsel %vm992, %v3200, %v3202
      %3239 = vrot.lane.b32.xlu0 %v2849, 60
      %v3240 = vpop.permute.xlu0 %3239
      %3241 = vrot.lane.b32.xlu0 %v2850, 60
      %v3242 = vpop.permute.xlu0 %3241
      %3243 = vrot.lane.b32.xlu0 %v2851, 60
      %v3244 = vpop.permute.xlu0 %3243
      %3245 = vrot.lane.b32.xlu0 %v2852, 60
      %v3246 = vpop.permute.xlu0 %3245
      %3247 = vrot.lane.b32.xlu0 %v2853, 60
      %v3248 = vpop.permute.xlu0 %3247
      %3249 = vrot.lane.b32.xlu0 %v2854, 60
      %v3250 = vpop.permute.xlu0 %3249
      %3251 = vrot.lane.b32.xlu0 %v2855, 60
      %v3252 = vpop.permute.xlu0 %3251
      %3253 = vrot.lane.b32.xlu0 %v2856, 60
      %v3254 = vpop.permute.xlu0 %3253
      %3255 = vrot.lane.b32.xlu0 %v2857, 60
      %v3256 = vpop.permute.xlu0 %3255
      %3257 = vrot.lane.b32.xlu0 %v2858, 60
      %v3258 = vpop.permute.xlu0 %3257
      %3259 = vrot.lane.b32.xlu0 %v2859, 60
      %v3260 = vpop.permute.xlu0 %3259
      %3261 = vrot.lane.b32.xlu0 %v2860, 60
      %v3262 = vpop.permute.xlu0 %3261
      %3263 = vrot.lane.b32.xlu0 %v2861, 60
      %v3264 = vpop.permute.xlu0 %3263
      %3265 = vrot.lane.b32.xlu0 %v2862, 60
      %v3266 = vpop.permute.xlu0 %3265
      %3267 = vrot.lane.b32.xlu0 %v2863, 60
      %v3268 = vpop.permute.xlu0 %3267
      %3269 = vrot.lane.b32.xlu0 %v2864, 60
      %v3270 = vpop.permute.xlu0 %3269
      %3271 = vrot.lane.b32.xlu0 %v2865, 60
      %v3272 = vpop.permute.xlu0 %3271
      %3273 = vrot.lane.b32.xlu0 %v2866, 60
      %v3274 = vpop.permute.xlu0 %3273
      %3275 = vrot.lane.b32.xlu0 %v2867, 60
      %v3276 = vpop.permute.xlu0 %3275
      %3277 = vrot.lane.b32.xlu0 %v2868, 60
      %v3278 = vpop.permute.xlu0 %3277
      %v3279 = vsel %vm1031, %v3240, %v3242
      %v3280 = vsel %vm1031, %v3242, %v3244
      %v3281 = vsel %vm1031, %v3244, %v3246
      %v3282 = vsel %vm1031, %v3246, %v3248
      %v3283 = vsel %vm1031, %v3248, %v3250
      %v3284 = vsel %vm1031, %v3250, %v3252
      %v3285 = vsel %vm1031, %v3252, %v3254
      %v3286 = vsel %vm1031, %v3254, %v3256
      %v3287 = vsel %vm1031, %v3256, %v3258
      %v3288 = vsel %vm1031, %v3260, %v3262
      %v3289 = vsel %vm1031, %v3262, %v3264
      %v3290 = vsel %vm1031, %v3264, %v3266
      %v3291 = vsel %vm1031, %v3266, %v3268
      %v3292 = vsel %vm1031, %v3268, %v3270
      %v3293 = vsel %vm1031, %v3270, %v3272
      %v3294 = vsel %vm1031, %v3272, %v3274
      %v3295 = vsel %vm1031, %v3274, %v3276
      %v3296 = vsel %vm1031, %v3276, %v3278
      %3315 = vrot.lane.b32.xlu0 %v2849, 59
      %v3316 = vpop.permute.xlu0 %3315
      %3317 = vrot.lane.b32.xlu0 %v2850, 59
      %v3318 = vpop.permute.xlu0 %3317
      %3319 = vrot.lane.b32.xlu0 %v2851, 59
      %v3320 = vpop.permute.xlu0 %3319
      %3321 = vrot.lane.b32.xlu0 %v2852, 59
      %v3322 = vpop.permute.xlu0 %3321
      %3323 = vrot.lane.b32.xlu0 %v2853, 59
      %v3324 = vpop.permute.xlu0 %3323
      %3325 = vrot.lane.b32.xlu0 %v2854, 59
      %v3326 = vpop.permute.xlu0 %3325
      %3327 = vrot.lane.b32.xlu0 %v2855, 59
      %v3328 = vpop.permute.xlu0 %3327
      %3329 = vrot.lane.b32.xlu0 %v2856, 59
      %v3330 = vpop.permute.xlu0 %3329
      %3331 = vrot.lane.b32.xlu0 %v2857, 59
      %v3332 = vpop.permute.xlu0 %3331
      %3333 = vrot.lane.b32.xlu0 %v2858, 59
      %v3334 = vpop.permute.xlu0 %3333
      %3335 = vrot.lane.b32.xlu0 %v2859, 59
      %v3336 = vpop.permute.xlu0 %3335
      %3337 = vrot.lane.b32.xlu0 %v2860, 59
      %v3338 = vpop.permute.xlu0 %3337
      %3339 = vrot.lane.b32.xlu0 %v2861, 59
      %v3340 = vpop.permute.xlu0 %3339
      %3341 = vrot.lane.b32.xlu0 %v2862, 59
      %v3342 = vpop.permute.xlu0 %3341
      %3343 = vrot.lane.b32.xlu0 %v2863, 59
      %v3344 = vpop.permute.xlu0 %3343
      %3345 = vrot.lane.b32.xlu0 %v2864, 59
      %v3346 = vpop.permute.xlu0 %3345
      %3347 = vrot.lane.b32.xlu0 %v2865, 59
      %v3348 = vpop.permute.xlu0 %3347
      %3349 = vrot.lane.b32.xlu0 %v2866, 59
      %v3350 = vpop.permute.xlu0 %3349
      %3351 = vrot.lane.b32.xlu0 %v2867, 59
      %v3352 = vpop.permute.xlu0 %3351
      %3353 = vrot.lane.b32.xlu0 %v2868, 59
      %v3354 = vpop.permute.xlu0 %3353
      %v3355 = vsel %vm1070, %v3316, %v3318
      %v3356 = vsel %vm1070, %v3318, %v3320
      %v3357 = vsel %vm1070, %v3320, %v3322
      %v3358 = vsel %vm1070, %v3322, %v3324
      %v3359 = vsel %vm1070, %v3324, %v3326
      %v3360 = vsel %vm1070, %v3326, %v3328
      %v3361 = vsel %vm1070, %v3328, %v3330
      %v3362 = vsel %vm1070, %v3330, %v3332
      %v3363 = vsel %vm1070, %v3332, %v3334
      %v3364 = vsel %vm1070, %v3336, %v3338
      %v3365 = vsel %vm1070, %v3338, %v3340
      %v3366 = vsel %vm1070, %v3340, %v3342
      %v3367 = vsel %vm1070, %v3342, %v3344
      %v3368 = vsel %vm1070, %v3344, %v3346
      %v3369 = vsel %vm1070, %v3346, %v3348
      %v3370 = vsel %vm1070, %v3348, %v3350
      %v3371 = vsel %vm1070, %v3350, %v3352
      %v3372 = vsel %vm1070, %v3352, %v3354
      %3391 = vrot.lane.b32.xlu0 %v2849, 58
      %v3392 = vpop.permute.xlu0 %3391
      %3393 = vrot.lane.b32.xlu0 %v2850, 58
      %v3394 = vpop.permute.xlu0 %3393
      %3395 = vrot.lane.b32.xlu0 %v2851, 58
      %v3396 = vpop.permute.xlu0 %3395
      %3397 = vrot.lane.b32.xlu0 %v2852, 58
      %v3398 = vpop.permute.xlu0 %3397
      %3399 = vrot.lane.b32.xlu0 %v2853, 58
      %v3400 = vpop.permute.xlu0 %3399
      %3401 = vrot.lane.b32.xlu0 %v2854, 58
      %v3402 = vpop.permute.xlu0 %3401
      %3403 = vrot.lane.b32.xlu0 %v2855, 58
      %v3404 = vpop.permute.xlu0 %3403
      %3405 = vrot.lane.b32.xlu0 %v2856, 58
      %v3406 = vpop.permute.xlu0 %3405
      %3407 = vrot.lane.b32.xlu0 %v2857, 58
      %v3408 = vpop.permute.xlu0 %3407
      %3409 = vrot.lane.b32.xlu0 %v2858, 58
      %v3410 = vpop.permute.xlu0 %3409
      %3411 = vrot.lane.b32.xlu0 %v2859, 58
      %v3412 = vpop.permute.xlu0 %3411
      %3413 = vrot.lane.b32.xlu0 %v2860, 58
      %v3414 = vpop.permute.xlu0 %3413
      %3415 = vrot.lane.b32.xlu0 %v2861, 58
      %v3416 = vpop.permute.xlu0 %3415
      %3417 = vrot.lane.b32.xlu0 %v2862, 58
      %v3418 = vpop.permute.xlu0 %3417
      %3419 = vrot.lane.b32.xlu0 %v2863, 58
      %v3420 = vpop.permute.xlu0 %3419
      %3421 = vrot.lane.b32.xlu0 %v2864, 58
      %v3422 = vpop.permute.xlu0 %3421
      %3423 = vrot.lane.b32.xlu0 %v2865, 58
      %v3424 = vpop.permute.xlu0 %3423
      %3425 = vrot.lane.b32.xlu0 %v2866, 58
      %v3426 = vpop.permute.xlu0 %3425
      %3427 = vrot.lane.b32.xlu0 %v2867, 58
      %v3428 = vpop.permute.xlu0 %3427
      %3429 = vrot.lane.b32.xlu0 %v2868, 58
      %v3430 = vpop.permute.xlu0 %3429
      %v3431 = vsel %vm1109, %v3392, %v3394
      %v3432 = vsel %vm1109, %v3394, %v3396
      %v3433 = vsel %vm1109, %v3396, %v3398
      %v3434 = vsel %vm1109, %v3398, %v3400
      %v3435 = vsel %vm1109, %v3400, %v3402
      %v3436 = vsel %vm1109, %v3402, %v3404
      %v3437 = vsel %vm1109, %v3404, %v3406
      %v3438 = vsel %vm1109, %v3406, %v3408
      %v3439 = vsel %vm1109, %v3408, %v3410
      %v3440 = vsel %vm1109, %v3412, %v3414
      %v3441 = vsel %vm1109, %v3414, %v3416
      %v3442 = vsel %vm1109, %v3416, %v3418
      %v3443 = vsel %vm1109, %v3418, %v3420
      %v3444 = vsel %vm1109, %v3420, %v3422
      %v3445 = vsel %vm1109, %v3422, %v3424
      %v3446 = vsel %vm1109, %v3424, %v3426
      %v3447 = vsel %vm1109, %v3426, %v3428
      %v3448 = vsel %vm1109, %v3428, %v3430
      %v3467 = vpack.c.bf16 %v2859, %v2849
      %v3468 = vpack.c.bf16 %v2860, %v2850
      %v3469 = vpack.c.bf16 %v2861, %v2851
      %v3470 = vpack.c.bf16 %v2862, %v2852
      %v3471 = vpack.c.bf16 %v2863, %v2853
      %v3472 = vpack.c.bf16 %v2864, %v2854
      %v3473 = vpack.c.bf16 %v2865, %v2855
      %v3474 = vpack.c.bf16 %v2866, %v2856
      %v3475 = vpack.c.bf16 %v2867, %v2857
      %v3476 = vpack.c.bf16 %v2931, %v2923
      %v3477 = vpack.c.bf16 %v2932, %v2924
      %v3478 = vpack.c.bf16 %v2933, %v2925
      %v3479 = vpack.c.bf16 %v2934, %v2926
      %v3480 = vpack.c.bf16 %v2935, %v2927
      %v3481 = vpack.c.bf16 %v2936, %v2928
      %v3482 = vpack.c.bf16 %v2937, %v2929
      %v3483 = vpack.c.bf16 %v2938, %v2930
      %v3484 = vpack.c.bf16 %v2922, %v2904
      %v3485 = vpack.c.bf16 %v3001, %v2993
      %v3486 = vpack.c.bf16 %v3002, %v2994
      %v3487 = vpack.c.bf16 %v3003, %v2995
      %v3488 = vpack.c.bf16 %v3004, %v2996
      %v3489 = vpack.c.bf16 %v3005, %v2997
      %v3490 = vpack.c.bf16 %v3006, %v2998
      %v3491 = vpack.c.bf16 %v3007, %v2999
      %v3492 = vpack.c.bf16 %v3008, %v3000
      %v3493 = vpack.c.bf16 %v2992, %v2974
      %v3494 = vpack.c.bf16 %v3071, %v3063
      %v3495 = vpack.c.bf16 %v3072, %v3064
      %v3496 = vpack.c.bf16 %v3073, %v3065
      %v3497 = vpack.c.bf16 %v3074, %v3066
      %v3498 = vpack.c.bf16 %v3075, %v3067
      %v3499 = vpack.c.bf16 %v3076, %v3068
      %v3500 = vpack.c.bf16 %v3077, %v3069
      %v3501 = vpack.c.bf16 %v3078, %v3070
      %v3502 = vpack.c.bf16 %v3062, %v3044
      %v3503 = vpack.c.bf16 %v3141, %v3133
      %v3504 = vpack.c.bf16 %v3142, %v3134
      %v3505 = vpack.c.bf16 %v3143, %v3135
      %v3506 = vpack.c.bf16 %v3144, %v3136
      %v3507 = vpack.c.bf16 %v3145, %v3137
      %v3508 = vpack.c.bf16 %v3146, %v3138
      %v3509 = vpack.c.bf16 %v3147, %v3139
      %v3510 = vpack.c.bf16 %v3148, %v3140
      %v3511 = vpack.c.bf16 %v3132, %v3114
      %v3512 = vpack.c.bf16 %v3211, %v3203
      %v3513 = vpack.c.bf16 %v3212, %v3204
      %v3514 = vpack.c.bf16 %v3213, %v3205
      %v3515 = vpack.c.bf16 %v3214, %v3206
      %v3516 = vpack.c.bf16 %v3215, %v3207
      %v3517 = vpack.c.bf16 %v3216, %v3208
      %v3518 = vpack.c.bf16 %v3217, %v3209
      %v3519 = vpack.c.bf16 %v3218, %v3210
      %v3520 = vpack.c.bf16 %v3202, %v3184
      %v3521 = vpack.c.bf16 %v3288, %v3279
      %v3522 = vpack.c.bf16 %v3289, %v3280
      %v3523 = vpack.c.bf16 %v3290, %v3281
      %v3524 = vpack.c.bf16 %v3291, %v3282
      %v3525 = vpack.c.bf16 %v3292, %v3283
      %v3526 = vpack.c.bf16 %v3293, %v3284
      %v3527 = vpack.c.bf16 %v3294, %v3285
      %v3528 = vpack.c.bf16 %v3295, %v3286
      %v3529 = vpack.c.bf16 %v3296, %v3287
      %v3530 = vpack.c.bf16 %v3364, %v3355
      %v3531 = vpack.c.bf16 %v3365, %v3356
      %v3532 = vpack.c.bf16 %v3366, %v3357
      %v3533 = vpack.c.bf16 %v3367, %v3358
      %v3534 = vpack.c.bf16 %v3368, %v3359
      %v3535 = vpack.c.bf16 %v3369, %v3360
      %v3536 = vpack.c.bf16 %v3370, %v3361
      %v3537 = vpack.c.bf16 %v3371, %v3362
      %v3538 = vpack.c.bf16 %v3372, %v3363
      %v3539 = vpack.c.bf16 %v3440, %v3431
      %v3540 = vpack.c.bf16 %v3441, %v3432
      %v3541 = vpack.c.bf16 %v3442, %v3433
      %v3542 = vpack.c.bf16 %v3443, %v3434
      %v3543 = vpack.c.bf16 %v3444, %v3435
      %v3544 = vpack.c.bf16 %v3445, %v3436
      %v3545 = vpack.c.bf16 %v3446, %v3437
      %v3546 = vpack.c.bf16 %v3447, %v3438
      %v3547 = vpack.c.bf16 %v3448, %v3439
      %v3548 = vld [vmem:[%s3] sm:$0xff]
      %v3549 = vld [vmem:[%s3 + $0x8] sm:$0xff]
      %v3552 = vunpack.c.l.b16 %v3548
      %v3553 = vunpack.c.h.b16 %v3548
      %v3554 = vunpack.c.l.b16 %v3549
      %v3555 = vunpack.c.h.b16 %v3549
      %v3556 = vpack.c.b16 %v3554, %v3552
      %v3557 = vpack.c.b16 %v3555, %v3553
      %v3560 = vsel %vm2385, %v3557, 0
      %3562 = vmatprep.subr.bf16.mxu0 %v3468
      %3563 = vmatpush1.bf16.msra.mxu0 %v3467
      %3564 = vmatprep.subr.bf16.mxu0 %v3477
      %3565 = vmatpush1.bf16.msra.mxu0 %v3476
      %3566 = vmatprep.subr.bf16.mxu0 %v3486
      %3567 = vmatpush1.bf16.msra.mxu0 %v3485
      %3568 = vmatprep.subr.bf16.mxu0 %v3495
      %3569 = vmatpush1.bf16.msra.mxu0 %v3494
      %3570 = vmatprep.subr.bf16.mxu0 %v3504
      %3571 = vmatpush1.bf16.msra.mxu0 %v3503
      %3572 = vmatprep.subr.bf16.mxu0 %v3513
      %3573 = vmatpush1.bf16.msra.mxu0 %v3512
      %3574 = vmatprep.subr.bf16.mxu0 %v3522
      %3575 = vmatpush1.bf16.msra.mxu0 %v3521
      %3576 = vmatprep.subr.bf16.mxu0 %v3531
      %3577 = vmatpush1.bf16.msra.mxu0 %v3530
      %3578 = vmatprep.subr.bf16.mxu0 %v3540
      %3579 = vmatpush1.bf16.msra.mxu0 %v3539
      %3580 = vmatprep.subr.bf16.mxu0 0
      %3581 = vmatpush1.bf16.msra.mxu0 0
      %3582 = vmatprep.subr.bf16.mxu0 0
      %3583 = vmatpush1.bf16.msra.mxu0 0
      %3584 = vmatprep.subr.bf16.mxu0 0
      %3585 = vmatpush1.bf16.msra.mxu0 0
      %3586 = vmatprep.subr.bf16.mxu0 0
      %3587 = vmatpush1.bf16.msra.mxu0 0
      %3588 = vmatprep.subr.bf16.mxu0 0
      %3589 = vmatpush1.bf16.msra.mxu0 0
      %3590 = vmatprep.subr.bf16.mxu0 0
      %3591 = vmatpush1.bf16.msra.mxu0 0
      %3592 = vmatprep.subr.bf16.mxu0 0
      %3593 = vmatpush1.bf16.msra.mxu0 0
      %3594 = vmatprep.mubr.bf16.mxu0 %v3560
      %3595 = vmatmul.mubr.bf16.gmra.mrb[0].mxu0 %v3556
      %v3596 = vpop.f32.mrb[0].mxu0
      %v3597 = vadd.f32 0.0, %v3596
      %v3598 = vpop.f32.mrb[0].mxu0
      %v3599 = vadd.f32 0.0, %v3598
      %v3600 = vpop.f32.mrb[0].mxu0
      %v3601 = vadd.f32 0.0, %v3600
      %v3602 = vpop.f32.mrb[0].mxu0
      %v3603 = vadd.f32 0.0, %v3602
      %3604 = vdwg.mxu0
      %3605 = vmatprep.subr.bf16.mxu0 %v3470
      %3606 = vmatpush1.bf16.msra.mxu0 %v3469
      %3607 = vmatprep.subr.bf16.mxu0 %v3479
      %3608 = vmatpush1.bf16.msra.mxu0 %v3478
      %3609 = vmatprep.subr.bf16.mxu0 %v3488
      %3610 = vmatpush1.bf16.msra.mxu0 %v3487
      %3611 = vmatprep.subr.bf16.mxu0 %v3497
      %3612 = vmatpush1.bf16.msra.mxu0 %v3496
      %3613 = vmatprep.subr.bf16.mxu0 %v3506
      %3614 = vmatpush1.bf16.msra.mxu0 %v3505
      %3615 = vmatprep.subr.bf16.mxu0 %v3515
      %3616 = vmatpush1.bf16.msra.mxu0 %v3514
      %3617 = vmatprep.subr.bf16.mxu0 %v3524
      %3618 = vmatpush1.bf16.msra.mxu0 %v3523
      %3619 = vmatprep.subr.bf16.mxu0 %v3533
      %3620 = vmatpush1.bf16.msra.mxu0 %v3532
      %3621 = vmatprep.subr.bf16.mxu0 %v3542
      %3622 = vmatpush1.bf16.msra.mxu0 %v3541
      %3623 = vmatprep.subr.bf16.mxu0 0
      %3624 = vmatpush1.bf16.msra.mxu0 0
      %3625 = vmatprep.subr.bf16.mxu0 0
      %3626 = vmatpush1.bf16.msra.mxu0 0
      %3627 = vmatprep.subr.bf16.mxu0 0
      %3628 = vmatpush1.bf16.msra.mxu0 0
      %3629 = vmatprep.subr.bf16.mxu0 0
      %3630 = vmatpush1.bf16.msra.mxu0 0
      %3631 = vmatprep.subr.bf16.mxu0 0
      %3632 = vmatpush1.bf16.msra.mxu0 0
      %3633 = vmatprep.subr.bf16.mxu0 0
      %3634 = vmatpush1.bf16.msra.mxu0 0
      %3635 = vmatprep.subr.bf16.mxu0 0
      %3636 = vmatpush1.bf16.msra.mxu0 0
      %3637 = vmatprep.mubr.bf16.mxu0 %v3560
      %3638 = vmatmul.mubr.bf16.gmra.mrb[0].mxu0 %v3556
      %v3639 = vpop.f32.mrb[0].mxu0
      %v3640 = vadd.f32 0.0, %v3639
      %v3641 = vpop.f32.mrb[0].mxu0
      %v3642 = vadd.f32 0.0, %v3641
      %v3643 = vpop.f32.mrb[0].mxu0
      %v3644 = vadd.f32 0.0, %v3643
      %v3645 = vpop.f32.mrb[0].mxu0
      %v3646 = vadd.f32 0.0, %v3645
      %3647 = vdwg.mxu0
      %3648 = vmatprep.subr.bf16.mxu0 %v3472
      %3649 = vmatpush1.bf16.msra.mxu0 %v3471
      %3650 = vmatprep.subr.bf16.mxu0 %v3481
      %3651 = vmatpush1.bf16.msra.mxu0 %v3480
      %3652 = vmatprep.subr.bf16.mxu0 %v3490
      %3653 = vmatpush1.bf16.msra.mxu0 %v3489
      %3654 = vmatprep.subr.bf16.mxu0 %v3499
      %3655 = vmatpush1.bf16.msra.mxu0 %v3498
      %3656 = vmatprep.subr.bf16.mxu0 %v3508
      %3657 = vmatpush1.bf16.msra.mxu0 %v3507
      %3658 = vmatprep.subr.bf16.mxu0 %v3517
      %3659 = vmatpush1.bf16.msra.mxu0 %v3516
      %3660 = vmatprep.subr.bf16.mxu0 %v3526
      %3661 = vmatpush1.bf16.msra.mxu0 %v3525
      %3662 = vmatprep.subr.bf16.mxu0 %v3535
      %3663 = vmatpush1.bf16.msra.mxu0 %v3534
      %3664 = vmatprep.subr.bf16.mxu0 %v3544
      %3665 = vmatpush1.bf16.msra.mxu0 %v3543
      %3666 = vmatprep.subr.bf16.mxu0 0
      %3667 = vmatpush1.bf16.msra.mxu0 0
      %3668 = vmatprep.subr.bf16.mxu0 0
      %3669 = vmatpush1.bf16.msra.mxu0 0
      %3670 = vmatprep.subr.bf16.mxu0 0
      %3671 = vmatpush1.bf16.msra.mxu0 0
      %3672 = vmatprep.subr.bf16.mxu0 0
      %3673 = vmatpush1.bf16.msra.mxu0 0
      %3674 = vmatprep.subr.bf16.mxu0 0
      %3675 = vmatpush1.bf16.msra.mxu0 0
      %3676 = vmatprep.subr.bf16.mxu0 0
      %3677 = vmatpush1.bf16.msra.mxu0 0
      %3678 = vmatprep.subr.bf16.mxu0 0
      %3679 = vmatpush1.bf16.msra.mxu0 0
      %3680 = vmatprep.mubr.bf16.mxu0 %v3560
      %3681 = vmatmul.mubr.bf16.gmra.mrb[0].mxu0 %v3556
      %v3682 = vpop.f32.mrb[0].mxu0
      %v3683 = vadd.f32 0.0, %v3682
      %v3684 = vpop.f32.mrb[0].mxu0
      %v3685 = vadd.f32 0.0, %v3684
      %v3686 = vpop.f32.mrb[0].mxu0
      %v3687 = vadd.f32 0.0, %v3686
      %v3688 = vpop.f32.mrb[0].mxu0
      %v3689 = vadd.f32 0.0, %v3688
      %3690 = vdwg.mxu0
      %3691 = vmatprep.subr.bf16.mxu0 %v3474
      %3692 = vmatpush1.bf16.msra.mxu0 %v3473
      %3693 = vmatprep.subr.bf16.mxu0 %v3483
      %3694 = vmatpush1.bf16.msra.mxu0 %v3482
      %3695 = vmatprep.subr.bf16.mxu0 %v3492
      %3696 = vmatpush1.bf16.msra.mxu0 %v3491
      %3697 = vmatprep.subr.bf16.mxu0 %v3501
      %3698 = vmatpush1.bf16.msra.mxu0 %v3500
      %3699 = vmatprep.subr.bf16.mxu0 %v3510
      %3700 = vmatpush1.bf16.msra.mxu0 %v3509
      %3701 = vmatprep.subr.bf16.mxu0 %v3519
      %3702 = vmatpush1.bf16.msra.mxu0 %v3518
      %3703 = vmatprep.subr.bf16.mxu0 %v3528
      %3704 = vmatpush1.bf16.msra.mxu0 %v3527
      %3705 = vmatprep.subr.bf16.mxu0 %v3537
      %3706 = vmatpush1.bf16.msra.mxu0 %v3536
      %3707 = vmatprep.subr.bf16.mxu0 %v3546
      %3708 = vmatpush1.bf16.msra.mxu0 %v3545
      %3709 = vmatprep.subr.bf16.mxu0 0
      %3710 = vmatpush1.bf16.msra.mxu0 0
      %3711 = vmatprep.subr.bf16.mxu0 0
      %3712 = vmatpush1.bf16.msra.mxu0 0
      %3713 = vmatprep.subr.bf16.mxu0 0
      %3714 = vmatpush1.bf16.msra.mxu0 0
      %3715 = vmatprep.subr.bf16.mxu0 0
      %3716 = vmatpush1.bf16.msra.mxu0 0
      %3717 = vmatprep.subr.bf16.mxu0 0
      %3718 = vmatpush1.bf16.msra.mxu0 0
      %3719 = vmatprep.subr.bf16.mxu0 0
      %3720 = vmatpush1.bf16.msra.mxu0 0
      %3721 = vmatprep.subr.bf16.mxu0 0
      %3722 = vmatpush1.bf16.msra.mxu0 0
      %3723 = vmatprep.mubr.bf16.mxu0 %v3560
      %3724 = vmatmul.mubr.bf16.gmra.mrb[0].mxu0 %v3556
      %v3725 = vpop.f32.mrb[0].mxu0
      %v3726 = vadd.f32 0.0, %v3725
      %v3727 = vpop.f32.mrb[0].mxu0
      %v3728 = vadd.f32 0.0, %v3727
      %v3729 = vpop.f32.mrb[0].mxu0
      %v3730 = vadd.f32 0.0, %v3729
      %v3731 = vpop.f32.mrb[0].mxu0
      %v3732 = vadd.f32 0.0, %v3731
      %3733 = vdwg.mxu0
      %3734 = vmatprep.subr.bf16.mxu0 0
      %3735 = vmatpush1.bf16.msra.mxu0 %v3475
      %3736 = vmatprep.subr.bf16.mxu0 0
      %3737 = vmatpush1.bf16.msra.mxu0 %v3484
      %3738 = vmatprep.subr.bf16.mxu0 0
      %3739 = vmatpush1.bf16.msra.mxu0 %v3493
      %3740 = vmatprep.subr.bf16.mxu0 0
      %3741 = vmatpush1.bf16.msra.mxu0 %v3502
      %3742 = vmatprep.subr.bf16.mxu0 0
      %3743 = vmatpush1.bf16.msra.mxu0 %v3511
      %3744 = vmatprep.subr.bf16.mxu0 0
      %3745 = vmatpush1.bf16.msra.mxu0 %v3520
      %3746 = vmatprep.subr.bf16.mxu0 0
      %3747 = vmatpush1.bf16.msra.mxu0 %v3529
      %3748 = vmatprep.subr.bf16.mxu0 0
      %3749 = vmatpush1.bf16.msra.mxu0 %v3538
      %3750 = vmatprep.subr.bf16.mxu0 0
      %3751 = vmatpush1.bf16.msra.mxu0 %v3547
      %3752 = vmatprep.subr.bf16.mxu0 0
      %3753 = vmatpush1.bf16.msra.mxu0 0
      %3754 = vmatprep.subr.bf16.mxu0 0
      %3755 = vmatpush1.bf16.msra.mxu0 0
      %3756 = vmatprep.subr.bf16.mxu0 0
      %3757 = vmatpush1.bf16.msra.mxu0 0
      %3758 = vmatprep.subr.bf16.mxu0 0
      %3759 = vmatpush1.bf16.msra.mxu0 0
      %3760 = vmatprep.subr.bf16.mxu0 0
      %3761 = vmatpush1.bf16.msra.mxu0 0
      %3762 = vmatprep.subr.bf16.mxu0 0
      %3763 = vmatpush1.bf16.msra.mxu0 0
      %3764 = vmatprep.subr.bf16.mxu0 0
      %3765 = vmatpush1.bf16.msra.mxu0 0
      %3766 = vmatprep.mubr.bf16.mxu0 %v3560
      %3767 = vmatmul.mubr.bf16.gmra.mrb[0].mxu0 %v3556
      %v3768 = vpop.f32.mrb[0].mxu0
      %v3769 = vadd.f32 0.0, %v3768
      %v3770 = vpop.f32.mrb[0].mxu0
      %v3771 = vpop.f32.mrb[0].mxu0
      %v3772 = vadd.f32 0.0, %v3771
      %v3773 = vpop.f32.mrb[0].mxu0
      %3774 = vdwg.mxu0
      %v3775 = vadd.f32 %v1247, %v3597
      %v3776 = vadd.f32 %v1249, %v3599
      %v3777 = vadd.f32 %v1290, %v3640
      %v3778 = vadd.f32 %v1292, %v3642
      %v3779 = vadd.f32 %v1333, %v3683
      %v3780 = vadd.f32 %v1335, %v3685
      %v3781 = vadd.f32 %v1376, %v3726
      %v3782 = vadd.f32 %v1378, %v3728
      %v3783 = vadd.f32 %v1419, %v3769
      %v3784 = vadd.f32 %v1251, %v3601
      %v3785 = vadd.f32 %v1253, %v3603
      %v3786 = vadd.f32 %v1294, %v3644
      %v3787 = vadd.f32 %v1296, %v3646
      %v3788 = vadd.f32 %v1337, %v3687
      %v3789 = vadd.f32 %v1339, %v3689
      %v3790 = vadd.f32 %v1380, %v3730
      %v3791 = vadd.f32 %v1382, %v3732
      %v3792 = vadd.f32 %v1422, %v3772
      %v3793 = vld [vmem:[%s12] sm:$0xff]
      %v3794 = vld [vmem:[%s12 + $0x8] sm:$0xff]
      %3796 = vset.pattern.permute.xlu0 0
      %3797 = vperm.xlu0 %3796, %v3793
      %v3798 = vpop.permute.xlu0 %3797
      %3801 = vset.pattern.permute.xlu0 0
      %3802 = vperm.xlu0 %3801, %v3794
      %v3803 = vpop.permute.xlu0 %3802
      %v3805 = vmul.f32 %v3775, %v3798
      %v3806 = vmul.f32 %v3776, %v3798
      %v3807 = vmul.f32 %v3777, %v3798
      %v3808 = vmul.f32 %v3778, %v3798
      %v3809 = vmul.f32 %v3779, %v3798
      %v3810 = vmul.f32 %v3780, %v3798
      %v3811 = vmul.f32 %v3781, %v3798
      %v3812 = vmul.f32 %v3782, %v3798
      %v3813 = vmul.f32 %v3783, %v3798
      %v3814 = vmul.f32 %v3784, %v3803
      %v3815 = vmul.f32 %v3785, %v3803
      %v3816 = vmul.f32 %v3786, %v3803
      %v3817 = vmul.f32 %v3787, %v3803
      %v3818 = vmul.f32 %v3788, %v3803
      %v3819 = vmul.f32 %v3789, %v3803
      %v3820 = vmul.f32 %v3790, %v3803
      %v3821 = vmul.f32 %v3791, %v3803
      %v3822 = vmul.f32 %v3792, %v3803
      %3823 = vset.pattern.permute.xlu0 1
      %3824 = vperm.xlu0 %3823, %v3793
      %v3825 = vpop.permute.xlu0 %3824
      %3827 = vset.pattern.permute.xlu0 1
      %3828 = vperm.xlu0 %3827, %v3794
      %v3829 = vpop.permute.xlu0 %3828
      %v3831 = vadd.f32 %v3805, %v3825
      %v3832 = vadd.f32 %v3806, %v3825
      %v3833 = vadd.f32 %v3807, %v3825
      %v3834 = vadd.f32 %v3808, %v3825
      %v3835 = vadd.f32 %v3809, %v3825
      %v3836 = vadd.f32 %v3810, %v3825
      %v3837 = vadd.f32 %v3811, %v3825
      %v3838 = vadd.f32 %v3812, %v3825
      %v3839 = vadd.f32 %v3813, %v3825
      %v3840 = vadd.f32 %v3814, %v3829
      %v3841 = vadd.f32 %v3815, %v3829
      %v3842 = vadd.f32 %v3816, %v3829
      %v3843 = vadd.f32 %v3817, %v3829
      %v3844 = vadd.f32 %v3818, %v3829
      %v3845 = vadd.f32 %v3819, %v3829
      %v3846 = vadd.f32 %v3820, %v3829
      %v3847 = vadd.f32 %v3821, %v3829
      %v3848 = vadd.f32 %v3822, %v3829
      %v3849 = vmax.f32 %v3831, 0.0
      %v3850 = vmax.f32 %v3832, 0.0
      %v3851 = vmax.f32 %v3833, 0.0
      %v3852 = vmax.f32 %v3834, 0.0
      %v3853 = vmax.f32 %v3835, 0.0
      %v3854 = vmax.f32 %v3836, 0.0
      %v3855 = vmax.f32 %v3837, 0.0
      %v3856 = vmax.f32 %v3838, 0.0
      %v3857 = vmax.f32 %v3839, 0.0
      %v3858 = vmax.f32 %v3840, 0.0
      %v3859 = vmax.f32 %v3841, 0.0
      %v3860 = vmax.f32 %v3842, 0.0
      %v3861 = vmax.f32 %v3843, 0.0
      %v3862 = vmax.f32 %v3844, 0.0
      %v3863 = vmax.f32 %v3845, 0.0
      %v3864 = vmax.f32 %v3846, 0.0
      %v3865 = vmax.f32 %v3847, 0.0
      %v3866 = vmax.f32 %v3848, 0.0
      %v3867 = vld [vmem:[%s21] sm:$0xff]
      %v3868 = vld [vmem:[%s21 + $0x8] sm:$0x1]
      %v3871 = vlaneseq
      %v3872 = vshrl.u32 %v3871, 7
      %v3873 = vsub.s32 0, %v3872
      %v3874 = vrot.slane %v3867, %v3873
      %v3875 = vlaneseq
      %v3876 = vshrl.u32 %v3875, 7
      %v3877 = vsub.s32 1, %v3876
      %v3878 = vrot.slane %v3867, %v3877
      %v3879 = vlaneseq
      %v3880 = vshrl.u32 %v3879, 7
      %v3881 = vsub.s32 2, %v3880
      %v3882 = vrot.slane %v3867, %v3881
      %v3883 = vlaneseq
      %v3884 = vshrl.u32 %v3883, 7
      %v3885 = vsub.s32 3, %v3884
      %v3886 = vrot.slane %v3867, %v3885
      %v3887 = vlaneseq
      %v3888 = vshrl.u32 %v3887, 7
      %v3889 = vsub.s32 4, %v3888
      %v3890 = vrot.slane %v3867, %v3889
      %v3891 = vlaneseq
      %v3892 = vshrl.u32 %v3891, 7
      %v3893 = vsub.s32 5, %v3892
      %v3894 = vrot.slane %v3867, %v3893
      %v3895 = vlaneseq
      %v3896 = vshrl.u32 %v3895, 7
      %v3897 = vsub.s32 6, %v3896
      %v3898 = vrot.slane %v3867, %v3897
      %v3899 = vlaneseq
      %v3900 = vshrl.u32 %v3899, 7
      %v3901 = vsub.s32 7, %v3900
      %v3902 = vrot.slane %v3867, %v3901
      %v3903 = vlaneseq
      %v3904 = vshrl.u32 %v3903, 7
      %v3905 = vsub.s32 0, %v3904
      %v3906 = vrot.slane %v3868, %v3905
      %v3916 = vmul.f32 %v3849, %v3874
      %v3917 = vmul.f32 %v3850, %v3878
      %v3918 = vmul.f32 %v3851, %v3882
      %v3919 = vmul.f32 %v3852, %v3886
      %v3920 = vmul.f32 %v3853, %v3890
      %v3921 = vmul.f32 %v3854, %v3894
      %v3922 = vmul.f32 %v3855, %v3898
      %v3923 = vmul.f32 %v3856, %v3902
      %v3924 = vmul.f32 %v3857, %v3906
      %v3925 = vmul.f32 %v3858, %v3874
      %v3926 = vmul.f32 %v3859, %v3878
      %v3927 = vmul.f32 %v3860, %v3882
      %v3928 = vmul.f32 %v3861, %v3886
      %v3929 = vmul.f32 %v3862, %v3890
      %v3930 = vmul.f32 %v3863, %v3894
      %v3931 = vmul.f32 %v3864, %v3898
      %v3932 = vmul.f32 %v3865, %v3902
      %v3933 = vmul.f32 %v3866, %v3906
      %3952 = vrot.lane.b32.xlu0 %v3916, 35
      %v3953 = vpop.permute.xlu0 %3952
      %3954 = vrot.lane.b32.xlu0 %v3917, 35
      %v3955 = vpop.permute.xlu0 %3954
      %3956 = vrot.lane.b32.xlu0 %v3918, 35
      %v3957 = vpop.permute.xlu0 %3956
      %3958 = vrot.lane.b32.xlu0 %v3919, 35
      %v3959 = vpop.permute.xlu0 %3958
      %3960 = vrot.lane.b32.xlu0 %v3920, 35
      %v3961 = vpop.permute.xlu0 %3960
      %3962 = vrot.lane.b32.xlu0 %v3921, 35
      %v3963 = vpop.permute.xlu0 %3962
      %3964 = vrot.lane.b32.xlu0 %v3922, 35
      %v3965 = vpop.permute.xlu0 %3964
      %3966 = vrot.lane.b32.xlu0 %v3923, 35
      %v3967 = vpop.permute.xlu0 %3966
      %3968 = vrot.lane.b32.xlu0 %v3924, 35
      %v3969 = vpop.permute.xlu0 %3968
      %3970 = vrot.lane.b32.xlu0 %v3925, 35
      %v3971 = vpop.permute.xlu0 %3970
      %3972 = vrot.lane.b32.xlu0 %v3926, 35
      %v3973 = vpop.permute.xlu0 %3972
      %3974 = vrot.lane.b32.xlu0 %v3927, 35
      %v3975 = vpop.permute.xlu0 %3974
      %3976 = vrot.lane.b32.xlu0 %v3928, 35
      %v3977 = vpop.permute.xlu0 %3976
      %3978 = vrot.lane.b32.xlu0 %v3929, 35
      %v3979 = vpop.permute.xlu0 %3978
      %3980 = vrot.lane.b32.xlu0 %v3930, 35
      %v3981 = vpop.permute.xlu0 %3980
      %3982 = vrot.lane.b32.xlu0 %v3931, 35
      %v3983 = vpop.permute.xlu0 %3982
      %3984 = vrot.lane.b32.xlu0 %v3932, 35
      %v3985 = vpop.permute.xlu0 %3984
      %3986 = vrot.lane.b32.xlu0 %v3933, 35
      %v3987 = vpop.permute.xlu0 %3986
      %v3988 = vsel %vm1620, %v3953, %v3955
      %v3989 = vsel %vm1620, %v3955, %v3957
      %v3990 = vsel %vm1620, %v3957, %v3959
      %v3991 = vsel %vm1620, %v3959, %v3961
      %v3992 = vsel %vm1620, %v3961, %v3963
      %v3993 = vsel %vm1620, %v3963, %v3965
      %v3994 = vsel %vm1620, %v3965, %v3967
      %v3995 = vsel %vm1620, %v3967, %v3969
      %v3996 = vsel %vm1620, %v3971, %v3973
      %v3997 = vsel %vm1620, %v3973, %v3975
      %v3998 = vsel %vm1620, %v3975, %v3977
      %v3999 = vsel %vm1620, %v3977, %v3979
      %v4000 = vsel %vm1620, %v3979, %v3981
      %v4001 = vsel %vm1620, %v3981, %v3983
      %v4002 = vsel %vm1620, %v3983, %v3985
      %v4003 = vsel %vm1620, %v3985, %v3987
      %4022 = vst.msk [vmem:[#allocation4] sm:$0xff] %vm1655, %v3953
      %4023 = vst [vmem:[#allocation4 + $0x8] sm:$0xff] %v3988
      %4024 = vst [vmem:[#allocation4 + $0x10] sm:$0xff] %v3989
      %4025 = vst [vmem:[#allocation4 + $0x18] sm:$0xff] %v3990
      %4026 = vst [vmem:[#allocation4 + $0x20] sm:$0xff] %v3991
      %4027 = vst [vmem:[#allocation4 + $0x28] sm:$0xff] %v3992
      %4028 = vst [vmem:[#allocation4 + $0x30] sm:$0xff] %v3993
      %4029 = vst [vmem:[#allocation4 + $0x38] sm:$0xff] %v3994
      %4030 = vst.msk [vmem:[#allocation4 + $0x40] sm:$0xff] %vm1664, %v3995
      %4031 = vst.msk [vmem:[#allocation4 + $0x50] sm:$0xff] %vm1655, %v3971
      %4032 = vst [vmem:[#allocation4 + $0x58] sm:$0xff] %v3996
      %4033 = vst [vmem:[#allocation4 + $0x60] sm:$0xff] %v3997
      %4034 = vst [vmem:[#allocation4 + $0x68] sm:$0xff] %v3998
      %4035 = vst [vmem:[#allocation4 + $0x70] sm:$0xff] %v3999
      %4036 = vst [vmem:[#allocation4 + $0x78] sm:$0xff] %v4000
      %4037 = vst [vmem:[#allocation4 + $0x80] sm:$0xff] %v4001
      %4038 = vst [vmem:[#allocation4 + $0x88] sm:$0xff] %v4002
      %4039 = vst.msk [vmem:[#allocation4 + $0x90] sm:$0xff] %vm1664, %v4003
      %v4040 = vld [vmem:[%s19] sm:$0xff]
      %v4041 = vld [vmem:[%s19 + $0x8] sm:$0xf]
      %v4042 = vld [vmem:[%s19 + $0xc] sm:$0xff]
      %v4043 = vld [vmem:[%s19 + $0x14] sm:$0xf]
      %v4044 = vld [vmem:[%s19 + $0x18] sm:$0xff]
      %v4045 = vld [vmem:[%s19 + $0x20] sm:$0xf]
      %v4046 = vld [vmem:[%s19 + $0x24] sm:$0xff]
      %v4047 = vld [vmem:[%s19 + $0x2c] sm:$0xf]
      %v4048 = vld [vmem:[%s19 + $0x30] sm:$0xff]
      %v4049 = vld [vmem:[%s19 + $0x38] sm:$0xf]
      %v4050 = vld [vmem:[%s19 + $0x3c] sm:$0xff]
      %v4051 = vld [vmem:[%s19 + $0x44] sm:$0xf]
      %v4052 = vld [vmem:[%s19 + $0x48] sm:$0xff]
      %v4053 = vld [vmem:[%s19 + $0x50] sm:$0xf]
      %v4054 = vld [vmem:[%s19 + $0x54] sm:$0xff]
      %v4055 = vld [vmem:[%s19 + $0x5c] sm:$0xf]
      %v4056 = vld [vmem:[%s19 + $0x60] sm:$0xff]
      %v4057 = vld [vmem:[%s19 + $0x68] sm:$0xf]
      %v4058 = vld [vmem:[%s19 + $0x6c] sm:$0xff]
      %v4059 = vld [vmem:[%s19 + $0x74] sm:$0xf]
      %v4060 = vld [vmem:[%s19 + $0x78] sm:$0xff]
      %v4061 = vld [vmem:[%s19 + $0x80] sm:$0xf]
      %v4062 = vld [vmem:[%s19 + $0x84] sm:$0xff]
      %v4063 = vld [vmem:[%s19 + $0x8c] sm:$0xf]
      %v4064 = vld [vmem:[%s19 + $0x90] sm:$0xff]
      %v4065 = vld [vmem:[%s19 + $0x98] sm:$0xf]
      %v4066 = vld [vmem:[%s19 + $0x9c] sm:$0xff]
      %v4067 = vld [vmem:[%s19 + $0xa4] sm:$0xf]
      %v4068 = vld [vmem:[%s19 + $0xa8] sm:$0xff]
      %v4069 = vld [vmem:[%s19 + $0xb0] sm:$0xf]
      %v4070 = vld [vmem:[%s19 + $0xb4] sm:$0xff]
      %v4071 = vld [vmem:[%s19 + $0xbc] sm:$0xf]
      %v4072 = vld [vmem:[%s19 + $0xc0] sm:$0xff]
      %v4073 = vld [vmem:[%s19 + $0xc8] sm:$0xf]
      %v4074 = vld [vmem:[%s19 + $0xcc] sm:$0xff]
      %v4075 = vld [vmem:[%s19 + $0xd4] sm:$0xf]
      %v4076 = vld [vmem:[%s19 + $0xd8] sm:$0xff]
      %v4077 = vld [vmem:[%s19 + $0xe0] sm:$0xf]
      %v4078 = vld [vmem:[%s19 + $0xe4] sm:$0xff]
      %v4079 = vld [vmem:[%s19 + $0xec] sm:$0xf]
      %v4080 = vld [vmem:[%s19 + $0xf0] sm:$0xff]
      %v4081 = vld [vmem:[%s19 + $0xf8] sm:$0xf]
      %v4082 = vld [vmem:[%s19 + $0xfc] sm:$0xff]
      %v4083 = vld [vmem:[%s19 + $0x104] sm:$0xf]
      %v4084 = vld [vmem:[%s19 + $0x108] sm:$0xff]
      %v4085 = vld [vmem:[%s19 + $0x110] sm:$0xf]
      %v4086 = vld [vmem:[%s19 + $0x114] sm:$0xff]
      %v4087 = vld [vmem:[%s19 + $0x11c] sm:$0xf]
      %v4088 = vld [vmem:[%s19 + $0x120] sm:$0xff]
      %v4089 = vld [vmem:[%s19 + $0x128] sm:$0xf]
      %v4090 = vld [vmem:[%s19 + $0x12c] sm:$0xff]
      %v4091 = vld [vmem:[%s19 + $0x134] sm:$0xf]
      %v4092 = vld [vmem:[%s19 + $0x138] sm:$0xff]
      %v4093 = vld [vmem:[%s19 + $0x140] sm:$0xf]
      %v4094 = vld [vmem:[%s19 + $0x144] sm:$0xff]
      %v4095 = vld [vmem:[%s19 + $0x14c] sm:$0xf]
      %v4096 = vld [vmem:[%s19 + $0x150] sm:$0xff]
      %v4097 = vld [vmem:[%s19 + $0x158] sm:$0xf]
      %v4098 = vld [vmem:[%s19 + $0x15c] sm:$0xff]
      %v4099 = vld [vmem:[%s19 + $0x164] sm:$0xf]
      %v4100 = vld [vmem:[%s19 + $0x168] sm:$0xff]
      %v4101 = vld [vmem:[%s19 + $0x170] sm:$0xf]
      %v4102 = vld [vmem:[%s19 + $0x174] sm:$0xff]
      %v4103 = vld [vmem:[%s19 + $0x17c] sm:$0xf]
      %v4104 = vld [vmem:[%s19 + $0x180] sm:$0xff]
      %v4105 = vld [vmem:[%s19 + $0x188] sm:$0xf]
      %v4106 = vld [vmem:[%s19 + $0x18c] sm:$0xff]
      %v4107 = vld [vmem:[%s19 + $0x194] sm:$0xf]
      %v4108 = vld [vmem:[%s19 + $0x198] sm:$0xff]
      %v4109 = vld [vmem:[%s19 + $0x1a0] sm:$0xf]
      %v4110 = vld [vmem:[%s19 + $0x1a4] sm:$0xff]
      %v4111 = vld [vmem:[%s19 + $0x1ac] sm:$0xf]
      %v4112 = vld [vmem:[%s19 + $0x1b0] sm:$0xff]
      %v4113 = vld [vmem:[%s19 + $0x1b8] sm:$0xf]
      %v4114 = vld [vmem:[%s19 + $0x1bc] sm:$0xff]
      %v4115 = vld [vmem:[%s19 + $0x1c4] sm:$0xf]
      %v4116 = vld [vmem:[%s19 + $0x1c8] sm:$0xff]
      %v4117 = vld [vmem:[%s19 + $0x1d0] sm:$0xf]
      %v4118 = vld [vmem:[%s19 + $0x1d4] sm:$0xff]
      %v4119 = vld [vmem:[%s19 + $0x1dc] sm:$0xf]
      %v4120 = vld [vmem:[%s19 + $0x1e0] sm:$0xff]
      %v4121 = vld [vmem:[%s19 + $0x1e8] sm:$0xf]
      %v4122 = vld [vmem:[%s19 + $0x1ec] sm:$0xff]
      %v4123 = vld [vmem:[%s19 + $0x1f4] sm:$0xf]
      %v4124 = vld [vmem:[%s19 + $0x1f8] sm:$0xff]
      %v4125 = vld [vmem:[%s19 + $0x200] sm:$0xf]
      %v4126 = vld [vmem:[%s19 + $0x204] sm:$0xff]
      %v4127 = vld [vmem:[%s19 + $0x20c] sm:$0xf]
      %v4128 = vld [vmem:[%s19 + $0x210] sm:$0xff]
      %v4129 = vld [vmem:[%s19 + $0x218] sm:$0xf]
      %v4130 = vld [vmem:[%s19 + $0x21c] sm:$0xff]
      %v4131 = vld [vmem:[%s19 + $0x224] sm:$0xf]
      %v4132 = vld [vmem:[%s19 + $0x228] sm:$0xff]
      %v4133 = vld [vmem:[%s19 + $0x230] sm:$0xf]
      %v4134 = vld [vmem:[%s19 + $0x234] sm:$0xff]
      %v4135 = vld [vmem:[%s19 + $0x23c] sm:$0xf]
      %v4136 = vld [vmem:[%s19 + $0x240] sm:$0xff]
      %v4137 = vld [vmem:[%s19 + $0x248] sm:$0xf]
      %v4138 = vld [vmem:[%s19 + $0x24c] sm:$0xff]
      %v4139 = vld [vmem:[%s19 + $0x254] sm:$0xf]
      %v4140 = vld [vmem:[%s19 + $0x258] sm:$0xff]
      %v4141 = vld [vmem:[%s19 + $0x260] sm:$0xf]
      %v4142 = vld [vmem:[%s19 + $0x264] sm:$0xff]
      %v4143 = vld [vmem:[%s19 + $0x26c] sm:$0xf]
      %v4144 = vld [vmem:[%s19 + $0x270] sm:$0xff]
      %v4145 = vld [vmem:[%s19 + $0x278] sm:$0xf]
      %v4146 = vld [vmem:[%s19 + $0x27c] sm:$0xff]
      %v4147 = vld [vmem:[%s19 + $0x284] sm:$0xf]
      %v4148 = vld [vmem:[%s19 + $0x288] sm:$0xff]
      %v4149 = vld [vmem:[%s19 + $0x290] sm:$0xf]
      %v4150 = vld [vmem:[%s19 + $0x294] sm:$0xff]
      %v4151 = vld [vmem:[%s19 + $0x29c] sm:$0xf]
      %v4152 = vld [vmem:[%s19 + $0x2a0] sm:$0xff]
      %v4153 = vld [vmem:[%s19 + $0x2a8] sm:$0xf]
      %v4154 = vld [vmem:[%s19 + $0x2ac] sm:$0xff]
      %v4155 = vld [vmem:[%s19 + $0x2b4] sm:$0xf]
      %v4156 = vld [vmem:[%s19 + $0x2b8] sm:$0xff]
      %v4157 = vld [vmem:[%s19 + $0x2c0] sm:$0xf]
      %v4158 = vld [vmem:[%s19 + $0x2c4] sm:$0xff]
      %v4159 = vld [vmem:[%s19 + $0x2cc] sm:$0xf]
      %v4160 = vld [vmem:[%s19 + $0x2d0] sm:$0xff]
      %v4161 = vld [vmem:[%s19 + $0x2d8] sm:$0xf]
      %v4162 = vld [vmem:[%s19 + $0x2dc] sm:$0xff]
      %v4163 = vld [vmem:[%s19 + $0x2e4] sm:$0xf]
      %v4164 = vld [vmem:[%s19 + $0x2e8] sm:$0xff]
      %v4165 = vld [vmem:[%s19 + $0x2f0] sm:$0xf]
      %v4166 = vld [vmem:[%s19 + $0x2f4] sm:$0xff]
      %v4167 = vld [vmem:[%s19 + $0x2fc] sm:$0xf]
      %v4168 = vld [vmem:[%s19 + $0x300] sm:$0xff]
      %v4169 = vld [vmem:[%s19 + $0x308] sm:$0xf]
      %v4170 = vld [vmem:[%s19 + $0x30c] sm:$0xff]
      %v4171 = vld [vmem:[%s19 + $0x314] sm:$0xf]
      %v4172 = vld [vmem:[%s19 + $0x318] sm:$0xff]
      %v4173 = vld [vmem:[%s19 + $0x320] sm:$0xf]
      %v4174 = vld [vmem:[%s19 + $0x324] sm:$0xff]
      %v4175 = vld [vmem:[%s19 + $0x32c] sm:$0xf]
      %v4176 = vld [vmem:[%s19 + $0x330] sm:$0xff]
      %v4177 = vld [vmem:[%s19 + $0x338] sm:$0xf]
      %v4178 = vld [vmem:[%s19 + $0x33c] sm:$0xff]
      %v4179 = vld [vmem:[%s19 + $0x344] sm:$0xf]
      %v4180 = vld [vmem:[%s19 + $0x348] sm:$0xff]
      %v4181 = vld [vmem:[%s19 + $0x350] sm:$0xf]
      %v4182 = vld [vmem:[%s19 + $0x354] sm:$0xff]
      %v4183 = vld [vmem:[%s19 + $0x35c] sm:$0xf]
      %v4184 = vld [vmem:[%s19 + $0x360] sm:$0xff]
      %v4185 = vld [vmem:[%s19 + $0x368] sm:$0xf]
      %v4186 = vld [vmem:[%s19 + $0x36c] sm:$0xff]
      %v4187 = vld [vmem:[%s19 + $0x374] sm:$0xf]
      %v4188 = vld [vmem:[%s19 + $0x378] sm:$0xff]
      %v4189 = vld [vmem:[%s19 + $0x380] sm:$0xf]
      %v4190 = vld [vmem:[%s19 + $0x384] sm:$0xff]
      %v4191 = vld [vmem:[%s19 + $0x38c] sm:$0xf]
      %v4192 = vld [vmem:[%s19 + $0x390] sm:$0xff]
      %v4193 = vld [vmem:[%s19 + $0x398] sm:$0xf]
      %v4194 = vld [vmem:[%s19 + $0x39c] sm:$0xff]
      %v4195 = vld [vmem:[%s19 + $0x3a4] sm:$0xf]
      %v4196 = vld [vmem:[%s19 + $0x3a8] sm:$0xff]
      %v4197 = vld [vmem:[%s19 + $0x3b0] sm:$0xf]
      %v4198 = vld [vmem:[%s19 + $0x3b4] sm:$0xff]
      %v4199 = vld [vmem:[%s19 + $0x3bc] sm:$0xf]
      %v4200 = vld [vmem:[%s19 + $0x3c0] sm:$0xff]
      %v4201 = vld [vmem:[%s19 + $0x3c8] sm:$0xf]
      %v4202 = vld [vmem:[%s19 + $0x3cc] sm:$0xff]
      %v4203 = vld [vmem:[%s19 + $0x3d4] sm:$0xf]
      %v4204 = vld [vmem:[%s19 + $0x3d8] sm:$0xff]
      %v4205 = vld [vmem:[%s19 + $0x3e0] sm:$0xf]
      %v4206 = vld [vmem:[%s19 + $0x3e4] sm:$0xff]
      %v4207 = vld [vmem:[%s19 + $0x3ec] sm:$0xf]
      %v4208 = vld [vmem:[%s19 + $0x3f0] sm:$0xff]
      %v4209 = vld [vmem:[%s19 + $0x3f8] sm:$0xf]
      %v4210 = vld [vmem:[%s19 + $0x3fc] sm:$0xff]
      %v4211 = vld [vmem:[%s19 + $0x404] sm:$0xf]
      %v4212 = vld [vmem:[%s19 + $0x408] sm:$0xff]
      %v4213 = vld [vmem:[%s19 + $0x410] sm:$0xf]
      %v4214 = vld [vmem:[%s19 + $0x414] sm:$0xff]
      %v4215 = vld [vmem:[%s19 + $0x41c] sm:$0xf]
      %v4216 = vld [vmem:[%s19 + $0x420] sm:$0xff]
      %v4217 = vld [vmem:[%s19 + $0x428] sm:$0xf]
      %v4218 = vld [vmem:[%s19 + $0x42c] sm:$0xff]
      %v4219 = vld [vmem:[%s19 + $0x434] sm:$0xf]
      %v4220 = vld [vmem:[%s19 + $0x438] sm:$0xff]
      %v4221 = vld [vmem:[%s19 + $0x440] sm:$0xf]
      %v4222 = vld [vmem:[%s19 + $0x444] sm:$0xff]
      %v4223 = vld [vmem:[%s19 + $0x44c] sm:$0xf]
      %v4224 = vld [vmem:[%s19 + $0x450] sm:$0xff]
      %v4225 = vld [vmem:[%s19 + $0x458] sm:$0xf]
      %v4226 = vld [vmem:[%s19 + $0x45c] sm:$0xff]
      %v4227 = vld [vmem:[%s19 + $0x464] sm:$0xf]
      %v4228 = vld [vmem:[%s19 + $0x468] sm:$0xff]
      %v4229 = vld [vmem:[%s19 + $0x470] sm:$0xf]
      %v4230 = vld [vmem:[%s19 + $0x474] sm:$0xff]
      %v4231 = vld [vmem:[%s19 + $0x47c] sm:$0xf]
      %v4232 = vld [vmem:[%s19 + $0x480] sm:$0xff]
      %v4233 = vld [vmem:[%s19 + $0x488] sm:$0xf]
      %v4234 = vld [vmem:[%s19 + $0x48c] sm:$0xff]
      %v4235 = vld [vmem:[%s19 + $0x494] sm:$0xf]
      %v4236 = vld [vmem:[%s19 + $0x498] sm:$0xff]
      %v4237 = vld [vmem:[%s19 + $0x4a0] sm:$0xf]
      %v4238 = vld [vmem:[%s19 + $0x4a4] sm:$0xff]
      %v4239 = vld [vmem:[%s19 + $0x4ac] sm:$0xf]
      %v4240 = vld [vmem:[%s19 + $0x4b0] sm:$0xff]
      %v4241 = vld [vmem:[%s19 + $0x4b8] sm:$0xf]
      %v4242 = vld [vmem:[%s19 + $0x4bc] sm:$0xff]
      %v4243 = vld [vmem:[%s19 + $0x4c4] sm:$0xf]
      %v4244 = vld [vmem:[%s19 + $0x4c8] sm:$0xff]
      %v4245 = vld [vmem:[%s19 + $0x4d0] sm:$0xf]
      %v4246 = vld [vmem:[%s19 + $0x4d4] sm:$0xff]
      %v4247 = vld [vmem:[%s19 + $0x4dc] sm:$0xf]
      %v4248 = vld [vmem:[%s19 + $0x4e0] sm:$0xff]
      %v4249 = vld [vmem:[%s19 + $0x4e8] sm:$0xf]
      %v4250 = vld [vmem:[%s19 + $0x4ec] sm:$0xff]
      %v4251 = vld [vmem:[%s19 + $0x4f4] sm:$0xf]
      %v4252 = vld [vmem:[%s19 + $0x4f8] sm:$0xff]
      %v4253 = vld [vmem:[%s19 + $0x500] sm:$0xf]
      %v4254 = vld [vmem:[%s19 + $0x504] sm:$0xff]
      %v4255 = vld [vmem:[%s19 + $0x50c] sm:$0xf]
      %v4256 = vld [vmem:[%s19 + $0x510] sm:$0xff]
      %v4257 = vld [vmem:[%s19 + $0x518] sm:$0xf]
      %v4258 = vld [vmem:[%s19 + $0x51c] sm:$0xff]
      %v4259 = vld [vmem:[%s19 + $0x524] sm:$0xf]
      %v4260 = vld [vmem:[%s19 + $0x528] sm:$0xff]
      %v4261 = vld [vmem:[%s19 + $0x530] sm:$0xf]
      %v4262 = vld [vmem:[%s19 + $0x534] sm:$0xff]
      %v4263 = vld [vmem:[%s19 + $0x53c] sm:$0xf]
      %v4264 = vld [vmem:[%s19 + $0x540] sm:$0xff]
      %v4265 = vld [vmem:[%s19 + $0x548] sm:$0xf]
      %v4266 = vld [vmem:[%s19 + $0x54c] sm:$0xff]
      %v4267 = vld [vmem:[%s19 + $0x554] sm:$0xf]
      %v4268 = vld [vmem:[%s19 + $0x558] sm:$0xff]
      %v4269 = vld [vmem:[%s19 + $0x560] sm:$0xf]
      %v4270 = vld [vmem:[%s19 + $0x564] sm:$0xff]
      %v4271 = vld [vmem:[%s19 + $0x56c] sm:$0xf]
      %v4272 = vld [vmem:[%s19 + $0x570] sm:$0xff]
      %v4273 = vld [vmem:[%s19 + $0x578] sm:$0xf]
      %v4274 = vld [vmem:[%s19 + $0x57c] sm:$0xff]
      %v4275 = vld [vmem:[%s19 + $0x584] sm:$0xf]
      %v4276 = vld [vmem:[%s19 + $0x588] sm:$0xff]
      %v4277 = vld [vmem:[%s19 + $0x590] sm:$0xf]
      %v4278 = vld [vmem:[%s19 + $0x594] sm:$0xff]
      %v4279 = vld [vmem:[%s19 + $0x59c] sm:$0xf]
      %v4280 = vld [vmem:[%s19 + $0x5a0] sm:$0xff]
      %v4281 = vld [vmem:[%s19 + $0x5a8] sm:$0xf]
      %v4282 = vld [vmem:[%s19 + $0x5ac] sm:$0xff]
      %v4283 = vld [vmem:[%s19 + $0x5b4] sm:$0xf]
      %v4284 = vld [vmem:[%s19 + $0x5b8] sm:$0xff]
      %v4285 = vld [vmem:[%s19 + $0x5c0] sm:$0xf]
      %v4286 = vld [vmem:[%s19 + $0x5c4] sm:$0xff]
      %v4287 = vld [vmem:[%s19 + $0x5cc] sm:$0xf]
      %v4288 = vld [vmem:[%s19 + $0x5d0] sm:$0xff]
      %v4289 = vld [vmem:[%s19 + $0x5d8] sm:$0xf]
      %v4290 = vld [vmem:[%s19 + $0x5dc] sm:$0xff]
      %v4291 = vld [vmem:[%s19 + $0x5e4] sm:$0xf]
      %v4292 = vld [vmem:[%s19 + $0x5e8] sm:$0xff]
      %v4293 = vld [vmem:[%s19 + $0x5f0] sm:$0xf]
      %v4294 = vld [vmem:[%s19 + $0x5f4] sm:$0xff]
      %v4295 = vld [vmem:[%s19 + $0x5fc] sm:$0xf]
      %v4296 = vld [vmem:[%s19 + $0x600] sm:$0xff]
      %v4297 = vld [vmem:[%s19 + $0x608] sm:$0xf]
      %v4298 = vld [vmem:[%s19 + $0x60c] sm:$0xff]
      %v4299 = vld [vmem:[%s19 + $0x614] sm:$0xf]
      %v4300 = vld [vmem:[%s19 + $0x618] sm:$0xff]
      %v4301 = vld [vmem:[%s19 + $0x620] sm:$0xf]
      %v4302 = vld [vmem:[%s19 + $0x624] sm:$0xff]
      %v4303 = vld [vmem:[%s19 + $0x62c] sm:$0xf]
      %v4304 = vld [vmem:[%s19 + $0x630] sm:$0xff]
      %v4305 = vld [vmem:[%s19 + $0x638] sm:$0xf]
      %v4306 = vld [vmem:[%s19 + $0x63c] sm:$0xff]
      %v4307 = vld [vmem:[%s19 + $0x644] sm:$0xf]
      %v4308 = vld [vmem:[%s19 + $0x648] sm:$0xff]
      %v4309 = vld [vmem:[%s19 + $0x650] sm:$0xf]
      %v4310 = vld [vmem:[%s19 + $0x654] sm:$0xff]
      %v4311 = vld [vmem:[%s19 + $0x65c] sm:$0xf]
      %v4312 = vld [vmem:[#allocation4] sm:$0xff]
      %v4313 = vld [vmem:[#allocation4 + $0x8] sm:$0xff]
      %v4314 = vld [vmem:[#allocation4 + $0x10] sm:$0xff]
      %v4315 = vld [vmem:[#allocation4 + $0x18] sm:$0xff]
      %v4316 = vld [vmem:[#allocation4 + $0x20] sm:$0xff]
      %v4317 = vld [vmem:[#allocation4 + $0x28] sm:$0xff]
      %v4318 = vld [vmem:[#allocation4 + $0x30] sm:$0xff]
      %v4319 = vld [vmem:[#allocation4 + $0x38] sm:$0xff]
      %v4320 = vld [vmem:[#allocation4 + $0x40] sm:$0xff]
      %v4321 = vld [vmem:[#allocation4 + $0x48] sm:$0xff]
      %v4322 = vld [vmem:[#allocation4 + $0x50] sm:$0xff]
      %v4323 = vld [vmem:[#allocation4 + $0x58] sm:$0xff]
      %v4324 = vld [vmem:[#allocation4 + $0x60] sm:$0xff]
      %v4325 = vld [vmem:[#allocation4 + $0x68] sm:$0xff]
      %v4326 = vld [vmem:[#allocation4 + $0x70] sm:$0xff]
      %v4327 = vld [vmem:[#allocation4 + $0x78] sm:$0xff]
      %v4328 = vld [vmem:[#allocation4 + $0x80] sm:$0xff]
      %v4329 = vld [vmem:[#allocation4 + $0x88] sm:$0xff]
      %v4330 = vld [vmem:[#allocation4 + $0x90] sm:$0xff]
      %v4331 = vld [vmem:[#allocation4 + $0x98] sm:$0xff]
      %4350 = vrot.lane.b32.xlu0 %v4312, 127
      %v4351 = vpop.permute.xlu0 %4350
      %4352 = vrot.lane.b32.xlu0 %v4313, 127
      %v4353 = vpop.permute.xlu0 %4352
      %4354 = vrot.lane.b32.xlu0 %v4314, 127
      %v4355 = vpop.permute.xlu0 %4354
      %4356 = vrot.lane.b32.xlu0 %v4315, 127
      %v4357 = vpop.permute.xlu0 %4356
      %4358 = vrot.lane.b32.xlu0 %v4316, 127
      %v4359 = vpop.permute.xlu0 %4358
      %4360 = vrot.lane.b32.xlu0 %v4317, 127
      %v4361 = vpop.permute.xlu0 %4360
      %4362 = vrot.lane.b32.xlu0 %v4318, 127
      %v4363 = vpop.permute.xlu0 %4362
      %4364 = vrot.lane.b32.xlu0 %v4319, 127
      %v4365 = vpop.permute.xlu0 %4364
      %4366 = vrot.lane.b32.xlu0 %v4320, 127
      %v4367 = vpop.permute.xlu0 %4366
      %4368 = vrot.lane.b32.xlu0 %v4322, 127
      %v4369 = vpop.permute.xlu0 %4368
      %4370 = vrot.lane.b32.xlu0 %v4323, 127
      %v4371 = vpop.permute.xlu0 %4370
      %4372 = vrot.lane.b32.xlu0 %v4324, 127
      %v4373 = vpop.permute.xlu0 %4372
      %4374 = vrot.lane.b32.xlu0 %v4325, 127
      %v4375 = vpop.permute.xlu0 %4374
      %4376 = vrot.lane.b32.xlu0 %v4326, 127
      %v4377 = vpop.permute.xlu0 %4376
      %4378 = vrot.lane.b32.xlu0 %v4327, 127
      %v4379 = vpop.permute.xlu0 %4378
      %4380 = vrot.lane.b32.xlu0 %v4328, 127
      %v4381 = vpop.permute.xlu0 %4380
      %4382 = vrot.lane.b32.xlu0 %v4329, 127
      %v4383 = vpop.permute.xlu0 %4382
      %4384 = vrot.lane.b32.xlu0 %v4330, 127
      %v4385 = vpop.permute.xlu0 %4384
      %v4386 = vsel %vm848, %v4351, %v4353
      %v4387 = vsel %vm848, %v4353, %v4355
      %v4388 = vsel %vm848, %v4355, %v4357
      %v4389 = vsel %vm848, %v4357, %v4359
      %v4390 = vsel %vm848, %v4359, %v4361
      %v4391 = vsel %vm848, %v4361, %v4363
      %v4392 = vsel %vm848, %v4363, %v4365
      %v4393 = vsel %vm848, %v4365, %v4367
      %v4394 = vsel %vm848, %v4369, %v4371
      %v4395 = vsel %vm848, %v4371, %v4373
      %v4396 = vsel %vm848, %v4373, %v4375
      %v4397 = vsel %vm848, %v4375, %v4377
      %v4398 = vsel %vm848, %v4377, %v4379
      %v4399 = vsel %vm848, %v4379, %v4381
      %v4400 = vsel %vm848, %v4381, %v4383
      %v4401 = vsel %vm848, %v4383, %v4385
      %4420 = vrot.lane.b32.xlu0 %v4312, 126
      %v4421 = vpop.permute.xlu0 %4420
      %4422 = vrot.lane.b32.xlu0 %v4313, 126
      %v4423 = vpop.permute.xlu0 %4422
      %4424 = vrot.lane.b32.xlu0 %v4314, 126
      %v4425 = vpop.permute.xlu0 %4424
      %4426 = vrot.lane.b32.xlu0 %v4315, 126
      %v4427 = vpop.permute.xlu0 %4426
      %4428 = vrot.lane.b32.xlu0 %v4316, 126
      %v4429 = vpop.permute.xlu0 %4428
      %4430 = vrot.lane.b32.xlu0 %v4317, 126
      %v4431 = vpop.permute.xlu0 %4430
      %4432 = vrot.lane.b32.xlu0 %v4318, 126
      %v4433 = vpop.permute.xlu0 %4432
      %4434 = vrot.lane.b32.xlu0 %v4319, 126
      %v4435 = vpop.permute.xlu0 %4434
      %4436 = vrot.lane.b32.xlu0 %v4320, 126
      %v4437 = vpop.permute.xlu0 %4436
      %4438 = vrot.lane.b32.xlu0 %v4322, 126
      %v4439 = vpop.permute.xlu0 %4438
      %4440 = vrot.lane.b32.xlu0 %v4323, 126
      %v4441 = vpop.permute.xlu0 %4440
      %4442 = vrot.lane.b32.xlu0 %v4324, 126
      %v4443 = vpop.permute.xlu0 %4442
      %4444 = vrot.lane.b32.xlu0 %v4325, 126
      %v4445 = vpop.permute.xlu0 %4444
      %4446 = vrot.lane.b32.xlu0 %v4326, 126
      %v4447 = vpop.permute.xlu0 %4446
      %4448 = vrot.lane.b32.xlu0 %v4327, 126
      %v4449 = vpop.permute.xlu0 %4448
      %4450 = vrot.lane.b32.xlu0 %v4328, 126
      %v4451 = vpop.permute.xlu0 %4450
      %4452 = vrot.lane.b32.xlu0 %v4329, 126
      %v4453 = vpop.permute.xlu0 %4452
      %4454 = vrot.lane.b32.xlu0 %v4330, 126
      %v4455 = vpop.permute.xlu0 %4454
      %v4456 = vsel %vm884, %v4421, %v4423
      %v4457 = vsel %vm884, %v4423, %v4425
      %v4458 = vsel %vm884, %v4425, %v4427
      %v4459 = vsel %vm884, %v4427, %v4429
      %v4460 = vsel %vm884, %v4429, %v4431
      %v4461 = vsel %vm884, %v4431, %v4433
      %v4462 = vsel %vm884, %v4433, %v4435
      %v4463 = vsel %vm884, %v4435, %v4437
      %v4464 = vsel %vm884, %v4439, %v4441
      %v4465 = vsel %vm884, %v4441, %v4443
      %v4466 = vsel %vm884, %v4443, %v4445
      %v4467 = vsel %vm884, %v4445, %v4447
      %v4468 = vsel %vm884, %v4447, %v4449
      %v4469 = vsel %vm884, %v4449, %v4451
      %v4470 = vsel %vm884, %v4451, %v4453
      %v4471 = vsel %vm884, %v4453, %v4455
      %4490 = vrot.lane.b32.xlu0 %v4312, 94
      %v4491 = vpop.permute.xlu0 %4490
      %4492 = vrot.lane.b32.xlu0 %v4313, 94
      %v4493 = vpop.permute.xlu0 %4492
      %4494 = vrot.lane.b32.xlu0 %v4314, 94
      %v4495 = vpop.permute.xlu0 %4494
      %4496 = vrot.lane.b32.xlu0 %v4315, 94
      %v4497 = vpop.permute.xlu0 %4496
      %4498 = vrot.lane.b32.xlu0 %v4316, 94
      %v4499 = vpop.permute.xlu0 %4498
      %4500 = vrot.lane.b32.xlu0 %v4317, 94
      %v4501 = vpop.permute.xlu0 %4500
      %4502 = vrot.lane.b32.xlu0 %v4318, 94
      %v4503 = vpop.permute.xlu0 %4502
      %4504 = vrot.lane.b32.xlu0 %v4319, 94
      %v4505 = vpop.permute.xlu0 %4504
      %4506 = vrot.lane.b32.xlu0 %v4320, 94
      %v4507 = vpop.permute.xlu0 %4506
      %4508 = vrot.lane.b32.xlu0 %v4322, 94
      %v4509 = vpop.permute.xlu0 %4508
      %4510 = vrot.lane.b32.xlu0 %v4323, 94
      %v4511 = vpop.permute.xlu0 %4510
      %4512 = vrot.lane.b32.xlu0 %v4324, 94
      %v4513 = vpop.permute.xlu0 %4512
      %4514 = vrot.lane.b32.xlu0 %v4325, 94
      %v4515 = vpop.permute.xlu0 %4514
      %4516 = vrot.lane.b32.xlu0 %v4326, 94
      %v4517 = vpop.permute.xlu0 %4516
      %4518 = vrot.lane.b32.xlu0 %v4327, 94
      %v4519 = vpop.permute.xlu0 %4518
      %4520 = vrot.lane.b32.xlu0 %v4328, 94
      %v4521 = vpop.permute.xlu0 %4520
      %4522 = vrot.lane.b32.xlu0 %v4329, 94
      %v4523 = vpop.permute.xlu0 %4522
      %4524 = vrot.lane.b32.xlu0 %v4330, 94
      %v4525 = vpop.permute.xlu0 %4524
      %v4526 = vsel %vm920, %v4491, %v4493
      %v4527 = vsel %vm920, %v4493, %v4495
      %v4528 = vsel %vm920, %v4495, %v4497
      %v4529 = vsel %vm920, %v4497, %v4499
      %v4530 = vsel %vm920, %v4499, %v4501
      %v4531 = vsel %vm920, %v4501, %v4503
      %v4532 = vsel %vm920, %v4503, %v4505
      %v4533 = vsel %vm920, %v4505, %v4507
      %v4534 = vsel %vm920, %v4509, %v4511
      %v4535 = vsel %vm920, %v4511, %v4513
      %v4536 = vsel %vm920, %v4513, %v4515
      %v4537 = vsel %vm920, %v4515, %v4517
      %v4538 = vsel %vm920, %v4517, %v4519
      %v4539 = vsel %vm920, %v4519, %v4521
      %v4540 = vsel %vm920, %v4521, %v4523
      %v4541 = vsel %vm920, %v4523, %v4525
      %4560 = vrot.lane.b32.xlu0 %v4312, 93
      %v4561 = vpop.permute.xlu0 %4560
      %4562 = vrot.lane.b32.xlu0 %v4313, 93
      %v4563 = vpop.permute.xlu0 %4562
      %4564 = vrot.lane.b32.xlu0 %v4314, 93
      %v4565 = vpop.permute.xlu0 %4564
      %4566 = vrot.lane.b32.xlu0 %v4315, 93
      %v4567 = vpop.permute.xlu0 %4566
      %4568 = vrot.lane.b32.xlu0 %v4316, 93
      %v4569 = vpop.permute.xlu0 %4568
      %4570 = vrot.lane.b32.xlu0 %v4317, 93
      %v4571 = vpop.permute.xlu0 %4570
      %4572 = vrot.lane.b32.xlu0 %v4318, 93
      %v4573 = vpop.permute.xlu0 %4572
      %4574 = vrot.lane.b32.xlu0 %v4319, 93
      %v4575 = vpop.permute.xlu0 %4574
      %4576 = vrot.lane.b32.xlu0 %v4320, 93
      %v4577 = vpop.permute.xlu0 %4576
      %4578 = vrot.lane.b32.xlu0 %v4322, 93
      %v4579 = vpop.permute.xlu0 %4578
      %4580 = vrot.lane.b32.xlu0 %v4323, 93
      %v4581 = vpop.permute.xlu0 %4580
      %4582 = vrot.lane.b32.xlu0 %v4324, 93
      %v4583 = vpop.permute.xlu0 %4582
      %4584 = vrot.lane.b32.xlu0 %v4325, 93
      %v4585 = vpop.permute.xlu0 %4584
      %4586 = vrot.lane.b32.xlu0 %v4326, 93
      %v4587 = vpop.permute.xlu0 %4586
      %4588 = vrot.lane.b32.xlu0 %v4327, 93
      %v4589 = vpop.permute.xlu0 %4588
      %4590 = vrot.lane.b32.xlu0 %v4328, 93
      %v4591 = vpop.permute.xlu0 %4590
      %4592 = vrot.lane.b32.xlu0 %v4329, 93
      %v4593 = vpop.permute.xlu0 %4592
      %4594 = vrot.lane.b32.xlu0 %v4330, 93
      %v4595 = vpop.permute.xlu0 %4594
      %v4596 = vsel %vm956, %v4561, %v4563
      %v4597 = vsel %vm956, %v4563, %v4565
      %v4598 = vsel %vm956, %v4565, %v4567
      %v4599 = vsel %vm956, %v4567, %v4569
      %v4600 = vsel %vm956, %v4569, %v4571
      %v4601 = vsel %vm956, %v4571, %v4573
      %v4602 = vsel %vm956, %v4573, %v4575
      %v4603 = vsel %vm956, %v4575, %v4577
      %v4604 = vsel %vm956, %v4579, %v4581
      %v4605 = vsel %vm956, %v4581, %v4583
      %v4606 = vsel %vm956, %v4583, %v4585
      %v4607 = vsel %vm956, %v4585, %v4587
      %v4608 = vsel %vm956, %v4587, %v4589
      %v4609 = vsel %vm956, %v4589, %v4591
      %v4610 = vsel %vm956, %v4591, %v4593
      %v4611 = vsel %vm956, %v4593, %v4595
      %4630 = vrot.lane.b32.xlu0 %v4312, 92
      %v4631 = vpop.permute.xlu0 %4630
      %4632 = vrot.lane.b32.xlu0 %v4313, 92
      %v4633 = vpop.permute.xlu0 %4632
      %4634 = vrot.lane.b32.xlu0 %v4314, 92
      %v4635 = vpop.permute.xlu0 %4634
      %4636 = vrot.lane.b32.xlu0 %v4315, 92
      %v4637 = vpop.permute.xlu0 %4636
      %4638 = vrot.lane.b32.xlu0 %v4316, 92
      %v4639 = vpop.permute.xlu0 %4638
      %4640 = vrot.lane.b32.xlu0 %v4317, 92
      %v4641 = vpop.permute.xlu0 %4640
      %4642 = vrot.lane.b32.xlu0 %v4318, 92
      %v4643 = vpop.permute.xlu0 %4642
      %4644 = vrot.lane.b32.xlu0 %v4319, 92
      %v4645 = vpop.permute.xlu0 %4644
      %4646 = vrot.lane.b32.xlu0 %v4320, 92
      %v4647 = vpop.permute.xlu0 %4646
      %4648 = vrot.lane.b32.xlu0 %v4322, 92
      %v4649 = vpop.permute.xlu0 %4648
      %4650 = vrot.lane.b32.xlu0 %v4323, 92
      %v4651 = vpop.permute.xlu0 %4650
      %4652 = vrot.lane.b32.xlu0 %v4324, 92
      %v4653 = vpop.permute.xlu0 %4652
      %4654 = vrot.lane.b32.xlu0 %v4325, 92
      %v4655 = vpop.permute.xlu0 %4654
      %4656 = vrot.lane.b32.xlu0 %v4326, 92
      %v4657 = vpop.permute.xlu0 %4656
      %4658 = vrot.lane.b32.xlu0 %v4327, 92
      %v4659 = vpop.permute.xlu0 %4658
      %4660 = vrot.lane.b32.xlu0 %v4328, 92
      %v4661 = vpop.permute.xlu0 %4660
      %4662 = vrot.lane.b32.xlu0 %v4329, 92
      %v4663 = vpop.permute.xlu0 %4662
      %4664 = vrot.lane.b32.xlu0 %v4330, 92
      %v4665 = vpop.permute.xlu0 %4664
      %v4666 = vsel %vm992, %v4631, %v4633
      %v4667 = vsel %vm992, %v4633, %v4635
      %v4668 = vsel %vm992, %v4635, %v4637
      %v4669 = vsel %vm992, %v4637, %v4639
      %v4670 = vsel %vm992, %v4639, %v4641
      %v4671 = vsel %vm992, %v4641, %v4643
      %v4672 = vsel %vm992, %v4643, %v4645
      %v4673 = vsel %vm992, %v4645, %v4647
      %v4674 = vsel %vm992, %v4649, %v4651
      %v4675 = vsel %vm992, %v4651, %v4653
      %v4676 = vsel %vm992, %v4653, %v4655
      %v4677 = vsel %vm992, %v4655, %v4657
      %v4678 = vsel %vm992, %v4657, %v4659
      %v4679 = vsel %vm992, %v4659, %v4661
      %v4680 = vsel %vm992, %v4661, %v4663
      %v4681 = vsel %vm992, %v4663, %v4665
      %4702 = vrot.lane.b32.xlu0 %v4312, 60
      %v4703 = vpop.permute.xlu0 %4702
      %4704 = vrot.lane.b32.xlu0 %v4313, 60
      %v4705 = vpop.permute.xlu0 %4704
      %4706 = vrot.lane.b32.xlu0 %v4314, 60
      %v4707 = vpop.permute.xlu0 %4706
      %4708 = vrot.lane.b32.xlu0 %v4315, 60
      %v4709 = vpop.permute.xlu0 %4708
      %4710 = vrot.lane.b32.xlu0 %v4316, 60
      %v4711 = vpop.permute.xlu0 %4710
      %4712 = vrot.lane.b32.xlu0 %v4317, 60
      %v4713 = vpop.permute.xlu0 %4712
      %4714 = vrot.lane.b32.xlu0 %v4318, 60
      %v4715 = vpop.permute.xlu0 %4714
      %4716 = vrot.lane.b32.xlu0 %v4319, 60
      %v4717 = vpop.permute.xlu0 %4716
      %4718 = vrot.lane.b32.xlu0 %v4320, 60
      %v4719 = vpop.permute.xlu0 %4718
      %4720 = vrot.lane.b32.xlu0 %v4321, 60
      %v4721 = vpop.permute.xlu0 %4720
      %4722 = vrot.lane.b32.xlu0 %v4322, 60
      %v4723 = vpop.permute.xlu0 %4722
      %4724 = vrot.lane.b32.xlu0 %v4323, 60
      %v4725 = vpop.permute.xlu0 %4724
      %4726 = vrot.lane.b32.xlu0 %v4324, 60
      %v4727 = vpop.permute.xlu0 %4726
      %4728 = vrot.lane.b32.xlu0 %v4325, 60
      %v4729 = vpop.permute.xlu0 %4728
      %4730 = vrot.lane.b32.xlu0 %v4326, 60
      %v4731 = vpop.permute.xlu0 %4730
      %4732 = vrot.lane.b32.xlu0 %v4327, 60
      %v4733 = vpop.permute.xlu0 %4732
      %4734 = vrot.lane.b32.xlu0 %v4328, 60
      %v4735 = vpop.permute.xlu0 %4734
      %4736 = vrot.lane.b32.xlu0 %v4329, 60
      %v4737 = vpop.permute.xlu0 %4736
      %4738 = vrot.lane.b32.xlu0 %v4330, 60
      %v4739 = vpop.permute.xlu0 %4738
      %4740 = vrot.lane.b32.xlu0 %v4331, 60
      %v4741 = vpop.permute.xlu0 %4740
      %v4742 = vsel %vm1031, %v4703, %v4705
      %v4743 = vsel %vm1031, %v4705, %v4707
      %v4744 = vsel %vm1031, %v4707, %v4709
      %v4745 = vsel %vm1031, %v4709, %v4711
      %v4746 = vsel %vm1031, %v4711, %v4713
      %v4747 = vsel %vm1031, %v4713, %v4715
      %v4748 = vsel %vm1031, %v4715, %v4717
      %v4749 = vsel %vm1031, %v4717, %v4719
      %v4750 = vsel %vm1031, %v4719, %v4721
      %v4751 = vsel %vm1031, %v4723, %v4725
      %v4752 = vsel %vm1031, %v4725, %v4727
      %v4753 = vsel %vm1031, %v4727, %v4729
      %v4754 = vsel %vm1031, %v4729, %v4731
      %v4755 = vsel %vm1031, %v4731, %v4733
      %v4756 = vsel %vm1031, %v4733, %v4735
      %v4757 = vsel %vm1031, %v4735, %v4737
      %v4758 = vsel %vm1031, %v4737, %v4739
      %v4759 = vsel %vm1031, %v4739, %v4741
      %4778 = vrot.lane.b32.xlu0 %v4312, 59
      %v4779 = vpop.permute.xlu0 %4778
      %4780 = vrot.lane.b32.xlu0 %v4313, 59
      %v4781 = vpop.permute.xlu0 %4780
      %4782 = vrot.lane.b32.xlu0 %v4314, 59
      %v4783 = vpop.permute.xlu0 %4782
      %4784 = vrot.lane.b32.xlu0 %v4315, 59
      %v4785 = vpop.permute.xlu0 %4784
      %4786 = vrot.lane.b32.xlu0 %v4316, 59
      %v4787 = vpop.permute.xlu0 %4786
      %4788 = vrot.lane.b32.xlu0 %v4317, 59
      %v4789 = vpop.permute.xlu0 %4788
      %4790 = vrot.lane.b32.xlu0 %v4318, 59
      %v4791 = vpop.permute.xlu0 %4790
      %4792 = vrot.lane.b32.xlu0 %v4319, 59
      %v4793 = vpop.permute.xlu0 %4792
      %4794 = vrot.lane.b32.xlu0 %v4320, 59
      %v4795 = vpop.permute.xlu0 %4794
      %4796 = vrot.lane.b32.xlu0 %v4321, 59
      %v4797 = vpop.permute.xlu0 %4796
      %4798 = vrot.lane.b32.xlu0 %v4322, 59
      %v4799 = vpop.permute.xlu0 %4798
      %4800 = vrot.lane.b32.xlu0 %v4323, 59
      %v4801 = vpop.permute.xlu0 %4800
      %4802 = vrot.lane.b32.xlu0 %v4324, 59
      %v4803 = vpop.permute.xlu0 %4802
      %4804 = vrot.lane.b32.xlu0 %v4325, 59
      %v4805 = vpop.permute.xlu0 %4804
      %4806 = vrot.lane.b32.xlu0 %v4326, 59
      %v4807 = vpop.permute.xlu0 %4806
      %4808 = vrot.lane.b32.xlu0 %v4327, 59
      %v4809 = vpop.permute.xlu0 %4808
      %4810 = vrot.lane.b32.xlu0 %v4328, 59
      %v4811 = vpop.permute.xlu0 %4810
      %4812 = vrot.lane.b32.xlu0 %v4329, 59
      %v4813 = vpop.permute.xlu0 %4812
      %4814 = vrot.lane.b32.xlu0 %v4330, 59
      %v4815 = vpop.permute.xlu0 %4814
      %4816 = vrot.lane.b32.xlu0 %v4331, 59
      %v4817 = vpop.permute.xlu0 %4816
      %v4818 = vsel %vm1070, %v4779, %v4781
      %v4819 = vsel %vm1070, %v4781, %v4783
      %v4820 = vsel %vm1070, %v4783, %v4785
      %v4821 = vsel %vm1070, %v4785, %v4787
      %v4822 = vsel %vm1070, %v4787, %v4789
      %v4823 = vsel %vm1070, %v4789, %v4791
      %v4824 = vsel %vm1070, %v4791, %v4793
      %v4825 = vsel %vm1070, %v4793, %v4795
      %v4826 = vsel %vm1070, %v4795, %v4797
      %v4827 = vsel %vm1070, %v4799, %v4801
      %v4828 = vsel %vm1070, %v4801, %v4803
      %v4829 = vsel %vm1070, %v4803, %v4805
      %v4830 = vsel %vm1070, %v4805, %v4807
      %v4831 = vsel %vm1070, %v4807, %v4809
      %v4832 = vsel %vm1070, %v4809, %v4811
      %v4833 = vsel %vm1070, %v4811, %v4813
      %v4834 = vsel %vm1070, %v4813, %v4815
      %v4835 = vsel %vm1070, %v4815, %v4817
      %4854 = vrot.lane.b32.xlu0 %v4312, 58
      %v4855 = vpop.permute.xlu0 %4854
      %4856 = vrot.lane.b32.xlu0 %v4313, 58
      %v4857 = vpop.permute.xlu0 %4856
      %4858 = vrot.lane.b32.xlu0 %v4314, 58
      %v4859 = vpop.permute.xlu0 %4858
      %4860 = vrot.lane.b32.xlu0 %v4315, 58
      %v4861 = vpop.permute.xlu0 %4860
      %4862 = vrot.lane.b32.xlu0 %v4316, 58
      %v4863 = vpop.permute.xlu0 %4862
      %4864 = vrot.lane.b32.xlu0 %v4317, 58
      %v4865 = vpop.permute.xlu0 %4864
      %4866 = vrot.lane.b32.xlu0 %v4318, 58
      %v4867 = vpop.permute.xlu0 %4866
      %4868 = vrot.lane.b32.xlu0 %v4319, 58
      %v4869 = vpop.permute.xlu0 %4868
      %4870 = vrot.lane.b32.xlu0 %v4320, 58
      %v4871 = vpop.permute.xlu0 %4870
      %4872 = vrot.lane.b32.xlu0 %v4321, 58
      %v4873 = vpop.permute.xlu0 %4872
      %4874 = vrot.lane.b32.xlu0 %v4322, 58
      %v4875 = vpop.permute.xlu0 %4874
      %4876 = vrot.lane.b32.xlu0 %v4323, 58
      %v4877 = vpop.permute.xlu0 %4876
      %4878 = vrot.lane.b32.xlu0 %v4324, 58
      %v4879 = vpop.permute.xlu0 %4878
      %4880 = vrot.lane.b32.xlu0 %v4325, 58
      %v4881 = vpop.permute.xlu0 %4880
      %4882 = vrot.lane.b32.xlu0 %v4326, 58
      %v4883 = vpop.permute.xlu0 %4882
      %4884 = vrot.lane.b32.xlu0 %v4327, 58
      %v4885 = vpop.permute.xlu0 %4884
      %4886 = vrot.lane.b32.xlu0 %v4328, 58
      %v4887 = vpop.permute.xlu0 %4886
      %4888 = vrot.lane.b32.xlu0 %v4329, 58
      %v4889 = vpop.permute.xlu0 %4888
      %4890 = vrot.lane.b32.xlu0 %v4330, 58
      %v4891 = vpop.permute.xlu0 %4890
      %4892 = vrot.lane.b32.xlu0 %v4331, 58
      %v4893 = vpop.permute.xlu0 %4892
      %v4894 = vsel %vm1109, %v4855, %v4857
      %v4895 = vsel %vm1109, %v4857, %v4859
      %v4896 = vsel %vm1109, %v4859, %v4861
      %v4897 = vsel %vm1109, %v4861, %v4863
      %v4898 = vsel %vm1109, %v4863, %v4865
      %v4899 = vsel %vm1109, %v4865, %v4867
      %v4900 = vsel %vm1109, %v4867, %v4869
      %v4901 = vsel %vm1109, %v4869, %v4871
      %v4902 = vsel %vm1109, %v4871, %v4873
      %v4903 = vsel %vm1109, %v4875, %v4877
      %v4904 = vsel %vm1109, %v4877, %v4879
      %v4905 = vsel %vm1109, %v4879, %v4881
      %v4906 = vsel %vm1109, %v4881, %v4883
      %v4907 = vsel %vm1109, %v4883, %v4885
      %v4908 = vsel %vm1109, %v4885, %v4887
      %v4909 = vsel %vm1109, %v4887, %v4889
      %v4910 = vsel %vm1109, %v4889, %v4891
      %v4911 = vsel %vm1109, %v4891, %v4893
      %v4930 = vpack.c.bf16 %v4322, %v4312
      %v4931 = vpack.c.bf16 %v4323, %v4313
      %v4932 = vpack.c.bf16 %v4324, %v4314
      %v4933 = vpack.c.bf16 %v4325, %v4315
      %v4934 = vpack.c.bf16 %v4326, %v4316
      %v4935 = vpack.c.bf16 %v4327, %v4317
      %v4936 = vpack.c.bf16 %v4328, %v4318
      %v4937 = vpack.c.bf16 %v4329, %v4319
      %v4938 = vpack.c.bf16 %v4330, %v4320
      %v4939 = vpack.c.bf16 %v4394, %v4386
      %v4940 = vpack.c.bf16 %v4395, %v4387
      %v4941 = vpack.c.bf16 %v4396, %v4388
      %v4942 = vpack.c.bf16 %v4397, %v4389
      %v4943 = vpack.c.bf16 %v4398, %v4390
      %v4944 = vpack.c.bf16 %v4399, %v4391
      %v4945 = vpack.c.bf16 %v4400, %v4392
      %v4946 = vpack.c.bf16 %v4401, %v4393
      %v4947 = vpack.c.bf16 %v4385, %v4367
      %v4948 = vpack.c.bf16 %v4464, %v4456
      %v4949 = vpack.c.bf16 %v4465, %v4457
      %v4950 = vpack.c.bf16 %v4466, %v4458
      %v4951 = vpack.c.bf16 %v4467, %v4459
      %v4952 = vpack.c.bf16 %v4468, %v4460
      %v4953 = vpack.c.bf16 %v4469, %v4461
      %v4954 = vpack.c.bf16 %v4470, %v4462
      %v4955 = vpack.c.bf16 %v4471, %v4463
      %v4956 = vpack.c.bf16 %v4455, %v4437
      %v4957 = vpack.c.bf16 %v4534, %v4526
      %v4958 = vpack.c.bf16 %v4535, %v4527
      %v4959 = vpack.c.bf16 %v4536, %v4528
      %v4960 = vpack.c.bf16 %v4537, %v4529
      %v4961 = vpack.c.bf16 %v4538, %v4530
      %v4962 = vpack.c.bf16 %v4539, %v4531
      %v4963 = vpack.c.bf16 %v4540, %v4532
      %v4964 = vpack.c.bf16 %v4541, %v4533
      %v4965 = vpack.c.bf16 %v4525, %v4507
      %v4966 = vpack.c.bf16 %v4604, %v4596
      %v4967 = vpack.c.bf16 %v4605, %v4597
      %v4968 = vpack.c.bf16 %v4606, %v4598
      %v4969 = vpack.c.bf16 %v4607, %v4599
      %v4970 = vpack.c.bf16 %v4608, %v4600
      %v4971 = vpack.c.bf16 %v4609, %v4601
      %v4972 = vpack.c.bf16 %v4610, %v4602
      %v4973 = vpack.c.bf16 %v4611, %v4603
      %v4974 = vpack.c.bf16 %v4595, %v4577
      %v4975 = vpack.c.bf16 %v4674, %v4666
      %v4976 = vpack.c.bf16 %v4675, %v4667
      %v4977 = vpack.c.bf16 %v4676, %v4668
      %v4978 = vpack.c.bf16 %v4677, %v4669
      %v4979 = vpack.c.bf16 %v4678, %v4670
      %v4980 = vpack.c.bf16 %v4679, %v4671
      %v4981 = vpack.c.bf16 %v4680, %v4672
      %v4982 = vpack.c.bf16 %v4681, %v4673
      %v4983 = vpack.c.bf16 %v4665, %v4647
      %v4984 = vpack.c.bf16 %v4751, %v4742
      %v4985 = vpack.c.bf16 %v4752, %v4743
      %v4986 = vpack.c.bf16 %v4753, %v4744
      %v4987 = vpack.c.bf16 %v4754, %v4745
      %v4988 = vpack.c.bf16 %v4755, %v4746
      %v4989 = vpack.c.bf16 %v4756, %v4747
      %v4990 = vpack.c.bf16 %v4757, %v4748
      %v4991 = vpack.c.bf16 %v4758, %v4749
      %v4992 = vpack.c.bf16 %v4759, %v4750
      %v4993 = vpack.c.bf16 %v4827, %v4818
      %v4994 = vpack.c.bf16 %v4828, %v4819
      %v4995 = vpack.c.bf16 %v4829, %v4820
      %v4996 = vpack.c.bf16 %v4830, %v4821
      %v4997 = vpack.c.bf16 %v4831, %v4822
      %v4998 = vpack.c.bf16 %v4832, %v4823
      %v4999 = vpack.c.bf16 %v4833, %v4824
      %v5000 = vpack.c.bf16 %v4834, %v4825
      %v5001 = vpack.c.bf16 %v4835, %v4826
      %v5002 = vpack.c.bf16 %v4903, %v4894
      %v5003 = vpack.c.bf16 %v4904, %v4895
      %v5004 = vpack.c.bf16 %v4905, %v4896
      %v5005 = vpack.c.bf16 %v4906, %v4897
      %v5006 = vpack.c.bf16 %v4907, %v4898
      %v5007 = vpack.c.bf16 %v4908, %v4899
      %v5008 = vpack.c.bf16 %v4909, %v4900
      %v5009 = vpack.c.bf16 %v4910, %v4901
      %v5010 = vpack.c.bf16 %v4911, %v4902
      %v5011 = vld [vmem:[%s4] sm:$0xff]
      %v5012 = vld [vmem:[%s4 + $0x8] sm:$0xff]
      %v5013 = vld [vmem:[%s4 + $0x10] sm:$0xff]
      %v5014 = vld [vmem:[%s4 + $0x18] sm:$0xff]
      %v5019 = vunpack.c.l.b16 %v5011
      %v5020 = vunpack.c.h.b16 %v5011
      %v5021 = vunpack.c.l.b16 %v5012
      %v5022 = vunpack.c.h.b16 %v5012
      %v5023 = vunpack.c.l.b16 %v5013
      %v5024 = vunpack.c.h.b16 %v5013
      %v5025 = vunpack.c.l.b16 %v5014
      %v5026 = vunpack.c.h.b16 %v5014
      %v5027 = vpack.c.b16 %v5021, %v5019
      %v5028 = vpack.c.b16 %v5022, %v5020
      %v5029 = vpack.c.b16 %v5025, %v5023
      %v5030 = vpack.c.b16 %v5026, %v5024
      %v5034 = vsel %vm2385, %v5028, 0
      %v5037 = vsel %vm2385, %v5030, 0
      %5039 = vmatprep.subr.bf16.mxu0 %v4931
      %5040 = vmatpush1.bf16.msra.mxu0 %v4930
      %5041 = vmatprep.subr.bf16.mxu0 %v4940
      %5042 = vmatpush1.bf16.msra.mxu0 %v4939
      %5043 = vmatprep.subr.bf16.mxu0 %v4949
      %5044 = vmatpush1.bf16.msra.mxu0 %v4948
      %5045 = vmatprep.subr.bf16.mxu0 %v4958
      %5046 = vmatpush1.bf16.msra.mxu0 %v4957
      %5047 = vmatprep.subr.bf16.mxu0 %v4967
      %5048 = vmatpush1.bf16.msra.mxu0 %v4966
      %5049 = vmatprep.subr.bf16.mxu0 %v4976
      %5050 = vmatpush1.bf16.msra.mxu0 %v4975
      %5051 = vmatprep.subr.bf16.mxu0 %v4985
      %5052 = vmatpush1.bf16.msra.mxu0 %v4984
      %5053 = vmatprep.subr.bf16.mxu0 %v4994
      %5054 = vmatpush1.bf16.msra.mxu0 %v4993
      %5055 = vmatprep.subr.bf16.mxu0 %v5003
      %5056 = vmatpush1.bf16.msra.mxu0 %v5002
      %5057 = vmatprep.subr.bf16.mxu0 0
      %5058 = vmatpush1.bf16.msra.mxu0 0
      %5059 = vmatprep.subr.bf16.mxu0 0
      %5060 = vmatpush1.bf16.msra.mxu0 0
      %5061 = vmatprep.subr.bf16.mxu0 0
      %5062 = vmatpush1.bf16.msra.mxu0 0
      %5063 = vmatprep.subr.bf16.mxu0 0
      %5064 = vmatpush1.bf16.msra.mxu0 0
      %5065 = vmatprep.subr.bf16.mxu0 0
      %5066 = vmatpush1.bf16.msra.mxu0 0
      %5067 = vmatprep.subr.bf16.mxu0 0
      %5068 = vmatpush1.bf16.msra.mxu0 0
      %5069 = vmatprep.subr.bf16.mxu0 0
      %5070 = vmatpush1.bf16.msra.mxu0 0
      %5071 = vmatprep.mubr.bf16.mxu0 %v5034
      %5072 = vmatmul.mubr.bf16.gmra.mrb[0].mxu0 %v5027
      %v5073 = vpop.f32.mrb[0].mxu0
      %v5074 = vadd.f32 0.0, %v5073
      %v5075 = vpop.f32.mrb[0].mxu0
      %v5076 = vadd.f32 0.0, %v5075
      %v5077 = vpop.f32.mrb[0].mxu0
      %v5078 = vadd.f32 0.0, %v5077
      %v5079 = vpop.f32.mrb[0].mxu0
      %v5080 = vadd.f32 0.0, %v5079
      %5081 = vmatprep.mubr.bf16.mxu0 %v5037
      %5082 = vmatmul.mubr.bf16.gmra.mrb[0].mxu0 %v5029
      %v5083 = vpop.f32.mrb[0].mxu0
      %v5084 = vadd.f32 0.0, %v5083
      %v5085 = vpop.f32.mrb[0].mxu0
      %v5086 = vadd.f32 0.0, %v5085
      %v5087 = vpop.f32.mrb[0].mxu0
      %v5088 = vadd.f32 0.0, %v5087
      %v5089 = vpop.f32.mrb[0].mxu0
      %v5090 = vadd.f32 0.0, %v5089
      %5091 = vdwg.mxu0
      %5092 = vmatprep.subr.bf16.mxu0 %v4933
      %5093 = vmatpush1.bf16.msra.mxu0 %v4932
      %5094 = vmatprep.subr.bf16.mxu0 %v4942
      %5095 = vmatpush1.bf16.msra.mxu0 %v4941
      %5096 = vmatprep.subr.bf16.mxu0 %v4951
      %5097 = vmatpush1.bf16.msra.mxu0 %v4950
      %5098 = vmatprep.subr.bf16.mxu0 %v4960
      %5099 = vmatpush1.bf16.msra.mxu0 %v4959
      %5100 = vmatprep.subr.bf16.mxu0 %v4969
      %5101 = vmatpush1.bf16.msra.mxu0 %v4968
      %5102 = vmatprep.subr.bf16.mxu0 %v4978
      %5103 = vmatpush1.bf16.msra.mxu0 %v4977
      %5104 = vmatprep.subr.bf16.mxu0 %v4987
      %5105 = vmatpush1.bf16.msra.mxu0 %v4986
      %5106 = vmatprep.subr.bf16.mxu0 %v4996
      %5107 = vmatpush1.bf16.msra.mxu0 %v4995
      %5108 = vmatprep.subr.bf16.mxu0 %v5005
      %5109 = vmatpush1.bf16.msra.mxu0 %v5004
      %5110 = vmatprep.subr.bf16.mxu0 0
      %5111 = vmatpush1.bf16.msra.mxu0 0
      %5112 = vmatprep.subr.bf16.mxu0 0
      %5113 = vmatpush1.bf16.msra.mxu0 0
      %5114 = vmatprep.subr.bf16.mxu0 0
      %5115 = vmatpush1.bf16.msra.mxu0 0
      %5116 = vmatprep.subr.bf16.mxu0 0
      %5117 = vmatpush1.bf16.msra.mxu0 0
      %5118 = vmatprep.subr.bf16.mxu0 0
      %5119 = vmatpush1.bf16.msra.mxu0 0
      %5120 = vmatprep.subr.bf16.mxu0 0
      %5121 = vmatpush1.bf16.msra.mxu0 0
      %5122 = vmatprep.subr.bf16.mxu0 0
      %5123 = vmatpush1.bf16.msra.mxu0 0
      %5124 = vmatprep.mubr.bf16.mxu0 %v5034
      %5125 = vmatmul.mubr.bf16.gmra.mrb[0].mxu0 %v5027
      %v5126 = vpop.f32.mrb[0].mxu0
      %v5127 = vadd.f32 0.0, %v5126
      %v5128 = vpop.f32.mrb[0].mxu0
      %v5129 = vadd.f32 0.0, %v5128
      %v5130 = vpop.f32.mrb[0].mxu0
      %v5131 = vadd.f32 0.0, %v5130
      %v5132 = vpop.f32.mrb[0].mxu0
      %v5133 = vadd.f32 0.0, %v5132
      %5134 = vmatprep.mubr.bf16.mxu0 %v5037
      %5135 = vmatmul.mubr.bf16.gmra.mrb[0].mxu0 %v5029
      %v5136 = vpop.f32.mrb[0].mxu0
      %v5137 = vadd.f32 0.0, %v5136
      %v5138 = vpop.f32.mrb[0].mxu0
      %v5139 = vadd.f32 0.0, %v5138
      %v5140 = vpop.f32.mrb[0].mxu0
      %v5141 = vadd.f32 0.0, %v5140
      %v5142 = vpop.f32.mrb[0].mxu0
      %v5143 = vadd.f32 0.0, %v5142
      %5144 = vdwg.mxu0
      %5145 = vmatprep.subr.bf16.mxu0 %v4935
      %5146 = vmatpush1.bf16.msra.mxu0 %v4934
      %5147 = vmatprep.subr.bf16.mxu0 %v4944
      %5148 = vmatpush1.bf16.msra.mxu0 %v4943
      %5149 = vmatprep.subr.bf16.mxu0 %v4953
      %5150 = vmatpush1.bf16.msra.mxu0 %v4952
      %5151 = vmatprep.subr.bf16.mxu0 %v4962
      %5152 = vmatpush1.bf16.msra.mxu0 %v4961
      %5153 = vmatprep.subr.bf16.mxu0 %v4971
      %5154 = vmatpush1.bf16.msra.mxu0 %v4970
      %5155 = vmatprep.subr.bf16.mxu0 %v4980
      %5156 = vmatpush1.bf16.msra.mxu0 %v4979
      %5157 = vmatprep.subr.bf16.mxu0 %v4989
      %5158 = vmatpush1.bf16.msra.mxu0 %v4988
      %5159 = vmatprep.subr.bf16.mxu0 %v4998
      %5160 = vmatpush1.bf16.msra.mxu0 %v4997
      %5161 = vmatprep.subr.bf16.mxu0 %v5007
      %5162 = vmatpush1.bf16.msra.mxu0 %v5006
      %5163 = vmatprep.subr.bf16.mxu0 0
      %5164 = vmatpush1.bf16.msra.mxu0 0
      %5165 = vmatprep.subr.bf16.mxu0 0
      %5166 = vmatpush1.bf16.msra.mxu0 0
      %5167 = vmatprep.subr.bf16.mxu0 0
      %5168 = vmatpush1.bf16.msra.mxu0 0
      %5169 = vmatprep.subr.bf16.mxu0 0
      %5170 = vmatpush1.bf16.msra.mxu0 0
      %5171 = vmatprep.subr.bf16.mxu0 0
      %5172 = vmatpush1.bf16.msra.mxu0 0
      %5173 = vmatprep.subr.bf16.mxu0 0
      %5174 = vmatpush1.bf16.msra.mxu0 0
      %5175 = vmatprep.subr.bf16.mxu0 0
      %5176 = vmatpush1.bf16.msra.mxu0 0
      %5177 = vmatprep.mubr.bf16.mxu0 %v5034
      %5178 = vmatmul.mubr.bf16.gmra.mrb[0].mxu0 %v5027
      %v5179 = vpop.f32.mrb[0].mxu0
      %v5180 = vadd.f32 0.0, %v5179
      %v5181 = vpop.f32.mrb[0].mxu0
      %v5182 = vadd.f32 0.0, %v5181
      %v5183 = vpop.f32.mrb[0].mxu0
      %v5184 = vadd.f32 0.0, %v5183
      %v5185 = vpop.f32.mrb[0].mxu0
      %v5186 = vadd.f32 0.0, %v5185
      %5187 = vmatprep.mubr.bf16.mxu0 %v5037
      %5188 = vmatmul.mubr.bf16.gmra.mrb[0].mxu0 %v5029
      %v5189 = vpop.f32.mrb[0].mxu0
      %v5190 = vadd.f32 0.0, %v5189
      %v5191 = vpop.f32.mrb[0].mxu0
      %v5192 = vadd.f32 0.0, %v5191
      %v5193 = vpop.f32.mrb[0].mxu0
      %v5194 = vadd.f32 0.0, %v5193
      %v5195 = vpop.f32.mrb[0].mxu0
      %v5196 = vadd.f32 0.0, %v5195
      %5197 = vdwg.mxu0
      %5198 = vmatprep.subr.bf16.mxu0 %v4937
      %5199 = vmatpush1.bf16.msra.mxu0 %v4936
      %5200 = vmatprep.subr.bf16.mxu0 %v4946
      %5201 = vmatpush1.bf16.msra.mxu0 %v4945
      %5202 = vmatprep.subr.bf16.mxu0 %v4955
      %5203 = vmatpush1.bf16.msra.mxu0 %v4954
      %5204 = vmatprep.subr.bf16.mxu0 %v4964
      %5205 = vmatpush1.bf16.msra.mxu0 %v4963
      %5206 = vmatprep.subr.bf16.mxu0 %v4973
      %5207 = vmatpush1.bf16.msra.mxu0 %v4972
      %5208 = vmatprep.subr.bf16.mxu0 %v4982
      %5209 = vmatpush1.bf16.msra.mxu0 %v4981
      %5210 = vmatprep.subr.bf16.mxu0 %v4991
      %5211 = vmatpush1.bf16.msra.mxu0 %v4990
      %5212 = vmatprep.subr.bf16.mxu0 %v5000
      %5213 = vmatpush1.bf16.msra.mxu0 %v4999
      %5214 = vmatprep.subr.bf16.mxu0 %v5009
      %5215 = vmatpush1.bf16.msra.mxu0 %v5008
      %5216 = vmatprep.subr.bf16.mxu0 0
      %5217 = vmatpush1.bf16.msra.mxu0 0
      %5218 = vmatprep.subr.bf16.mxu0 0
      %5219 = vmatpush1.bf16.msra.mxu0 0
      %5220 = vmatprep.subr.bf16.mxu0 0
      %5221 = vmatpush1.bf16.msra.mxu0 0
      %5222 = vmatprep.subr.bf16.mxu0 0
      %5223 = vmatpush1.bf16.msra.mxu0 0
      %5224 = vmatprep.subr.bf16.mxu0 0
      %5225 = vmatpush1.bf16.msra.mxu0 0
      %5226 = vmatprep.subr.bf16.mxu0 0
      %5227 = vmatpush1.bf16.msra.mxu0 0
      %5228 = vmatprep.subr.bf16.mxu0 0
      %5229 = vmatpush1.bf16.msra.mxu0 0
      %5230 = vmatprep.mubr.bf16.mxu0 %v5034
      %5231 = vmatmul.mubr.bf16.gmra.mrb[0].mxu0 %v5027
      %v5232 = vpop.f32.mrb[0].mxu0
      %v5233 = vadd.f32 0.0, %v5232
      %v5234 = vpop.f32.mrb[0].mxu0
      %v5235 = vadd.f32 0.0, %v5234
      %v5236 = vpop.f32.mrb[0].mxu0
      %v5237 = vadd.f32 0.0, %v5236
      %v5238 = vpop.f32.mrb[0].mxu0
      %v5239 = vadd.f32 0.0, %v5238
      %5240 = vmatprep.mubr.bf16.mxu0 %v5037
      %5241 = vmatmul.mubr.bf16.gmra.mrb[0].mxu0 %v5029
      %v5242 = vpop.f32.mrb[0].mxu0
      %v5243 = vadd.f32 0.0, %v5242
      %v5244 = vpop.f32.mrb[0].mxu0
      %v5245 = vadd.f32 0.0, %v5244
      %v5246 = vpop.f32.mrb[0].mxu0
      %v5247 = vadd.f32 0.0, %v5246
      %v5248 = vpop.f32.mrb[0].mxu0
      %v5249 = vadd.f32 0.0, %v5248
      %5250 = vdwg.mxu0
      %5251 = vmatprep.subr.bf16.mxu0 0
      %5252 = vmatpush1.bf16.msra.mxu0 %v4938
      %5253 = vmatprep.subr.bf16.mxu0 0
      %5254 = vmatpush1.bf16.msra.mxu0 %v4947
      %5255 = vmatprep.subr.bf16.mxu0 0
      %5256 = vmatpush1.bf16.msra.mxu0 %v4956
      %5257 = vmatprep.subr.bf16.mxu0 0
      %5258 = vmatpush1.bf16.msra.mxu0 %v4965
      %5259 = vmatprep.subr.bf16.mxu0 0
      %5260 = vmatpush1.bf16.msra.mxu0 %v4974
      %5261 = vmatprep.subr.bf16.mxu0 0
      %5262 = vmatpush1.bf16.msra.mxu0 %v4983
      %5263 = vmatprep.subr.bf16.mxu0 0
      %5264 = vmatpush1.bf16.msra.mxu0 %v4992
      %5265 = vmatprep.subr.bf16.mxu0 0
      %5266 = vmatpush1.bf16.msra.mxu0 %v5001
      %5267 = vmatprep.subr.bf16.mxu0 0
      %5268 = vmatpush1.bf16.msra.mxu0 %v5010
      %5269 = vmatprep.subr.bf16.mxu0 0
      %5270 = vmatpush1.bf16.msra.mxu0 0
      %5271 = vmatprep.subr.bf16.mxu0 0
      %5272 = vmatpush1.bf16.msra.mxu0 0
      %5273 = vmatprep.subr.bf16.mxu0 0
      %5274 = vmatpush1.bf16.msra.mxu0 0
      %5275 = vmatprep.subr.bf16.mxu0 0
      %5276 = vmatpush1.bf16.msra.mxu0 0
      %5277 = vmatprep.subr.bf16.mxu0 0
      %5278 = vmatpush1.bf16.msra.mxu0 0
      %5279 = vmatprep.subr.bf16.mxu0 0
      %5280 = vmatpush1.bf16.msra.mxu0 0
      %5281 = vmatprep.subr.bf16.mxu0 0
      %5282 = vmatpush1.bf16.msra.mxu0 0
      %5283 = vmatprep.mubr.bf16.mxu0 %v5034
      %5284 = vmatmul.mubr.bf16.gmra.mrb[0].mxu0 %v5027
      %v5285 = vpop.f32.mrb[0].mxu0
      %v5286 = vadd.f32 0.0, %v5285
      %v5287 = vpop.f32.mrb[0].mxu0
      %v5288 = vpop.f32.mrb[0].mxu0
      %v5289 = vadd.f32 0.0, %v5288
      %v5290 = vpop.f32.mrb[0].mxu0
      %5291 = vmatprep.mubr.bf16.mxu0 %v5037
      %5292 = vmatmul.mubr.bf16.gmra.mrb[0].mxu0 %v5029
      %v5293 = vpop.f32.mrb[0].mxu0
      %v5294 = vadd.f32 0.0, %v5293
      %v5295 = vpop.f32.mrb[0].mxu0
      %v5296 = vpop.f32.mrb[0].mxu0
      %v5297 = vadd.f32 0.0, %v5296
      %v5298 = vpop.f32.mrb[0].mxu0
      %5299 = vdwg.mxu0
      %v5300 = vld [vmem:[%s13] sm:$0xff]
      %v5301 = vld [vmem:[%s13 + $0x8] sm:$0xff]
      %v5302 = vld [vmem:[%s13 + $0x10] sm:$0xff]
      %v5303 = vld [vmem:[%s13 + $0x18] sm:$0xff]
      %5305 = vset.pattern.permute.xlu0 0
      %5306 = vperm.xlu0 %5305, %v5300
      %v5307 = vpop.permute.xlu0 %5306
      %5310 = vset.pattern.permute.xlu0 0
      %5311 = vperm.xlu0 %5310, %v5301
      %v5312 = vpop.permute.xlu0 %5311
      %5315 = vset.pattern.permute.xlu0 0
      %5316 = vperm.xlu0 %5315, %v5302
      %v5317 = vpop.permute.xlu0 %5316
      %5320 = vset.pattern.permute.xlu0 0
      %5321 = vperm.xlu0 %5320, %v5303
      %v5322 = vpop.permute.xlu0 %5321
      %v5324 = vmul.f32 %v5074, %v5307
      %v5325 = vmul.f32 %v5076, %v5307
      %v5326 = vmul.f32 %v5127, %v5307
      %v5327 = vmul.f32 %v5129, %v5307
      %v5328 = vmul.f32 %v5180, %v5307
      %v5329 = vmul.f32 %v5182, %v5307
      %v5330 = vmul.f32 %v5233, %v5307
      %v5331 = vmul.f32 %v5235, %v5307
      %v5332 = vmul.f32 %v5286, %v5307
      %v5333 = vmul.f32 %v5078, %v5312
      %v5334 = vmul.f32 %v5080, %v5312
      %v5335 = vmul.f32 %v5131, %v5312
      %v5336 = vmul.f32 %v5133, %v5312
      %v5337 = vmul.f32 %v5184, %v5312
      %v5338 = vmul.f32 %v5186, %v5312
      %v5339 = vmul.f32 %v5237, %v5312
      %v5340 = vmul.f32 %v5239, %v5312
      %v5341 = vmul.f32 %v5289, %v5312
      %v5342 = vmul.f32 %v5084, %v5317
      %v5343 = vmul.f32 %v5086, %v5317
      %v5344 = vmul.f32 %v5137, %v5317
      %v5345 = vmul.f32 %v5139, %v5317
      %v5346 = vmul.f32 %v5190, %v5317
      %v5347 = vmul.f32 %v5192, %v5317
      %v5348 = vmul.f32 %v5243, %v5317
      %v5349 = vmul.f32 %v5245, %v5317
      %v5350 = vmul.f32 %v5294, %v5317
      %v5351 = vmul.f32 %v5088, %v5322
      %v5352 = vmul.f32 %v5090, %v5322
      %v5353 = vmul.f32 %v5141, %v5322
      %v5354 = vmul.f32 %v5143, %v5322
      %v5355 = vmul.f32 %v5194, %v5322
      %v5356 = vmul.f32 %v5196, %v5322
      %v5357 = vmul.f32 %v5247, %v5322
      %v5358 = vmul.f32 %v5249, %v5322
      %v5359 = vmul.f32 %v5297, %v5322
      %5360 = vset.pattern.permute.xlu0 1
      %5361 = vperm.xlu0 %5360, %v5300
      %v5362 = vpop.permute.xlu0 %5361
      %5364 = vset.pattern.permute.xlu0 1
      %5365 = vperm.xlu0 %5364, %v5301
      %v5366 = vpop.permute.xlu0 %5365
      %5368 = vset.pattern.permute.xlu0 1
      %5369 = vperm.xlu0 %5368, %v5302
      %v5370 = vpop.permute.xlu0 %5369
      %5372 = vset.pattern.permute.xlu0 1
      %5373 = vperm.xlu0 %5372, %v5303
      %v5374 = vpop.permute.xlu0 %5373
      %v5376 = vadd.f32 %v5324, %v5362
      %v5377 = vadd.f32 %v5325, %v5362
      %v5378 = vadd.f32 %v5326, %v5362
      %v5379 = vadd.f32 %v5327, %v5362
      %v5380 = vadd.f32 %v5328, %v5362
      %v5381 = vadd.f32 %v5329, %v5362
      %v5382 = vadd.f32 %v5330, %v5362
      %v5383 = vadd.f32 %v5331, %v5362
      %v5384 = vadd.f32 %v5332, %v5362
      %v5385 = vadd.f32 %v5333, %v5366
      %v5386 = vadd.f32 %v5334, %v5366
      %v5387 = vadd.f32 %v5335, %v5366
      %v5388 = vadd.f32 %v5336, %v5366
      %v5389 = vadd.f32 %v5337, %v5366
      %v5390 = vadd.f32 %v5338, %v5366
      %v5391 = vadd.f32 %v5339, %v5366
      %v5392 = vadd.f32 %v5340, %v5366
      %v5393 = vadd.f32 %v5341, %v5366
      %v5394 = vadd.f32 %v5342, %v5370
      %v5395 = vadd.f32 %v5343, %v5370
      %v5396 = vadd.f32 %v5344, %v5370
      %v5397 = vadd.f32 %v5345, %v5370
      %v5398 = vadd.f32 %v5346, %v5370
      %v5399 = vadd.f32 %v5347, %v5370
      %v5400 = vadd.f32 %v5348, %v5370
      %v5401 = vadd.f32 %v5349, %v5370
      %v5402 = vadd.f32 %v5350, %v5370
      %v5403 = vadd.f32 %v5351, %v5374
      %v5404 = vadd.f32 %v5352, %v5374
      %v5405 = vadd.f32 %v5353, %v5374
      %v5406 = vadd.f32 %v5354, %v5374
      %v5407 = vadd.f32 %v5355, %v5374
      %v5408 = vadd.f32 %v5356, %v5374
      %v5409 = vadd.f32 %v5357, %v5374
      %v5410 = vadd.f32 %v5358, %v5374
      %v5411 = vadd.f32 %v5359, %v5374
      %v5412 = vmax.f32 %v5376, 0.0
      %v5413 = vmax.f32 %v5377, 0.0
      %v5414 = vmax.f32 %v5378, 0.0
      %v5415 = vmax.f32 %v5379, 0.0
      %v5416 = vmax.f32 %v5380, 0.0
      %v5417 = vmax.f32 %v5381, 0.0
      %v5418 = vmax.f32 %v5382, 0.0
      %v5419 = vmax.f32 %v5383, 0.0
      %v5420 = vmax.f32 %v5384, 0.0
      %v5421 = vmax.f32 %v5385, 0.0
      %v5422 = vmax.f32 %v5386, 0.0
      %v5423 = vmax.f32 %v5387, 0.0
      %v5424 = vmax.f32 %v5388, 0.0
      %v5425 = vmax.f32 %v5389, 0.0
      %v5426 = vmax.f32 %v5390, 0.0
      %v5427 = vmax.f32 %v5391, 0.0
      %v5428 = vmax.f32 %v5392, 0.0
      %v5429 = vmax.f32 %v5393, 0.0
      %v5430 = vmax.f32 %v5394, 0.0
      %v5431 = vmax.f32 %v5395, 0.0
      %v5432 = vmax.f32 %v5396, 0.0
      %v5433 = vmax.f32 %v5397, 0.0
      %v5434 = vmax.f32 %v5398, 0.0
      %v5435 = vmax.f32 %v5399, 0.0
      %v5436 = vmax.f32 %v5400, 0.0
      %v5437 = vmax.f32 %v5401, 0.0
      %v5438 = vmax.f32 %v5402, 0.0
      %v5439 = vmax.f32 %v5403, 0.0
      %v5440 = vmax.f32 %v5404, 0.0
      %v5441 = vmax.f32 %v5405, 0.0
      %v5442 = vmax.f32 %v5406, 0.0
      %v5443 = vmax.f32 %v5407, 0.0
      %v5444 = vmax.f32 %v5408, 0.0
      %v5445 = vmax.f32 %v5409, 0.0
      %v5446 = vmax.f32 %v5410, 0.0
      %v5447 = vmax.f32 %v5411, 0.0
      %v5448 = vpack.c.bf16 %v5421, %v5412
      %v5449 = vpack.c.bf16 %v5422, %v5413
      %v5450 = vpack.c.bf16 %v5423, %v5414
      %v5451 = vpack.c.bf16 %v5424, %v5415
      %v5452 = vpack.c.bf16 %v5425, %v5416
      %v5453 = vpack.c.bf16 %v5426, %v5417
      %v5454 = vpack.c.bf16 %v5427, %v5418
      %v5455 = vpack.c.bf16 %v5428, %v5419
      %v5456 = vpack.c.bf16 %v5429, %v5420
      %v5457 = vpack.c.bf16 %v5439, %v5430
      %v5458 = vpack.c.bf16 %v5440, %v5431
      %v5459 = vpack.c.bf16 %v5441, %v5432
      %v5460 = vpack.c.bf16 %v5442, %v5433
      %v5461 = vpack.c.bf16 %v5443, %v5434
      %v5462 = vpack.c.bf16 %v5444, %v5435
      %v5463 = vpack.c.bf16 %v5445, %v5436
      %v5464 = vpack.c.bf16 %v5446, %v5437
      %v5465 = vpack.c.bf16 %v5447, %v5438
      %v5738 = vunpack.c.l.b16 %v4040
      %v5739 = vunpack.c.h.b16 %v4040
      %v5740 = vunpack.c.l.b16 %v4041
      %v5741 = vunpack.c.l.b16 %v4042
      %v5742 = vunpack.c.h.b16 %v4042
      %v5743 = vunpack.c.l.b16 %v4043
      %v5744 = vunpack.c.l.b16 %v4044
      %v5745 = vunpack.c.h.b16 %v4044
      %v5746 = vunpack.c.l.b16 %v4045
      %v5747 = vunpack.c.l.b16 %v4046
      %v5748 = vunpack.c.h.b16 %v4046
      %v5749 = vunpack.c.l.b16 %v4047
      %v5750 = vunpack.c.l.b16 %v4048
      %v5751 = vunpack.c.h.b16 %v4048
      %v5752 = vunpack.c.l.b16 %v4049
      %v5753 = vunpack.c.l.b16 %v4050
      %v5754 = vunpack.c.h.b16 %v4050
      %v5755 = vunpack.c.l.b16 %v4051
      %v5756 = vunpack.c.l.b16 %v4052
      %v5757 = vunpack.c.h.b16 %v4052
      %v5758 = vunpack.c.l.b16 %v4053
      %v5759 = vunpack.c.l.b16 %v4054
      %v5760 = vunpack.c.h.b16 %v4054
      %v5761 = vunpack.c.l.b16 %v4055
      %v5762 = vunpack.c.l.b16 %v4056
      %v5763 = vunpack.c.h.b16 %v4056
      %v5764 = vunpack.c.l.b16 %v4057
      %v5765 = vunpack.c.l.b16 %v4058
      %v5766 = vunpack.c.h.b16 %v4058
      %v5767 = vunpack.c.l.b16 %v4059
      %v5768 = vunpack.c.l.b16 %v4060
      %v5769 = vunpack.c.h.b16 %v4060
      %v5770 = vunpack.c.l.b16 %v4061
      %v5771 = vunpack.c.l.b16 %v4062
      %v5772 = vunpack.c.h.b16 %v4062
      %v5773 = vunpack.c.l.b16 %v4063
      %v5774 = vunpack.c.l.b16 %v4064
      %v5775 = vunpack.c.h.b16 %v4064
      %v5776 = vunpack.c.l.b16 %v4065
      %v5777 = vunpack.c.l.b16 %v4066
      %v5778 = vunpack.c.h.b16 %v4066
      %v5779 = vunpack.c.l.b16 %v4067
      %v5780 = vunpack.c.l.b16 %v4068
      %v5781 = vunpack.c.h.b16 %v4068
      %v5782 = vunpack.c.l.b16 %v4069
      %v5783 = vunpack.c.l.b16 %v4070
      %v5784 = vunpack.c.h.b16 %v4070
      %v5785 = vunpack.c.l.b16 %v4071
      %v5786 = vunpack.c.l.b16 %v4072
      %v5787 = vunpack.c.h.b16 %v4072
      %v5788 = vunpack.c.l.b16 %v4073
      %v5789 = vunpack.c.l.b16 %v4074
      %v5790 = vunpack.c.h.b16 %v4074
      %v5791 = vunpack.c.l.b16 %v4075
      %v5792 = vunpack.c.l.b16 %v4076
      %v5793 = vunpack.c.h.b16 %v4076
      %v5794 = vunpack.c.l.b16 %v4077
      %v5795 = vunpack.c.l.b16 %v4078
      %v5796 = vunpack.c.h.b16 %v4078
      %v5797 = vunpack.c.l.b16 %v4079
      %v5798 = vunpack.c.l.b16 %v4080
      %v5799 = vunpack.c.h.b16 %v4080
      %v5800 = vunpack.c.l.b16 %v4081
      %v5801 = vunpack.c.l.b16 %v4082
      %v5802 = vunpack.c.h.b16 %v4082
      %v5803 = vunpack.c.l.b16 %v4083
      %v5804 = vunpack.c.l.b16 %v4084
      %v5805 = vunpack.c.h.b16 %v4084
      %v5806 = vunpack.c.l.b16 %v4085
      %v5807 = vunpack.c.l.b16 %v4086
      %v5808 = vunpack.c.h.b16 %v4086
      %v5809 = vunpack.c.l.b16 %v4087
      %v5810 = vunpack.c.l.b16 %v4088
      %v5811 = vunpack.c.h.b16 %v4088
      %v5812 = vunpack.c.l.b16 %v4089
      %v5813 = vunpack.c.l.b16 %v4090
      %v5814 = vunpack.c.h.b16 %v4090
      %v5815 = vunpack.c.l.b16 %v4091
      %v5816 = vunpack.c.l.b16 %v4092
      %v5817 = vunpack.c.h.b16 %v4092
      %v5818 = vunpack.c.l.b16 %v4093
      %v5819 = vunpack.c.l.b16 %v4094
      %v5820 = vunpack.c.h.b16 %v4094
      %v5821 = vunpack.c.l.b16 %v4095
      %v5822 = vunpack.c.l.b16 %v4096
      %v5823 = vunpack.c.h.b16 %v4096
      %v5824 = vunpack.c.l.b16 %v4097
      %v5825 = vunpack.c.l.b16 %v4098
      %v5826 = vunpack.c.h.b16 %v4098
      %v5827 = vunpack.c.l.b16 %v4099
      %v5828 = vunpack.c.l.b16 %v4100
      %v5829 = vunpack.c.h.b16 %v4100
      %v5830 = vunpack.c.l.b16 %v4101
      %v5831 = vunpack.c.l.b16 %v4102
      %v5832 = vunpack.c.h.b16 %v4102
      %v5833 = vunpack.c.l.b16 %v4103
      %v5834 = vunpack.c.l.b16 %v4104
      %v5835 = vunpack.c.h.b16 %v4104
      %v5836 = vunpack.c.l.b16 %v4105
      %v5837 = vunpack.c.l.b16 %v4106
      %v5838 = vunpack.c.h.b16 %v4106
      %v5839 = vunpack.c.l.b16 %v4107
      %v5840 = vunpack.c.l.b16 %v4108
      %v5841 = vunpack.c.h.b16 %v4108
      %v5842 = vunpack.c.l.b16 %v4109
      %v5843 = vunpack.c.l.b16 %v4110
      %v5844 = vunpack.c.h.b16 %v4110
      %v5845 = vunpack.c.l.b16 %v4111
      %v5846 = vunpack.c.l.b16 %v4112
      %v5847 = vunpack.c.h.b16 %v4112
      %v5848 = vunpack.c.l.b16 %v4113
      %v5849 = vunpack.c.l.b16 %v4114
      %v5850 = vunpack.c.h.b16 %v4114
      %v5851 = vunpack.c.l.b16 %v4115
      %v5852 = vunpack.c.l.b16 %v4116
      %v5853 = vunpack.c.h.b16 %v4116
      %v5854 = vunpack.c.l.b16 %v4117
      %v5855 = vunpack.c.l.b16 %v4118
      %v5856 = vunpack.c.h.b16 %v4118
      %v5857 = vunpack.c.l.b16 %v4119
      %v5858 = vunpack.c.l.b16 %v4120
      %v5859 = vunpack.c.h.b16 %v4120
      %v5860 = vunpack.c.l.b16 %v4121
      %v5861 = vunpack.c.l.b16 %v4122
      %v5862 = vunpack.c.h.b16 %v4122
      %v5863 = vunpack.c.l.b16 %v4123
      %v5864 = vunpack.c.l.b16 %v4124
      %v5865 = vunpack.c.h.b16 %v4124
      %v5866 = vunpack.c.l.b16 %v4125
      %v5867 = vunpack.c.l.b16 %v4126
      %v5868 = vunpack.c.h.b16 %v4126
      %v5869 = vunpack.c.l.b16 %v4127
      %v5870 = vunpack.c.l.b16 %v4128
      %v5871 = vunpack.c.h.b16 %v4128
      %v5872 = vunpack.c.l.b16 %v4129
      %v5873 = vunpack.c.l.b16 %v4130
      %v5874 = vunpack.c.h.b16 %v4130
      %v5875 = vunpack.c.l.b16 %v4131
      %v5876 = vunpack.c.l.b16 %v4132
      %v5877 = vunpack.c.h.b16 %v4132
      %v5878 = vunpack.c.l.b16 %v4133
      %v5879 = vunpack.c.l.b16 %v4134
      %v5880 = vunpack.c.h.b16 %v4134
      %v5881 = vunpack.c.l.b16 %v4135
      %v5882 = vunpack.c.l.b16 %v4136
      %v5883 = vunpack.c.h.b16 %v4136
      %v5884 = vunpack.c.l.b16 %v4137
      %v5885 = vunpack.c.l.b16 %v4138
      %v5886 = vunpack.c.h.b16 %v4138
      %v5887 = vunpack.c.l.b16 %v4139
      %v5888 = vunpack.c.l.b16 %v4140
      %v5889 = vunpack.c.h.b16 %v4140
      %v5890 = vunpack.c.l.b16 %v4141
      %v5891 = vunpack.c.l.b16 %v4142
      %v5892 = vunpack.c.h.b16 %v4142
      %v5893 = vunpack.c.l.b16 %v4143
      %v5894 = vunpack.c.l.b16 %v4144
      %v5895 = vunpack.c.h.b16 %v4144
      %v5896 = vunpack.c.l.b16 %v4145
      %v5897 = vunpack.c.l.b16 %v4146
      %v5898 = vunpack.c.h.b16 %v4146
      %v5899 = vunpack.c.l.b16 %v4147
      %v5900 = vunpack.c.l.b16 %v4148
      %v5901 = vunpack.c.h.b16 %v4148
      %v5902 = vunpack.c.l.b16 %v4149
      %v5903 = vunpack.c.l.b16 %v4150
      %v5904 = vunpack.c.h.b16 %v4150
      %v5905 = vunpack.c.l.b16 %v4151
      %v5906 = vunpack.c.l.b16 %v4152
      %v5907 = vunpack.c.h.b16 %v4152
      %v5908 = vunpack.c.l.b16 %v4153
      %v5909 = vunpack.c.l.b16 %v4154
      %v5910 = vunpack.c.h.b16 %v4154
      %v5911 = vunpack.c.l.b16 %v4155
      %v5912 = vunpack.c.l.b16 %v4156
      %v5913 = vunpack.c.h.b16 %v4156
      %v5914 = vunpack.c.l.b16 %v4157
      %v5915 = vunpack.c.l.b16 %v4158
      %v5916 = vunpack.c.h.b16 %v4158
      %v5917 = vunpack.c.l.b16 %v4159
      %v5918 = vunpack.c.l.b16 %v4160
      %v5919 = vunpack.c.h.b16 %v4160
      %v5920 = vunpack.c.l.b16 %v4161
      %v5921 = vunpack.c.l.b16 %v4162
      %v5922 = vunpack.c.h.b16 %v4162
      %v5923 = vunpack.c.l.b16 %v4163
      %v5924 = vunpack.c.l.b16 %v4164
      %v5925 = vunpack.c.h.b16 %v4164
      %v5926 = vunpack.c.l.b16 %v4165
      %v5927 = vunpack.c.l.b16 %v4166
      %v5928 = vunpack.c.h.b16 %v4166
      %v5929 = vunpack.c.l.b16 %v4167
      %v5930 = vunpack.c.l.b16 %v4168
      %v5931 = vunpack.c.h.b16 %v4168
      %v5932 = vunpack.c.l.b16 %v4169
      %v5933 = vunpack.c.l.b16 %v4170
      %v5934 = vunpack.c.h.b16 %v4170
      %v5935 = vunpack.c.l.b16 %v4171
      %v5936 = vunpack.c.l.b16 %v4172
      %v5937 = vunpack.c.h.b16 %v4172
      %v5938 = vunpack.c.l.b16 %v4173
      %v5939 = vunpack.c.l.b16 %v4174
      %v5940 = vunpack.c.h.b16 %v4174
      %v5941 = vunpack.c.l.b16 %v4175
      %v5942 = vunpack.c.l.b16 %v4176
      %v5943 = vunpack.c.h.b16 %v4176
      %v5944 = vunpack.c.l.b16 %v4177
      %v5945 = vunpack.c.l.b16 %v4178
      %v5946 = vunpack.c.h.b16 %v4178
      %v5947 = vunpack.c.l.b16 %v4179
      %v5948 = vunpack.c.l.b16 %v4180
      %v5949 = vunpack.c.h.b16 %v4180
      %v5950 = vunpack.c.l.b16 %v4181
      %v5951 = vunpack.c.l.b16 %v4182
      %v5952 = vunpack.c.h.b16 %v4182
      %v5953 = vunpack.c.l.b16 %v4183
      %v5954 = vunpack.c.l.b16 %v4184
      %v5955 = vunpack.c.h.b16 %v4184
      %v5956 = vunpack.c.l.b16 %v4185
      %v5957 = vunpack.c.l.b16 %v4186
      %v5958 = vunpack.c.h.b16 %v4186
      %v5959 = vunpack.c.l.b16 %v4187
      %v5960 = vunpack.c.l.b16 %v4188
      %v5961 = vunpack.c.h.b16 %v4188
      %v5962 = vunpack.c.l.b16 %v4189
      %v5963 = vunpack.c.l.b16 %v4190
      %v5964 = vunpack.c.h.b16 %v4190
      %v5965 = vunpack.c.l.b16 %v4191
      %v5966 = vunpack.c.l.b16 %v4192
      %v5967 = vunpack.c.h.b16 %v4192
      %v5968 = vunpack.c.l.b16 %v4193
      %v5969 = vunpack.c.l.b16 %v4194
      %v5970 = vunpack.c.h.b16 %v4194
      %v5971 = vunpack.c.l.b16 %v4195
      %v5972 = vunpack.c.l.b16 %v4196
      %v5973 = vunpack.c.h.b16 %v4196
      %v5974 = vunpack.c.l.b16 %v4197
      %v5975 = vunpack.c.l.b16 %v4198
      %v5976 = vunpack.c.h.b16 %v4198
      %v5977 = vunpack.c.l.b16 %v4199
      %v5978 = vunpack.c.l.b16 %v4200
      %v5979 = vunpack.c.h.b16 %v4200
      %v5980 = vunpack.c.l.b16 %v4201
      %v5981 = vunpack.c.l.b16 %v4202
      %v5982 = vunpack.c.h.b16 %v4202
      %v5983 = vunpack.c.l.b16 %v4203
      %v5984 = vunpack.c.l.b16 %v4204
      %v5985 = vunpack.c.h.b16 %v4204
      %v5986 = vunpack.c.l.b16 %v4205
      %v5987 = vunpack.c.l.b16 %v4206
      %v5988 = vunpack.c.h.b16 %v4206
      %v5989 = vunpack.c.l.b16 %v4207
      %v5990 = vunpack.c.l.b16 %v4208
      %v5991 = vunpack.c.h.b16 %v4208
      %v5992 = vunpack.c.l.b16 %v4209
      %v5993 = vunpack.c.l.b16 %v4210
      %v5994 = vunpack.c.h.b16 %v4210
      %v5995 = vunpack.c.l.b16 %v4211
      %v5996 = vunpack.c.l.b16 %v4212
      %v5997 = vunpack.c.h.b16 %v4212
      %v5998 = vunpack.c.l.b16 %v4213
      %v5999 = vunpack.c.l.b16 %v4214
      %v6000 = vunpack.c.h.b16 %v4214
      %v6001 = vunpack.c.l.b16 %v4215
      %v6002 = vunpack.c.l.b16 %v4216
      %v6003 = vunpack.c.h.b16 %v4216
      %v6004 = vunpack.c.l.b16 %v4217
      %v6005 = vunpack.c.l.b16 %v4218
      %v6006 = vunpack.c.h.b16 %v4218
      %v6007 = vunpack.c.l.b16 %v4219
      %v6008 = vunpack.c.l.b16 %v4220
      %v6009 = vunpack.c.h.b16 %v4220
      %v6010 = vunpack.c.l.b16 %v4221
      %v6011 = vunpack.c.l.b16 %v4222
      %v6012 = vunpack.c.h.b16 %v4222
      %v6013 = vunpack.c.l.b16 %v4223
      %v6014 = vunpack.c.l.b16 %v4224
      %v6015 = vunpack.c.h.b16 %v4224
      %v6016 = vunpack.c.l.b16 %v4225
      %v6017 = vunpack.c.l.b16 %v4226
      %v6018 = vunpack.c.h.b16 %v4226
      %v6019 = vunpack.c.l.b16 %v4227
      %v6020 = vunpack.c.l.b16 %v4228
      %v6021 = vunpack.c.h.b16 %v4228
      %v6022 = vunpack.c.l.b16 %v4229
      %v6023 = vunpack.c.l.b16 %v4230
      %v6024 = vunpack.c.h.b16 %v4230
      %v6025 = vunpack.c.l.b16 %v4231
      %v6026 = vunpack.c.l.b16 %v4232
      %v6027 = vunpack.c.h.b16 %v4232
      %v6028 = vunpack.c.l.b16 %v4233
      %v6029 = vunpack.c.l.b16 %v4234
      %v6030 = vunpack.c.h.b16 %v4234
      %v6031 = vunpack.c.l.b16 %v4235
      %v6032 = vunpack.c.l.b16 %v4236
      %v6033 = vunpack.c.h.b16 %v4236
      %v6034 = vunpack.c.l.b16 %v4237
      %v6035 = vunpack.c.l.b16 %v4238
      %v6036 = vunpack.c.h.b16 %v4238
      %v6037 = vunpack.c.l.b16 %v4239
      %v6038 = vunpack.c.l.b16 %v4240
      %v6039 = vunpack.c.h.b16 %v4240
      %v6040 = vunpack.c.l.b16 %v4241
      %v6041 = vunpack.c.l.b16 %v4242
      %v6042 = vunpack.c.h.b16 %v4242
      %v6043 = vunpack.c.l.b16 %v4243
      %v6044 = vunpack.c.l.b16 %v4244
      %v6045 = vunpack.c.h.b16 %v4244
      %v6046 = vunpack.c.l.b16 %v4245
      %v6047 = vunpack.c.l.b16 %v4246
      %v6048 = vunpack.c.h.b16 %v4246
      %v6049 = vunpack.c.l.b16 %v4247
      %v6050 = vunpack.c.l.b16 %v4248
      %v6051 = vunpack.c.h.b16 %v4248
      %v6052 = vunpack.c.l.b16 %v4249
      %v6053 = vunpack.c.l.b16 %v4250
      %v6054 = vunpack.c.h.b16 %v4250
      %v6055 = vunpack.c.l.b16 %v4251
      %v6056 = vunpack.c.l.b16 %v4252
      %v6057 = vunpack.c.h.b16 %v4252
      %v6058 = vunpack.c.l.b16 %v4253
      %v6059 = vunpack.c.l.b16 %v4254
      %v6060 = vunpack.c.h.b16 %v4254
      %v6061 = vunpack.c.l.b16 %v4255
      %v6062 = vunpack.c.l.b16 %v4256
      %v6063 = vunpack.c.h.b16 %v4256
      %v6064 = vunpack.c.l.b16 %v4257
      %v6065 = vunpack.c.l.b16 %v4258
      %v6066 = vunpack.c.h.b16 %v4258
      %v6067 = vunpack.c.l.b16 %v4259
      %v6068 = vunpack.c.l.b16 %v4260
      %v6069 = vunpack.c.h.b16 %v4260
      %v6070 = vunpack.c.l.b16 %v4261
      %v6071 = vunpack.c.l.b16 %v4262
      %v6072 = vunpack.c.h.b16 %v4262
      %v6073 = vunpack.c.l.b16 %v4263
      %v6074 = vunpack.c.l.b16 %v4264
      %v6075 = vunpack.c.h.b16 %v4264
      %v6076 = vunpack.c.l.b16 %v4265
      %v6077 = vunpack.c.l.b16 %v4266
      %v6078 = vunpack.c.h.b16 %v4266
      %v6079 = vunpack.c.l.b16 %v4267
      %v6080 = vunpack.c.l.b16 %v4268
      %v6081 = vunpack.c.h.b16 %v4268
      %v6082 = vunpack.c.l.b16 %v4269
      %v6083 = vunpack.c.l.b16 %v4270
      %v6084 = vunpack.c.h.b16 %v4270
      %v6085 = vunpack.c.l.b16 %v4271
      %v6086 = vunpack.c.l.b16 %v4272
      %v6087 = vunpack.c.h.b16 %v4272
      %v6088 = vunpack.c.l.b16 %v4273
      %v6089 = vunpack.c.l.b16 %v4274
      %v6090 = vunpack.c.h.b16 %v4274
      %v6091 = vunpack.c.l.b16 %v4275
      %v6092 = vunpack.c.l.b16 %v4276
      %v6093 = vunpack.c.h.b16 %v4276
      %v6094 = vunpack.c.l.b16 %v4277
      %v6095 = vunpack.c.l.b16 %v4278
      %v6096 = vunpack.c.h.b16 %v4278
      %v6097 = vunpack.c.l.b16 %v4279
      %v6098 = vunpack.c.l.b16 %v4280
      %v6099 = vunpack.c.h.b16 %v4280
      %v6100 = vunpack.c.l.b16 %v4281
      %v6101 = vunpack.c.l.b16 %v4282
      %v6102 = vunpack.c.h.b16 %v4282
      %v6103 = vunpack.c.l.b16 %v4283
      %v6104 = vunpack.c.l.b16 %v4284
      %v6105 = vunpack.c.h.b16 %v4284
      %v6106 = vunpack.c.l.b16 %v4285
      %v6107 = vunpack.c.l.b16 %v4286
      %v6108 = vunpack.c.h.b16 %v4286
      %v6109 = vunpack.c.l.b16 %v4287
      %v6110 = vunpack.c.l.b16 %v4288
      %v6111 = vunpack.c.h.b16 %v4288
      %v6112 = vunpack.c.l.b16 %v4289
      %v6113 = vunpack.c.l.b16 %v4290
      %v6114 = vunpack.c.h.b16 %v4290
      %v6115 = vunpack.c.l.b16 %v4291
      %v6116 = vunpack.c.l.b16 %v4292
      %v6117 = vunpack.c.h.b16 %v4292
      %v6118 = vunpack.c.l.b16 %v4293
      %v6119 = vunpack.c.l.b16 %v4294
      %v6120 = vunpack.c.h.b16 %v4294
      %v6121 = vunpack.c.l.b16 %v4295
      %v6122 = vunpack.c.l.b16 %v4296
      %v6123 = vunpack.c.h.b16 %v4296
      %v6124 = vunpack.c.l.b16 %v4297
      %v6125 = vunpack.c.l.b16 %v4298
      %v6126 = vunpack.c.h.b16 %v4298
      %v6127 = vunpack.c.l.b16 %v4299
      %v6128 = vunpack.c.l.b16 %v4300
      %v6129 = vunpack.c.h.b16 %v4300
      %v6130 = vunpack.c.l.b16 %v4301
      %v6131 = vunpack.c.l.b16 %v4302
      %v6132 = vunpack.c.h.b16 %v4302
      %v6133 = vunpack.c.l.b16 %v4303
      %v6134 = vunpack.c.l.b16 %v4304
      %v6135 = vunpack.c.h.b16 %v4304
      %v6136 = vunpack.c.l.b16 %v4305
      %v6137 = vunpack.c.l.b16 %v4306
      %v6138 = vunpack.c.h.b16 %v4306
      %v6139 = vunpack.c.l.b16 %v4307
      %v6140 = vunpack.c.l.b16 %v4308
      %v6141 = vunpack.c.h.b16 %v4308
      %v6142 = vunpack.c.l.b16 %v4309
      %v6143 = vunpack.c.l.b16 %v4310
      %v6144 = vunpack.c.h.b16 %v4310
      %v6145 = vunpack.c.l.b16 %v4311
      %v6146 = vpack.c.b16 %v5741, %v5738
      %v6147 = vpack.c.b16 %v5742, %v5739
      %v6148 = vpack.c.b16 %v5743, %v5740
      %v6149 = vpack.c.b16 %v5747, %v5744
      %v6150 = vpack.c.b16 %v5748, %v5745
      %v6151 = vpack.c.b16 %v5749, %v5746
      %v6152 = vpack.c.b16 %v5753, %v5750
      %v6153 = vpack.c.b16 %v5754, %v5751
      %v6154 = vpack.c.b16 %v5755, %v5752
      %v6155 = vpack.c.b16 %v5759, %v5756
      %v6156 = vpack.c.b16 %v5760, %v5757
      %v6157 = vpack.c.b16 %v5761, %v5758
      %v6158 = vpack.c.b16 %v5765, %v5762
      %v6159 = vpack.c.b16 %v5766, %v5763
      %v6160 = vpack.c.b16 %v5767, %v5764
      %v6161 = vpack.c.b16 %v5771, %v5768
      %v6162 = vpack.c.b16 %v5772, %v5769
      %v6163 = vpack.c.b16 %v5773, %v5770
      %v6164 = vpack.c.b16 %v5777, %v5774
      %v6165 = vpack.c.b16 %v5778, %v5775
      %v6166 = vpack.c.b16 %v5779, %v5776
      %v6167 = vpack.c.b16 %v5783, %v5780
      %v6168 = vpack.c.b16 %v5784, %v5781
      %v6169 = vpack.c.b16 %v5785, %v5782
      %v6170 = vpack.c.b16 %v5789, %v5786
      %v6171 = vpack.c.b16 %v5790, %v5787
      %v6172 = vpack.c.b16 %v5791, %v5788
      %v6173 = vpack.c.b16 %v5795, %v5792
      %v6174 = vpack.c.b16 %v5796, %v5793
      %v6175 = vpack.c.b16 %v5797, %v5794
      %v6176 = vpack.c.b16 %v5801, %v5798
      %v6177 = vpack.c.b16 %v5802, %v5799
      %v6178 = vpack.c.b16 %v5803, %v5800
      %v6179 = vpack.c.b16 %v5807, %v5804
      %v6180 = vpack.c.b16 %v5808, %v5805
      %v6181 = vpack.c.b16 %v5809, %v5806
      %v6182 = vpack.c.b16 %v5813, %v5810
      %v6183 = vpack.c.b16 %v5814, %v5811
      %v6184 = vpack.c.b16 %v5815, %v5812
      %v6185 = vpack.c.b16 %v5819, %v5816
      %v6186 = vpack.c.b16 %v5820, %v5817
      %v6187 = vpack.c.b16 %v5821, %v5818
      %v6188 = vpack.c.b16 %v5825, %v5822
      %v6189 = vpack.c.b16 %v5826, %v5823
      %v6190 = vpack.c.b16 %v5827, %v5824
      %v6191 = vpack.c.b16 %v5831, %v5828
      %v6192 = vpack.c.b16 %v5832, %v5829
      %v6193 = vpack.c.b16 %v5833, %v5830
      %v6194 = vpack.c.b16 %v5837, %v5834
      %v6195 = vpack.c.b16 %v5838, %v5835
      %v6196 = vpack.c.b16 %v5839, %v5836
      %v6197 = vpack.c.b16 %v5843, %v5840
      %v6198 = vpack.c.b16 %v5844, %v5841
      %v6199 = vpack.c.b16 %v5845, %v5842
      %v6200 = vpack.c.b16 %v5849, %v5846
      %v6201 = vpack.c.b16 %v5850, %v5847
      %v6202 = vpack.c.b16 %v5851, %v5848
      %v6203 = vpack.c.b16 %v5855, %v5852
      %v6204 = vpack.c.b16 %v5856, %v5853
      %v6205 = vpack.c.b16 %v5857, %v5854
      %v6206 = vpack.c.b16 %v5861, %v5858
      %v6207 = vpack.c.b16 %v5862, %v5859
      %v6208 = vpack.c.b16 %v5863, %v5860
      %v6209 = vpack.c.b16 %v5867, %v5864
      %v6210 = vpack.c.b16 %v5868, %v5865
      %v6211 = vpack.c.b16 %v5869, %v5866
      %v6212 = vpack.c.b16 %v5873, %v5870
      %v6213 = vpack.c.b16 %v5874, %v5871
      %v6214 = vpack.c.b16 %v5875, %v5872
      %v6215 = vpack.c.b16 %v5879, %v5876
      %v6216 = vpack.c.b16 %v5880, %v5877
      %v6217 = vpack.c.b16 %v5881, %v5878
      %v6218 = vpack.c.b16 %v5885, %v5882
      %v6219 = vpack.c.b16 %v5886, %v5883
      %v6220 = vpack.c.b16 %v5887, %v5884
      %v6221 = vpack.c.b16 %v5891, %v5888
      %v6222 = vpack.c.b16 %v5892, %v5889
      %v6223 = vpack.c.b16 %v5893, %v5890
      %v6224 = vpack.c.b16 %v5897, %v5894
      %v6225 = vpack.c.b16 %v5898, %v5895
      %v6226 = vpack.c.b16 %v5899, %v5896
      %v6227 = vpack.c.b16 %v5903, %v5900
      %v6228 = vpack.c.b16 %v5904, %v5901
      %v6229 = vpack.c.b16 %v5905, %v5902
      %v6230 = vpack.c.b16 %v5909, %v5906
      %v6231 = vpack.c.b16 %v5910, %v5907
      %v6232 = vpack.c.b16 %v5911, %v5908
      %v6233 = vpack.c.b16 %v5915, %v5912
      %v6234 = vpack.c.b16 %v5916, %v5913
      %v6235 = vpack.c.b16 %v5917, %v5914
      %v6236 = vpack.c.b16 %v5921, %v5918
      %v6237 = vpack.c.b16 %v5922, %v5919
      %v6238 = vpack.c.b16 %v5923, %v5920
      %v6239 = vpack.c.b16 %v5927, %v5924
      %v6240 = vpack.c.b16 %v5928, %v5925
      %v6241 = vpack.c.b16 %v5929, %v5926
      %v6242 = vpack.c.b16 %v5933, %v5930
      %v6243 = vpack.c.b16 %v5934, %v5931
      %v6244 = vpack.c.b16 %v5935, %v5932
      %v6245 = vpack.c.b16 %v5939, %v5936
      %v6246 = vpack.c.b16 %v5940, %v5937
      %v6247 = vpack.c.b16 %v5941, %v5938
      %v6248 = vpack.c.b16 %v5945, %v5942
      %v6249 = vpack.c.b16 %v5946, %v5943
      %v6250 = vpack.c.b16 %v5947, %v5944
      %v6251 = vpack.c.b16 %v5951, %v5948
      %v6252 = vpack.c.b16 %v5952, %v5949
      %v6253 = vpack.c.b16 %v5953, %v5950
      %v6254 = vpack.c.b16 %v5957, %v5954
      %v6255 = vpack.c.b16 %v5958, %v5955
      %v6256 = vpack.c.b16 %v5959, %v5956
      %v6257 = vpack.c.b16 %v5963, %v5960
      %v6258 = vpack.c.b16 %v5964, %v5961
      %v6259 = vpack.c.b16 %v5965, %v5962
      %v6260 = vpack.c.b16 %v5969, %v5966
      %v6261 = vpack.c.b16 %v5970, %v5967
      %v6262 = vpack.c.b16 %v5971, %v5968
      %v6263 = vpack.c.b16 %v5975, %v5972
      %v6264 = vpack.c.b16 %v5976, %v5973
      %v6265 = vpack.c.b16 %v5977, %v5974
      %v6266 = vpack.c.b16 %v5981, %v5978
      %v6267 = vpack.c.b16 %v5982, %v5979
      %v6268 = vpack.c.b16 %v5983, %v5980
      %v6269 = vpack.c.b16 %v5987, %v5984
      %v6270 = vpack.c.b16 %v5988, %v5985
      %v6271 = vpack.c.b16 %v5989, %v5986
      %v6272 = vpack.c.b16 %v5993, %v5990
      %v6273 = vpack.c.b16 %v5994, %v5991
      %v6274 = vpack.c.b16 %v5995, %v5992
      %v6275 = vpack.c.b16 %v5999, %v5996
      %v6276 = vpack.c.b16 %v6000, %v5997
      %v6277 = vpack.c.b16 %v6001, %v5998
      %v6278 = vpack.c.b16 %v6005, %v6002
      %v6279 = vpack.c.b16 %v6006, %v6003
      %v6280 = vpack.c.b16 %v6007, %v6004
      %v6281 = vpack.c.b16 %v6011, %v6008
      %v6282 = vpack.c.b16 %v6012, %v6009
      %v6283 = vpack.c.b16 %v6013, %v6010
      %v6284 = vpack.c.b16 %v6017, %v6014
      %v6285 = vpack.c.b16 %v6018, %v6015
      %v6286 = vpack.c.b16 %v6019, %v6016
      %v6287 = vpack.c.b16 %v6023, %v6020
      %v6288 = vpack.c.b16 %v6024, %v6021
      %v6289 = vpack.c.b16 %v6025, %v6022
      %v6290 = vpack.c.b16 %v6029, %v6026
      %v6291 = vpack.c.b16 %v6030, %v6027
      %v6292 = vpack.c.b16 %v6031, %v6028
      %v6293 = vpack.c.b16 %v6035, %v6032
      %v6294 = vpack.c.b16 %v6036, %v6033
      %v6295 = vpack.c.b16 %v6037, %v6034
      %v6296 = vpack.c.b16 %v6041, %v6038
      %v6297 = vpack.c.b16 %v6042, %v6039
      %v6298 = vpack.c.b16 %v6043, %v6040
      %v6299 = vpack.c.b16 %v6047, %v6044
      %v6300 = vpack.c.b16 %v6048, %v6045
      %v6301 = vpack.c.b16 %v6049, %v6046
      %v6302 = vpack.c.b16 %v6053, %v6050
      %v6303 = vpack.c.b16 %v6054, %v6051
      %v6304 = vpack.c.b16 %v6055, %v6052
      %v6305 = vpack.c.b16 %v6059, %v6056
      %v6306 = vpack.c.b16 %v6060, %v6057
      %v6307 = vpack.c.b16 %v6061, %v6058
      %v6308 = vpack.c.b16 %v6065, %v6062
      %v6309 = vpack.c.b16 %v6066, %v6063
      %v6310 = vpack.c.b16 %v6067, %v6064
      %v6311 = vpack.c.b16 %v6071, %v6068
      %v6312 = vpack.c.b16 %v6072, %v6069
      %v6313 = vpack.c.b16 %v6073, %v6070
      %v6314 = vpack.c.b16 %v6077, %v6074
      %v6315 = vpack.c.b16 %v6078, %v6075
      %v6316 = vpack.c.b16 %v6079, %v6076
      %v6317 = vpack.c.b16 %v6083, %v6080
      %v6318 = vpack.c.b16 %v6084, %v6081
      %v6319 = vpack.c.b16 %v6085, %v6082
      %v6320 = vpack.c.b16 %v6089, %v6086
      %v6321 = vpack.c.b16 %v6090, %v6087
      %v6322 = vpack.c.b16 %v6091, %v6088
      %v6323 = vpack.c.b16 %v6095, %v6092
      %v6324 = vpack.c.b16 %v6096, %v6093
      %v6325 = vpack.c.b16 %v6097, %v6094
      %v6326 = vpack.c.b16 %v6101, %v6098
      %v6327 = vpack.c.b16 %v6102, %v6099
      %v6328 = vpack.c.b16 %v6103, %v6100
      %v6329 = vpack.c.b16 %v6107, %v6104
      %v6330 = vpack.c.b16 %v6108, %v6105
      %v6331 = vpack.c.b16 %v6109, %v6106
      %v6332 = vpack.c.b16 %v6113, %v6110
      %v6333 = vpack.c.b16 %v6114, %v6111
      %v6334 = vpack.c.b16 %v6115, %v6112
      %v6335 = vpack.c.b16 %v6119, %v6116
      %v6336 = vpack.c.b16 %v6120, %v6117
      %v6337 = vpack.c.b16 %v6121, %v6118
      %v6338 = vpack.c.b16 %v6125, %v6122
      %v6339 = vpack.c.b16 %v6126, %v6123
      %v6340 = vpack.c.b16 %v6127, %v6124
      %v6341 = vpack.c.b16 %v6131, %v6128
      %v6342 = vpack.c.b16 %v6132, %v6129
      %v6343 = vpack.c.b16 %v6133, %v6130
      %v6344 = vpack.c.b16 %v6137, %v6134
      %v6345 = vpack.c.b16 %v6138, %v6135
      %v6346 = vpack.c.b16 %v6139, %v6136
      %v6347 = vpack.c.b16 %v6143, %v6140
      %v6348 = vpack.c.b16 %v6144, %v6141
      %v6349 = vpack.c.b16 %v6145, %v6142
      %vm6554 = vcmask 523264
      %v6556 = vsel %vm6554, %v5456, 0
      %v6559 = vsel %vm6554, %v5465, 0
      %6561 = vmatprep.subr.bf16.mxu0 %v6147
      %6562 = vmatpush1.bf16.msra.mxu0 %v6146
      %6563 = vmatprep.subr.bf16.mxu0 %v6150
      %6564 = vmatpush1.bf16.msra.mxu0 %v6149
      %6565 = vmatprep.subr.bf16.mxu0 %v6153
      %6566 = vmatpush1.bf16.msra.mxu0 %v6152
      %6567 = vmatprep.subr.bf16.mxu0 %v6156
      %6568 = vmatpush1.bf16.msra.mxu0 %v6155
      %6569 = vmatprep.subr.bf16.mxu0 %v6159
      %6570 = vmatpush1.bf16.msra.mxu0 %v6158
      %6571 = vmatprep.subr.bf16.mxu0 %v6162
      %6572 = vmatpush1.bf16.msra.mxu0 %v6161
      %6573 = vmatprep.subr.bf16.mxu0 %v6165
      %6574 = vmatpush1.bf16.msra.mxu0 %v6164
      %6575 = vmatprep.subr.bf16.mxu0 %v6168
      %6576 = vmatpush1.bf16.msra.mxu0 %v6167
      %6577 = vmatprep.subr.bf16.mxu0 %v6171
      %6578 = vmatpush1.bf16.msra.mxu0 %v6170
      %6579 = vmatprep.subr.bf16.mxu0 %v6174
      %6580 = vmatpush1.bf16.msra.mxu0 %v6173
      %6581 = vmatprep.subr.bf16.mxu0 %v6177
      %6582 = vmatpush1.bf16.msra.mxu0 %v6176
      %6583 = vmatprep.subr.bf16.mxu0 %v6180
      %6584 = vmatpush1.bf16.msra.mxu0 %v6179
      %6585 = vmatprep.subr.bf16.mxu0 %v6183
      %6586 = vmatpush1.bf16.msra.mxu0 %v6182
      %6587 = vmatprep.subr.bf16.mxu0 %v6186
      %6588 = vmatpush1.bf16.msra.mxu0 %v6185
      %6589 = vmatprep.subr.bf16.mxu0 %v6189
      %6590 = vmatpush1.bf16.msra.mxu0 %v6188
      %6591 = vmatprep.subr.bf16.mxu0 %v6192
      %6592 = vmatpush1.bf16.msra.mxu0 %v6191
      %6593 = vmatprep.mubr.bf16.mxu0 %v5449
      %6594 = vmatmul.mubr.bf16.gmra.mrb[0].mxu0 %v5448
      %v6595 = vpop.f32.mrb[0].mxu0
      %v6596 = vadd.f32 0.0, %v6595
      %v6597 = vpop.f32.mrb[0].mxu0
      %v6598 = vadd.f32 0.0, %v6597
      %v6599 = vpop.f32.mrb[0].mxu0
      %v6600 = vadd.f32 0.0, %v6599
      %v6601 = vpop.f32.mrb[0].mxu0
      %v6602 = vadd.f32 0.0, %v6601
      %6603 = vmatprep.mubr.bf16.mxu0 %v5458
      %6604 = vmatmul.mubr.bf16.gmra.mrb[0].mxu0 %v5457
      %v6605 = vpop.f32.mrb[0].mxu0
      %v6606 = vadd.f32 0.0, %v6605
      %v6607 = vpop.f32.mrb[0].mxu0
      %v6608 = vadd.f32 0.0, %v6607
      %v6609 = vpop.f32.mrb[0].mxu0
      %v6610 = vadd.f32 0.0, %v6609
      %v6611 = vpop.f32.mrb[0].mxu0
      %v6612 = vadd.f32 0.0, %v6611
      %6613 = vdwg.mxu0
      %6614 = vmatprep.subr.bf16.mxu0 %v6195
      %6615 = vmatpush1.bf16.msra.mxu0 %v6194
      %6616 = vmatprep.subr.bf16.mxu0 %v6198
      %6617 = vmatpush1.bf16.msra.mxu0 %v6197
      %6618 = vmatprep.subr.bf16.mxu0 %v6201
      %6619 = vmatpush1.bf16.msra.mxu0 %v6200
      %6620 = vmatprep.subr.bf16.mxu0 %v6204
      %6621 = vmatpush1.bf16.msra.mxu0 %v6203
      %6622 = vmatprep.subr.bf16.mxu0 %v6207
      %6623 = vmatpush1.bf16.msra.mxu0 %v6206
      %6624 = vmatprep.subr.bf16.mxu0 %v6210
      %6625 = vmatpush1.bf16.msra.mxu0 %v6209
      %6626 = vmatprep.subr.bf16.mxu0 %v6213
      %6627 = vmatpush1.bf16.msra.mxu0 %v6212
      %6628 = vmatprep.subr.bf16.mxu0 %v6216
      %6629 = vmatpush1.bf16.msra.mxu0 %v6215
      %6630 = vmatprep.subr.bf16.mxu0 %v6219
      %6631 = vmatpush1.bf16.msra.mxu0 %v6218
      %6632 = vmatprep.subr.bf16.mxu0 %v6222
      %6633 = vmatpush1.bf16.msra.mxu0 %v6221
      %6634 = vmatprep.subr.bf16.mxu0 %v6225
      %6635 = vmatpush1.bf16.msra.mxu0 %v6224
      %6636 = vmatprep.subr.bf16.mxu0 %v6228
      %6637 = vmatpush1.bf16.msra.mxu0 %v6227
      %6638 = vmatprep.subr.bf16.mxu0 %v6231
      %6639 = vmatpush1.bf16.msra.mxu0 %v6230
      %6640 = vmatprep.subr.bf16.mxu0 %v6234
      %6641 = vmatpush1.bf16.msra.mxu0 %v6233
      %6642 = vmatprep.subr.bf16.mxu0 %v6237
      %6643 = vmatpush1.bf16.msra.mxu0 %v6236
      %6644 = vmatprep.subr.bf16.mxu0 %v6240
      %6645 = vmatpush1.bf16.msra.mxu0 %v6239
      %6646 = vmatprep.mubr.bf16.mxu0 %v5451
      %6647 = vmatmul.mubr.bf16.gmra.mrb[0].mxu0 %v5450
      %v6648 = vpop.f32.mrb[0].mxu0
      %v6649 = vadd.f32 %v6596, %v6648
      %v6650 = vpop.f32.mrb[0].mxu0
      %v6651 = vadd.f32 %v6598, %v6650
      %v6652 = vpop.f32.mrb[0].mxu0
      %v6653 = vadd.f32 %v6600, %v6652
      %v6654 = vpop.f32.mrb[0].mxu0
      %v6655 = vadd.f32 %v6602, %v6654
      %6656 = vmatprep.mubr.bf16.mxu0 %v5460
      %6657 = vmatmul.mubr.bf16.gmra.mrb[0].mxu0 %v5459
      %v6658 = vpop.f32.mrb[0].mxu0
      %v6659 = vadd.f32 %v6606, %v6658
      %v6660 = vpop.f32.mrb[0].mxu0
      %v6661 = vadd.f32 %v6608, %v6660
      %v6662 = vpop.f32.mrb[0].mxu0
      %v6663 = vadd.f32 %v6610, %v6662
      %v6664 = vpop.f32.mrb[0].mxu0
      %v6665 = vadd.f32 %v6612, %v6664
      %6666 = vdwg.mxu0
      %6667 = vmatprep.subr.bf16.mxu0 %v6243
      %6668 = vmatpush1.bf16.msra.mxu0 %v6242
      %6669 = vmatprep.subr.bf16.mxu0 %v6246
      %6670 = vmatpush1.bf16.msra.mxu0 %v6245
      %6671 = vmatprep.subr.bf16.mxu0 %v6249
      %6672 = vmatpush1.bf16.msra.mxu0 %v6248
      %6673 = vmatprep.subr.bf16.mxu0 %v6252
      %6674 = vmatpush1.bf16.msra.mxu0 %v6251
      %6675 = vmatprep.subr.bf16.mxu0 %v6255
      %6676 = vmatpush1.bf16.msra.mxu0 %v6254
      %6677 = vmatprep.subr.bf16.mxu0 %v6258
      %6678 = vmatpush1.bf16.msra.mxu0 %v6257
      %6679 = vmatprep.subr.bf16.mxu0 %v6261
      %6680 = vmatpush1.bf16.msra.mxu0 %v6260
      %6681 = vmatprep.subr.bf16.mxu0 %v6264
      %6682 = vmatpush1.bf16.msra.mxu0 %v6263
      %6683 = vmatprep.subr.bf16.mxu0 %v6267
      %6684 = vmatpush1.bf16.msra.mxu0 %v6266
      %6685 = vmatprep.subr.bf16.mxu0 %v6270
      %6686 = vmatpush1.bf16.msra.mxu0 %v6269
      %6687 = vmatprep.subr.bf16.mxu0 %v6273
      %6688 = vmatpush1.bf16.msra.mxu0 %v6272
      %6689 = vmatprep.subr.bf16.mxu0 %v6276
      %6690 = vmatpush1.bf16.msra.mxu0 %v6275
      %6691 = vmatprep.subr.bf16.mxu0 %v6279
      %6692 = vmatpush1.bf16.msra.mxu0 %v6278
      %6693 = vmatprep.subr.bf16.mxu0 %v6282
      %6694 = vmatpush1.bf16.msra.mxu0 %v6281
      %6695 = vmatprep.subr.bf16.mxu0 %v6285
      %6696 = vmatpush1.bf16.msra.mxu0 %v6284
      %6697 = vmatprep.subr.bf16.mxu0 %v6288
      %6698 = vmatpush1.bf16.msra.mxu0 %v6287
      %6699 = vmatprep.mubr.bf16.mxu0 %v5453
      %6700 = vmatmul.mubr.bf16.gmra.mrb[0].mxu0 %v5452
      %v6701 = vpop.f32.mrb[0].mxu0
      %v6702 = vadd.f32 %v6649, %v6701
      %v6703 = vpop.f32.mrb[0].mxu0
      %v6704 = vadd.f32 %v6651, %v6703
      %v6705 = vpop.f32.mrb[0].mxu0
      %v6706 = vadd.f32 %v6653, %v6705
      %v6707 = vpop.f32.mrb[0].mxu0
      %v6708 = vadd.f32 %v6655, %v6707
      %6709 = vmatprep.mubr.bf16.mxu0 %v5462
      %6710 = vmatmul.mubr.bf16.gmra.mrb[0].mxu0 %v5461
      %v6711 = vpop.f32.mrb[0].mxu0
      %v6712 = vadd.f32 %v6659, %v6711
      %v6713 = vpop.f32.mrb[0].mxu0
      %v6714 = vadd.f32 %v6661, %v6713
      %v6715 = vpop.f32.mrb[0].mxu0
      %v6716 = vadd.f32 %v6663, %v6715
      %v6717 = vpop.f32.mrb[0].mxu0
      %v6718 = vadd.f32 %v6665, %v6717
      %6719 = vdwg.mxu0
      %6720 = vmatprep.subr.bf16.mxu0 %v6291
      %6721 = vmatpush1.bf16.msra.mxu0 %v6290
      %6722 = vmatprep.subr.bf16.mxu0 %v6294
      %6723 = vmatpush1.bf16.msra.mxu0 %v6293
      %6724 = vmatprep.subr.bf16.mxu0 %v6297
      %6725 = vmatpush1.bf16.msra.mxu0 %v6296
      %6726 = vmatprep.subr.bf16.mxu0 %v6300
      %6727 = vmatpush1.bf16.msra.mxu0 %v6299
      %6728 = vmatprep.subr.bf16.mxu0 %v6303
      %6729 = vmatpush1.bf16.msra.mxu0 %v6302
      %6730 = vmatprep.subr.bf16.mxu0 %v6306
      %6731 = vmatpush1.bf16.msra.mxu0 %v6305
      %6732 = vmatprep.subr.bf16.mxu0 %v6309
      %6733 = vmatpush1.bf16.msra.mxu0 %v6308
      %6734 = vmatprep.subr.bf16.mxu0 %v6312
      %6735 = vmatpush1.bf16.msra.mxu0 %v6311
      %6736 = vmatprep.subr.bf16.mxu0 %v6315
      %6737 = vmatpush1.bf16.msra.mxu0 %v6314
      %6738 = vmatprep.subr.bf16.mxu0 %v6318
      %6739 = vmatpush1.bf16.msra.mxu0 %v6317
      %6740 = vmatprep.subr.bf16.mxu0 %v6321
      %6741 = vmatpush1.bf16.msra.mxu0 %v6320
      %6742 = vmatprep.subr.bf16.mxu0 %v6324
      %6743 = vmatpush1.bf16.msra.mxu0 %v6323
      %6744 = vmatprep.subr.bf16.mxu0 %v6327
      %6745 = vmatpush1.bf16.msra.mxu0 %v6326
      %6746 = vmatprep.subr.bf16.mxu0 %v6330
      %6747 = vmatpush1.bf16.msra.mxu0 %v6329
      %6748 = vmatprep.subr.bf16.mxu0 %v6333
      %6749 = vmatpush1.bf16.msra.mxu0 %v6332
      %6750 = vmatprep.subr.bf16.mxu0 %v6336
      %6751 = vmatpush1.bf16.msra.mxu0 %v6335
      %6752 = vmatprep.mubr.bf16.mxu0 %v5455
      %6753 = vmatmul.mubr.bf16.gmra.mrb[0].mxu0 %v5454
      %v6754 = vpop.f32.mrb[0].mxu0
      %v6755 = vadd.f32 %v6702, %v6754
      %v6756 = vpop.f32.mrb[0].mxu0
      %v6757 = vadd.f32 %v6704, %v6756
      %v6758 = vpop.f32.mrb[0].mxu0
      %v6759 = vadd.f32 %v6706, %v6758
      %v6760 = vpop.f32.mrb[0].mxu0
      %v6761 = vadd.f32 %v6708, %v6760
      %6762 = vmatprep.mubr.bf16.mxu0 %v5464
      %6763 = vmatmul.mubr.bf16.gmra.mrb[0].mxu0 %v5463
      %v6764 = vpop.f32.mrb[0].mxu0
      %v6765 = vadd.f32 %v6712, %v6764
      %v6766 = vpop.f32.mrb[0].mxu0
      %v6767 = vadd.f32 %v6714, %v6766
      %v6768 = vpop.f32.mrb[0].mxu0
      %v6769 = vadd.f32 %v6716, %v6768
      %v6770 = vpop.f32.mrb[0].mxu0
      %v6771 = vadd.f32 %v6718, %v6770
      %6772 = vdwg.mxu0
      %6773 = vmatprep.subr.bf16.mxu0 %v6339
      %6774 = vmatpush1.bf16.msra.mxu0 %v6338
      %6775 = vmatprep.subr.bf16.mxu0 %v6342
      %6776 = vmatpush1.bf16.msra.mxu0 %v6341
      %6777 = vmatprep.subr.bf16.mxu0 %v6345
      %6778 = vmatpush1.bf16.msra.mxu0 %v6344
      %6779 = vmatprep.subr.bf16.mxu0 %v6348
      %6780 = vmatpush1.bf16.msra.mxu0 %v6347
      %6781 = vmatprep.subr.bf16.mxu0 0
      %6782 = vmatpush1.bf16.msra.mxu0 0
      %6783 = vmatprep.subr.bf16.mxu0 0
      %6784 = vmatpush1.bf16.msra.mxu0 0
      %6785 = vmatprep.subr.bf16.mxu0 0
      %6786 = vmatpush1.bf16.msra.mxu0 0
      %6787 = vmatprep.subr.bf16.mxu0 0
      %6788 = vmatpush1.bf16.msra.mxu0 0
      %6789 = vmatprep.subr.bf16.mxu0 0
      %6790 = vmatpush1.bf16.msra.mxu0 0
      %6791 = vmatprep.subr.bf16.mxu0 0
      %6792 = vmatpush1.bf16.msra.mxu0 0
      %6793 = vmatprep.subr.bf16.mxu0 0
      %6794 = vmatpush1.bf16.msra.mxu0 0
      %6795 = vmatprep.subr.bf16.mxu0 0
      %6796 = vmatpush1.bf16.msra.mxu0 0
      %6797 = vmatprep.subr.bf16.mxu0 0
      %6798 = vmatpush1.bf16.msra.mxu0 0
      %6799 = vmatprep.subr.bf16.mxu0 0
      %6800 = vmatpush1.bf16.msra.mxu0 0
      %6801 = vmatprep.subr.bf16.mxu0 0
      %6802 = vmatpush1.bf16.msra.mxu0 0
      %6803 = vmatprep.subr.bf16.mxu0 0
      %6804 = vmatpush1.bf16.msra.mxu0 0
      %6805 = vmatprep.mubr.bf16.mxu0 0
      %6806 = vmatmul.mubr.bf16.gmra.mrb[0].mxu0 %v6556
      %v6807 = vpop.f32.mrb[0].mxu0
      %v6808 = vadd.f32 %v6755, %v6807
      %v6809 = vpop.f32.mrb[0].mxu0
      %v6810 = vadd.f32 %v6757, %v6809
      %v6811 = vpop.f32.mrb[0].mxu0
      %v6812 = vadd.f32 %v6759, %v6811
      %v6813 = vpop.f32.mrb[0].mxu0
      %v6814 = vadd.f32 %v6761, %v6813
      %6815 = vmatprep.mubr.bf16.mxu0 0
      %6816 = vmatmul.mubr.bf16.gmra.mrb[0].mxu0 %v6559
      %v6817 = vpop.f32.mrb[0].mxu0
      %v6818 = vadd.f32 %v6765, %v6817
      %v6819 = vpop.f32.mrb[0].mxu0
      %v6820 = vadd.f32 %v6767, %v6819
      %v6821 = vpop.f32.mrb[0].mxu0
      %v6822 = vadd.f32 %v6769, %v6821
      %v6823 = vpop.f32.mrb[0].mxu0
      %v6824 = vadd.f32 %v6771, %v6823
      %6825 = vdwg.mxu0
      %6826 = vmatprep.subr.bf16.mxu0 0
      %6827 = vmatpush1.bf16.msra.mxu0 %v6148
      %6828 = vmatprep.subr.bf16.mxu0 0
      %6829 = vmatpush1.bf16.msra.mxu0 %v6151
      %6830 = vmatprep.subr.bf16.mxu0 0
      %6831 = vmatpush1.bf16.msra.mxu0 %v6154
      %6832 = vmatprep.subr.bf16.mxu0 0
      %6833 = vmatpush1.bf16.msra.mxu0 %v6157
      %6834 = vmatprep.subr.bf16.mxu0 0
      %6835 = vmatpush1.bf16.msra.mxu0 %v6160
      %6836 = vmatprep.subr.bf16.mxu0 0
      %6837 = vmatpush1.bf16.msra.mxu0 %v6163
      %6838 = vmatprep.subr.bf16.mxu0 0
      %6839 = vmatpush1.bf16.msra.mxu0 %v6166
      %6840 = vmatprep.subr.bf16.mxu0 0
      %6841 = vmatpush1.bf16.msra.mxu0 %v6169
      %6842 = vmatprep.subr.bf16.mxu0 0
      %6843 = vmatpush1.bf16.msra.mxu0 %v6172
      %6844 = vmatprep.subr.bf16.mxu0 0
      %6845 = vmatpush1.bf16.msra.mxu0 %v6175
      %6846 = vmatprep.subr.bf16.mxu0 0
      %6847 = vmatpush1.bf16.msra.mxu0 %v6178
      %6848 = vmatprep.subr.bf16.mxu0 0
      %6849 = vmatpush1.bf16.msra.mxu0 %v6181
      %6850 = vmatprep.subr.bf16.mxu0 0
      %6851 = vmatpush1.bf16.msra.mxu0 %v6184
      %6852 = vmatprep.subr.bf16.mxu0 0
      %6853 = vmatpush1.bf16.msra.mxu0 %v6187
      %6854 = vmatprep.subr.bf16.mxu0 0
      %6855 = vmatpush1.bf16.msra.mxu0 %v6190
      %6856 = vmatprep.subr.bf16.mxu0 0
      %6857 = vmatpush1.bf16.msra.mxu0 %v6193
      %6858 = vmatprep.mubr.bf16.mxu0 %v5449
      %6859 = vmatmul.mubr.bf16.gmra.mrb[0].mxu0 %v5448
      %v6860 = vpop.f32.mrb[0].mxu0
      %v6861 = vadd.f32 0.0, %v6860
      %v6862 = vpop.f32.mrb[0].mxu0
      %v6863 = vpop.f32.mrb[0].mxu0
      %v6864 = vadd.f32 0.0, %v6863
      %v6865 = vpop.f32.mrb[0].mxu0
      %6866 = vmatprep.mubr.bf16.mxu0 %v5458
      %6867 = vmatmul.mubr.bf16.gmra.mrb[0].mxu0 %v5457
      %v6868 = vpop.f32.mrb[0].mxu0
      %v6869 = vadd.f32 0.0, %v6868
      %v6870 = vpop.f32.mrb[0].mxu0
      %v6871 = vpop.f32.mrb[0].mxu0
      %v6872 = vadd.f32 0.0, %v6871
      %v6873 = vpop.f32.mrb[0].mxu0
      %6874 = vdwg.mxu0
      %6875 = vmatprep.subr.bf16.mxu0 0
      %6876 = vmatpush1.bf16.msra.mxu0 %v6196
      %6877 = vmatprep.subr.bf16.mxu0 0
      %6878 = vmatpush1.bf16.msra.mxu0 %v6199
      %6879 = vmatprep.subr.bf16.mxu0 0
      %6880 = vmatpush1.bf16.msra.mxu0 %v6202
      %6881 = vmatprep.subr.bf16.mxu0 0
      %6882 = vmatpush1.bf16.msra.mxu0 %v6205
      %6883 = vmatprep.subr.bf16.mxu0 0
      %6884 = vmatpush1.bf16.msra.mxu0 %v6208
      %6885 = vmatprep.subr.bf16.mxu0 0
      %6886 = vmatpush1.bf16.msra.mxu0 %v6211
      %6887 = vmatprep.subr.bf16.mxu0 0
      %6888 = vmatpush1.bf16.msra.mxu0 %v6214
      %6889 = vmatprep.subr.bf16.mxu0 0
      %6890 = vmatpush1.bf16.msra.mxu0 %v6217
      %6891 = vmatprep.subr.bf16.mxu0 0
      %6892 = vmatpush1.bf16.msra.mxu0 %v6220
      %6893 = vmatprep.subr.bf16.mxu0 0
      %6894 = vmatpush1.bf16.msra.mxu0 %v6223
      %6895 = vmatprep.subr.bf16.mxu0 0
      %6896 = vmatpush1.bf16.msra.mxu0 %v6226
      %6897 = vmatprep.subr.bf16.mxu0 0
      %6898 = vmatpush1.bf16.msra.mxu0 %v6229
      %6899 = vmatprep.subr.bf16.mxu0 0
      %6900 = vmatpush1.bf16.msra.mxu0 %v6232
      %6901 = vmatprep.subr.bf16.mxu0 0
      %6902 = vmatpush1.bf16.msra.mxu0 %v6235
      %6903 = vmatprep.subr.bf16.mxu0 0
      %6904 = vmatpush1.bf16.msra.mxu0 %v6238
      %6905 = vmatprep.subr.bf16.mxu0 0
      %6906 = vmatpush1.bf16.msra.mxu0 %v6241
      %6907 = vmatprep.mubr.bf16.mxu0 %v5451
      %6908 = vmatmul.mubr.bf16.gmra.mrb[0].mxu0 %v5450
      %v6909 = vpop.f32.mrb[0].mxu0
      %v6910 = vadd.f32 %v6861, %v6909
      %v6911 = vpop.f32.mrb[0].mxu0
      %v6912 = vpop.f32.mrb[0].mxu0
      %v6913 = vadd.f32 %v6864, %v6912
      %v6914 = vpop.f32.mrb[0].mxu0
      %6915 = vmatprep.mubr.bf16.mxu0 %v5460
      %6916 = vmatmul.mubr.bf16.gmra.mrb[0].mxu0 %v5459
      %v6917 = vpop.f32.mrb[0].mxu0
      %v6918 = vadd.f32 %v6869, %v6917
      %v6919 = vpop.f32.mrb[0].mxu0
      %v6920 = vpop.f32.mrb[0].mxu0
      %v6921 = vadd.f32 %v6872, %v6920
      %v6922 = vpop.f32.mrb[0].mxu0
      %6923 = vdwg.mxu0
      %6924 = vmatprep.subr.bf16.mxu0 0
      %6925 = vmatpush1.bf16.msra.mxu0 %v6244
      %6926 = vmatprep.subr.bf16.mxu0 0
      %6927 = vmatpush1.bf16.msra.mxu0 %v6247
      %6928 = vmatprep.subr.bf16.mxu0 0
      %6929 = vmatpush1.bf16.msra.mxu0 %v6250
      %6930 = vmatprep.subr.bf16.mxu0 0
      %6931 = vmatpush1.bf16.msra.mxu0 %v6253
      %6932 = vmatprep.subr.bf16.mxu0 0
      %6933 = vmatpush1.bf16.msra.mxu0 %v6256
      %6934 = vmatprep.subr.bf16.mxu0 0
      %6935 = vmatpush1.bf16.msra.mxu0 %v6259
      %6936 = vmatprep.subr.bf16.mxu0 0
      %6937 = vmatpush1.bf16.msra.mxu0 %v6262
      %6938 = vmatprep.subr.bf16.mxu0 0
      %6939 = vmatpush1.bf16.msra.mxu0 %v6265
      %6940 = vmatprep.subr.bf16.mxu0 0
      %6941 = vmatpush1.bf16.msra.mxu0 %v6268
      %6942 = vmatprep.subr.bf16.mxu0 0
      %6943 = vmatpush1.bf16.msra.mxu0 %v6271
      %6944 = vmatprep.subr.bf16.mxu0 0
      %6945 = vmatpush1.bf16.msra.mxu0 %v6274
      %6946 = vmatprep.subr.bf16.mxu0 0
      %6947 = vmatpush1.bf16.msra.mxu0 %v6277
      %6948 = vmatprep.subr.bf16.mxu0 0
      %6949 = vmatpush1.bf16.msra.mxu0 %v6280
      %6950 = vmatprep.subr.bf16.mxu0 0
      %6951 = vmatpush1.bf16.msra.mxu0 %v6283
      %6952 = vmatprep.subr.bf16.mxu0 0
      %6953 = vmatpush1.bf16.msra.mxu0 %v6286
      %6954 = vmatprep.subr.bf16.mxu0 0
      %6955 = vmatpush1.bf16.msra.mxu0 %v6289
      %6956 = vmatprep.mubr.bf16.mxu0 %v5453
      %6957 = vmatmul.mubr.bf16.gmra.mrb[0].mxu0 %v5452
      %v6958 = vpop.f32.mrb[0].mxu0
      %v6959 = vadd.f32 %v6910, %v6958
      %v6960 = vpop.f32.mrb[0].mxu0
      %v6961 = vpop.f32.mrb[0].mxu0
      %v6962 = vadd.f32 %v6913, %v6961
      %v6963 = vpop.f32.mrb[0].mxu0
      %6964 = vmatprep.mubr.bf16.mxu0 %v5462
      %6965 = vmatmul.mubr.bf16.gmra.mrb[0].mxu0 %v5461
      %v6966 = vpop.f32.mrb[0].mxu0
      %v6967 = vadd.f32 %v6918, %v6966
      %v6968 = vpop.f32.mrb[0].mxu0
      %v6969 = vpop.f32.mrb[0].mxu0
      %v6970 = vadd.f32 %v6921, %v6969
      %v6971 = vpop.f32.mrb[0].mxu0
      %6972 = vdwg.mxu0
      %6973 = vmatprep.subr.bf16.mxu0 0
      %6974 = vmatpush1.bf16.msra.mxu0 %v6292
      %6975 = vmatprep.subr.bf16.mxu0 0
      %6976 = vmatpush1.bf16.msra.mxu0 %v6295
      %6977 = vmatprep.subr.bf16.mxu0 0
      %6978 = vmatpush1.bf16.msra.mxu0 %v6298
      %6979 = vmatprep.subr.bf16.mxu0 0
      %6980 = vmatpush1.bf16.msra.mxu0 %v6301
      %6981 = vmatprep.subr.bf16.mxu0 0
      %6982 = vmatpush1.bf16.msra.mxu0 %v6304
      %6983 = vmatprep.subr.bf16.mxu0 0
      %6984 = vmatpush1.bf16.msra.mxu0 %v6307
      %6985 = vmatprep.subr.bf16.mxu0 0
      %6986 = vmatpush1.bf16.msra.mxu0 %v6310
      %6987 = vmatprep.subr.bf16.mxu0 0
      %6988 = vmatpush1.bf16.msra.mxu0 %v6313
      %6989 = vmatprep.subr.bf16.mxu0 0
      %6990 = vmatpush1.bf16.msra.mxu0 %v6316
      %6991 = vmatprep.subr.bf16.mxu0 0
      %6992 = vmatpush1.bf16.msra.mxu0 %v6319
      %6993 = vmatprep.subr.bf16.mxu0 0
      %6994 = vmatpush1.bf16.msra.mxu0 %v6322
      %6995 = vmatprep.subr.bf16.mxu0 0
      %6996 = vmatpush1.bf16.msra.mxu0 %v6325
      %6997 = vmatprep.subr.bf16.mxu0 0
      %6998 = vmatpush1.bf16.msra.mxu0 %v6328
      %6999 = vmatprep.subr.bf16.mxu0 0
      %7000 = vmatpush1.bf16.msra.mxu0 %v6331
      %7001 = vmatprep.subr.bf16.mxu0 0
      %7002 = vmatpush1.bf16.msra.mxu0 %v6334
      %7003 = vmatprep.subr.bf16.mxu0 0
      %7004 = vmatpush1.bf16.msra.mxu0 %v6337
      %7005 = vmatprep.mubr.bf16.mxu0 %v5455
      %7006 = vmatmul.mubr.bf16.gmra.mrb[0].mxu0 %v5454
      %v7007 = vpop.f32.mrb[0].mxu0
      %v7008 = vadd.f32 %v6959, %v7007
      %v7009 = vpop.f32.mrb[0].mxu0
      %v7010 = vpop.f32.mrb[0].mxu0
      %v7011 = vadd.f32 %v6962, %v7010
      %v7012 = vpop.f32.mrb[0].mxu0
      %7013 = vmatprep.mubr.bf16.mxu0 %v5464
      %7014 = vmatmul.mubr.bf16.gmra.mrb[0].mxu0 %v5463
      %v7015 = vpop.f32.mrb[0].mxu0
      %v7016 = vadd.f32 %v6967, %v7015
      %v7017 = vpop.f32.mrb[0].mxu0
      %v7018 = vpop.f32.mrb[0].mxu0
      %v7019 = vadd.f32 %v6970, %v7018
      %v7020 = vpop.f32.mrb[0].mxu0
      %7021 = vdwg.mxu0
      %7022 = vmatprep.subr.bf16.mxu0 0
      %7023 = vmatpush1.bf16.msra.mxu0 %v6340
      %7024 = vmatprep.subr.bf16.mxu0 0
      %7025 = vmatpush1.bf16.msra.mxu0 %v6343
      %7026 = vmatprep.subr.bf16.mxu0 0
      %7027 = vmatpush1.bf16.msra.mxu0 %v6346
      %7028 = vmatprep.subr.bf16.mxu0 0
      %7029 = vmatpush1.bf16.msra.mxu0 %v6349
      %7030 = vmatprep.subr.bf16.mxu0 0
      %7031 = vmatpush1.bf16.msra.mxu0 0
      %7032 = vmatprep.subr.bf16.mxu0 0
      %7033 = vmatpush1.bf16.msra.mxu0 0
      %7034 = vmatprep.subr.bf16.mxu0 0
      %7035 = vmatpush1.bf16.msra.mxu0 0
      %7036 = vmatprep.subr.bf16.mxu0 0
      %7037 = vmatpush1.bf16.msra.mxu0 0
      %7038 = vmatprep.subr.bf16.mxu0 0
      %7039 = vmatpush1.bf16.msra.mxu0 0
      %7040 = vmatprep.subr.bf16.mxu0 0
      %7041 = vmatpush1.bf16.msra.mxu0 0
      %7042 = vmatprep.subr.bf16.mxu0 0
      %7043 = vmatpush1.bf16.msra.mxu0 0
      %7044 = vmatprep.subr.bf16.mxu0 0
      %7045 = vmatpush1.bf16.msra.mxu0 0
      %7046 = vmatprep.subr.bf16.mxu0 0
      %7047 = vmatpush1.bf16.msra.mxu0 0
      %7048 = vmatprep.subr.bf16.mxu0 0
      %7049 = vmatpush1.bf16.msra.mxu0 0
      %7050 = vmatprep.subr.bf16.mxu0 0
      %7051 = vmatpush1.bf16.msra.mxu0 0
      %7052 = vmatprep.subr.bf16.mxu0 0
      %7053 = vmatpush1.bf16.msra.mxu0 0
      %7054 = vmatprep.mubr.bf16.mxu0 0
      %7055 = vmatmul.mubr.bf16.gmra.mrb[0].mxu0 %v6556
      %v7056 = vpop.f32.mrb[0].mxu0
      %v7057 = vadd.f32 %v7008, %v7056
      %v7058 = vpop.f32.mrb[0].mxu0
      %v7059 = vpop.f32.mrb[0].mxu0
      %v7060 = vadd.f32 %v7011, %v7059
      %v7061 = vpop.f32.mrb[0].mxu0
      %7062 = vmatprep.mubr.bf16.mxu0 0
      %7063 = vmatmul.mubr.bf16.gmra.mrb[0].mxu0 %v6559
      %v7064 = vpop.f32.mrb[0].mxu0
      %v7065 = vadd.f32 %v7016, %v7064
      %v7066 = vpop.f32.mrb[0].mxu0
      %v7067 = vpop.f32.mrb[0].mxu0
      %v7068 = vadd.f32 %v7019, %v7067
      %v7069 = vpop.f32.mrb[0].mxu0
      %7070 = vdwg.mxu0
      %7071 = vst [vmem:[#allocation5] sm:$0xff] %v6808
      %7072 = vst [vmem:[#allocation5 + $0x8] sm:$0xff] %v6810
      %7073 = vst [vmem:[#allocation5 + $0x10] sm:$0xff] %v7057
      %7074 = vst [vmem:[#allocation5 + $0x18] sm:$0xff] %v6812
      %7075 = vst [vmem:[#allocation5 + $0x20] sm:$0xff] %v6814
      %7076 = vst [vmem:[#allocation5 + $0x28] sm:$0xff] %v7060
      %7077 = vst [vmem:[#allocation5 + $0x30] sm:$0xff] %v6818
      %7078 = vst [vmem:[#allocation5 + $0x38] sm:$0xff] %v6820
      %7079 = vst [vmem:[#allocation5 + $0x40] sm:$0xff] %v7065
      %7080 = vst [vmem:[#allocation5 + $0x48] sm:$0xff] %v6822
      %7081 = vst [vmem:[#allocation5 + $0x50] sm:$0xff] %v6824
      %7082 = vst [vmem:[#allocation5 + $0x58] sm:$0xff] %v7068
      %v7083 = vpack.c.bf16 %v3858, %v3849
      %v7084 = vpack.c.bf16 %v3859, %v3850
      %v7085 = vpack.c.bf16 %v3860, %v3851
      %v7086 = vpack.c.bf16 %v3861, %v3852
      %v7087 = vpack.c.bf16 %v3862, %v3853
      %v7088 = vpack.c.bf16 %v3863, %v3854
      %v7089 = vpack.c.bf16 %v3864, %v3855
      %v7090 = vpack.c.bf16 %v3865, %v3856
      %v7091 = vpack.c.bf16 %v3866, %v3857
      %v7093 = vsel %vm6554, %v7091, 0
      %7095 = vmatprep.subr.bf16.mxu0 %v6147
      %7096 = vmatpush1.bf16.msra.mxu0 %v6146
      %7097 = vmatprep.subr.bf16.mxu0 %v6150
      %7098 = vmatpush1.bf16.msra.mxu0 %v6149
      %7099 = vmatprep.subr.bf16.mxu0 %v6153
      %7100 = vmatpush1.bf16.msra.mxu0 %v6152
      %7101 = vmatprep.subr.bf16.mxu0 %v6156
      %7102 = vmatpush1.bf16.msra.mxu0 %v6155
      %7103 = vmatprep.subr.bf16.mxu0 %v6159
      %7104 = vmatpush1.bf16.msra.mxu0 %v6158
      %7105 = vmatprep.subr.bf16.mxu0 %v6162
      %7106 = vmatpush1.bf16.msra.mxu0 %v6161
      %7107 = vmatprep.subr.bf16.mxu0 %v6165
      %7108 = vmatpush1.bf16.msra.mxu0 %v6164
      %7109 = vmatprep.subr.bf16.mxu0 %v6168
      %7110 = vmatpush1.bf16.msra.mxu0 %v6167
      %7111 = vmatprep.subr.bf16.mxu0 %v6171
      %7112 = vmatpush1.bf16.msra.mxu0 %v6170
      %7113 = vmatprep.subr.bf16.mxu0 %v6174
      %7114 = vmatpush1.bf16.msra.mxu0 %v6173
      %7115 = vmatprep.subr.bf16.mxu0 %v6177
      %7116 = vmatpush1.bf16.msra.mxu0 %v6176
      %7117 = vmatprep.subr.bf16.mxu0 %v6180
      %7118 = vmatpush1.bf16.msra.mxu0 %v6179
      %7119 = vmatprep.subr.bf16.mxu0 %v6183
      %7120 = vmatpush1.bf16.msra.mxu0 %v6182
      %7121 = vmatprep.subr.bf16.mxu0 %v6186
      %7122 = vmatpush1.bf16.msra.mxu0 %v6185
      %7123 = vmatprep.subr.bf16.mxu0 %v6189
      %7124 = vmatpush1.bf16.msra.mxu0 %v6188
      %7125 = vmatprep.subr.bf16.mxu0 %v6192
      %7126 = vmatpush1.bf16.msra.mxu0 %v6191
      %7127 = vmatprep.mubr.bf16.mxu0 %v7084
      %7128 = vmatmul.mubr.bf16.gmra.mrb[0].mxu0 %v7083
      %v7129 = vpop.f32.mrb[0].mxu0
      %v7130 = vadd.f32 0.0, %v7129
      %v7131 = vpop.f32.mrb[0].mxu0
      %v7132 = vadd.f32 0.0, %v7131
      %v7133 = vpop.f32.mrb[0].mxu0
      %v7134 = vadd.f32 0.0, %v7133
      %v7135 = vpop.f32.mrb[0].mxu0
      %v7136 = vadd.f32 0.0, %v7135
      %7137 = vdwg.mxu0
      %7138 = vmatprep.subr.bf16.mxu0 %v6195
      %7139 = vmatpush1.bf16.msra.mxu0 %v6194
      %7140 = vmatprep.subr.bf16.mxu0 %v6198
      %7141 = vmatpush1.bf16.msra.mxu0 %v6197
      %7142 = vmatprep.subr.bf16.mxu0 %v6201
      %7143 = vmatpush1.bf16.msra.mxu0 %v6200
      %7144 = vmatprep.subr.bf16.mxu0 %v6204
      %7145 = vmatpush1.bf16.msra.mxu0 %v6203
      %7146 = vmatprep.subr.bf16.mxu0 %v6207
      %7147 = vmatpush1.bf16.msra.mxu0 %v6206
      %7148 = vmatprep.subr.bf16.mxu0 %v6210
      %7149 = vmatpush1.bf16.msra.mxu0 %v6209
      %7150 = vmatprep.subr.bf16.mxu0 %v6213
      %7151 = vmatpush1.bf16.msra.mxu0 %v6212
      %7152 = vmatprep.subr.bf16.mxu0 %v6216
      %7153 = vmatpush1.bf16.msra.mxu0 %v6215
      %7154 = vmatprep.subr.bf16.mxu0 %v6219
      %7155 = vmatpush1.bf16.msra.mxu0 %v6218
      %7156 = vmatprep.subr.bf16.mxu0 %v6222
      %7157 = vmatpush1.bf16.msra.mxu0 %v6221
      %7158 = vmatprep.subr.bf16.mxu0 %v6225
      %7159 = vmatpush1.bf16.msra.mxu0 %v6224
      %7160 = vmatprep.subr.bf16.mxu0 %v6228
      %7161 = vmatpush1.bf16.msra.mxu0 %v6227
      %7162 = vmatprep.subr.bf16.mxu0 %v6231
      %7163 = vmatpush1.bf16.msra.mxu0 %v6230
      %7164 = vmatprep.subr.bf16.mxu0 %v6234
      %7165 = vmatpush1.bf16.msra.mxu0 %v6233
      %7166 = vmatprep.subr.bf16.mxu0 %v6237
      %7167 = vmatpush1.bf16.msra.mxu0 %v6236
      %7168 = vmatprep.subr.bf16.mxu0 %v6240
      %7169 = vmatpush1.bf16.msra.mxu0 %v6239
      %7170 = vmatprep.mubr.bf16.mxu0 %v7086
      %7171 = vmatmul.mubr.bf16.gmra.mrb[0].mxu0 %v7085
      %v7172 = vpop.f32.mrb[0].mxu0
      %v7173 = vadd.f32 %v7130, %v7172
      %v7174 = vpop.f32.mrb[0].mxu0
      %v7175 = vadd.f32 %v7132, %v7174
      %v7176 = vpop.f32.mrb[0].mxu0
      %v7177 = vadd.f32 %v7134, %v7176
      %v7178 = vpop.f32.mrb[0].mxu0
      %v7179 = vadd.f32 %v7136, %v7178
      %7180 = vdwg.mxu0
      %7181 = vmatprep.subr.bf16.mxu0 %v6243
      %7182 = vmatpush1.bf16.msra.mxu0 %v6242
      %7183 = vmatprep.subr.bf16.mxu0 %v6246
      %7184 = vmatpush1.bf16.msra.mxu0 %v6245
      %7185 = vmatprep.subr.bf16.mxu0 %v6249
      %7186 = vmatpush1.bf16.msra.mxu0 %v6248
      %7187 = vmatprep.subr.bf16.mxu0 %v6252
      %7188 = vmatpush1.bf16.msra.mxu0 %v6251
      %7189 = vmatprep.subr.bf16.mxu0 %v6255
      %7190 = vmatpush1.bf16.msra.mxu0 %v6254
      %7191 = vmatprep.subr.bf16.mxu0 %v6258
      %7192 = vmatpush1.bf16.msra.mxu0 %v6257
      %7193 = vmatprep.subr.bf16.mxu0 %v6261
      %7194 = vmatpush1.bf16.msra.mxu0 %v6260
      %7195 = vmatprep.subr.bf16.mxu0 %v6264
      %7196 = vmatpush1.bf16.msra.mxu0 %v6263
      %7197 = vmatprep.subr.bf16.mxu0 %v6267
      %7198 = vmatpush1.bf16.msra.mxu0 %v6266
      %7199 = vmatprep.subr.bf16.mxu0 %v6270
      %7200 = vmatpush1.bf16.msra.mxu0 %v6269
      %7201 = vmatprep.subr.bf16.mxu0 %v6273
      %7202 = vmatpush1.bf16.msra.mxu0 %v6272
      %7203 = vmatprep.subr.bf16.mxu0 %v6276
      %7204 = vmatpush1.bf16.msra.mxu0 %v6275
      %7205 = vmatprep.subr.bf16.mxu0 %v6279
      %7206 = vmatpush1.bf16.msra.mxu0 %v6278
      %7207 = vmatprep.subr.bf16.mxu0 %v6282
      %7208 = vmatpush1.bf16.msra.mxu0 %v6281
      %7209 = vmatprep.subr.bf16.mxu0 %v6285
      %7210 = vmatpush1.bf16.msra.mxu0 %v6284
      %7211 = vmatprep.subr.bf16.mxu0 %v6288
      %7212 = vmatpush1.bf16.msra.mxu0 %v6287
      %7213 = vmatprep.mubr.bf16.mxu0 %v7088
      %7214 = vmatmul.mubr.bf16.gmra.mrb[0].mxu0 %v7087
      %v7215 = vpop.f32.mrb[0].mxu0
      %v7216 = vadd.f32 %v7173, %v7215
      %v7217 = vpop.f32.mrb[0].mxu0
      %v7218 = vadd.f32 %v7175, %v7217
      %v7219 = vpop.f32.mrb[0].mxu0
      %v7220 = vadd.f32 %v7177, %v7219
      %v7221 = vpop.f32.mrb[0].mxu0
      %v7222 = vadd.f32 %v7179, %v7221
      %7223 = vdwg.mxu0
      %7224 = vmatprep.subr.bf16.mxu0 %v6291
      %7225 = vmatpush1.bf16.msra.mxu0 %v6290
      %7226 = vmatprep.subr.bf16.mxu0 %v6294
      %7227 = vmatpush1.bf16.msra.mxu0 %v6293
      %7228 = vmatprep.subr.bf16.mxu0 %v6297
      %7229 = vmatpush1.bf16.msra.mxu0 %v6296
      %7230 = vmatprep.subr.bf16.mxu0 %v6300
      %7231 = vmatpush1.bf16.msra.mxu0 %v6299
      %7232 = vmatprep.subr.bf16.mxu0 %v6303
      %7233 = vmatpush1.bf16.msra.mxu0 %v6302
      %7234 = vmatprep.subr.bf16.mxu0 %v6306
      %7235 = vmatpush1.bf16.msra.mxu0 %v6305
      %7236 = vmatprep.subr.bf16.mxu0 %v6309
      %7237 = vmatpush1.bf16.msra.mxu0 %v6308
      %7238 = vmatprep.subr.bf16.mxu0 %v6312
      %7239 = vmatpush1.bf16.msra.mxu0 %v6311
      %7240 = vmatprep.subr.bf16.mxu0 %v6315
      %7241 = vmatpush1.bf16.msra.mxu0 %v6314
      %7242 = vmatprep.subr.bf16.mxu0 %v6318
      %7243 = vmatpush1.bf16.msra.mxu0 %v6317
      %7244 = vmatprep.subr.bf16.mxu0 %v6321
      %7245 = vmatpush1.bf16.msra.mxu0 %v6320
      %7246 = vmatprep.subr.bf16.mxu0 %v6324
      %7247 = vmatpush1.bf16.msra.mxu0 %v6323
      %7248 = vmatprep.subr.bf16.mxu0 %v6327
      %7249 = vmatpush1.bf16.msra.mxu0 %v6326
      %7250 = vmatprep.subr.bf16.mxu0 %v6330
      %7251 = vmatpush1.bf16.msra.mxu0 %v6329
      %7252 = vmatprep.subr.bf16.mxu0 %v6333
      %7253 = vmatpush1.bf16.msra.mxu0 %v6332
      %7254 = vmatprep.subr.bf16.mxu0 %v6336
      %7255 = vmatpush1.bf16.msra.mxu0 %v6335
      %7256 = vmatprep.mubr.bf16.mxu0 %v7090
      %7257 = vmatmul.mubr.bf16.gmra.mrb[0].mxu0 %v7089
      %v7258 = vpop.f32.mrb[0].mxu0
      %v7259 = vadd.f32 %v7216, %v7258
      %v7260 = vpop.f32.mrb[0].mxu0
      %v7261 = vadd.f32 %v7218, %v7260
      %v7262 = vpop.f32.mrb[0].mxu0
      %v7263 = vadd.f32 %v7220, %v7262
      %v7264 = vpop.f32.mrb[0].mxu0
      %v7265 = vadd.f32 %v7222, %v7264
      %7266 = vdwg.mxu0
      %7267 = vmatprep.subr.bf16.mxu0 %v6339
      %7268 = vmatpush1.bf16.msra.mxu0 %v6338
      %7269 = vmatprep.subr.bf16.mxu0 %v6342
      %7270 = vmatpush1.bf16.msra.mxu0 %v6341
      %7271 = vmatprep.subr.bf16.mxu0 %v6345
      %7272 = vmatpush1.bf16.msra.mxu0 %v6344
      %7273 = vmatprep.subr.bf16.mxu0 %v6348
      %7274 = vmatpush1.bf16.msra.mxu0 %v6347
      %7275 = vmatprep.subr.bf16.mxu0 0
      %7276 = vmatpush1.bf16.msra.mxu0 0
      %7277 = vmatprep.subr.bf16.mxu0 0
      %7278 = vmatpush1.bf16.msra.mxu0 0
      %7279 = vmatprep.subr.bf16.mxu0 0
      %7280 = vmatpush1.bf16.msra.mxu0 0
      %7281 = vmatprep.subr.bf16.mxu0 0
      %7282 = vmatpush1.bf16.msra.mxu0 0
      %7283 = vmatprep.subr.bf16.mxu0 0
      %7284 = vmatpush1.bf16.msra.mxu0 0
      %7285 = vmatprep.subr.bf16.mxu0 0
      %7286 = vmatpush1.bf16.msra.mxu0 0
      %7287 = vmatprep.subr.bf16.mxu0 0
      %7288 = vmatpush1.bf16.msra.mxu0 0
      %7289 = vmatprep.subr.bf16.mxu0 0
      %7290 = vmatpush1.bf16.msra.mxu0 0
      %7291 = vmatprep.subr.bf16.mxu0 0
      %7292 = vmatpush1.bf16.msra.mxu0 0
      %7293 = vmatprep.subr.bf16.mxu0 0
      %7294 = vmatpush1.bf16.msra.mxu0 0
      %7295 = vmatprep.subr.bf16.mxu0 0
      %7296 = vmatpush1.bf16.msra.mxu0 0
      %7297 = vmatprep.subr.bf16.mxu0 0
      %7298 = vmatpush1.bf16.msra.mxu0 0
      %7299 = vmatprep.mubr.bf16.mxu0 0
      %7300 = vmatmul.mubr.bf16.gmra.mrb[0].mxu0 %v7093
      %v7301 = vpop.f32.mrb[0].mxu0
      %v7302 = vadd.f32 %v7259, %v7301
      %v7303 = vpop.f32.mrb[0].mxu0
      %v7304 = vadd.f32 %v7261, %v7303
      %v7305 = vpop.f32.mrb[0].mxu0
      %v7306 = vadd.f32 %v7263, %v7305
      %v7307 = vpop.f32.mrb[0].mxu0
      %v7308 = vadd.f32 %v7265, %v7307
      %7309 = vdwg.mxu0
      %7310 = vmatprep.subr.bf16.mxu0 0
      %7311 = vmatpush1.bf16.msra.mxu0 %v6148
      %7312 = vmatprep.subr.bf16.mxu0 0
      %7313 = vmatpush1.bf16.msra.mxu0 %v6151
      %7314 = vmatprep.subr.bf16.mxu0 0
      %7315 = vmatpush1.bf16.msra.mxu0 %v6154
      %7316 = vmatprep.subr.bf16.mxu0 0
      %7317 = vmatpush1.bf16.msra.mxu0 %v6157
      %7318 = vmatprep.subr.bf16.mxu0 0
      %7319 = vmatpush1.bf16.msra.mxu0 %v6160
      %7320 = vmatprep.subr.bf16.mxu0 0
      %7321 = vmatpush1.bf16.msra.mxu0 %v6163
      %7322 = vmatprep.subr.bf16.mxu0 0
      %7323 = vmatpush1.bf16.msra.mxu0 %v6166
      %7324 = vmatprep.subr.bf16.mxu0 0
      %7325 = vmatpush1.bf16.msra.mxu0 %v6169
      %7326 = vmatprep.subr.bf16.mxu0 0
      %7327 = vmatpush1.bf16.msra.mxu0 %v6172
      %7328 = vmatprep.subr.bf16.mxu0 0
      %7329 = vmatpush1.bf16.msra.mxu0 %v6175
      %7330 = vmatprep.subr.bf16.mxu0 0
      %7331 = vmatpush1.bf16.msra.mxu0 %v6178
      %7332 = vmatprep.subr.bf16.mxu0 0
      %7333 = vmatpush1.bf16.msra.mxu0 %v6181
      %7334 = vmatprep.subr.bf16.mxu0 0
      %7335 = vmatpush1.bf16.msra.mxu0 %v6184
      %7336 = vmatprep.subr.bf16.mxu0 0
      %7337 = vmatpush1.bf16.msra.mxu0 %v6187
      %7338 = vmatprep.subr.bf16.mxu0 0
      %7339 = vmatpush1.bf16.msra.mxu0 %v6190
      %7340 = vmatprep.subr.bf16.mxu0 0
      %7341 = vmatpush1.bf16.msra.mxu0 %v6193
      %7342 = vmatprep.mubr.bf16.mxu0 %v7084
      %7343 = vmatmul.mubr.bf16.gmra.mrb[0].mxu0 %v7083
      %v7344 = vpop.f32.mrb[0].mxu0
      %v7345 = vadd.f32 0.0, %v7344
      %v7346 = vpop.f32.mrb[0].mxu0
      %v7347 = vpop.f32.mrb[0].mxu0
      %v7348 = vadd.f32 0.0, %v7347
      %v7349 = vpop.f32.mrb[0].mxu0
      %7350 = vdwg.mxu0
      %7351 = vmatprep.subr.bf16.mxu0 0
      %7352 = vmatpush1.bf16.msra.mxu0 %v6196
      %7353 = vmatprep.subr.bf16.mxu0 0
      %7354 = vmatpush1.bf16.msra.mxu0 %v6199
      %7355 = vmatprep.subr.bf16.mxu0 0
      %7356 = vmatpush1.bf16.msra.mxu0 %v6202
      %7357 = vmatprep.subr.bf16.mxu0 0
      %7358 = vmatpush1.bf16.msra.mxu0 %v6205
      %7359 = vmatprep.subr.bf16.mxu0 0
      %7360 = vmatpush1.bf16.msra.mxu0 %v6208
      %7361 = vmatprep.subr.bf16.mxu0 0
      %7362 = vmatpush1.bf16.msra.mxu0 %v6211
      %7363 = vmatprep.subr.bf16.mxu0 0
      %7364 = vmatpush1.bf16.msra.mxu0 %v6214
      %7365 = vmatprep.subr.bf16.mxu0 0
      %7366 = vmatpush1.bf16.msra.mxu0 %v6217
      %7367 = vmatprep.subr.bf16.mxu0 0
      %7368 = vmatpush1.bf16.msra.mxu0 %v6220
      %7369 = vmatprep.subr.bf16.mxu0 0
      %7370 = vmatpush1.bf16.msra.mxu0 %v6223
      %7371 = vmatprep.subr.bf16.mxu0 0
      %7372 = vmatpush1.bf16.msra.mxu0 %v6226
      %7373 = vmatprep.subr.bf16.mxu0 0
      %7374 = vmatpush1.bf16.msra.mxu0 %v6229
      %7375 = vmatprep.subr.bf16.mxu0 0
      %7376 = vmatpush1.bf16.msra.mxu0 %v6232
      %7377 = vmatprep.subr.bf16.mxu0 0
      %7378 = vmatpush1.bf16.msra.mxu0 %v6235
      %7379 = vmatprep.subr.bf16.mxu0 0
      %7380 = vmatpush1.bf16.msra.mxu0 %v6238
      %7381 = vmatprep.subr.bf16.mxu0 0
      %7382 = vmatpush1.bf16.msra.mxu0 %v6241
      %7383 = vmatprep.mubr.bf16.mxu0 %v7086
      %7384 = vmatmul.mubr.bf16.gmra.mrb[0].mxu0 %v7085
      %v7385 = vpop.f32.mrb[0].mxu0
      %v7386 = vadd.f32 %v7345, %v7385
      %v7387 = vpop.f32.mrb[0].mxu0
      %v7388 = vpop.f32.mrb[0].mxu0
      %v7389 = vadd.f32 %v7348, %v7388
      %v7390 = vpop.f32.mrb[0].mxu0
      %7391 = vdwg.mxu0
      %7392 = vmatprep.subr.bf16.mxu0 0
      %7393 = vmatpush1.bf16.msra.mxu0 %v6244
      %7394 = vmatprep.subr.bf16.mxu0 0
      %7395 = vmatpush1.bf16.msra.mxu0 %v6247
      %7396 = vmatprep.subr.bf16.mxu0 0
      %7397 = vmatpush1.bf16.msra.mxu0 %v6250
      %7398 = vmatprep.subr.bf16.mxu0 0
      %7399 = vmatpush1.bf16.msra.mxu0 %v6253
      %7400 = vmatprep.subr.bf16.mxu0 0
      %7401 = vmatpush1.bf16.msra.mxu0 %v6256
      %7402 = vmatprep.subr.bf16.mxu0 0
      %7403 = vmatpush1.bf16.msra.mxu0 %v6259
      %7404 = vmatprep.subr.bf16.mxu0 0
      %7405 = vmatpush1.bf16.msra.mxu0 %v6262
      %7406 = vmatprep.subr.bf16.mxu0 0
      %7407 = vmatpush1.bf16.msra.mxu0 %v6265
      %7408 = vmatprep.subr.bf16.mxu0 0
      %7409 = vmatpush1.bf16.msra.mxu0 %v6268
      %7410 = vmatprep.subr.bf16.mxu0 0
      %7411 = vmatpush1.bf16.msra.mxu0 %v6271
      %7412 = vmatprep.subr.bf16.mxu0 0
      %7413 = vmatpush1.bf16.msra.mxu0 %v6274
      %7414 = vmatprep.subr.bf16.mxu0 0
      %7415 = vmatpush1.bf16.msra.mxu0 %v6277
      %7416 = vmatprep.subr.bf16.mxu0 0
      %7417 = vmatpush1.bf16.msra.mxu0 %v6280
      %7418 = vmatprep.subr.bf16.mxu0 0
      %7419 = vmatpush1.bf16.msra.mxu0 %v6283
      %7420 = vmatprep.subr.bf16.mxu0 0
      %7421 = vmatpush1.bf16.msra.mxu0 %v6286
      %7422 = vmatprep.subr.bf16.mxu0 0
      %7423 = vmatpush1.bf16.msra.mxu0 %v6289
      %7424 = vmatprep.mubr.bf16.mxu0 %v7088
      %7425 = vmatmul.mubr.bf16.gmra.mrb[0].mxu0 %v7087
      %v7426 = vpop.f32.mrb[0].mxu0
      %v7427 = vadd.f32 %v7386, %v7426
      %v7428 = vpop.f32.mrb[0].mxu0
      %v7429 = vpop.f32.mrb[0].mxu0
      %v7430 = vadd.f32 %v7389, %v7429
      %v7431 = vpop.f32.mrb[0].mxu0
      %7432 = vdwg.mxu0
      %7433 = vmatprep.subr.bf16.mxu0 0
      %7434 = vmatpush1.bf16.msra.mxu0 %v6292
      %7435 = vmatprep.subr.bf16.mxu0 0
      %7436 = vmatpush1.bf16.msra.mxu0 %v6295
      %7437 = vmatprep.subr.bf16.mxu0 0
      %7438 = vmatpush1.bf16.msra.mxu0 %v6298
      %7439 = vmatprep.subr.bf16.mxu0 0
      %7440 = vmatpush1.bf16.msra.mxu0 %v6301
      %7441 = vmatprep.subr.bf16.mxu0 0
      %7442 = vmatpush1.bf16.msra.mxu0 %v6304
      %7443 = vmatprep.subr.bf16.mxu0 0
      %7444 = vmatpush1.bf16.msra.mxu0 %v6307
      %7445 = vmatprep.subr.bf16.mxu0 0
      %7446 = vmatpush1.bf16.msra.mxu0 %v6310
      %7447 = vmatprep.subr.bf16.mxu0 0
      %7448 = vmatpush1.bf16.msra.mxu0 %v6313
      %7449 = vmatprep.subr.bf16.mxu0 0
      %7450 = vmatpush1.bf16.msra.mxu0 %v6316
      %7451 = vmatprep.subr.bf16.mxu0 0
      %7452 = vmatpush1.bf16.msra.mxu0 %v6319
      %7453 = vmatprep.subr.bf16.mxu0 0
      %7454 = vmatpush1.bf16.msra.mxu0 %v6322
      %7455 = vmatprep.subr.bf16.mxu0 0
      %7456 = vmatpush1.bf16.msra.mxu0 %v6325
      %7457 = vmatprep.subr.bf16.mxu0 0
      %7458 = vmatpush1.bf16.msra.mxu0 %v6328
      %7459 = vmatprep.subr.bf16.mxu0 0
      %7460 = vmatpush1.bf16.msra.mxu0 %v6331
      %7461 = vmatprep.subr.bf16.mxu0 0
      %7462 = vmatpush1.bf16.msra.mxu0 %v6334
      %7463 = vmatprep.subr.bf16.mxu0 0
      %7464 = vmatpush1.bf16.msra.mxu0 %v6337
      %7465 = vmatprep.mubr.bf16.mxu0 %v7090
      %7466 = vmatmul.mubr.bf16.gmra.mrb[0].mxu0 %v7089
      %v7467 = vpop.f32.mrb[0].mxu0
      %v7468 = vadd.f32 %v7427, %v7467
      %v7469 = vpop.f32.mrb[0].mxu0
      %v7470 = vpop.f32.mrb[0].mxu0
      %v7471 = vadd.f32 %v7430, %v7470
      %v7472 = vpop.f32.mrb[0].mxu0
      %7473 = vdwg.mxu0
      %7474 = vmatprep.subr.bf16.mxu0 0
      %7475 = vmatpush1.bf16.msra.mxu0 %v6340
      %7476 = vmatprep.subr.bf16.mxu0 0
      %7477 = vmatpush1.bf16.msra.mxu0 %v6343
      %7478 = vmatprep.subr.bf16.mxu0 0
      %7479 = vmatpush1.bf16.msra.mxu0 %v6346
      %7480 = vmatprep.subr.bf16.mxu0 0
      %7481 = vmatpush1.bf16.msra.mxu0 %v6349
      %7482 = vmatprep.subr.bf16.mxu0 0
      %7483 = vmatpush1.bf16.msra.mxu0 0
      %7484 = vmatprep.subr.bf16.mxu0 0
      %7485 = vmatpush1.bf16.msra.mxu0 0
      %7486 = vmatprep.subr.bf16.mxu0 0
      %7487 = vmatpush1.bf16.msra.mxu0 0
      %7488 = vmatprep.subr.bf16.mxu0 0
      %7489 = vmatpush1.bf16.msra.mxu0 0
      %7490 = vmatprep.subr.bf16.mxu0 0
      %7491 = vmatpush1.bf16.msra.mxu0 0
      %7492 = vmatprep.subr.bf16.mxu0 0
      %7493 = vmatpush1.bf16.msra.mxu0 0
      %7494 = vmatprep.subr.bf16.mxu0 0
      %7495 = vmatpush1.bf16.msra.mxu0 0
      %7496 = vmatprep.subr.bf16.mxu0 0
      %7497 = vmatpush1.bf16.msra.mxu0 0
      %7498 = vmatprep.subr.bf16.mxu0 0
      %7499 = vmatpush1.bf16.msra.mxu0 0
      %7500 = vmatprep.subr.bf16.mxu0 0
      %7501 = vmatpush1.bf16.msra.mxu0 0
      %7502 = vmatprep.subr.bf16.mxu0 0
      %7503 = vmatpush1.bf16.msra.mxu0 0
      %7504 = vmatprep.subr.bf16.mxu0 0
      %7505 = vmatpush1.bf16.msra.mxu0 0
      %7506 = vmatprep.mubr.bf16.mxu0 0
      %7507 = vmatmul.mubr.bf16.gmra.mrb[0].mxu0 %v7093
      %v7508 = vpop.f32.mrb[0].mxu0
      %v7509 = vadd.f32 %v7468, %v7508
      %v7510 = vpop.f32.mrb[0].mxu0
      %v7511 = vpop.f32.mrb[0].mxu0
      %v7512 = vadd.f32 %v7471, %v7511
      %v7513 = vpop.f32.mrb[0].mxu0
      %7514 = vdwg.mxu0
      %v7515 = vld [vmem:[%s6] sm:$0xf]
      %v7516 = vld [vmem:[%s6 + $0x4] sm:$0xf]
      %v7517 = vld [vmem:[%s6 + $0x8] sm:$0xf]
      %v7518 = vld [vmem:[%s6 + $0xc] sm:$0xf]
      %v7519 = vpack.c.bf16 %v7306, %v7302
      %v7520 = vpack.c.bf16 %v7308, %v7304
      %v7521 = vpack.c.bf16 %v7512, %v7509
      %v7526 = vunpack.c.l.b16 %v7515
      %v7527 = vunpack.c.l.b16 %v7516
      %v7528 = vunpack.c.l.b16 %v7517
      %v7529 = vunpack.c.l.b16 %v7518
      %v7530 = vpack.c.b16 %v7527, %v7526
      %v7531 = vpack.c.b16 %v7529, %v7528
      %v7533 = vsel %vm2385, %v7530, 0
      %v7536 = vsel %vm2385, %v7531, 0
      %7538 = vmatprep.subr.bf16.mxu0 %v7520
      %7539 = vmatpush1.bf16.msra.mxu0 %v7519
      %7540 = vmatprep.subr.bf16.mxu0 0
      %7541 = vmatpush1.bf16.msra.mxu0 0
      %7542 = vmatprep.subr.bf16.mxu0 0
      %7543 = vmatpush1.bf16.msra.mxu0 0
      %7544 = vmatprep.subr.bf16.mxu0 0
      %7545 = vmatpush1.bf16.msra.mxu0 0
      %7546 = vmatprep.subr.bf16.mxu0 0
      %7547 = vmatpush1.bf16.msra.mxu0 0
      %7548 = vmatprep.subr.bf16.mxu0 0
      %7549 = vmatpush1.bf16.msra.mxu0 0
      %7550 = vmatprep.subr.bf16.mxu0 0
      %7551 = vmatpush1.bf16.msra.mxu0 0
      %7552 = vmatprep.subr.bf16.mxu0 0
      %7553 = vmatpush1.bf16.msra.mxu0 0
      %7554 = vmatprep.subr.bf16.mxu0 0
      %7555 = vmatpush1.bf16.msra.mxu0 0
      %7556 = vmatprep.subr.bf16.mxu0 0
      %7557 = vmatpush1.bf16.msra.mxu0 0
      %7558 = vmatprep.subr.bf16.mxu0 0
      %7559 = vmatpush1.bf16.msra.mxu0 0
      %7560 = vmatprep.subr.bf16.mxu0 0
      %7561 = vmatpush1.bf16.msra.mxu0 0
      %7562 = vmatprep.subr.bf16.mxu0 0
      %7563 = vmatpush1.bf16.msra.mxu0 0
      %7564 = vmatprep.subr.bf16.mxu0 0
      %7565 = vmatpush1.bf16.msra.mxu0 0
      %7566 = vmatprep.subr.bf16.mxu0 0
      %7567 = vmatpush1.bf16.msra.mxu0 0
      %7568 = vmatprep.subr.bf16.mxu0 0
      %7569 = vmatpush1.bf16.msra.mxu0 0
      %7570 = vmatprep.mubr.bf16.mxu0 0
      %7571 = vmatmul.mubr.bf16.gmra.mrb[0].mxu0 %v7533
      %v7572 = vpop.f32.mrb[0].mxu0
      %v7573 = vadd.f32 0.0, %v7572
      %v7574 = vpop.f32.mrb[0].mxu0
      %v7575 = vadd.f32 0.0, %v7574
      %v7576 = vpop.f32.mrb[0].mxu0
      %v7577 = vadd.f32 0.0, %v7576
      %v7578 = vpop.f32.mrb[0].mxu0
      %v7579 = vadd.f32 0.0, %v7578
      %7580 = vmatprep.mubr.bf16.mxu0 0
      %7581 = vmatmul.mubr.bf16.gmra.mrb[0].mxu0 %v7536
      %v7582 = vpop.f32.mrb[0].mxu0
      %v7583 = vadd.f32 0.0, %v7582
      %v7584 = vpop.f32.mrb[0].mxu0
      %v7585 = vadd.f32 0.0, %v7584
      %v7586 = vpop.f32.mrb[0].mxu0
      %v7587 = vadd.f32 0.0, %v7586
      %v7588 = vpop.f32.mrb[0].mxu0
      %v7589 = vadd.f32 0.0, %v7588
      %7590 = vdwg.mxu0
      %7591 = vmatprep.subr.bf16.mxu0 0
      %7592 = vmatpush1.bf16.msra.mxu0 %v7521
      %7593 = vmatprep.subr.bf16.mxu0 0
      %7594 = vmatpush1.bf16.msra.mxu0 0
      %7595 = vmatprep.subr.bf16.mxu0 0
      %7596 = vmatpush1.bf16.msra.mxu0 0
      %7597 = vmatprep.subr.bf16.mxu0 0
      %7598 = vmatpush1.bf16.msra.mxu0 0
      %7599 = vmatprep.subr.bf16.mxu0 0
      %7600 = vmatpush1.bf16.msra.mxu0 0
      %7601 = vmatprep.subr.bf16.mxu0 0
      %7602 = vmatpush1.bf16.msra.mxu0 0
      %7603 = vmatprep.subr.bf16.mxu0 0
      %7604 = vmatpush1.bf16.msra.mxu0 0
      %7605 = vmatprep.subr.bf16.mxu0 0
      %7606 = vmatpush1.bf16.msra.mxu0 0
      %7607 = vmatprep.subr.bf16.mxu0 0
      %7608 = vmatpush1.bf16.msra.mxu0 0
      %7609 = vmatprep.subr.bf16.mxu0 0
      %7610 = vmatpush1.bf16.msra.mxu0 0
      %7611 = vmatprep.subr.bf16.mxu0 0
      %7612 = vmatpush1.bf16.msra.mxu0 0
      %7613 = vmatprep.subr.bf16.mxu0 0
      %7614 = vmatpush1.bf16.msra.mxu0 0
      %7615 = vmatprep.subr.bf16.mxu0 0
      %7616 = vmatpush1.bf16.msra.mxu0 0
      %7617 = vmatprep.subr.bf16.mxu0 0
      %7618 = vmatpush1.bf16.msra.mxu0 0
      %7619 = vmatprep.subr.bf16.mxu0 0
      %7620 = vmatpush1.bf16.msra.mxu0 0
      %7621 = vmatprep.subr.bf16.mxu0 0
      %7622 = vmatpush1.bf16.msra.mxu0 0
      %7623 = vmatprep.mubr.bf16.mxu0 0
      %7624 = vmatmul.mubr.bf16.gmra.mrb[0].mxu0 %v7533
      %v7625 = vpop.f32.mrb[0].mxu0
      %v7626 = vadd.f32 0.0, %v7625
      %v7627 = vpop.f32.mrb[0].mxu0
      %v7628 = vpop.f32.mrb[0].mxu0
      %v7629 = vadd.f32 0.0, %v7628
      %v7630 = vpop.f32.mrb[0].mxu0
      %7631 = vmatprep.mubr.bf16.mxu0 0
      %7632 = vmatmul.mubr.bf16.gmra.mrb[0].mxu0 %v7536
      %v7633 = vpop.f32.mrb[0].mxu0
      %v7634 = vadd.f32 0.0, %v7633
      %v7635 = vpop.f32.mrb[0].mxu0
      %v7636 = vpop.f32.mrb[0].mxu0
      %v7637 = vadd.f32 0.0, %v7636
      %v7638 = vpop.f32.mrb[0].mxu0
      %7639 = vdwg.mxu0
      %v7640 = vld [vmem:[#allocation5] sm:$0xff]
      %v7641 = vld [vmem:[#allocation5 + $0x8] sm:$0xff]
      %v7642 = vld [vmem:[#allocation5 + $0x10] sm:$0xff]
      %v7643 = vld [vmem:[#allocation5 + $0x18] sm:$0xff]
      %v7644 = vld [vmem:[#allocation5 + $0x20] sm:$0xff]
      %v7645 = vld [vmem:[#allocation5 + $0x28] sm:$0xff]
      %v7646 = vld [vmem:[#allocation5 + $0x30] sm:$0xff]
      %v7647 = vld [vmem:[#allocation5 + $0x38] sm:$0xff]
      %v7648 = vld [vmem:[#allocation5 + $0x40] sm:$0xff]
      %v7649 = vld [vmem:[#allocation5 + $0x48] sm:$0xff]
      %v7650 = vld [vmem:[#allocation5 + $0x50] sm:$0xff]
      %v7651 = vld [vmem:[#allocation5 + $0x58] sm:$0xff]
      %7664 = vrot.lane.b32.xlu0 %v7640, 127
      %v7665 = vpop.permute.xlu0 %7664
      %7666 = vrot.lane.b32.xlu0 %v7641, 127
      %v7667 = vpop.permute.xlu0 %7666
      %7668 = vrot.lane.b32.xlu0 %v7642, 127
      %v7669 = vpop.permute.xlu0 %7668
      %7670 = vrot.lane.b32.xlu0 %v7643, 127
      %v7671 = vpop.permute.xlu0 %7670
      %7672 = vrot.lane.b32.xlu0 %v7644, 127
      %v7673 = vpop.permute.xlu0 %7672
      %7674 = vrot.lane.b32.xlu0 %v7645, 127
      %v7675 = vpop.permute.xlu0 %7674
      %7676 = vrot.lane.b32.xlu0 %v7646, 127
      %v7677 = vpop.permute.xlu0 %7676
      %7678 = vrot.lane.b32.xlu0 %v7647, 127
      %v7679 = vpop.permute.xlu0 %7678
      %7680 = vrot.lane.b32.xlu0 %v7648, 127
      %v7681 = vpop.permute.xlu0 %7680
      %7682 = vrot.lane.b32.xlu0 %v7649, 127
      %v7683 = vpop.permute.xlu0 %7682
      %7684 = vrot.lane.b32.xlu0 %v7650, 127
      %v7685 = vpop.permute.xlu0 %7684
      %7686 = vrot.lane.b32.xlu0 %v7651, 127
      %v7687 = vpop.permute.xlu0 %7686
      %v7688 = vsel %vm848, %v7665, %v7667
      %v7689 = vsel %vm848, %v7667, %v7669
      %v7690 = vsel %vm848, %v7671, %v7673
      %v7691 = vsel %vm848, %v7673, %v7675
      %v7692 = vsel %vm848, %v7677, %v7679
      %v7693 = vsel %vm848, %v7679, %v7681
      %v7694 = vsel %vm848, %v7683, %v7685
      %v7695 = vsel %vm848, %v7685, %v7687
      %7708 = vrot.lane.b32.xlu0 %v7640, 126
      %v7709 = vpop.permute.xlu0 %7708
      %7710 = vrot.lane.b32.xlu0 %v7641, 126
      %v7711 = vpop.permute.xlu0 %7710
      %7712 = vrot.lane.b32.xlu0 %v7642, 126
      %v7713 = vpop.permute.xlu0 %7712
      %7714 = vrot.lane.b32.xlu0 %v7643, 126
      %v7715 = vpop.permute.xlu0 %7714
      %7716 = vrot.lane.b32.xlu0 %v7644, 126
      %v7717 = vpop.permute.xlu0 %7716
      %7718 = vrot.lane.b32.xlu0 %v7645, 126
      %v7719 = vpop.permute.xlu0 %7718
      %7720 = vrot.lane.b32.xlu0 %v7646, 126
      %v7721 = vpop.permute.xlu0 %7720
      %7722 = vrot.lane.b32.xlu0 %v7647, 126
      %v7723 = vpop.permute.xlu0 %7722
      %7724 = vrot.lane.b32.xlu0 %v7648, 126
      %v7725 = vpop.permute.xlu0 %7724
      %7726 = vrot.lane.b32.xlu0 %v7649, 126
      %v7727 = vpop.permute.xlu0 %7726
      %7728 = vrot.lane.b32.xlu0 %v7650, 126
      %v7729 = vpop.permute.xlu0 %7728
      %7730 = vrot.lane.b32.xlu0 %v7651, 126
      %v7731 = vpop.permute.xlu0 %7730
      %v7732 = vsel %vm884, %v7709, %v7711
      %v7733 = vsel %vm884, %v7711, %v7713
      %v7734 = vsel %vm884, %v7715, %v7717
      %v7735 = vsel %vm884, %v7717, %v7719
      %v7736 = vsel %vm884, %v7721, %v7723
      %v7737 = vsel %vm884, %v7723, %v7725
      %v7738 = vsel %vm884, %v7727, %v7729
      %v7739 = vsel %vm884, %v7729, %v7731
      %7752 = vrot.lane.b32.xlu0 %v7640, 110
      %v7753 = vpop.permute.xlu0 %7752
      %7754 = vrot.lane.b32.xlu0 %v7641, 110
      %v7755 = vpop.permute.xlu0 %7754
      %7756 = vrot.lane.b32.xlu0 %v7642, 110
      %v7757 = vpop.permute.xlu0 %7756
      %7758 = vrot.lane.b32.xlu0 %v7643, 110
      %v7759 = vpop.permute.xlu0 %7758
      %7760 = vrot.lane.b32.xlu0 %v7644, 110
      %v7761 = vpop.permute.xlu0 %7760
      %7762 = vrot.lane.b32.xlu0 %v7645, 110
      %v7763 = vpop.permute.xlu0 %7762
      %7764 = vrot.lane.b32.xlu0 %v7646, 110
      %v7765 = vpop.permute.xlu0 %7764
      %7766 = vrot.lane.b32.xlu0 %v7647, 110
      %v7767 = vpop.permute.xlu0 %7766
      %7768 = vrot.lane.b32.xlu0 %v7648, 110
      %v7769 = vpop.permute.xlu0 %7768
      %7770 = vrot.lane.b32.xlu0 %v7649, 110
      %v7771 = vpop.permute.xlu0 %7770
      %7772 = vrot.lane.b32.xlu0 %v7650, 110
      %v7773 = vpop.permute.xlu0 %7772
      %7774 = vrot.lane.b32.xlu0 %v7651, 110
      %v7775 = vpop.permute.xlu0 %7774
      %vm7776 = vcmask 900096
      %v7777 = vsel %vm7776, %v7753, %v7755
      %v7778 = vsel %vm7776, %v7755, %v7757
      %v7779 = vsel %vm7776, %v7759, %v7761
      %v7780 = vsel %vm7776, %v7761, %v7763
      %v7781 = vsel %vm7776, %v7765, %v7767
      %v7782 = vsel %vm7776, %v7767, %v7769
      %v7783 = vsel %vm7776, %v7771, %v7773
      %v7784 = vsel %vm7776, %v7773, %v7775
      %7797 = vrot.lane.b32.xlu0 %v7640, 109
      %v7798 = vpop.permute.xlu0 %7797
      %7799 = vrot.lane.b32.xlu0 %v7641, 109
      %v7800 = vpop.permute.xlu0 %7799
      %7801 = vrot.lane.b32.xlu0 %v7642, 109
      %v7802 = vpop.permute.xlu0 %7801
      %7803 = vrot.lane.b32.xlu0 %v7643, 109
      %v7804 = vpop.permute.xlu0 %7803
      %7805 = vrot.lane.b32.xlu0 %v7644, 109
      %v7806 = vpop.permute.xlu0 %7805
      %7807 = vrot.lane.b32.xlu0 %v7645, 109
      %v7808 = vpop.permute.xlu0 %7807
      %7809 = vrot.lane.b32.xlu0 %v7646, 109
      %v7810 = vpop.permute.xlu0 %7809
      %7811 = vrot.lane.b32.xlu0 %v7647, 109
      %v7812 = vpop.permute.xlu0 %7811
      %7813 = vrot.lane.b32.xlu0 %v7648, 109
      %v7814 = vpop.permute.xlu0 %7813
      %7815 = vrot.lane.b32.xlu0 %v7649, 109
      %v7816 = vpop.permute.xlu0 %7815
      %7817 = vrot.lane.b32.xlu0 %v7650, 109
      %v7818 = vpop.permute.xlu0 %7817
      %7819 = vrot.lane.b32.xlu0 %v7651, 109
      %v7820 = vpop.permute.xlu0 %7819
      %vm7821 = vcmask 891904
      %v7822 = vsel %vm7821, %v7798, %v7800
      %v7823 = vsel %vm7821, %v7800, %v7802
      %v7824 = vsel %vm7821, %v7804, %v7806
      %v7825 = vsel %vm7821, %v7806, %v7808
      %v7826 = vsel %vm7821, %v7810, %v7812
      %v7827 = vsel %vm7821, %v7812, %v7814
      %v7828 = vsel %vm7821, %v7816, %v7818
      %v7829 = vsel %vm7821, %v7818, %v7820
      %7842 = vrot.lane.b32.xlu0 %v7640, 108
      %v7843 = vpop.permute.xlu0 %7842
      %7844 = vrot.lane.b32.xlu0 %v7641, 108
      %v7845 = vpop.permute.xlu0 %7844
      %7846 = vrot.lane.b32.xlu0 %v7642, 108
      %v7847 = vpop.permute.xlu0 %7846
      %7848 = vrot.lane.b32.xlu0 %v7643, 108
      %v7849 = vpop.permute.xlu0 %7848
      %7850 = vrot.lane.b32.xlu0 %v7644, 108
      %v7851 = vpop.permute.xlu0 %7850
      %7852 = vrot.lane.b32.xlu0 %v7645, 108
      %v7853 = vpop.permute.xlu0 %7852
      %7854 = vrot.lane.b32.xlu0 %v7646, 108
      %v7855 = vpop.permute.xlu0 %7854
      %7856 = vrot.lane.b32.xlu0 %v7647, 108
      %v7857 = vpop.permute.xlu0 %7856
      %7858 = vrot.lane.b32.xlu0 %v7648, 108
      %v7859 = vpop.permute.xlu0 %7858
      %7860 = vrot.lane.b32.xlu0 %v7649, 108
      %v7861 = vpop.permute.xlu0 %7860
      %7862 = vrot.lane.b32.xlu0 %v7650, 108
      %v7863 = vpop.permute.xlu0 %7862
      %7864 = vrot.lane.b32.xlu0 %v7651, 108
      %v7865 = vpop.permute.xlu0 %7864
      %vm7866 = vcmask 883712
      %v7867 = vsel %vm7866, %v7843, %v7845
      %v7868 = vsel %vm7866, %v7845, %v7847
      %v7869 = vsel %vm7866, %v7849, %v7851
      %v7870 = vsel %vm7866, %v7851, %v7853
      %v7871 = vsel %vm7866, %v7855, %v7857
      %v7872 = vsel %vm7866, %v7857, %v7859
      %v7873 = vsel %vm7866, %v7861, %v7863
      %v7874 = vsel %vm7866, %v7863, %v7865
      %7887 = vrot.lane.b32.xlu0 %v7640, 92
      %v7888 = vpop.permute.xlu0 %7887
      %7889 = vrot.lane.b32.xlu0 %v7641, 92
      %v7890 = vpop.permute.xlu0 %7889
      %7891 = vrot.lane.b32.xlu0 %v7642, 92
      %v7892 = vpop.permute.xlu0 %7891
      %7893 = vrot.lane.b32.xlu0 %v7643, 92
      %v7894 = vpop.permute.xlu0 %7893
      %7895 = vrot.lane.b32.xlu0 %v7644, 92
      %v7896 = vpop.permute.xlu0 %7895
      %7897 = vrot.lane.b32.xlu0 %v7645, 92
      %v7898 = vpop.permute.xlu0 %7897
      %7899 = vrot.lane.b32.xlu0 %v7646, 92
      %v7900 = vpop.permute.xlu0 %7899
      %7901 = vrot.lane.b32.xlu0 %v7647, 92
      %v7902 = vpop.permute.xlu0 %7901
      %7903 = vrot.lane.b32.xlu0 %v7648, 92
      %v7904 = vpop.permute.xlu0 %7903
      %7905 = vrot.lane.b32.xlu0 %v7649, 92
      %v7906 = vpop.permute.xlu0 %7905
      %7907 = vrot.lane.b32.xlu0 %v7650, 92
      %v7908 = vpop.permute.xlu0 %7907
      %7909 = vrot.lane.b32.xlu0 %v7651, 92
      %v7910 = vpop.permute.xlu0 %7909
      %v7911 = vsel %vm992, %v7888, %v7890
      %v7912 = vsel %vm992, %v7890, %v7892
      %v7913 = vsel %vm992, %v7894, %v7896
      %v7914 = vsel %vm992, %v7896, %v7898
      %v7915 = vsel %vm992, %v7900, %v7902
      %v7916 = vsel %vm992, %v7902, %v7904
      %v7917 = vsel %vm992, %v7906, %v7908
      %v7918 = vsel %vm992, %v7908, %v7910
      %7931 = vrot.lane.b32.xlu0 %v7640, 91
      %v7932 = vpop.permute.xlu0 %7931
      %7933 = vrot.lane.b32.xlu0 %v7641, 91
      %v7934 = vpop.permute.xlu0 %7933
      %7935 = vrot.lane.b32.xlu0 %v7642, 91
      %v7936 = vpop.permute.xlu0 %7935
      %7937 = vrot.lane.b32.xlu0 %v7643, 91
      %v7938 = vpop.permute.xlu0 %7937
      %7939 = vrot.lane.b32.xlu0 %v7644, 91
      %v7940 = vpop.permute.xlu0 %7939
      %7941 = vrot.lane.b32.xlu0 %v7645, 91
      %v7942 = vpop.permute.xlu0 %7941
      %7943 = vrot.lane.b32.xlu0 %v7646, 91
      %v7944 = vpop.permute.xlu0 %7943
      %7945 = vrot.lane.b32.xlu0 %v7647, 91
      %v7946 = vpop.permute.xlu0 %7945
      %7947 = vrot.lane.b32.xlu0 %v7648, 91
      %v7948 = vpop.permute.xlu0 %7947
      %7949 = vrot.lane.b32.xlu0 %v7649, 91
      %v7950 = vpop.permute.xlu0 %7949
      %7951 = vrot.lane.b32.xlu0 %v7650, 91
      %v7952 = vpop.permute.xlu0 %7951
      %7953 = vrot.lane.b32.xlu0 %v7651, 91
      %v7954 = vpop.permute.xlu0 %7953
      %vm7955 = vcmask 744448
      %v7956 = vsel %vm7955, %v7932, %v7934
      %v7957 = vsel %vm7955, %v7934, %v7936
      %v7958 = vsel %vm7955, %v7938, %v7940
      %v7959 = vsel %vm7955, %v7940, %v7942
      %v7960 = vsel %vm7955, %v7944, %v7946
      %v7961 = vsel %vm7955, %v7946, %v7948
      %v7962 = vsel %vm7955, %v7950, %v7952
      %v7963 = vsel %vm7955, %v7952, %v7954
      %7976 = vrot.lane.b32.xlu0 %v7640, 90
      %v7977 = vpop.permute.xlu0 %7976
      %7978 = vrot.lane.b32.xlu0 %v7641, 90
      %v7979 = vpop.permute.xlu0 %7978
      %7980 = vrot.lane.b32.xlu0 %v7642, 90
      %v7981 = vpop.permute.xlu0 %7980
      %7982 = vrot.lane.b32.xlu0 %v7643, 90
      %v7983 = vpop.permute.xlu0 %7982
      %7984 = vrot.lane.b32.xlu0 %v7644, 90
      %v7985 = vpop.permute.xlu0 %7984
      %7986 = vrot.lane.b32.xlu0 %v7645, 90
      %v7987 = vpop.permute.xlu0 %7986
      %7988 = vrot.lane.b32.xlu0 %v7646, 90
      %v7989 = vpop.permute.xlu0 %7988
      %7990 = vrot.lane.b32.xlu0 %v7647, 90
      %v7991 = vpop.permute.xlu0 %7990
      %7992 = vrot.lane.b32.xlu0 %v7648, 90
      %v7993 = vpop.permute.xlu0 %7992
      %7994 = vrot.lane.b32.xlu0 %v7649, 90
      %v7995 = vpop.permute.xlu0 %7994
      %7996 = vrot.lane.b32.xlu0 %v7650, 90
      %v7997 = vpop.permute.xlu0 %7996
      %7998 = vrot.lane.b32.xlu0 %v7651, 90
      %v7999 = vpop.permute.xlu0 %7998
      %vm8000 = vcmask 736256
      %v8001 = vsel %vm8000, %v7977, %v7979
      %v8002 = vsel %vm8000, %v7979, %v7981
      %v8003 = vsel %vm8000, %v7983, %v7985
      %v8004 = vsel %vm8000, %v7985, %v7987
      %v8005 = vsel %vm8000, %v7989, %v7991
      %v8006 = vsel %vm8000, %v7991, %v7993
      %v8007 = vsel %vm8000, %v7995, %v7997
      %v8008 = vsel %vm8000, %v7997, %v7999
      %v8021 = vpack.c.bf16 %v7643, %v7640
      %v8022 = vpack.c.bf16 %v7644, %v7641
      %v8023 = vpack.c.bf16 %v7645, %v7642
      %v8024 = vpack.c.bf16 %v7649, %v7646
      %v8025 = vpack.c.bf16 %v7650, %v7647
      %v8026 = vpack.c.bf16 %v7651, %v7648
      %v8027 = vpack.c.bf16 %v7690, %v7688
      %v8028 = vpack.c.bf16 %v7691, %v7689
      %v8029 = vpack.c.bf16 %v7675, %v7669
      %v8030 = vpack.c.bf16 %v7694, %v7692
      %v8031 = vpack.c.bf16 %v7695, %v7693
      %v8032 = vpack.c.bf16 %v7687, %v7681
      %v8033 = vpack.c.bf16 %v7734, %v7732
      %v8034 = vpack.c.bf16 %v7735, %v7733
      %v8035 = vpack.c.bf16 %v7719, %v7713
      %v8036 = vpack.c.bf16 %v7738, %v7736
      %v8037 = vpack.c.bf16 %v7739, %v7737
      %v8038 = vpack.c.bf16 %v7731, %v7725
      %v8039 = vpack.c.bf16 %v7779, %v7777
      %v8040 = vpack.c.bf16 %v7780, %v7778
      %v8041 = vpack.c.bf16 %v7763, %v7757
      %v8042 = vpack.c.bf16 %v7783, %v7781
      %v8043 = vpack.c.bf16 %v7784, %v7782
      %v8044 = vpack.c.bf16 %v7775, %v7769
      %v8045 = vpack.c.bf16 %v7824, %v7822
      %v8046 = vpack.c.bf16 %v7825, %v7823
      %v8047 = vpack.c.bf16 %v7808, %v7802
      %v8048 = vpack.c.bf16 %v7828, %v7826
      %v8049 = vpack.c.bf16 %v7829, %v7827
      %v8050 = vpack.c.bf16 %v7820, %v7814
      %v8051 = vpack.c.bf16 %v7869, %v7867
      %v8052 = vpack.c.bf16 %v7870, %v7868
      %v8053 = vpack.c.bf16 %v7853, %v7847
      %v8054 = vpack.c.bf16 %v7873, %v7871
      %v8055 = vpack.c.bf16 %v7874, %v7872
      %v8056 = vpack.c.bf16 %v7865, %v7859
      %v8057 = vpack.c.bf16 %v7913, %v7911
      %v8058 = vpack.c.bf16 %v7914, %v7912
      %v8059 = vpack.c.bf16 %v7898, %v7892
      %v8060 = vpack.c.bf16 %v7917, %v7915
      %v8061 = vpack.c.bf16 %v7918, %v7916
      %v8062 = vpack.c.bf16 %v7910, %v7904
      %v8063 = vpack.c.bf16 %v7958, %v7956
      %v8064 = vpack.c.bf16 %v7959, %v7957
      %v8065 = vpack.c.bf16 %v7942, %v7936
      %v8066 = vpack.c.bf16 %v7962, %v7960
      %v8067 = vpack.c.bf16 %v7963, %v7961
      %v8068 = vpack.c.bf16 %v7954, %v7948
      %v8069 = vpack.c.bf16 %v8003, %v8001
      %v8070 = vpack.c.bf16 %v8004, %v8002
      %v8071 = vpack.c.bf16 %v7987, %v7981
      %v8072 = vpack.c.bf16 %v8007, %v8005
      %v8073 = vpack.c.bf16 %v8008, %v8006
      %v8074 = vpack.c.bf16 %v7999, %v7993
      %v8075 = vld [vmem:[%s5] sm:$0xff]
      %v8076 = vld [vmem:[%s5 + $0x8] sm:$0xf]
      %v8077 = vld [vmem:[%s5 + $0xc] sm:$0xff]
      %v8078 = vld [vmem:[%s5 + $0x14] sm:$0xf]
      %v8079 = vld [vmem:[%s5 + $0x18] sm:$0xff]
      %v8080 = vld [vmem:[%s5 + $0x20] sm:$0xf]
      %v8081 = vld [vmem:[%s5 + $0x24] sm:$0xff]
      %v8082 = vld [vmem:[%s5 + $0x2c] sm:$0xf]
      %v8091 = vunpack.c.l.b16 %v8075
      %v8092 = vunpack.c.h.b16 %v8075
      %v8093 = vunpack.c.l.b16 %v8076
      %v8094 = vunpack.c.l.b16 %v8077
      %v8095 = vunpack.c.h.b16 %v8077
      %v8096 = vunpack.c.l.b16 %v8078
      %v8097 = vunpack.c.l.b16 %v8079
      %v8098 = vunpack.c.h.b16 %v8079
      %v8099 = vunpack.c.l.b16 %v8080
      %v8100 = vunpack.c.l.b16 %v8081
      %v8101 = vunpack.c.h.b16 %v8081
      %v8102 = vunpack.c.l.b16 %v8082
      %v8103 = vpack.c.b16 %v8094, %v8091
      %v8104 = vpack.c.b16 %v8095, %v8092
      %v8105 = vpack.c.b16 %v8096, %v8093
      %v8106 = vpack.c.b16 %v8100, %v8097
      %v8107 = vpack.c.b16 %v8101, %v8098
      %v8108 = vpack.c.b16 %v8102, %v8099
      %8125 = vrot.lane.b32.xlu0 %v7573, 109
      %v8126 = vpop.permute.xlu0 %8125
      %8127 = vrot.lane.b32.xlu0 %v7575, 109
      %v8128 = vpop.permute.xlu0 %8127
      %8129 = vrot.lane.b32.xlu0 %v7626, 109
      %v8130 = vpop.permute.xlu0 %8129
      %8131 = vrot.lane.b32.xlu0 %v7577, 109
      %v8132 = vpop.permute.xlu0 %8131
      %8133 = vrot.lane.b32.xlu0 %v7579, 109
      %v8134 = vpop.permute.xlu0 %8133
      %8135 = vrot.lane.b32.xlu0 %v7629, 109
      %v8136 = vpop.permute.xlu0 %8135
      %8137 = vrot.lane.b32.xlu0 %v7583, 109
      %v8138 = vpop.permute.xlu0 %8137
      %8139 = vrot.lane.b32.xlu0 %v7585, 109
      %v8140 = vpop.permute.xlu0 %8139
      %8141 = vrot.lane.b32.xlu0 %v7634, 109
      %v8142 = vpop.permute.xlu0 %8141
      %8143 = vrot.lane.b32.xlu0 %v7587, 109
      %v8144 = vpop.permute.xlu0 %8143
      %8145 = vrot.lane.b32.xlu0 %v7589, 109
      %v8146 = vpop.permute.xlu0 %8145
      %8147 = vrot.lane.b32.xlu0 %v7637, 109
      %v8148 = vpop.permute.xlu0 %8147
      %v8149 = vsel %vm7821, %v8126, %v8128
      %v8150 = vsel %vm7821, %v8128, %v8130
      %v8151 = vsel %vm7821, %v8132, %v8134
      %v8152 = vsel %vm7821, %v8134, %v8136
      %v8153 = vsel %vm7821, %v8138, %v8140
      %v8154 = vsel %vm7821, %v8140, %v8142
      %v8155 = vsel %vm7821, %v8144, %v8146
      %v8156 = vsel %vm7821, %v8146, %v8148
      %vm8169 = vcmask 261120
      %v8171 = vsel %vm8169, %v8105, 0
      %v8174 = vsel %vm8169, %v8108, 0
      %8176 = vmatprep.subr.bf16.mxu0 %v8022
      %8177 = vmatpush1.bf16.msra.mxu0 %v8021
      %8178 = vmatprep.subr.bf16.mxu0 %v8025
      %8179 = vmatpush1.bf16.msra.mxu0 %v8024
      %8180 = vmatprep.subr.bf16.mxu0 %v8028
      %8181 = vmatpush1.bf16.msra.mxu0 %v8027
      %8182 = vmatprep.subr.bf16.mxu0 %v8031
      %8183 = vmatpush1.bf16.msra.mxu0 %v8030
      %8184 = vmatprep.subr.bf16.mxu0 %v8034
      %8185 = vmatpush1.bf16.msra.mxu0 %v8033
      %8186 = vmatprep.subr.bf16.mxu0 %v8037
      %8187 = vmatpush1.bf16.msra.mxu0 %v8036
      %8188 = vmatprep.subr.bf16.mxu0 %v8040
      %8189 = vmatpush1.bf16.msra.mxu0 %v8039
      %8190 = vmatprep.subr.bf16.mxu0 %v8043
      %8191 = vmatpush1.bf16.msra.mxu0 %v8042
      %8192 = vmatprep.subr.bf16.mxu0 %v8046
      %8193 = vmatpush1.bf16.msra.mxu0 %v8045
      %8194 = vmatprep.subr.bf16.mxu0 %v8049
      %8195 = vmatpush1.bf16.msra.mxu0 %v8048
      %8196 = vmatprep.subr.bf16.mxu0 %v8052
      %8197 = vmatpush1.bf16.msra.mxu0 %v8051
      %8198 = vmatprep.subr.bf16.mxu0 %v8055
      %8199 = vmatpush1.bf16.msra.mxu0 %v8054
      %8200 = vmatprep.subr.bf16.mxu0 %v8058
      %8201 = vmatpush1.bf16.msra.mxu0 %v8057
      %8202 = vmatprep.subr.bf16.mxu0 %v8061
      %8203 = vmatpush1.bf16.msra.mxu0 %v8060
      %8204 = vmatprep.subr.bf16.mxu0 %v8064
      %8205 = vmatpush1.bf16.msra.mxu0 %v8063
      %8206 = vmatprep.subr.bf16.mxu0 %v8067
      %8207 = vmatpush1.bf16.msra.mxu0 %v8066
      %8208 = vmatprep.mubr.bf16.mxu0 %v8104
      %8209 = vmatmul.mubr.bf16.gmra.mrb[0].mxu0 %v8103
      %v8210 = vpop.f32.mrb[0].mxu0
      %v8211 = vadd.f32 %v8149, %v8210
      %v8212 = vpop.f32.mrb[0].mxu0
      %v8213 = vadd.f32 %v8150, %v8212
      %v8214 = vpop.f32.mrb[0].mxu0
      %v8215 = vadd.f32 %v8151, %v8214
      %v8216 = vpop.f32.mrb[0].mxu0
      %v8217 = vadd.f32 %v8152, %v8216
      %8218 = vmatprep.mubr.bf16.mxu0 %v8107
      %8219 = vmatmul.mubr.bf16.gmra.mrb[0].mxu0 %v8106
      %v8220 = vpop.f32.mrb[0].mxu0
      %v8221 = vadd.f32 %v8153, %v8220
      %v8222 = vpop.f32.mrb[0].mxu0
      %v8223 = vadd.f32 %v8154, %v8222
      %v8224 = vpop.f32.mrb[0].mxu0
      %v8225 = vadd.f32 %v8155, %v8224
      %v8226 = vpop.f32.mrb[0].mxu0
      %v8227 = vadd.f32 %v8156, %v8226
      %8228 = vdwg.mxu0
      %8229 = vmatprep.subr.bf16.mxu0 %v8070
      %8230 = vmatpush1.bf16.msra.mxu0 %v8069
      %8231 = vmatprep.subr.bf16.mxu0 %v8073
      %8232 = vmatpush1.bf16.msra.mxu0 %v8072
      %8233 = vmatprep.subr.bf16.mxu0 0
      %8234 = vmatpush1.bf16.msra.mxu0 0
      %8235 = vmatprep.subr.bf16.mxu0 0
      %8236 = vmatpush1.bf16.msra.mxu0 0
      %8237 = vmatprep.subr.bf16.mxu0 0
      %8238 = vmatpush1.bf16.msra.mxu0 0
      %8239 = vmatprep.subr.bf16.mxu0 0
      %8240 = vmatpush1.bf16.msra.mxu0 0
      %8241 = vmatprep.subr.bf16.mxu0 0
      %8242 = vmatpush1.bf16.msra.mxu0 0
      %8243 = vmatprep.subr.bf16.mxu0 0
      %8244 = vmatpush1.bf16.msra.mxu0 0
      %8245 = vmatprep.subr.bf16.mxu0 0
      %8246 = vmatpush1.bf16.msra.mxu0 0
      %8247 = vmatprep.subr.bf16.mxu0 0
      %8248 = vmatpush1.bf16.msra.mxu0 0
      %8249 = vmatprep.subr.bf16.mxu0 0
      %8250 = vmatpush1.bf16.msra.mxu0 0
      %8251 = vmatprep.subr.bf16.mxu0 0
      %8252 = vmatpush1.bf16.msra.mxu0 0
      %8253 = vmatprep.subr.bf16.mxu0 0
      %8254 = vmatpush1.bf16.msra.mxu0 0
      %8255 = vmatprep.subr.bf16.mxu0 0
      %8256 = vmatpush1.bf16.msra.mxu0 0
      %8257 = vmatprep.subr.bf16.mxu0 0
      %8258 = vmatpush1.bf16.msra.mxu0 0
      %8259 = vmatprep.subr.bf16.mxu0 0
      %8260 = vmatpush1.bf16.msra.mxu0 0
      %8261 = vmatprep.mubr.bf16.mxu0 0
      %8262 = vmatmul.mubr.bf16.gmra.mrb[0].mxu0 %v8171
      %v8263 = vpop.f32.mrb[0].mxu0
      %v8264 = vadd.f32 %v8211, %v8263
      %v8265 = vpop.f32.mrb[0].mxu0
      %v8266 = vadd.f32 %v8213, %v8265
      %v8267 = vpop.f32.mrb[0].mxu0
      %v8268 = vadd.f32 %v8215, %v8267
      %v8269 = vpop.f32.mrb[0].mxu0
      %v8270 = vadd.f32 %v8217, %v8269
      %8271 = vmatprep.mubr.bf16.mxu0 0
      %8272 = vmatmul.mubr.bf16.gmra.mrb[0].mxu0 %v8174
      %v8273 = vpop.f32.mrb[0].mxu0
      %v8274 = vadd.f32 %v8221, %v8273
      %v8275 = vpop.f32.mrb[0].mxu0
      %v8276 = vadd.f32 %v8223, %v8275
      %v8277 = vpop.f32.mrb[0].mxu0
      %v8278 = vadd.f32 %v8225, %v8277
      %v8279 = vpop.f32.mrb[0].mxu0
      %v8280 = vadd.f32 %v8227, %v8279
      %8281 = vdwg.mxu0
      %8282 = vmatprep.subr.bf16.mxu0 0
      %8283 = vmatpush1.bf16.msra.mxu0 %v8023
      %8284 = vmatprep.subr.bf16.mxu0 0
      %8285 = vmatpush1.bf16.msra.mxu0 %v8026
      %8286 = vmatprep.subr.bf16.mxu0 0
      %8287 = vmatpush1.bf16.msra.mxu0 %v8029
      %8288 = vmatprep.subr.bf16.mxu0 0
      %8289 = vmatpush1.bf16.msra.mxu0 %v8032
      %8290 = vmatprep.subr.bf16.mxu0 0
      %8291 = vmatpush1.bf16.msra.mxu0 %v8035
      %8292 = vmatprep.subr.bf16.mxu0 0
      %8293 = vmatpush1.bf16.msra.mxu0 %v8038
      %8294 = vmatprep.subr.bf16.mxu0 0
      %8295 = vmatpush1.bf16.msra.mxu0 %v8041
      %8296 = vmatprep.subr.bf16.mxu0 0
      %8297 = vmatpush1.bf16.msra.mxu0 %v8044
      %8298 = vmatprep.subr.bf16.mxu0 0
      %8299 = vmatpush1.bf16.msra.mxu0 %v8047
      %8300 = vmatprep.subr.bf16.mxu0 0
      %8301 = vmatpush1.bf16.msra.mxu0 %v8050
      %8302 = vmatprep.subr.bf16.mxu0 0
      %8303 = vmatpush1.bf16.msra.mxu0 %v8053
      %8304 = vmatprep.subr.bf16.mxu0 0
      %8305 = vmatpush1.bf16.msra.mxu0 %v8056
      %8306 = vmatprep.subr.bf16.mxu0 0
      %8307 = vmatpush1.bf16.msra.mxu0 %v8059
      %8308 = vmatprep.subr.bf16.mxu0 0
      %8309 = vmatpush1.bf16.msra.mxu0 %v8062
      %8310 = vmatprep.subr.bf16.mxu0 0
      %8311 = vmatpush1.bf16.msra.mxu0 %v8065
      %8312 = vmatprep.subr.bf16.mxu0 0
      %8313 = vmatpush1.bf16.msra.mxu0 %v8068
      %8314 = vmatprep.mubr.bf16.mxu0 %v8104
      %8315 = vmatmul.mubr.bf16.gmra.mrb[0].mxu0 %v8103
      %v8316 = vpop.f32.mrb[0].mxu0
      %v8317 = vadd.f32 %v8130, %v8316
      %v8318 = vpop.f32.mrb[0].mxu0
      %v8319 = vpop.f32.mrb[0].mxu0
      %v8320 = vadd.f32 %v8136, %v8319
      %v8321 = vpop.f32.mrb[0].mxu0
      %8322 = vmatprep.mubr.bf16.mxu0 %v8107
      %8323 = vmatmul.mubr.bf16.gmra.mrb[0].mxu0 %v8106
      %v8324 = vpop.f32.mrb[0].mxu0
      %v8325 = vadd.f32 %v8142, %v8324
      %v8326 = vpop.f32.mrb[0].mxu0
      %v8327 = vpop.f32.mrb[0].mxu0
      %v8328 = vadd.f32 %v8148, %v8327
      %v8329 = vpop.f32.mrb[0].mxu0
      %8330 = vdwg.mxu0
      %8331 = vmatprep.subr.bf16.mxu0 0
      %8332 = vmatpush1.bf16.msra.mxu0 %v8071
      %8333 = vmatprep.subr.bf16.mxu0 0
      %8334 = vmatpush1.bf16.msra.mxu0 %v8074
      %8335 = vmatprep.subr.bf16.mxu0 0
      %8336 = vmatpush1.bf16.msra.mxu0 0
      %8337 = vmatprep.subr.bf16.mxu0 0
      %8338 = vmatpush1.bf16.msra.mxu0 0
      %8339 = vmatprep.subr.bf16.mxu0 0
      %8340 = vmatpush1.bf16.msra.mxu0 0
      %8341 = vmatprep.subr.bf16.mxu0 0
      %8342 = vmatpush1.bf16.msra.mxu0 0
      %8343 = vmatprep.subr.bf16.mxu0 0
      %8344 = vmatpush1.bf16.msra.mxu0 0
      %8345 = vmatprep.subr.bf16.mxu0 0
      %8346 = vmatpush1.bf16.msra.mxu0 0
      %8347 = vmatprep.subr.bf16.mxu0 0
      %8348 = vmatpush1.bf16.msra.mxu0 0
      %8349 = vmatprep.subr.bf16.mxu0 0
      %8350 = vmatpush1.bf16.msra.mxu0 0
      %8351 = vmatprep.subr.bf16.mxu0 0
      %8352 = vmatpush1.bf16.msra.mxu0 0
      %8353 = vmatprep.subr.bf16.mxu0 0
      %8354 = vmatpush1.bf16.msra.mxu0 0
      %8355 = vmatprep.subr.bf16.mxu0 0
      %8356 = vmatpush1.bf16.msra.mxu0 0
      %8357 = vmatprep.subr.bf16.mxu0 0
      %8358 = vmatpush1.bf16.msra.mxu0 0
      %8359 = vmatprep.subr.bf16.mxu0 0
      %8360 = vmatpush1.bf16.msra.mxu0 0
      %8361 = vmatprep.subr.bf16.mxu0 0
      %8362 = vmatpush1.bf16.msra.mxu0 0
      %8363 = vmatprep.mubr.bf16.mxu0 0
      %8364 = vmatmul.mubr.bf16.gmra.mrb[0].mxu0 %v8171
      %v8365 = vpop.f32.mrb[0].mxu0
      %v8366 = vadd.f32 %v8317, %v8365
      %v8367 = vpop.f32.mrb[0].mxu0
      %v8368 = vpop.f32.mrb[0].mxu0
      %v8369 = vadd.f32 %v8320, %v8368
      %v8370 = vpop.f32.mrb[0].mxu0
      %8371 = vmatprep.mubr.bf16.mxu0 0
      %8372 = vmatmul.mubr.bf16.gmra.mrb[0].mxu0 %v8174
      %v8373 = vpop.f32.mrb[0].mxu0
      %v8374 = vadd.f32 %v8325, %v8373
      %v8375 = vpop.f32.mrb[0].mxu0
      %v8376 = vpop.f32.mrb[0].mxu0
      %v8377 = vadd.f32 %v8328, %v8376
      %v8378 = vpop.f32.mrb[0].mxu0
      %8379 = vdwg.mxu0
      %v8380 = vld [vmem:[%s14] sm:$0xff]
      %v8381 = vld [vmem:[%s14 + $0x8] sm:$0xff]
      %v8382 = vld [vmem:[%s14 + $0x10] sm:$0xff]
      %v8383 = vld [vmem:[%s14 + $0x18] sm:$0xff]
      %8385 = vset.pattern.permute.xlu0 0
      %8386 = vperm.xlu0 %8385, %v8380
      %v8387 = vpop.permute.xlu0 %8386
      %8390 = vset.pattern.permute.xlu0 0
      %8391 = vperm.xlu0 %8390, %v8381
      %v8392 = vpop.permute.xlu0 %8391
      %8395 = vset.pattern.permute.xlu0 0
      %8396 = vperm.xlu0 %8395, %v8382
      %v8397 = vpop.permute.xlu0 %8396
      %8400 = vset.pattern.permute.xlu0 0
      %8401 = vperm.xlu0 %8400, %v8383
      %v8402 = vpop.permute.xlu0 %8401
      %v8404 = vmul.f32 %v8264, %v8387
      %v8405 = vmul.f32 %v8266, %v8387
      %v8406 = vmul.f32 %v8366, %v8387
      %v8407 = vmul.f32 %v8268, %v8392
      %v8408 = vmul.f32 %v8270, %v8392
      %v8409 = vmul.f32 %v8369, %v8392
      %v8410 = vmul.f32 %v8274, %v8397
      %v8411 = vmul.f32 %v8276, %v8397
      %v8412 = vmul.f32 %v8374, %v8397
      %v8413 = vmul.f32 %v8278, %v8402
      %v8414 = vmul.f32 %v8280, %v8402
      %v8415 = vmul.f32 %v8377, %v8402
      %8416 = vset.pattern.permute.xlu0 1
      %8417 = vperm.xlu0 %8416, %v8380
      %v8418 = vpop.permute.xlu0 %8417
      %8420 = vset.pattern.permute.xlu0 1
      %8421 = vperm.xlu0 %8420, %v8381
      %v8422 = vpop.permute.xlu0 %8421
      %8424 = vset.pattern.permute.xlu0 1
      %8425 = vperm.xlu0 %8424, %v8382
      %v8426 = vpop.permute.xlu0 %8425
      %8428 = vset.pattern.permute.xlu0 1
      %8429 = vperm.xlu0 %8428, %v8383
      %v8430 = vpop.permute.xlu0 %8429
      %v8432 = vadd.f32 %v8404, %v8418
      %v8433 = vadd.f32 %v8405, %v8418
      %v8434 = vadd.f32 %v8406, %v8418
      %v8435 = vadd.f32 %v8407, %v8422
      %v8436 = vadd.f32 %v8408, %v8422
      %v8437 = vadd.f32 %v8409, %v8422
      %v8438 = vadd.f32 %v8410, %v8426
      %v8439 = vadd.f32 %v8411, %v8426
      %v8440 = vadd.f32 %v8412, %v8426
      %v8441 = vadd.f32 %v8413, %v8430
      %v8442 = vadd.f32 %v8414, %v8430
      %v8443 = vadd.f32 %v8415, %v8430
      %v8444 = vmax.f32 %v8432, 0.0
      %v8445 = vmax.f32 %v8433, 0.0
      %v8446 = vmax.f32 %v8434, 0.0
      %v8447 = vmax.f32 %v8435, 0.0
      %v8448 = vmax.f32 %v8436, 0.0
      %v8449 = vmax.f32 %v8437, 0.0
      %v8450 = vmax.f32 %v8438, 0.0
      %v8451 = vmax.f32 %v8439, 0.0
      %v8452 = vmax.f32 %v8440, 0.0
      %v8453 = vmax.f32 %v8441, 0.0
      %v8454 = vmax.f32 %v8442, 0.0
      %v8455 = vmax.f32 %v8443, 0.0
      %v8456 = vld [vmem:[%s22] sm:$0x7]
      %v8458 = vlaneseq
      %v8459 = vshrl.u32 %v8458, 7
      %v8460 = vsub.s32 0, %v8459
      %v8461 = vrot.slane %v8456, %v8460
      %v8462 = vlaneseq
      %v8463 = vshrl.u32 %v8462, 7
      %v8464 = vsub.s32 1, %v8463
      %v8465 = vrot.slane %v8456, %v8464
      %v8466 = vlaneseq
      %v8467 = vshrl.u32 %v8466, 7
      %v8468 = vsub.s32 2, %v8467
      %v8469 = vrot.slane %v8456, %v8468
      %v8473 = vmul.f32 %v8444, %v8461
      %v8474 = vmul.f32 %v8445, %v8465
      %v8475 = vmul.f32 %v8446, %v8469
      %v8476 = vmul.f32 %v8447, %v8461
      %v8477 = vmul.f32 %v8448, %v8465
      %v8478 = vmul.f32 %v8449, %v8469
      %v8479 = vmul.f32 %v8450, %v8461
      %v8480 = vmul.f32 %v8451, %v8465
      %v8481 = vmul.f32 %v8452, %v8469
      %v8482 = vmul.f32 %v8453, %v8461
      %v8483 = vmul.f32 %v8454, %v8465
      %v8484 = vmul.f32 %v8455, %v8469
      %8497 = vrot.lane.b32.xlu0 %v8473, 19
      %v8498 = vpop.permute.xlu0 %8497
      %8499 = vrot.lane.b32.xlu0 %v8474, 19
      %v8500 = vpop.permute.xlu0 %8499
      %8501 = vrot.lane.b32.xlu0 %v8475, 19
      %v8502 = vpop.permute.xlu0 %8501
      %8503 = vrot.lane.b32.xlu0 %v8476, 19
      %v8504 = vpop.permute.xlu0 %8503
      %8505 = vrot.lane.b32.xlu0 %v8477, 19
      %v8506 = vpop.permute.xlu0 %8505
      %8507 = vrot.lane.b32.xlu0 %v8478, 19
      %v8508 = vpop.permute.xlu0 %8507
      %8509 = vrot.lane.b32.xlu0 %v8479, 19
      %v8510 = vpop.permute.xlu0 %8509
      %8511 = vrot.lane.b32.xlu0 %v8480, 19
      %v8512 = vpop.permute.xlu0 %8511
      %8513 = vrot.lane.b32.xlu0 %v8481, 19
      %v8514 = vpop.permute.xlu0 %8513
      %8515 = vrot.lane.b32.xlu0 %v8482, 19
      %v8516 = vpop.permute.xlu0 %8515
      %8517 = vrot.lane.b32.xlu0 %v8483, 19
      %v8518 = vpop.permute.xlu0 %8517
      %8519 = vrot.lane.b32.xlu0 %v8484, 19
      %v8520 = vpop.permute.xlu0 %8519
      %vm8521 = vcmask 154624
      %v8522 = vsel %vm8521, %v8498, %v8500
      %v8523 = vsel %vm8521, %v8500, %v8502
      %v8524 = vsel %vm8521, %v8504, %v8506
      %v8525 = vsel %vm8521, %v8506, %v8508
      %v8526 = vsel %vm8521, %v8510, %v8512
      %v8527 = vsel %vm8521, %v8512, %v8514
      %v8528 = vsel %vm8521, %v8516, %v8518
      %v8529 = vsel %vm8521, %v8518, %v8520
      %vm8542 = vcmask 1047704
      %8543 = vst.msk [vmem:[#allocation6] sm:$0xff] %vm8542, %v8498
      %8544 = vst [vmem:[#allocation6 + $0x8] sm:$0xff] %v8522
      %vm8545 = vcmask 416768
      %8546 = vst.msk [vmem:[#allocation6 + $0x10] sm:$0xff] %vm8545, %v8523
      %8547 = vst.msk [vmem:[#allocation6 + $0x18] sm:$0xff] %vm8542, %v8504
      %8548 = vst [vmem:[#allocation6 + $0x20] sm:$0xff] %v8524
      %8549 = vst.msk [vmem:[#allocation6 + $0x28] sm:$0xff] %vm8545, %v8525
      %8550 = vst.msk [vmem:[#allocation6 + $0x30] sm:$0xff] %vm8542, %v8510
      %8551 = vst [vmem:[#allocation6 + $0x38] sm:$0xff] %v8526
      %8552 = vst.msk [vmem:[#allocation6 + $0x40] sm:$0xff] %vm8545, %v8527
      %8553 = vst.msk [vmem:[#allocation6 + $0x48] sm:$0xff] %vm8542, %v8516
      %8554 = vst [vmem:[#allocation6 + $0x50] sm:$0xff] %v8528
      %8555 = vst.msk [vmem:[#allocation6 + $0x58] sm:$0xff] %vm8545, %v8529
      %v8556 = vld [vmem:[%s20] sm:$0xf]
      %v8557 = vld [vmem:[%s20 + $0x4] sm:$0xf]
      %v8558 = vld [vmem:[%s20 + $0x8] sm:$0xf]
      %v8559 = vld [vmem:[%s20 + $0xc] sm:$0xf]
      %v8560 = vld [vmem:[%s20 + $0x10] sm:$0xf]
      %v8561 = vld [vmem:[%s20 + $0x14] sm:$0xf]
      %v8562 = vld [vmem:[%s20 + $0x18] sm:$0xf]
      %v8563 = vld [vmem:[%s20 + $0x1c] sm:$0xf]
      %v8564 = vld [vmem:[%s20 + $0x20] sm:$0xf]
      %v8565 = vld [vmem:[%s20 + $0x24] sm:$0xf]
      %v8566 = vld [vmem:[%s20 + $0x28] sm:$0xf]
      %v8567 = vld [vmem:[%s20 + $0x2c] sm:$0xf]
      %v8568 = vld [vmem:[%s20 + $0x30] sm:$0xf]
      %v8569 = vld [vmem:[%s20 + $0x34] sm:$0xf]
      %v8570 = vld [vmem:[%s20 + $0x38] sm:$0xf]
      %v8571 = vld [vmem:[%s20 + $0x3c] sm:$0xf]
      %v8572 = vld [vmem:[%s20 + $0x40] sm:$0xf]
      %v8573 = vld [vmem:[%s20 + $0x44] sm:$0xf]
      %v8574 = vld [vmem:[%s20 + $0x48] sm:$0xf]
      %v8575 = vld [vmem:[%s20 + $0x4c] sm:$0xf]
      %v8576 = vld [vmem:[%s20 + $0x50] sm:$0xf]
      %v8577 = vld [vmem:[%s20 + $0x54] sm:$0xf]
      %v8578 = vld [vmem:[%s20 + $0x58] sm:$0xf]
      %v8579 = vld [vmem:[%s20 + $0x5c] sm:$0xf]
      %v8580 = vld [vmem:[%s20 + $0x60] sm:$0xf]
      %v8581 = vld [vmem:[%s20 + $0x64] sm:$0xf]
      %v8582 = vld [vmem:[%s20 + $0x68] sm:$0xf]
      %v8583 = vld [vmem:[%s20 + $0x6c] sm:$0xf]
      %v8584 = vld [vmem:[%s20 + $0x70] sm:$0xf]
      %v8585 = vld [vmem:[%s20 + $0x74] sm:$0xf]
      %v8586 = vld [vmem:[%s20 + $0x78] sm:$0xf]
      %v8587 = vld [vmem:[%s20 + $0x7c] sm:$0xf]
      %v8588 = vld [vmem:[%s20 + $0x80] sm:$0xf]
      %v8589 = vld [vmem:[%s20 + $0x84] sm:$0xf]
      %v8590 = vld [vmem:[%s20 + $0x88] sm:$0xf]
      %v8591 = vld [vmem:[%s20 + $0x8c] sm:$0xf]
      %v8592 = vld [vmem:[#allocation6] sm:$0xff]
      %v8593 = vld [vmem:[#allocation6 + $0x8] sm:$0xff]
      %v8594 = vld [vmem:[#allocation6 + $0x10] sm:$0xff]
      %v8595 = vld [vmem:[#allocation6 + $0x18] sm:$0xff]
      %v8596 = vld [vmem:[#allocation6 + $0x20] sm:$0xff]
      %v8597 = vld [vmem:[#allocation6 + $0x28] sm:$0xff]
      %v8598 = vld [vmem:[#allocation6 + $0x30] sm:$0xff]
      %v8599 = vld [vmem:[#allocation6 + $0x38] sm:$0xff]
      %v8600 = vld [vmem:[#allocation6 + $0x40] sm:$0xff]
      %v8601 = vld [vmem:[#allocation6 + $0x48] sm:$0xff]
      %v8602 = vld [vmem:[#allocation6 + $0x50] sm:$0xff]
      %v8603 = vld [vmem:[#allocation6 + $0x58] sm:$0xff]
      %8616 = vrot.lane.b32.xlu0 %v8592, 127
      %v8617 = vpop.permute.xlu0 %8616
      %8618 = vrot.lane.b32.xlu0 %v8593, 127
      %v8619 = vpop.permute.xlu0 %8618
      %8620 = vrot.lane.b32.xlu0 %v8594, 127
      %v8621 = vpop.permute.xlu0 %8620
      %8622 = vrot.lane.b32.xlu0 %v8595, 127
      %v8623 = vpop.permute.xlu0 %8622
      %8624 = vrot.lane.b32.xlu0 %v8596, 127
      %v8625 = vpop.permute.xlu0 %8624
      %8626 = vrot.lane.b32.xlu0 %v8597, 127
      %v8627 = vpop.permute.xlu0 %8626
      %8628 = vrot.lane.b32.xlu0 %v8598, 127
      %v8629 = vpop.permute.xlu0 %8628
      %8630 = vrot.lane.b32.xlu0 %v8599, 127
      %v8631 = vpop.permute.xlu0 %8630
      %8632 = vrot.lane.b32.xlu0 %v8600, 127
      %v8633 = vpop.permute.xlu0 %8632
      %8634 = vrot.lane.b32.xlu0 %v8601, 127
      %v8635 = vpop.permute.xlu0 %8634
      %8636 = vrot.lane.b32.xlu0 %v8602, 127
      %v8637 = vpop.permute.xlu0 %8636
      %8638 = vrot.lane.b32.xlu0 %v8603, 127
      %v8639 = vpop.permute.xlu0 %8638
      %v8640 = vsel %vm848, %v8617, %v8619
      %v8641 = vsel %vm848, %v8619, %v8621
      %v8642 = vsel %vm848, %v8623, %v8625
      %v8643 = vsel %vm848, %v8625, %v8627
      %v8644 = vsel %vm848, %v8629, %v8631
      %v8645 = vsel %vm848, %v8631, %v8633
      %v8646 = vsel %vm848, %v8635, %v8637
      %v8647 = vsel %vm848, %v8637, %v8639
      %8660 = vrot.lane.b32.xlu0 %v8592, 126
      %v8661 = vpop.permute.xlu0 %8660
      %8662 = vrot.lane.b32.xlu0 %v8593, 126
      %v8663 = vpop.permute.xlu0 %8662
      %8664 = vrot.lane.b32.xlu0 %v8594, 126
      %v8665 = vpop.permute.xlu0 %8664
      %8666 = vrot.lane.b32.xlu0 %v8595, 126
      %v8667 = vpop.permute.xlu0 %8666
      %8668 = vrot.lane.b32.xlu0 %v8596, 126
      %v8669 = vpop.permute.xlu0 %8668
      %8670 = vrot.lane.b32.xlu0 %v8597, 126
      %v8671 = vpop.permute.xlu0 %8670
      %8672 = vrot.lane.b32.xlu0 %v8598, 126
      %v8673 = vpop.permute.xlu0 %8672
      %8674 = vrot.lane.b32.xlu0 %v8599, 126
      %v8675 = vpop.permute.xlu0 %8674
      %8676 = vrot.lane.b32.xlu0 %v8600, 126
      %v8677 = vpop.permute.xlu0 %8676
      %8678 = vrot.lane.b32.xlu0 %v8601, 126
      %v8679 = vpop.permute.xlu0 %8678
      %8680 = vrot.lane.b32.xlu0 %v8602, 126
      %v8681 = vpop.permute.xlu0 %8680
      %8682 = vrot.lane.b32.xlu0 %v8603, 126
      %v8683 = vpop.permute.xlu0 %8682
      %v8684 = vsel %vm884, %v8661, %v8663
      %v8685 = vsel %vm884, %v8663, %v8665
      %v8686 = vsel %vm884, %v8667, %v8669
      %v8687 = vsel %vm884, %v8669, %v8671
      %v8688 = vsel %vm884, %v8673, %v8675
      %v8689 = vsel %vm884, %v8675, %v8677
      %v8690 = vsel %vm884, %v8679, %v8681
      %v8691 = vsel %vm884, %v8681, %v8683
      %8704 = vrot.lane.b32.xlu0 %v8592, 110
      %v8705 = vpop.permute.xlu0 %8704
      %8706 = vrot.lane.b32.xlu0 %v8593, 110
      %v8707 = vpop.permute.xlu0 %8706
      %8708 = vrot.lane.b32.xlu0 %v8594, 110
      %v8709 = vpop.permute.xlu0 %8708
      %8710 = vrot.lane.b32.xlu0 %v8595, 110
      %v8711 = vpop.permute.xlu0 %8710
      %8712 = vrot.lane.b32.xlu0 %v8596, 110
      %v8713 = vpop.permute.xlu0 %8712
      %8714 = vrot.lane.b32.xlu0 %v8597, 110
      %v8715 = vpop.permute.xlu0 %8714
      %8716 = vrot.lane.b32.xlu0 %v8598, 110
      %v8717 = vpop.permute.xlu0 %8716
      %8718 = vrot.lane.b32.xlu0 %v8599, 110
      %v8719 = vpop.permute.xlu0 %8718
      %8720 = vrot.lane.b32.xlu0 %v8600, 110
      %v8721 = vpop.permute.xlu0 %8720
      %8722 = vrot.lane.b32.xlu0 %v8601, 110
      %v8723 = vpop.permute.xlu0 %8722
      %8724 = vrot.lane.b32.xlu0 %v8602, 110
      %v8725 = vpop.permute.xlu0 %8724
      %8726 = vrot.lane.b32.xlu0 %v8603, 110
      %v8727 = vpop.permute.xlu0 %8726
      %v8728 = vsel %vm7776, %v8705, %v8707
      %v8729 = vsel %vm7776, %v8707, %v8709
      %v8730 = vsel %vm7776, %v8711, %v8713
      %v8731 = vsel %vm7776, %v8713, %v8715
      %v8732 = vsel %vm7776, %v8717, %v8719
      %v8733 = vsel %vm7776, %v8719, %v8721
      %v8734 = vsel %vm7776, %v8723, %v8725
      %v8735 = vsel %vm7776, %v8725, %v8727
      %8748 = vrot.lane.b32.xlu0 %v8592, 109
      %v8749 = vpop.permute.xlu0 %8748
      %8750 = vrot.lane.b32.xlu0 %v8593, 109
      %v8751 = vpop.permute.xlu0 %8750
      %8752 = vrot.lane.b32.xlu0 %v8594, 109
      %v8753 = vpop.permute.xlu0 %8752
      %8754 = vrot.lane.b32.xlu0 %v8595, 109
      %v8755 = vpop.permute.xlu0 %8754
      %8756 = vrot.lane.b32.xlu0 %v8596, 109
      %v8757 = vpop.permute.xlu0 %8756
      %8758 = vrot.lane.b32.xlu0 %v8597, 109
      %v8759 = vpop.permute.xlu0 %8758
      %8760 = vrot.lane.b32.xlu0 %v8598, 109
      %v8761 = vpop.permute.xlu0 %8760
      %8762 = vrot.lane.b32.xlu0 %v8599, 109
      %v8763 = vpop.permute.xlu0 %8762
      %8764 = vrot.lane.b32.xlu0 %v8600, 109
      %v8765 = vpop.permute.xlu0 %8764
      %8766 = vrot.lane.b32.xlu0 %v8601, 109
      %v8767 = vpop.permute.xlu0 %8766
      %8768 = vrot.lane.b32.xlu0 %v8602, 109
      %v8769 = vpop.permute.xlu0 %8768
      %8770 = vrot.lane.b32.xlu0 %v8603, 109
      %v8771 = vpop.permute.xlu0 %8770
      %v8772 = vsel %vm7821, %v8749, %v8751
      %v8773 = vsel %vm7821, %v8751, %v8753
      %v8774 = vsel %vm7821, %v8755, %v8757
      %v8775 = vsel %vm7821, %v8757, %v8759
      %v8776 = vsel %vm7821, %v8761, %v8763
      %v8777 = vsel %vm7821, %v8763, %v8765
      %v8778 = vsel %vm7821, %v8767, %v8769
      %v8779 = vsel %vm7821, %v8769, %v8771
      %8792 = vrot.lane.b32.xlu0 %v8592, 108
      %v8793 = vpop.permute.xlu0 %8792
      %8794 = vrot.lane.b32.xlu0 %v8593, 108
      %v8795 = vpop.permute.xlu0 %8794
      %8796 = vrot.lane.b32.xlu0 %v8594, 108
      %v8797 = vpop.permute.xlu0 %8796
      %8798 = vrot.lane.b32.xlu0 %v8595, 108
      %v8799 = vpop.permute.xlu0 %8798
      %8800 = vrot.lane.b32.xlu0 %v8596, 108
      %v8801 = vpop.permute.xlu0 %8800
      %8802 = vrot.lane.b32.xlu0 %v8597, 108
      %v8803 = vpop.permute.xlu0 %8802
      %8804 = vrot.lane.b32.xlu0 %v8598, 108
      %v8805 = vpop.permute.xlu0 %8804
      %8806 = vrot.lane.b32.xlu0 %v8599, 108
      %v8807 = vpop.permute.xlu0 %8806
      %8808 = vrot.lane.b32.xlu0 %v8600, 108
      %v8809 = vpop.permute.xlu0 %8808
      %8810 = vrot.lane.b32.xlu0 %v8601, 108
      %v8811 = vpop.permute.xlu0 %8810
      %8812 = vrot.lane.b32.xlu0 %v8602, 108
      %v8813 = vpop.permute.xlu0 %8812
      %8814 = vrot.lane.b32.xlu0 %v8603, 108
      %v8815 = vpop.permute.xlu0 %8814
      %v8816 = vsel %vm7866, %v8793, %v8795
      %v8817 = vsel %vm7866, %v8795, %v8797
      %v8818 = vsel %vm7866, %v8799, %v8801
      %v8819 = vsel %vm7866, %v8801, %v8803
      %v8820 = vsel %vm7866, %v8805, %v8807
      %v8821 = vsel %vm7866, %v8807, %v8809
      %v8822 = vsel %vm7866, %v8811, %v8813
      %v8823 = vsel %vm7866, %v8813, %v8815
      %8836 = vrot.lane.b32.xlu0 %v8592, 92
      %v8837 = vpop.permute.xlu0 %8836
      %8838 = vrot.lane.b32.xlu0 %v8593, 92
      %v8839 = vpop.permute.xlu0 %8838
      %8840 = vrot.lane.b32.xlu0 %v8594, 92
      %v8841 = vpop.permute.xlu0 %8840
      %8842 = vrot.lane.b32.xlu0 %v8595, 92
      %v8843 = vpop.permute.xlu0 %8842
      %8844 = vrot.lane.b32.xlu0 %v8596, 92
      %v8845 = vpop.permute.xlu0 %8844
      %8846 = vrot.lane.b32.xlu0 %v8597, 92
      %v8847 = vpop.permute.xlu0 %8846
      %8848 = vrot.lane.b32.xlu0 %v8598, 92
      %v8849 = vpop.permute.xlu0 %8848
      %8850 = vrot.lane.b32.xlu0 %v8599, 92
      %v8851 = vpop.permute.xlu0 %8850
      %8852 = vrot.lane.b32.xlu0 %v8600, 92
      %v8853 = vpop.permute.xlu0 %8852
      %8854 = vrot.lane.b32.xlu0 %v8601, 92
      %v8855 = vpop.permute.xlu0 %8854
      %8856 = vrot.lane.b32.xlu0 %v8602, 92
      %v8857 = vpop.permute.xlu0 %8856
      %8858 = vrot.lane.b32.xlu0 %v8603, 92
      %v8859 = vpop.permute.xlu0 %8858
      %v8860 = vsel %vm992, %v8837, %v8839
      %v8861 = vsel %vm992, %v8839, %v8841
      %v8862 = vsel %vm992, %v8843, %v8845
      %v8863 = vsel %vm992, %v8845, %v8847
      %v8864 = vsel %vm992, %v8849, %v8851
      %v8865 = vsel %vm992, %v8851, %v8853
      %v8866 = vsel %vm992, %v8855, %v8857
      %v8867 = vsel %vm992, %v8857, %v8859
      %8880 = vrot.lane.b32.xlu0 %v8592, 91
      %v8881 = vpop.permute.xlu0 %8880
      %8882 = vrot.lane.b32.xlu0 %v8593, 91
      %v8883 = vpop.permute.xlu0 %8882
      %8884 = vrot.lane.b32.xlu0 %v8594, 91
      %v8885 = vpop.permute.xlu0 %8884
      %8886 = vrot.lane.b32.xlu0 %v8595, 91
      %v8887 = vpop.permute.xlu0 %8886
      %8888 = vrot.lane.b32.xlu0 %v8596, 91
      %v8889 = vpop.permute.xlu0 %8888
      %8890 = vrot.lane.b32.xlu0 %v8597, 91
      %v8891 = vpop.permute.xlu0 %8890
      %8892 = vrot.lane.b32.xlu0 %v8598, 91
      %v8893 = vpop.permute.xlu0 %8892
      %8894 = vrot.lane.b32.xlu0 %v8599, 91
      %v8895 = vpop.permute.xlu0 %8894
      %8896 = vrot.lane.b32.xlu0 %v8600, 91
      %v8897 = vpop.permute.xlu0 %8896
      %8898 = vrot.lane.b32.xlu0 %v8601, 91
      %v8899 = vpop.permute.xlu0 %8898
      %8900 = vrot.lane.b32.xlu0 %v8602, 91
      %v8901 = vpop.permute.xlu0 %8900
      %8902 = vrot.lane.b32.xlu0 %v8603, 91
      %v8903 = vpop.permute.xlu0 %8902
      %v8904 = vsel %vm7955, %v8881, %v8883
      %v8905 = vsel %vm7955, %v8883, %v8885
      %v8906 = vsel %vm7955, %v8887, %v8889
      %v8907 = vsel %vm7955, %v8889, %v8891
      %v8908 = vsel %vm7955, %v8893, %v8895
      %v8909 = vsel %vm7955, %v8895, %v8897
      %v8910 = vsel %vm7955, %v8899, %v8901
      %v8911 = vsel %vm7955, %v8901, %v8903
      %8924 = vrot.lane.b32.xlu0 %v8592, 90
      %v8925 = vpop.permute.xlu0 %8924
      %8926 = vrot.lane.b32.xlu0 %v8593, 90
      %v8927 = vpop.permute.xlu0 %8926
      %8928 = vrot.lane.b32.xlu0 %v8594, 90
      %v8929 = vpop.permute.xlu0 %8928
      %8930 = vrot.lane.b32.xlu0 %v8595, 90
      %v8931 = vpop.permute.xlu0 %8930
      %8932 = vrot.lane.b32.xlu0 %v8596, 90
      %v8933 = vpop.permute.xlu0 %8932
      %8934 = vrot.lane.b32.xlu0 %v8597, 90
      %v8935 = vpop.permute.xlu0 %8934
      %8936 = vrot.lane.b32.xlu0 %v8598, 90
      %v8937 = vpop.permute.xlu0 %8936
      %8938 = vrot.lane.b32.xlu0 %v8599, 90
      %v8939 = vpop.permute.xlu0 %8938
      %8940 = vrot.lane.b32.xlu0 %v8600, 90
      %v8941 = vpop.permute.xlu0 %8940
      %8942 = vrot.lane.b32.xlu0 %v8601, 90
      %v8943 = vpop.permute.xlu0 %8942
      %8944 = vrot.lane.b32.xlu0 %v8602, 90
      %v8945 = vpop.permute.xlu0 %8944
      %8946 = vrot.lane.b32.xlu0 %v8603, 90
      %v8947 = vpop.permute.xlu0 %8946
      %v8948 = vsel %vm8000, %v8925, %v8927
      %v8949 = vsel %vm8000, %v8927, %v8929
      %v8950 = vsel %vm8000, %v8931, %v8933
      %v8951 = vsel %vm8000, %v8933, %v8935
      %v8952 = vsel %vm8000, %v8937, %v8939
      %v8953 = vsel %vm8000, %v8939, %v8941
      %v8954 = vsel %vm8000, %v8943, %v8945
      %v8955 = vsel %vm8000, %v8945, %v8947
      %v8968 = vpack.c.bf16 %v8595, %v8592
      %v8969 = vpack.c.bf16 %v8596, %v8593
      %v8970 = vpack.c.bf16 %v8597, %v8594
      %v8971 = vpack.c.bf16 %v8601, %v8598
      %v8972 = vpack.c.bf16 %v8602, %v8599
      %v8973 = vpack.c.bf16 %v8603, %v8600
      %v8974 = vpack.c.bf16 %v8642, %v8640
      %v8975 = vpack.c.bf16 %v8643, %v8641
      %v8976 = vpack.c.bf16 %v8627, %v8621
      %v8977 = vpack.c.bf16 %v8646, %v8644
      %v8978 = vpack.c.bf16 %v8647, %v8645
      %v8979 = vpack.c.bf16 %v8639, %v8633
      %v8980 = vpack.c.bf16 %v8686, %v8684
      %v8981 = vpack.c.bf16 %v8687, %v8685
      %v8982 = vpack.c.bf16 %v8671, %v8665
      %v8983 = vpack.c.bf16 %v8690, %v8688
      %v8984 = vpack.c.bf16 %v8691, %v8689
      %v8985 = vpack.c.bf16 %v8683, %v8677
      %v8986 = vpack.c.bf16 %v8730, %v8728
      %v8987 = vpack.c.bf16 %v8731, %v8729
      %v8988 = vpack.c.bf16 %v8715, %v8709
      %v8989 = vpack.c.bf16 %v8734, %v8732
      %v8990 = vpack.c.bf16 %v8735, %v8733
      %v8991 = vpack.c.bf16 %v8727, %v8721
      %v8992 = vpack.c.bf16 %v8774, %v8772
      %v8993 = vpack.c.bf16 %v8775, %v8773
      %v8994 = vpack.c.bf16 %v8759, %v8753
      %v8995 = vpack.c.bf16 %v8778, %v8776
      %v8996 = vpack.c.bf16 %v8779, %v8777
      %v8997 = vpack.c.bf16 %v8771, %v8765
      %v8998 = vpack.c.bf16 %v8818, %v8816
      %v8999 = vpack.c.bf16 %v8819, %v8817
      %v9000 = vpack.c.bf16 %v8803, %v8797
      %v9001 = vpack.c.bf16 %v8822, %v8820
      %v9002 = vpack.c.bf16 %v8823, %v8821
      %v9003 = vpack.c.bf16 %v8815, %v8809
      %v9004 = vpack.c.bf16 %v8862, %v8860
      %v9005 = vpack.c.bf16 %v8863, %v8861
      %v9006 = vpack.c.bf16 %v8847, %v8841
      %v9007 = vpack.c.bf16 %v8866, %v8864
      %v9008 = vpack.c.bf16 %v8867, %v8865
      %v9009 = vpack.c.bf16 %v8859, %v8853
      %v9010 = vpack.c.bf16 %v8906, %v8904
      %v9011 = vpack.c.bf16 %v8907, %v8905
      %v9012 = vpack.c.bf16 %v8891, %v8885
      %v9013 = vpack.c.bf16 %v8910, %v8908
      %v9014 = vpack.c.bf16 %v8911, %v8909
      %v9015 = vpack.c.bf16 %v8903, %v8897
      %v9016 = vpack.c.bf16 %v8950, %v8948
      %v9017 = vpack.c.bf16 %v8951, %v8949
      %v9018 = vpack.c.bf16 %v8935, %v8929
      %v9019 = vpack.c.bf16 %v8954, %v8952
      %v9020 = vpack.c.bf16 %v8955, %v8953
      %v9021 = vpack.c.bf16 %v8947, %v8941
      %v9022 = vld [vmem:[%s7] sm:$0xff]
      %v9023 = vld [vmem:[%s7 + $0x8] sm:$0xf]
      %v9024 = vld [vmem:[%s7 + $0xc] sm:$0xff]
      %v9025 = vld [vmem:[%s7 + $0x14] sm:$0xf]
      %v9026 = vld [vmem:[%s7 + $0x18] sm:$0xff]
      %v9027 = vld [vmem:[%s7 + $0x20] sm:$0xf]
      %v9028 = vld [vmem:[%s7 + $0x24] sm:$0xff]
      %v9029 = vld [vmem:[%s7 + $0x2c] sm:$0xf]
      %v9030 = vld [vmem:[%s7 + $0x30] sm:$0xff]
      %v9031 = vld [vmem:[%s7 + $0x38] sm:$0xf]
      %v9032 = vld [vmem:[%s7 + $0x3c] sm:$0xff]
      %v9033 = vld [vmem:[%s7 + $0x44] sm:$0xf]
      %v9034 = vld [vmem:[%s7 + $0x48] sm:$0xff]
      %v9035 = vld [vmem:[%s7 + $0x50] sm:$0xf]
      %v9036 = vld [vmem:[%s7 + $0x54] sm:$0xff]
      %v9037 = vld [vmem:[%s7 + $0x5c] sm:$0xf]
      %v9054 = vunpack.c.l.b16 %v9022
      %v9055 = vunpack.c.h.b16 %v9022
      %v9056 = vunpack.c.l.b16 %v9023
      %v9057 = vunpack.c.l.b16 %v9024
      %v9058 = vunpack.c.h.b16 %v9024
      %v9059 = vunpack.c.l.b16 %v9025
      %v9060 = vunpack.c.l.b16 %v9026
      %v9061 = vunpack.c.h.b16 %v9026
      %v9062 = vunpack.c.l.b16 %v9027
      %v9063 = vunpack.c.l.b16 %v9028
      %v9064 = vunpack.c.h.b16 %v9028
      %v9065 = vunpack.c.l.b16 %v9029
      %v9066 = vunpack.c.l.b16 %v9030
      %v9067 = vunpack.c.h.b16 %v9030
      %v9068 = vunpack.c.l.b16 %v9031
      %v9069 = vunpack.c.l.b16 %v9032
      %v9070 = vunpack.c.h.b16 %v9032
      %v9071 = vunpack.c.l.b16 %v9033
      %v9072 = vunpack.c.l.b16 %v9034
      %v9073 = vunpack.c.h.b16 %v9034
      %v9074 = vunpack.c.l.b16 %v9035
      %v9075 = vunpack.c.l.b16 %v9036
      %v9076 = vunpack.c.h.b16 %v9036
      %v9077 = vunpack.c.l.b16 %v9037
      %v9078 = vpack.c.b16 %v9057, %v9054
      %v9079 = vpack.c.b16 %v9058, %v9055
      %v9080 = vpack.c.b16 %v9059, %v9056
      %v9081 = vpack.c.b16 %v9063, %v9060
      %v9082 = vpack.c.b16 %v9064, %v9061
      %v9083 = vpack.c.b16 %v9065, %v9062
      %v9084 = vpack.c.b16 %v9069, %v9066
      %v9085 = vpack.c.b16 %v9070, %v9067
      %v9086 = vpack.c.b16 %v9071, %v9068
      %v9087 = vpack.c.b16 %v9075, %v9072
      %v9088 = vpack.c.b16 %v9076, %v9073
      %v9089 = vpack.c.b16 %v9077, %v9074
      %v9099 = vsel %vm8169, %v9080, 0
      %v9102 = vsel %vm8169, %v9083, 0
      %v9105 = vsel %vm8169, %v9086, 0
      %v9108 = vsel %vm8169, %v9089, 0
      %9110 = vmatprep.subr.bf16.mxu0 %v8969
      %9111 = vmatpush1.bf16.msra.mxu0 %v8968
      %9112 = vmatprep.subr.bf16.mxu0 %v8972
      %9113 = vmatpush1.bf16.msra.mxu0 %v8971
      %9114 = vmatprep.subr.bf16.mxu0 %v8975
      %9115 = vmatpush1.bf16.msra.mxu0 %v8974
      %9116 = vmatprep.subr.bf16.mxu0 %v8978
      %9117 = vmatpush1.bf16.msra.mxu0 %v8977
      %9118 = vmatprep.subr.bf16.mxu0 %v8981
      %9119 = vmatpush1.bf16.msra.mxu0 %v8980
      %9120 = vmatprep.subr.bf16.mxu0 %v8984
      %9121 = vmatpush1.bf16.msra.mxu0 %v8983
      %9122 = vmatprep.subr.bf16.mxu0 %v8987
      %9123 = vmatpush1.bf16.msra.mxu0 %v8986
      %9124 = vmatprep.subr.bf16.mxu0 %v8990
      %9125 = vmatpush1.bf16.msra.mxu0 %v8989
      %9126 = vmatprep.subr.bf16.mxu0 %v8993
      %9127 = vmatpush1.bf16.msra.mxu0 %v8992
      %9128 = vmatprep.subr.bf16.mxu0 %v8996
      %9129 = vmatpush1.bf16.msra.mxu0 %v8995
      %9130 = vmatprep.subr.bf16.mxu0 %v8999
      %9131 = vmatpush1.bf16.msra.mxu0 %v8998
      %9132 = vmatprep.subr.bf16.mxu0 %v9002
      %9133 = vmatpush1.bf16.msra.mxu0 %v9001
      %9134 = vmatprep.subr.bf16.mxu0 %v9005
      %9135 = vmatpush1.bf16.msra.mxu0 %v9004
      %9136 = vmatprep.subr.bf16.mxu0 %v9008
      %9137 = vmatpush1.bf16.msra.mxu0 %v9007
      %9138 = vmatprep.subr.bf16.mxu0 %v9011
      %9139 = vmatpush1.bf16.msra.mxu0 %v9010
      %9140 = vmatprep.subr.bf16.mxu0 %v9014
      %9141 = vmatpush1.bf16.msra.mxu0 %v9013
      %9142 = vmatprep.mubr.bf16.mxu0 %v9079
      %9143 = vmatmul.mubr.bf16.gmra.mrb[0].mxu0 %v9078
      %v9144 = vpop.f32.mrb[0].mxu0
      %v9145 = vadd.f32 0.0, %v9144
      %v9146 = vpop.f32.mrb[0].mxu0
      %v9147 = vadd.f32 0.0, %v9146
      %v9148 = vpop.f32.mrb[0].mxu0
      %v9149 = vadd.f32 0.0, %v9148
      %v9150 = vpop.f32.mrb[0].mxu0
      %v9151 = vadd.f32 0.0, %v9150
      %9152 = vmatprep.mubr.bf16.mxu0 %v9082
      %9153 = vmatmul.mubr.bf16.gmra.mrb[0].mxu0 %v9081
      %v9154 = vpop.f32.mrb[0].mxu0
      %v9155 = vadd.f32 0.0, %v9154
      %v9156 = vpop.f32.mrb[0].mxu0
      %v9157 = vadd.f32 0.0, %v9156
      %v9158 = vpop.f32.mrb[0].mxu0
      %v9159 = vadd.f32 0.0, %v9158
      %v9160 = vpop.f32.mrb[0].mxu0
      %v9161 = vadd.f32 0.0, %v9160
      %9162 = vmatprep.mubr.bf16.mxu0 %v9085
      %9163 = vmatmul.mubr.bf16.gmra.mrb[0].mxu0 %v9084
      %v9164 = vpop.f32.mrb[0].mxu0
      %v9165 = vadd.f32 0.0, %v9164
      %v9166 = vpop.f32.mrb[0].mxu0
      %v9167 = vadd.f32 0.0, %v9166
      %v9168 = vpop.f32.mrb[0].mxu0
      %v9169 = vadd.f32 0.0, %v9168
      %v9170 = vpop.f32.mrb[0].mxu0
      %v9171 = vadd.f32 0.0, %v9170
      %9172 = vmatprep.mubr.bf16.mxu0 %v9088
      %9173 = vmatmul.mubr.bf16.gmra.mrb[0].mxu0 %v9087
      %v9174 = vpop.f32.mrb[0].mxu0
      %v9175 = vadd.f32 0.0, %v9174
      %v9176 = vpop.f32.mrb[0].mxu0
      %v9177 = vadd.f32 0.0, %v9176
      %v9178 = vpop.f32.mrb[0].mxu0
      %v9179 = vadd.f32 0.0, %v9178
      %v9180 = vpop.f32.mrb[0].mxu0
      %v9181 = vadd.f32 0.0, %v9180
      %9182 = vdwg.mxu0
      %9183 = vmatprep.subr.bf16.mxu0 %v9017
      %9184 = vmatpush1.bf16.msra.mxu0 %v9016
      %9185 = vmatprep.subr.bf16.mxu0 %v9020
      %9186 = vmatpush1.bf16.msra.mxu0 %v9019
      %9187 = vmatprep.subr.bf16.mxu0 0
      %9188 = vmatpush1.bf16.msra.mxu0 0
      %9189 = vmatprep.subr.bf16.mxu0 0
      %9190 = vmatpush1.bf16.msra.mxu0 0
      %9191 = vmatprep.subr.bf16.mxu0 0
      %9192 = vmatpush1.bf16.msra.mxu0 0
      %9193 = vmatprep.subr.bf16.mxu0 0
      %9194 = vmatpush1.bf16.msra.mxu0 0
      %9195 = vmatprep.subr.bf16.mxu0 0
      %9196 = vmatpush1.bf16.msra.mxu0 0
      %9197 = vmatprep.subr.bf16.mxu0 0
      %9198 = vmatpush1.bf16.msra.mxu0 0
      %9199 = vmatprep.subr.bf16.mxu0 0
      %9200 = vmatpush1.bf16.msra.mxu0 0
      %9201 = vmatprep.subr.bf16.mxu0 0
      %9202 = vmatpush1.bf16.msra.mxu0 0
      %9203 = vmatprep.subr.bf16.mxu0 0
      %9204 = vmatpush1.bf16.msra.mxu0 0
      %9205 = vmatprep.subr.bf16.mxu0 0
      %9206 = vmatpush1.bf16.msra.mxu0 0
      %9207 = vmatprep.subr.bf16.mxu0 0
      %9208 = vmatpush1.bf16.msra.mxu0 0
      %9209 = vmatprep.subr.bf16.mxu0 0
      %9210 = vmatpush1.bf16.msra.mxu0 0
      %9211 = vmatprep.subr.bf16.mxu0 0
      %9212 = vmatpush1.bf16.msra.mxu0 0
      %9213 = vmatprep.subr.bf16.mxu0 0
      %9214 = vmatpush1.bf16.msra.mxu0 0
      %9215 = vmatprep.mubr.bf16.mxu0 0
      %9216 = vmatmul.mubr.bf16.gmra.mrb[0].mxu0 %v9099
      %v9217 = vpop.f32.mrb[0].mxu0
      %v9218 = vadd.f32 %v9145, %v9217
      %v9219 = vpop.f32.mrb[0].mxu0
      %v9220 = vadd.f32 %v9147, %v9219
      %v9221 = vpop.f32.mrb[0].mxu0
      %v9222 = vadd.f32 %v9149, %v9221
      %v9223 = vpop.f32.mrb[0].mxu0
      %v9224 = vadd.f32 %v9151, %v9223
      %9225 = vmatprep.mubr.bf16.mxu0 0
      %9226 = vmatmul.mubr.bf16.gmra.mrb[0].mxu0 %v9102
      %v9227 = vpop.f32.mrb[0].mxu0
      %v9228 = vadd.f32 %v9155, %v9227
      %v9229 = vpop.f32.mrb[0].mxu0
      %v9230 = vadd.f32 %v9157, %v9229
      %v9231 = vpop.f32.mrb[0].mxu0
      %v9232 = vadd.f32 %v9159, %v9231
      %v9233 = vpop.f32.mrb[0].mxu0
      %v9234 = vadd.f32 %v9161, %v9233
      %9235 = vmatprep.mubr.bf16.mxu0 0
      %9236 = vmatmul.mubr.bf16.gmra.mrb[0].mxu0 %v9105
      %v9237 = vpop.f32.mrb[0].mxu0
      %v9238 = vadd.f32 %v9165, %v9237
      %v9239 = vpop.f32.mrb[0].mxu0
      %v9240 = vadd.f32 %v9167, %v9239
      %v9241 = vpop.f32.mrb[0].mxu0
      %v9242 = vadd.f32 %v9169, %v9241
      %v9243 = vpop.f32.mrb[0].mxu0
      %v9244 = vadd.f32 %v9171, %v9243
      %9245 = vmatprep.mubr.bf16.mxu0 0
      %9246 = vmatmul.mubr.bf16.gmra.mrb[0].mxu0 %v9108
      %v9247 = vpop.f32.mrb[0].mxu0
      %v9248 = vadd.f32 %v9175, %v9247
      %v9249 = vpop.f32.mrb[0].mxu0
      %v9250 = vadd.f32 %v9177, %v9249
      %v9251 = vpop.f32.mrb[0].mxu0
      %v9252 = vadd.f32 %v9179, %v9251
      %v9253 = vpop.f32.mrb[0].mxu0
      %v9254 = vadd.f32 %v9181, %v9253
      %9255 = vdwg.mxu0
      %9256 = vmatprep.subr.bf16.mxu0 0
      %9257 = vmatpush1.bf16.msra.mxu0 %v8970
      %9258 = vmatprep.subr.bf16.mxu0 0
      %9259 = vmatpush1.bf16.msra.mxu0 %v8973
      %9260 = vmatprep.subr.bf16.mxu0 0
      %9261 = vmatpush1.bf16.msra.mxu0 %v8976
      %9262 = vmatprep.subr.bf16.mxu0 0
      %9263 = vmatpush1.bf16.msra.mxu0 %v8979
      %9264 = vmatprep.subr.bf16.mxu0 0
      %9265 = vmatpush1.bf16.msra.mxu0 %v8982
      %9266 = vmatprep.subr.bf16.mxu0 0
      %9267 = vmatpush1.bf16.msra.mxu0 %v8985
      %9268 = vmatprep.subr.bf16.mxu0 0
      %9269 = vmatpush1.bf16.msra.mxu0 %v8988
      %9270 = vmatprep.subr.bf16.mxu0 0
      %9271 = vmatpush1.bf16.msra.mxu0 %v8991
      %9272 = vmatprep.subr.bf16.mxu0 0
      %9273 = vmatpush1.bf16.msra.mxu0 %v8994
      %9274 = vmatprep.subr.bf16.mxu0 0
      %9275 = vmatpush1.bf16.msra.mxu0 %v8997
      %9276 = vmatprep.subr.bf16.mxu0 0
      %9277 = vmatpush1.bf16.msra.mxu0 %v9000
      %9278 = vmatprep.subr.bf16.mxu0 0
      %9279 = vmatpush1.bf16.msra.mxu0 %v9003
      %9280 = vmatprep.subr.bf16.mxu0 0
      %9281 = vmatpush1.bf16.msra.mxu0 %v9006
      %9282 = vmatprep.subr.bf16.mxu0 0
      %9283 = vmatpush1.bf16.msra.mxu0 %v9009
      %9284 = vmatprep.subr.bf16.mxu0 0
      %9285 = vmatpush1.bf16.msra.mxu0 %v9012
      %9286 = vmatprep.subr.bf16.mxu0 0
      %9287 = vmatpush1.bf16.msra.mxu0 %v9015
      %9288 = vmatprep.mubr.bf16.mxu0 %v9079
      %9289 = vmatmul.mubr.bf16.gmra.mrb[0].mxu0 %v9078
      %v9290 = vpop.f32.mrb[0].mxu0
      %v9291 = vadd.f32 0.0, %v9290
      %v9292 = vpop.f32.mrb[0].mxu0
      %v9293 = vpop.f32.mrb[0].mxu0
      %v9294 = vadd.f32 0.0, %v9293
      %v9295 = vpop.f32.mrb[0].mxu0
      %9296 = vmatprep.mubr.bf16.mxu0 %v9082
      %9297 = vmatmul.mubr.bf16.gmra.mrb[0].mxu0 %v9081
      %v9298 = vpop.f32.mrb[0].mxu0
      %v9299 = vadd.f32 0.0, %v9298
      %v9300 = vpop.f32.mrb[0].mxu0
      %v9301 = vpop.f32.mrb[0].mxu0
      %v9302 = vadd.f32 0.0, %v9301
      %v9303 = vpop.f32.mrb[0].mxu0
      %9304 = vmatprep.mubr.bf16.mxu0 %v9085
      %9305 = vmatmul.mubr.bf16.gmra.mrb[0].mxu0 %v9084
      %v9306 = vpop.f32.mrb[0].mxu0
      %v9307 = vadd.f32 0.0, %v9306
      %v9308 = vpop.f32.mrb[0].mxu0
      %v9309 = vpop.f32.mrb[0].mxu0
      %v9310 = vadd.f32 0.0, %v9309
      %v9311 = vpop.f32.mrb[0].mxu0
      %9312 = vmatprep.mubr.bf16.mxu0 %v9088
      %9313 = vmatmul.mubr.bf16.gmra.mrb[0].mxu0 %v9087
      %v9314 = vpop.f32.mrb[0].mxu0
      %v9315 = vadd.f32 0.0, %v9314
      %v9316 = vpop.f32.mrb[0].mxu0
      %v9317 = vpop.f32.mrb[0].mxu0
      %v9318 = vadd.f32 0.0, %v9317
      %v9319 = vpop.f32.mrb[0].mxu0
      %9320 = vdwg.mxu0
      %9321 = vmatprep.subr.bf16.mxu0 0
      %9322 = vmatpush1.bf16.msra.mxu0 %v9018
      %9323 = vmatprep.subr.bf16.mxu0 0
      %9324 = vmatpush1.bf16.msra.mxu0 %v9021
      %9325 = vmatprep.subr.bf16.mxu0 0
      %9326 = vmatpush1.bf16.msra.mxu0 0
      %9327 = vmatprep.subr.bf16.mxu0 0
      %9328 = vmatpush1.bf16.msra.mxu0 0
      %9329 = vmatprep.subr.bf16.mxu0 0
      %9330 = vmatpush1.bf16.msra.mxu0 0
      %9331 = vmatprep.subr.bf16.mxu0 0
      %9332 = vmatpush1.bf16.msra.mxu0 0
      %9333 = vmatprep.subr.bf16.mxu0 0
      %9334 = vmatpush1.bf16.msra.mxu0 0
      %9335 = vmatprep.subr.bf16.mxu0 0
      %9336 = vmatpush1.bf16.msra.mxu0 0
      %9337 = vmatprep.subr.bf16.mxu0 0
      %9338 = vmatpush1.bf16.msra.mxu0 0
      %9339 = vmatprep.subr.bf16.mxu0 0
      %9340 = vmatpush1.bf16.msra.mxu0 0
      %9341 = vmatprep.subr.bf16.mxu0 0
      %9342 = vmatpush1.bf16.msra.mxu0 0
      %9343 = vmatprep.subr.bf16.mxu0 0
      %9344 = vmatpush1.bf16.msra.mxu0 0
      %9345 = vmatprep.subr.bf16.mxu0 0
      %9346 = vmatpush1.bf16.msra.mxu0 0
      %9347 = vmatprep.subr.bf16.mxu0 0
      %9348 = vmatpush1.bf16.msra.mxu0 0
      %9349 = vmatprep.subr.bf16.mxu0 0
      %9350 = vmatpush1.bf16.msra.mxu0 0
      %9351 = vmatprep.subr.bf16.mxu0 0
      %9352 = vmatpush1.bf16.msra.mxu0 0
      %9353 = vmatprep.mubr.bf16.mxu0 0
      %9354 = vmatmul.mubr.bf16.gmra.mrb[0].mxu0 %v9099
      %v9355 = vpop.f32.mrb[0].mxu0
      %v9356 = vadd.f32 %v9291, %v9355
      %v9357 = vpop.f32.mrb[0].mxu0
      %v9358 = vpop.f32.mrb[0].mxu0
      %v9359 = vadd.f32 %v9294, %v9358
      %v9360 = vpop.f32.mrb[0].mxu0
      %9361 = vmatprep.mubr.bf16.mxu0 0
      %9362 = vmatmul.mubr.bf16.gmra.mrb[0].mxu0 %v9102
      %v9363 = vpop.f32.mrb[0].mxu0
      %v9364 = vadd.f32 %v9299, %v9363
      %v9365 = vpop.f32.mrb[0].mxu0
      %v9366 = vpop.f32.mrb[0].mxu0
      %v9367 = vadd.f32 %v9302, %v9366
      %v9368 = vpop.f32.mrb[0].mxu0
      %9369 = vmatprep.mubr.bf16.mxu0 0
      %9370 = vmatmul.mubr.bf16.gmra.mrb[0].mxu0 %v9105
      %v9371 = vpop.f32.mrb[0].mxu0
      %v9372 = vadd.f32 %v9307, %v9371
      %v9373 = vpop.f32.mrb[0].mxu0
      %v9374 = vpop.f32.mrb[0].mxu0
      %v9375 = vadd.f32 %v9310, %v9374
      %v9376 = vpop.f32.mrb[0].mxu0
      %9377 = vmatprep.mubr.bf16.mxu0 0
      %9378 = vmatmul.mubr.bf16.gmra.mrb[0].mxu0 %v9108
      %v9379 = vpop.f32.mrb[0].mxu0
      %v9380 = vadd.f32 %v9315, %v9379
      %v9381 = vpop.f32.mrb[0].mxu0
      %v9382 = vpop.f32.mrb[0].mxu0
      %v9383 = vadd.f32 %v9318, %v9382
      %v9384 = vpop.f32.mrb[0].mxu0
      %9385 = vdwg.mxu0
      %v9386 = vld [vmem:[%s15] sm:$0xff]
      %v9387 = vld [vmem:[%s15 + $0x8] sm:$0xff]
      %v9388 = vld [vmem:[%s15 + $0x10] sm:$0xff]
      %v9389 = vld [vmem:[%s15 + $0x18] sm:$0xff]
      %v9390 = vld [vmem:[%s15 + $0x20] sm:$0xff]
      %v9391 = vld [vmem:[%s15 + $0x28] sm:$0xff]
      %v9392 = vld [vmem:[%s15 + $0x30] sm:$0xff]
      %v9393 = vld [vmem:[%s15 + $0x38] sm:$0xff]
      %9395 = vset.pattern.permute.xlu0 0
      %9396 = vperm.xlu0 %9395, %v9386
      %v9397 = vpop.permute.xlu0 %9396
      %9400 = vset.pattern.permute.xlu0 0
      %9401 = vperm.xlu0 %9400, %v9387
      %v9402 = vpop.permute.xlu0 %9401
      %9405 = vset.pattern.permute.xlu0 0
      %9406 = vperm.xlu0 %9405, %v9388
      %v9407 = vpop.permute.xlu0 %9406
      %9410 = vset.pattern.permute.xlu0 0
      %9411 = vperm.xlu0 %9410, %v9389
      %v9412 = vpop.permute.xlu0 %9411
      %9415 = vset.pattern.permute.xlu0 0
      %9416 = vperm.xlu0 %9415, %v9390
      %v9417 = vpop.permute.xlu0 %9416
      %9420 = vset.pattern.permute.xlu0 0
      %9421 = vperm.xlu0 %9420, %v9391
      %v9422 = vpop.permute.xlu0 %9421
      %9425 = vset.pattern.permute.xlu0 0
      %9426 = vperm.xlu0 %9425, %v9392
      %v9427 = vpop.permute.xlu0 %9426
      %9430 = vset.pattern.permute.xlu0 0
      %9431 = vperm.xlu0 %9430, %v9393
      %v9432 = vpop.permute.xlu0 %9431
      %v9434 = vmul.f32 %v9218, %v9397
      %v9435 = vmul.f32 %v9220, %v9397
      %v9436 = vmul.f32 %v9356, %v9397
      %v9437 = vmul.f32 %v9222, %v9402
      %v9438 = vmul.f32 %v9224, %v9402
      %v9439 = vmul.f32 %v9359, %v9402
      %v9440 = vmul.f32 %v9228, %v9407
      %v9441 = vmul.f32 %v9230, %v9407
      %v9442 = vmul.f32 %v9364, %v9407
      %v9443 = vmul.f32 %v9232, %v9412
      %v9444 = vmul.f32 %v9234, %v9412
      %v9445 = vmul.f32 %v9367, %v9412
      %v9446 = vmul.f32 %v9238, %v9417
      %v9447 = vmul.f32 %v9240, %v9417
      %v9448 = vmul.f32 %v9372, %v9417
      %v9449 = vmul.f32 %v9242, %v9422
      %v9450 = vmul.f32 %v9244, %v9422
      %v9451 = vmul.f32 %v9375, %v9422
      %v9452 = vmul.f32 %v9248, %v9427
      %v9453 = vmul.f32 %v9250, %v9427
      %v9454 = vmul.f32 %v9380, %v9427
      %v9455 = vmul.f32 %v9252, %v9432
      %v9456 = vmul.f32 %v9254, %v9432
      %v9457 = vmul.f32 %v9383, %v9432
      %9458 = vset.pattern.permute.xlu0 1
      %9459 = vperm.xlu0 %9458, %v9386
      %v9460 = vpop.permute.xlu0 %9459
      %9462 = vset.pattern.permute.xlu0 1
      %9463 = vperm.xlu0 %9462, %v9387
      %v9464 = vpop.permute.xlu0 %9463
      %9466 = vset.pattern.permute.xlu0 1
      %9467 = vperm.xlu0 %9466, %v9388
      %v9468 = vpop.permute.xlu0 %9467
      %9470 = vset.pattern.permute.xlu0 1
      %9471 = vperm.xlu0 %9470, %v9389
      %v9472 = vpop.permute.xlu0 %9471
      %9474 = vset.pattern.permute.xlu0 1
      %9475 = vperm.xlu0 %9474, %v9390
      %v9476 = vpop.permute.xlu0 %9475
      %9478 = vset.pattern.permute.xlu0 1
      %9479 = vperm.xlu0 %9478, %v9391
      %v9480 = vpop.permute.xlu0 %9479
      %9482 = vset.pattern.permute.xlu0 1
      %9483 = vperm.xlu0 %9482, %v9392
      %v9484 = vpop.permute.xlu0 %9483
      %9486 = vset.pattern.permute.xlu0 1
      %9487 = vperm.xlu0 %9486, %v9393
      %v9488 = vpop.permute.xlu0 %9487
      %v9490 = vadd.f32 %v9434, %v9460
      %v9491 = vadd.f32 %v9435, %v9460
      %v9492 = vadd.f32 %v9436, %v9460
      %v9493 = vadd.f32 %v9437, %v9464
      %v9494 = vadd.f32 %v9438, %v9464
      %v9495 = vadd.f32 %v9439, %v9464
      %v9496 = vadd.f32 %v9440, %v9468
      %v9497 = vadd.f32 %v9441, %v9468
      %v9498 = vadd.f32 %v9442, %v9468
      %v9499 = vadd.f32 %v9443, %v9472
      %v9500 = vadd.f32 %v9444, %v9472
      %v9501 = vadd.f32 %v9445, %v9472
      %v9502 = vadd.f32 %v9446, %v9476
      %v9503 = vadd.f32 %v9447, %v9476
      %v9504 = vadd.f32 %v9448, %v9476
      %v9505 = vadd.f32 %v9449, %v9480
      %v9506 = vadd.f32 %v9450, %v9480
      %v9507 = vadd.f32 %v9451, %v9480
      %v9508 = vadd.f32 %v9452, %v9484
      %v9509 = vadd.f32 %v9453, %v9484
      %v9510 = vadd.f32 %v9454, %v9484
      %v9511 = vadd.f32 %v9455, %v9488
      %v9512 = vadd.f32 %v9456, %v9488
      %v9513 = vadd.f32 %v9457, %v9488
      %v9514 = vmax.f32 %v9490, 0.0
      %v9515 = vmax.f32 %v9491, 0.0
      %v9516 = vmax.f32 %v9492, 0.0
      %v9517 = vmax.f32 %v9493, 0.0
      %v9518 = vmax.f32 %v9494, 0.0
      %v9519 = vmax.f32 %v9495, 0.0
      %v9520 = vmax.f32 %v9496, 0.0
      %v9521 = vmax.f32 %v9497, 0.0
      %v9522 = vmax.f32 %v9498, 0.0
      %v9523 = vmax.f32 %v9499, 0.0
      %v9524 = vmax.f32 %v9500, 0.0
      %v9525 = vmax.f32 %v9501, 0.0
      %v9526 = vmax.f32 %v9502, 0.0
      %v9527 = vmax.f32 %v9503, 0.0
      %v9528 = vmax.f32 %v9504, 0.0
      %v9529 = vmax.f32 %v9505, 0.0
      %v9530 = vmax.f32 %v9506, 0.0
      %v9531 = vmax.f32 %v9507, 0.0
      %v9532 = vmax.f32 %v9508, 0.0
      %v9533 = vmax.f32 %v9509, 0.0
      %v9534 = vmax.f32 %v9510, 0.0
      %v9535 = vmax.f32 %v9511, 0.0
      %v9536 = vmax.f32 %v9512, 0.0
      %v9537 = vmax.f32 %v9513, 0.0
      %v9538 = vpack.c.bf16 %v9517, %v9514
      %v9539 = vpack.c.bf16 %v9518, %v9515
      %v9540 = vpack.c.bf16 %v9519, %v9516
      %v9541 = vpack.c.bf16 %v9523, %v9520
      %v9542 = vpack.c.bf16 %v9524, %v9521
      %v9543 = vpack.c.bf16 %v9525, %v9522
      %v9544 = vpack.c.bf16 %v9529, %v9526
      %v9545 = vpack.c.bf16 %v9530, %v9527
      %v9546 = vpack.c.bf16 %v9531, %v9528
      %v9547 = vpack.c.bf16 %v9535, %v9532
      %v9548 = vpack.c.bf16 %v9536, %v9533
      %v9549 = vpack.c.bf16 %v9537, %v9534
      %v9586 = vunpack.c.l.b16 %v8556
      %v9587 = vunpack.c.l.b16 %v8557
      %v9588 = vunpack.c.l.b16 %v8558
      %v9589 = vunpack.c.l.b16 %v8559
      %v9590 = vunpack.c.l.b16 %v8560
      %v9591 = vunpack.c.l.b16 %v8561
      %v9592 = vunpack.c.l.b16 %v8562
      %v9593 = vunpack.c.l.b16 %v8563
      %v9594 = vunpack.c.l.b16 %v8564
      %v9595 = vunpack.c.l.b16 %v8565
      %v9596 = vunpack.c.l.b16 %v8566
      %v9597 = vunpack.c.l.b16 %v8567
      %v9598 = vunpack.c.l.b16 %v8568
      %v9599 = vunpack.c.l.b16 %v8569
      %v9600 = vunpack.c.l.b16 %v8570
      %v9601 = vunpack.c.l.b16 %v8571
      %v9602 = vunpack.c.l.b16 %v8572
      %v9603 = vunpack.c.l.b16 %v8573
      %v9604 = vunpack.c.l.b16 %v8574
      %v9605 = vunpack.c.l.b16 %v8575
      %v9606 = vunpack.c.l.b16 %v8576
      %v9607 = vunpack.c.l.b16 %v8577
      %v9608 = vunpack.c.l.b16 %v8578
      %v9609 = vunpack.c.l.b16 %v8579
      %v9610 = vunpack.c.l.b16 %v8580
      %v9611 = vunpack.c.l.b16 %v8581
      %v9612 = vunpack.c.l.b16 %v8582
      %v9613 = vunpack.c.l.b16 %v8583
      %v9614 = vunpack.c.l.b16 %v8584
      %v9615 = vunpack.c.l.b16 %v8585
      %v9616 = vunpack.c.l.b16 %v8586
      %v9617 = vunpack.c.l.b16 %v8587
      %v9618 = vunpack.c.l.b16 %v8588
      %v9619 = vunpack.c.l.b16 %v8589
      %v9620 = vunpack.c.l.b16 %v8590
      %v9621 = vunpack.c.l.b16 %v8591
      %v9622 = vpack.c.b16 %v9587, %v9586
      %v9623 = vpack.c.b16 %v9589, %v9588
      %v9624 = vpack.c.b16 %v9591, %v9590
      %v9625 = vpack.c.b16 %v9593, %v9592
      %v9626 = vpack.c.b16 %v9595, %v9594
      %v9627 = vpack.c.b16 %v9597, %v9596
      %v9628 = vpack.c.b16 %v9599, %v9598
      %v9629 = vpack.c.b16 %v9601, %v9600
      %v9630 = vpack.c.b16 %v9603, %v9602
      %v9631 = vpack.c.b16 %v9605, %v9604
      %v9632 = vpack.c.b16 %v9607, %v9606
      %v9633 = vpack.c.b16 %v9609, %v9608
      %v9634 = vpack.c.b16 %v9611, %v9610
      %v9635 = vpack.c.b16 %v9613, %v9612
      %v9636 = vpack.c.b16 %v9615, %v9614
      %v9637 = vpack.c.b16 %v9617, %v9616
      %v9638 = vpack.c.b16 %v9619, %v9618
      %v9639 = vpack.c.b16 %v9621, %v9620
      %v9659 = vsel %vm8169, %v9540, 0
      %v9662 = vsel %vm8169, %v9543, 0
      %v9665 = vsel %vm8169, %v9546, 0
      %v9668 = vsel %vm8169, %v9549, 0
      %9670 = vmatprep.subr.bf16.mxu0 0
      %9671 = vmatpush1.bf16.msra.mxu0 %v9622
      %9672 = vmatprep.subr.bf16.mxu0 0
      %9673 = vmatpush1.bf16.msra.mxu0 %v9623
      %9674 = vmatprep.subr.bf16.mxu0 0
      %9675 = vmatpush1.bf16.msra.mxu0 %v9624
      %9676 = vmatprep.subr.bf16.mxu0 0
      %9677 = vmatpush1.bf16.msra.mxu0 %v9625
      %9678 = vmatprep.subr.bf16.mxu0 0
      %9679 = vmatpush1.bf16.msra.mxu0 %v9626
      %9680 = vmatprep.subr.bf16.mxu0 0
      %9681 = vmatpush1.bf16.msra.mxu0 %v9627
      %9682 = vmatprep.subr.bf16.mxu0 0
      %9683 = vmatpush1.bf16.msra.mxu0 %v9628
      %9684 = vmatprep.subr.bf16.mxu0 0
      %9685 = vmatpush1.bf16.msra.mxu0 %v9629
      %9686 = vmatprep.subr.bf16.mxu0 0
      %9687 = vmatpush1.bf16.msra.mxu0 %v9630
      %9688 = vmatprep.subr.bf16.mxu0 0
      %9689 = vmatpush1.bf16.msra.mxu0 %v9631
      %9690 = vmatprep.subr.bf16.mxu0 0
      %9691 = vmatpush1.bf16.msra.mxu0 %v9632
      %9692 = vmatprep.subr.bf16.mxu0 0
      %9693 = vmatpush1.bf16.msra.mxu0 %v9633
      %9694 = vmatprep.subr.bf16.mxu0 0
      %9695 = vmatpush1.bf16.msra.mxu0 %v9634
      %9696 = vmatprep.subr.bf16.mxu0 0
      %9697 = vmatpush1.bf16.msra.mxu0 %v9635
      %9698 = vmatprep.subr.bf16.mxu0 0
      %9699 = vmatpush1.bf16.msra.mxu0 %v9636
      %9700 = vmatprep.subr.bf16.mxu0 0
      %9701 = vmatpush1.bf16.msra.mxu0 %v9637
      %9702 = vmatprep.mubr.bf16.mxu0 %v9539
      %9703 = vmatmul.mubr.bf16.gmra.mrb[0].mxu0 %v9538
      %v9704 = vpop.f32.mrb[0].mxu0
      %v9705 = vadd.f32 0.0, %v9704
      %v9706 = vpop.f32.mrb[0].mxu0
      %v9707 = vpop.f32.mrb[0].mxu0
      %v9708 = vadd.f32 0.0, %v9707
      %v9709 = vpop.f32.mrb[0].mxu0
      %9710 = vmatprep.mubr.bf16.mxu0 %v9542
      %9711 = vmatmul.mubr.bf16.gmra.mrb[0].mxu0 %v9541
      %v9712 = vpop.f32.mrb[0].mxu0
      %v9713 = vadd.f32 0.0, %v9712
      %v9714 = vpop.f32.mrb[0].mxu0
      %v9715 = vpop.f32.mrb[0].mxu0
      %v9716 = vadd.f32 0.0, %v9715
      %v9717 = vpop.f32.mrb[0].mxu0
      %9718 = vmatprep.mubr.bf16.mxu0 %v9545
      %9719 = vmatmul.mubr.bf16.gmra.mrb[0].mxu0 %v9544
      %v9720 = vpop.f32.mrb[0].mxu0
      %v9721 = vadd.f32 0.0, %v9720
      %v9722 = vpop.f32.mrb[0].mxu0
      %v9723 = vpop.f32.mrb[0].mxu0
      %v9724 = vadd.f32 0.0, %v9723
      %v9725 = vpop.f32.mrb[0].mxu0
      %9726 = vmatprep.mubr.bf16.mxu0 %v9548
      %9727 = vmatmul.mubr.bf16.gmra.mrb[0].mxu0 %v9547
      %v9728 = vpop.f32.mrb[0].mxu0
      %v9729 = vadd.f32 0.0, %v9728
      %v9730 = vpop.f32.mrb[0].mxu0
      %v9731 = vpop.f32.mrb[0].mxu0
      %v9732 = vadd.f32 0.0, %v9731
      %v9733 = vpop.f32.mrb[0].mxu0
      %9734 = vdwg.mxu0
      %9735 = vmatprep.subr.bf16.mxu0 0
      %9736 = vmatpush1.bf16.msra.mxu0 %v9638
      %9737 = vmatprep.subr.bf16.mxu0 0
      %9738 = vmatpush1.bf16.msra.mxu0 %v9639
      %9739 = vmatprep.subr.bf16.mxu0 0
      %9740 = vmatpush1.bf16.msra.mxu0 0
      %9741 = vmatprep.subr.bf16.mxu0 0
      %9742 = vmatpush1.bf16.msra.mxu0 0
      %9743 = vmatprep.subr.bf16.mxu0 0
      %9744 = vmatpush1.bf16.msra.mxu0 0
      %9745 = vmatprep.subr.bf16.mxu0 0
      %9746 = vmatpush1.bf16.msra.mxu0 0
      %9747 = vmatprep.subr.bf16.mxu0 0
      %9748 = vmatpush1.bf16.msra.mxu0 0
      %9749 = vmatprep.subr.bf16.mxu0 0
      %9750 = vmatpush1.bf16.msra.mxu0 0
      %9751 = vmatprep.subr.bf16.mxu0 0
      %9752 = vmatpush1.bf16.msra.mxu0 0
      %9753 = vmatprep.subr.bf16.mxu0 0
      %9754 = vmatpush1.bf16.msra.mxu0 0
      %9755 = vmatprep.subr.bf16.mxu0 0
      %9756 = vmatpush1.bf16.msra.mxu0 0
      %9757 = vmatprep.subr.bf16.mxu0 0
      %9758 = vmatpush1.bf16.msra.mxu0 0
      %9759 = vmatprep.subr.bf16.mxu0 0
      %9760 = vmatpush1.bf16.msra.mxu0 0
      %9761 = vmatprep.subr.bf16.mxu0 0
      %9762 = vmatpush1.bf16.msra.mxu0 0
      %9763 = vmatprep.subr.bf16.mxu0 0
      %9764 = vmatpush1.bf16.msra.mxu0 0
      %9765 = vmatprep.subr.bf16.mxu0 0
      %9766 = vmatpush1.bf16.msra.mxu0 0
      %9767 = vmatprep.mubr.bf16.mxu0 0
      %9768 = vmatmul.mubr.bf16.gmra.mrb[0].mxu0 %v9659
      %v9769 = vpop.f32.mrb[0].mxu0
      %v9770 = vadd.f32 %v9705, %v9769
      %v9771 = vpop.f32.mrb[0].mxu0
      %v9772 = vpop.f32.mrb[0].mxu0
      %v9773 = vadd.f32 %v9708, %v9772
      %v9774 = vpop.f32.mrb[0].mxu0
      %9775 = vmatprep.mubr.bf16.mxu0 0
      %9776 = vmatmul.mubr.bf16.gmra.mrb[0].mxu0 %v9662
      %v9777 = vpop.f32.mrb[0].mxu0
      %v9778 = vadd.f32 %v9713, %v9777
      %v9779 = vpop.f32.mrb[0].mxu0
      %v9780 = vpop.f32.mrb[0].mxu0
      %v9781 = vadd.f32 %v9716, %v9780
      %v9782 = vpop.f32.mrb[0].mxu0
      %9783 = vmatprep.mubr.bf16.mxu0 0
      %9784 = vmatmul.mubr.bf16.gmra.mrb[0].mxu0 %v9665
      %v9785 = vpop.f32.mrb[0].mxu0
      %v9786 = vadd.f32 %v9721, %v9785
      %v9787 = vpop.f32.mrb[0].mxu0
      %v9788 = vpop.f32.mrb[0].mxu0
      %v9789 = vadd.f32 %v9724, %v9788
      %v9790 = vpop.f32.mrb[0].mxu0
      %9791 = vmatprep.mubr.bf16.mxu0 0
      %9792 = vmatmul.mubr.bf16.gmra.mrb[0].mxu0 %v9668
      %v9793 = vpop.f32.mrb[0].mxu0
      %v9794 = vadd.f32 %v9729, %v9793
      %v9795 = vpop.f32.mrb[0].mxu0
      %v9796 = vpop.f32.mrb[0].mxu0
      %v9797 = vadd.f32 %v9732, %v9796
      %v9798 = vpop.f32.mrb[0].mxu0
      %9799 = vdwg.mxu0
      %9800 = vst [vmem:[#allocation7] sm:$0xff] %v9770
      %9801 = vst [vmem:[#allocation7 + $0x8] sm:$0xff] %v9773
      %9802 = vst [vmem:[#allocation7 + $0x10] sm:$0xff] %v9778
      %9803 = vst [vmem:[#allocation7 + $0x18] sm:$0xff] %v9781
      %9804 = vst [vmem:[#allocation7 + $0x20] sm:$0xff] %v9786
      %9805 = vst [vmem:[#allocation7 + $0x28] sm:$0xff] %v9789
      %9806 = vst [vmem:[#allocation7 + $0x30] sm:$0xff] %v9794
      %9807 = vst [vmem:[#allocation7 + $0x38] sm:$0xff] %v9797
      %v9808 = vpack.c.bf16 %v8447, %v8444
      %v9809 = vpack.c.bf16 %v8448, %v8445
      %v9810 = vpack.c.bf16 %v8449, %v8446
      %v9811 = vpack.c.bf16 %v8453, %v8450
      %v9812 = vpack.c.bf16 %v8454, %v8451
      %v9813 = vpack.c.bf16 %v8455, %v8452
      %v9815 = vsel %vm8169, %v9810, 0
      %v9818 = vsel %vm8169, %v9813, 0
      %9820 = vmatprep.subr.bf16.mxu0 0
      %9821 = vmatpush1.bf16.msra.mxu0 %v9622
      %9822 = vmatprep.subr.bf16.mxu0 0
      %9823 = vmatpush1.bf16.msra.mxu0 %v9623
      %9824 = vmatprep.subr.bf16.mxu0 0
      %9825 = vmatpush1.bf16.msra.mxu0 %v9624
      %9826 = vmatprep.subr.bf16.mxu0 0
      %9827 = vmatpush1.bf16.msra.mxu0 %v9625
      %9828 = vmatprep.subr.bf16.mxu0 0
      %9829 = vmatpush1.bf16.msra.mxu0 %v9626
      %9830 = vmatprep.subr.bf16.mxu0 0
      %9831 = vmatpush1.bf16.msra.mxu0 %v9627
      %9832 = vmatprep.subr.bf16.mxu0 0
      %9833 = vmatpush1.bf16.msra.mxu0 %v9628
      %9834 = vmatprep.subr.bf16.mxu0 0
      %9835 = vmatpush1.bf16.msra.mxu0 %v9629
      %9836 = vmatprep.subr.bf16.mxu0 0
      %9837 = vmatpush1.bf16.msra.mxu0 %v9630
      %9838 = vmatprep.subr.bf16.mxu0 0
      %9839 = vmatpush1.bf16.msra.mxu0 %v9631
      %9840 = vmatprep.subr.bf16.mxu0 0
      %9841 = vmatpush1.bf16.msra.mxu0 %v9632
      %9842 = vmatprep.subr.bf16.mxu0 0
      %9843 = vmatpush1.bf16.msra.mxu0 %v9633
      %9844 = vmatprep.subr.bf16.mxu0 0
      %9845 = vmatpush1.bf16.msra.mxu0 %v9634
      %9846 = vmatprep.subr.bf16.mxu0 0
      %9847 = vmatpush1.bf16.msra.mxu0 %v9635
      %9848 = vmatprep.subr.bf16.mxu0 0
      %9849 = vmatpush1.bf16.msra.mxu0 %v9636
      %9850 = vmatprep.subr.bf16.mxu0 0
      %9851 = vmatpush1.bf16.msra.mxu0 %v9637
      %9852 = vmatprep.mubr.bf16.mxu0 %v9809
      %9853 = vmatmul.mubr.bf16.gmra.mrb[0].mxu0 %v9808
      %v9854 = vpop.f32.mrb[0].mxu0
      %v9855 = vadd.f32 0.0, %v9854
      %v9856 = vpop.f32.mrb[0].mxu0
      %v9857 = vpop.f32.mrb[0].mxu0
      %v9858 = vadd.f32 0.0, %v9857
      %v9859 = vpop.f32.mrb[0].mxu0
      %9860 = vmatprep.mubr.bf16.mxu0 %v9812
      %9861 = vmatmul.mubr.bf16.gmra.mrb[0].mxu0 %v9811
      %v9862 = vpop.f32.mrb[0].mxu0
      %v9863 = vadd.f32 0.0, %v9862
      %v9864 = vpop.f32.mrb[0].mxu0
      %v9865 = vpop.f32.mrb[0].mxu0
      %v9866 = vadd.f32 0.0, %v9865
      %v9867 = vpop.f32.mrb[0].mxu0
      %9868 = vdwg.mxu0
      %9869 = vmatprep.subr.bf16.mxu0 0
      %9870 = vmatpush1.bf16.msra.mxu0 %v9638
      %9871 = vmatprep.subr.bf16.mxu0 0
      %9872 = vmatpush1.bf16.msra.mxu0 %v9639
      %9873 = vmatprep.subr.bf16.mxu0 0
      %9874 = vmatpush1.bf16.msra.mxu0 0
      %9875 = vmatprep.subr.bf16.mxu0 0
      %9876 = vmatpush1.bf16.msra.mxu0 0
      %9877 = vmatprep.subr.bf16.mxu0 0
      %9878 = vmatpush1.bf16.msra.mxu0 0
      %9879 = vmatprep.subr.bf16.mxu0 0
      %9880 = vmatpush1.bf16.msra.mxu0 0
      %9881 = vmatprep.subr.bf16.mxu0 0
      %9882 = vmatpush1.bf16.msra.mxu0 0
      %9883 = vmatprep.subr.bf16.mxu0 0
      %9884 = vmatpush1.bf16.msra.mxu0 0
      %9885 = vmatprep.subr.bf16.mxu0 0
      %9886 = vmatpush1.bf16.msra.mxu0 0
      %9887 = vmatprep.subr.bf16.mxu0 0
      %9888 = vmatpush1.bf16.msra.mxu0 0
      %9889 = vmatprep.subr.bf16.mxu0 0
      %9890 = vmatpush1.bf16.msra.mxu0 0
      %9891 = vmatprep.subr.bf16.mxu0 0
      %9892 = vmatpush1.bf16.msra.mxu0 0
      %9893 = vmatprep.subr.bf16.mxu0 0
      %9894 = vmatpush1.bf16.msra.mxu0 0
      %9895 = vmatprep.subr.bf16.mxu0 0
      %9896 = vmatpush1.bf16.msra.mxu0 0
      %9897 = vmatprep.subr.bf16.mxu0 0
      %9898 = vmatpush1.bf16.msra.mxu0 0
      %9899 = vmatprep.subr.bf16.mxu0 0
      %9900 = vmatpush1.bf16.msra.mxu0 0
      %9901 = vmatprep.mubr.bf16.mxu0 0
      %9902 = vmatmul.mubr.bf16.gmra.mrb[0].mxu0 %v9815
      %v9903 = vpop.f32.mrb[0].mxu0
      %v9904 = vadd.f32 %v9855, %v9903
      %v9905 = vpop.f32.mrb[0].mxu0
      %v9906 = vpop.f32.mrb[0].mxu0
      %v9907 = vadd.f32 %v9858, %v9906
      %v9908 = vpop.f32.mrb[0].mxu0
      %9909 = vmatprep.mubr.bf16.mxu0 0
      %9910 = vmatmul.mubr.bf16.gmra.mrb[0].mxu0 %v9818
      %v9911 = vpop.f32.mrb[0].mxu0
      %v9912 = vadd.f32 %v9863, %v9911
      %v9913 = vpop.f32.mrb[0].mxu0
      %v9914 = vpop.f32.mrb[0].mxu0
      %v9915 = vadd.f32 %v9866, %v9914
      %v9916 = vpop.f32.mrb[0].mxu0
      %9917 = vdwg.mxu0
      %v9918 = vld [vmem:[%s9] sm:$0xf]
      %v9919 = vld [vmem:[%s9 + $0x4] sm:$0xf]
      %v9920 = vld [vmem:[%s9 + $0x8] sm:$0xf]
      %v9921 = vld [vmem:[%s9 + $0xc] sm:$0xf]
      %v9922 = vld [vmem:[%s9 + $0x10] sm:$0xf]
      %v9923 = vld [vmem:[%s9 + $0x14] sm:$0xf]
      %v9924 = vld [vmem:[%s9 + $0x18] sm:$0xf]
      %v9925 = vld [vmem:[%s9 + $0x1c] sm:$0xf]
      %v9926 = vpack.c.bf16 %v9907, %v9904
      %v9927 = vpack.c.bf16 %v9915, %v9912
      %v9936 = vunpack.c.l.b16 %v9918
      %v9937 = vunpack.c.l.b16 %v9919
      %v9938 = vunpack.c.l.b16 %v9920
      %v9939 = vunpack.c.l.b16 %v9921
      %v9940 = vunpack.c.l.b16 %v9922
      %v9941 = vunpack.c.l.b16 %v9923
      %v9942 = vunpack.c.l.b16 %v9924
      %v9943 = vunpack.c.l.b16 %v9925
      %v9944 = vpack.c.b16 %v9937, %v9936
      %v9945 = vpack.c.b16 %v9939, %v9938
      %v9946 = vpack.c.b16 %v9941, %v9940
      %v9947 = vpack.c.b16 %v9943, %v9942
      %v9949 = vsel %vm8169, %v9944, 0
      %v9952 = vsel %vm8169, %v9945, 0
      %v9955 = vsel %vm8169, %v9946, 0
      %v9958 = vsel %vm8169, %v9947, 0
      %9960 = vmatprep.subr.bf16.mxu0 0
      %9961 = vmatpush1.bf16.msra.mxu0 %v9926
      %9962 = vmatprep.subr.bf16.mxu0 0
      %9963 = vmatpush1.bf16.msra.mxu0 %v9927
      %9964 = vmatprep.subr.bf16.mxu0 0
      %9965 = vmatpush1.bf16.msra.mxu0 0
      %9966 = vmatprep.subr.bf16.mxu0 0
      %9967 = vmatpush1.bf16.msra.mxu0 0
      %9968 = vmatprep.subr.bf16.mxu0 0
      %9969 = vmatpush1.bf16.msra.mxu0 0
      %9970 = vmatprep.subr.bf16.mxu0 0
      %9971 = vmatpush1.bf16.msra.mxu0 0
      %9972 = vmatprep.subr.bf16.mxu0 0
      %9973 = vmatpush1.bf16.msra.mxu0 0
      %9974 = vmatprep.subr.bf16.mxu0 0
      %9975 = vmatpush1.bf16.msra.mxu0 0
      %9976 = vmatprep.subr.bf16.mxu0 0
      %9977 = vmatpush1.bf16.msra.mxu0 0
      %9978 = vmatprep.subr.bf16.mxu0 0
      %9979 = vmatpush1.bf16.msra.mxu0 0
      %9980 = vmatprep.subr.bf16.mxu0 0
      %9981 = vmatpush1.bf16.msra.mxu0 0
      %9982 = vmatprep.subr.bf16.mxu0 0
      %9983 = vmatpush1.bf16.msra.mxu0 0
      %9984 = vmatprep.subr.bf16.mxu0 0
      %9985 = vmatpush1.bf16.msra.mxu0 0
      %9986 = vmatprep.subr.bf16.mxu0 0
      %9987 = vmatpush1.bf16.msra.mxu0 0
      %9988 = vmatprep.subr.bf16.mxu0 0
      %9989 = vmatpush1.bf16.msra.mxu0 0
      %9990 = vmatprep.subr.bf16.mxu0 0
      %9991 = vmatpush1.bf16.msra.mxu0 0
      %9992 = vmatprep.mubr.bf16.mxu0 0
      %9993 = vmatmul.mubr.bf16.gmra.mrb[0].mxu0 %v9949
      %v9994 = vpop.f32.mrb[0].mxu0
      %v9995 = vadd.f32 0.0, %v9994
      %v9996 = vpop.f32.mrb[0].mxu0
      %v9997 = vpop.f32.mrb[0].mxu0
      %v9998 = vadd.f32 0.0, %v9997
      %v9999 = vpop.f32.mrb[0].mxu0
      %10000 = vmatprep.mubr.bf16.mxu0 0
      %10001 = vmatmul.mubr.bf16.gmra.mrb[0].mxu0 %v9952
      %v10002 = vpop.f32.mrb[0].mxu0
      %v10003 = vadd.f32 0.0, %v10002
      %v10004 = vpop.f32.mrb[0].mxu0
      %v10005 = vpop.f32.mrb[0].mxu0
      %v10006 = vadd.f32 0.0, %v10005
      %v10007 = vpop.f32.mrb[0].mxu0
      %10008 = vmatprep.mubr.bf16.mxu0 0
      %10009 = vmatmul.mubr.bf16.gmra.mrb[0].mxu0 %v9955
      %v10010 = vpop.f32.mrb[0].mxu0
      %v10011 = vadd.f32 0.0, %v10010
      %v10012 = vpop.f32.mrb[0].mxu0
      %v10013 = vpop.f32.mrb[0].mxu0
      %v10014 = vadd.f32 0.0, %v10013
      %v10015 = vpop.f32.mrb[0].mxu0
      %10016 = vmatprep.mubr.bf16.mxu0 0
      %10017 = vmatmul.mubr.bf16.gmra.mrb[0].mxu0 %v9958
      %v10018 = vpop.f32.mrb[0].mxu0
      %v10019 = vadd.f32 0.0, %v10018
      %v10020 = vpop.f32.mrb[0].mxu0
      %v10021 = vpop.f32.mrb[0].mxu0
      %v10022 = vadd.f32 0.0, %v10021
      %v10023 = vpop.f32.mrb[0].mxu0
      %10024 = vdwg.mxu0
      %v10025 = vld [vmem:[#allocation7] sm:$0xff]
      %v10026 = vld [vmem:[#allocation7 + $0x8] sm:$0xff]
      %v10027 = vld [vmem:[#allocation7 + $0x10] sm:$0xff]
      %v10028 = vld [vmem:[#allocation7 + $0x18] sm:$0xff]
      %v10029 = vld [vmem:[#allocation7 + $0x20] sm:$0xff]
      %v10030 = vld [vmem:[#allocation7 + $0x28] sm:$0xff]
      %v10031 = vld [vmem:[#allocation7 + $0x30] sm:$0xff]
      %v10032 = vld [vmem:[#allocation7 + $0x38] sm:$0xff]
      %10041 = vrot.lane.b32.xlu0 %v10025, 127
      %v10042 = vpop.permute.xlu0 %10041
      %10043 = vrot.lane.b32.xlu0 %v10026, 127
      %v10044 = vpop.permute.xlu0 %10043
      %10045 = vrot.lane.b32.xlu0 %v10027, 127
      %v10046 = vpop.permute.xlu0 %10045
      %10047 = vrot.lane.b32.xlu0 %v10028, 127
      %v10048 = vpop.permute.xlu0 %10047
      %10049 = vrot.lane.b32.xlu0 %v10029, 127
      %v10050 = vpop.permute.xlu0 %10049
      %10051 = vrot.lane.b32.xlu0 %v10030, 127
      %v10052 = vpop.permute.xlu0 %10051
      %10053 = vrot.lane.b32.xlu0 %v10031, 127
      %v10054 = vpop.permute.xlu0 %10053
      %10055 = vrot.lane.b32.xlu0 %v10032, 127
      %v10056 = vpop.permute.xlu0 %10055
      %10065 = vrot.lane.b32.xlu0 %v10025, 126
      %v10066 = vpop.permute.xlu0 %10065
      %10067 = vrot.lane.b32.xlu0 %v10026, 126
      %v10068 = vpop.permute.xlu0 %10067
      %10069 = vrot.lane.b32.xlu0 %v10027, 126
      %v10070 = vpop.permute.xlu0 %10069
      %10071 = vrot.lane.b32.xlu0 %v10028, 126
      %v10072 = vpop.permute.xlu0 %10071
      %10073 = vrot.lane.b32.xlu0 %v10029, 126
      %v10074 = vpop.permute.xlu0 %10073
      %10075 = vrot.lane.b32.xlu0 %v10030, 126
      %v10076 = vpop.permute.xlu0 %10075
      %10077 = vrot.lane.b32.xlu0 %v10031, 126
      %v10078 = vpop.permute.xlu0 %10077
      %10079 = vrot.lane.b32.xlu0 %v10032, 126
      %v10080 = vpop.permute.xlu0 %10079
      %10089 = vrot.lane.b32.xlu0 %v10025, 118
      %v10090 = vpop.permute.xlu0 %10089
      %10091 = vrot.lane.b32.xlu0 %v10026, 118
      %v10092 = vpop.permute.xlu0 %10091
      %10093 = vrot.lane.b32.xlu0 %v10027, 118
      %v10094 = vpop.permute.xlu0 %10093
      %10095 = vrot.lane.b32.xlu0 %v10028, 118
      %v10096 = vpop.permute.xlu0 %10095
      %10097 = vrot.lane.b32.xlu0 %v10029, 118
      %v10098 = vpop.permute.xlu0 %10097
      %10099 = vrot.lane.b32.xlu0 %v10030, 118
      %v10100 = vpop.permute.xlu0 %10099
      %10101 = vrot.lane.b32.xlu0 %v10031, 118
      %v10102 = vpop.permute.xlu0 %10101
      %10103 = vrot.lane.b32.xlu0 %v10032, 118
      %v10104 = vpop.permute.xlu0 %10103
      %10113 = vrot.lane.b32.xlu0 %v10025, 117
      %v10114 = vpop.permute.xlu0 %10113
      %10115 = vrot.lane.b32.xlu0 %v10026, 117
      %v10116 = vpop.permute.xlu0 %10115
      %10117 = vrot.lane.b32.xlu0 %v10027, 117
      %v10118 = vpop.permute.xlu0 %10117
      %10119 = vrot.lane.b32.xlu0 %v10028, 117
      %v10120 = vpop.permute.xlu0 %10119
      %10121 = vrot.lane.b32.xlu0 %v10029, 117
      %v10122 = vpop.permute.xlu0 %10121
      %10123 = vrot.lane.b32.xlu0 %v10030, 117
      %v10124 = vpop.permute.xlu0 %10123
      %10125 = vrot.lane.b32.xlu0 %v10031, 117
      %v10126 = vpop.permute.xlu0 %10125
      %10127 = vrot.lane.b32.xlu0 %v10032, 117
      %v10128 = vpop.permute.xlu0 %10127
      %10137 = vrot.lane.b32.xlu0 %v10025, 116
      %v10138 = vpop.permute.xlu0 %10137
      %10139 = vrot.lane.b32.xlu0 %v10026, 116
      %v10140 = vpop.permute.xlu0 %10139
      %10141 = vrot.lane.b32.xlu0 %v10027, 116
      %v10142 = vpop.permute.xlu0 %10141
      %10143 = vrot.lane.b32.xlu0 %v10028, 116
      %v10144 = vpop.permute.xlu0 %10143
      %10145 = vrot.lane.b32.xlu0 %v10029, 116
      %v10146 = vpop.permute.xlu0 %10145
      %10147 = vrot.lane.b32.xlu0 %v10030, 116
      %v10148 = vpop.permute.xlu0 %10147
      %10149 = vrot.lane.b32.xlu0 %v10031, 116
      %v10150 = vpop.permute.xlu0 %10149
      %10151 = vrot.lane.b32.xlu0 %v10032, 116
      %v10152 = vpop.permute.xlu0 %10151
      %10161 = vrot.lane.b32.xlu0 %v10025, 108
      %v10162 = vpop.permute.xlu0 %10161
      %10163 = vrot.lane.b32.xlu0 %v10026, 108
      %v10164 = vpop.permute.xlu0 %10163
      %10165 = vrot.lane.b32.xlu0 %v10027, 108
      %v10166 = vpop.permute.xlu0 %10165
      %10167 = vrot.lane.b32.xlu0 %v10028, 108
      %v10168 = vpop.permute.xlu0 %10167
      %10169 = vrot.lane.b32.xlu0 %v10029, 108
      %v10170 = vpop.permute.xlu0 %10169
      %10171 = vrot.lane.b32.xlu0 %v10030, 108
      %v10172 = vpop.permute.xlu0 %10171
      %10173 = vrot.lane.b32.xlu0 %v10031, 108
      %v10174 = vpop.permute.xlu0 %10173
      %10175 = vrot.lane.b32.xlu0 %v10032, 108
      %v10176 = vpop.permute.xlu0 %10175
      %10185 = vrot.lane.b32.xlu0 %v10025, 107
      %v10186 = vpop.permute.xlu0 %10185
      %10187 = vrot.lane.b32.xlu0 %v10026, 107
      %v10188 = vpop.permute.xlu0 %10187
      %10189 = vrot.lane.b32.xlu0 %v10027, 107
      %v10190 = vpop.permute.xlu0 %10189
      %10191 = vrot.lane.b32.xlu0 %v10028, 107
      %v10192 = vpop.permute.xlu0 %10191
      %10193 = vrot.lane.b32.xlu0 %v10029, 107
      %v10194 = vpop.permute.xlu0 %10193
      %10195 = vrot.lane.b32.xlu0 %v10030, 107
      %v10196 = vpop.permute.xlu0 %10195
      %10197 = vrot.lane.b32.xlu0 %v10031, 107
      %v10198 = vpop.permute.xlu0 %10197
      %10199 = vrot.lane.b32.xlu0 %v10032, 107
      %v10200 = vpop.permute.xlu0 %10199
      %10209 = vrot.lane.b32.xlu0 %v10025, 106
      %v10210 = vpop.permute.xlu0 %10209
      %10211 = vrot.lane.b32.xlu0 %v10026, 106
      %v10212 = vpop.permute.xlu0 %10211
      %10213 = vrot.lane.b32.xlu0 %v10027, 106
      %v10214 = vpop.permute.xlu0 %10213
      %10215 = vrot.lane.b32.xlu0 %v10028, 106
      %v10216 = vpop.permute.xlu0 %10215
      %10217 = vrot.lane.b32.xlu0 %v10029, 106
      %v10218 = vpop.permute.xlu0 %10217
      %10219 = vrot.lane.b32.xlu0 %v10030, 106
      %v10220 = vpop.permute.xlu0 %10219
      %10221 = vrot.lane.b32.xlu0 %v10031, 106
      %v10222 = vpop.permute.xlu0 %10221
      %10223 = vrot.lane.b32.xlu0 %v10032, 106
      %v10224 = vpop.permute.xlu0 %10223
      %v10233 = vpack.c.bf16 %v10026, %v10025
      %v10234 = vpack.c.bf16 %v10028, %v10027
      %v10235 = vpack.c.bf16 %v10030, %v10029
      %v10236 = vpack.c.bf16 %v10032, %v10031
      %v10237 = vpack.c.bf16 %v10044, %v10042
      %v10238 = vpack.c.bf16 %v10048, %v10046
      %v10239 = vpack.c.bf16 %v10052, %v10050
      %v10240 = vpack.c.bf16 %v10056, %v10054
      %v10241 = vpack.c.bf16 %v10068, %v10066
      %v10242 = vpack.c.bf16 %v10072, %v10070
      %v10243 = vpack.c.bf16 %v10076, %v10074
      %v10244 = vpack.c.bf16 %v10080, %v10078
      %v10245 = vpack.c.bf16 %v10092, %v10090
      %v10246 = vpack.c.bf16 %v10096, %v10094
      %v10247 = vpack.c.bf16 %v10100, %v10098
      %v10248 = vpack.c.bf16 %v10104, %v10102
      %v10249 = vpack.c.bf16 %v10116, %v10114
      %v10250 = vpack.c.bf16 %v10120, %v10118
      %v10251 = vpack.c.bf16 %v10124, %v10122
      %v10252 = vpack.c.bf16 %v10128, %v10126
      %v10253 = vpack.c.bf16 %v10140, %v10138
      %v10254 = vpack.c.bf16 %v10144, %v10142
      %v10255 = vpack.c.bf16 %v10148, %v10146
      %v10256 = vpack.c.bf16 %v10152, %v10150
      %v10257 = vpack.c.bf16 %v10164, %v10162
      %v10258 = vpack.c.bf16 %v10168, %v10166
      %v10259 = vpack.c.bf16 %v10172, %v10170
      %v10260 = vpack.c.bf16 %v10176, %v10174
      %v10261 = vpack.c.bf16 %v10188, %v10186
      %v10262 = vpack.c.bf16 %v10192, %v10190
      %v10263 = vpack.c.bf16 %v10196, %v10194
      %v10264 = vpack.c.bf16 %v10200, %v10198
      %v10265 = vpack.c.bf16 %v10212, %v10210
      %v10266 = vpack.c.bf16 %v10216, %v10214
      %v10267 = vpack.c.bf16 %v10220, %v10218
      %v10268 = vpack.c.bf16 %v10224, %v10222
      %v10269 = vld [vmem:[%s8] sm:$0xff]
      %v10270 = vld [vmem:[%s8 + $0x8] sm:$0xff]
      %v10271 = vld [vmem:[%s8 + $0x10] sm:$0xf]
      %v10272 = vld [vmem:[%s8 + $0x14] sm:$0xff]
      %v10273 = vld [vmem:[%s8 + $0x1c] sm:$0xff]
      %v10274 = vld [vmem:[%s8 + $0x24] sm:$0xf]
      %v10275 = vld [vmem:[%s8 + $0x28] sm:$0xff]
      %v10276 = vld [vmem:[%s8 + $0x30] sm:$0xff]
      %v10277 = vld [vmem:[%s8 + $0x38] sm:$0xf]
      %v10278 = vld [vmem:[%s8 + $0x3c] sm:$0xff]
      %v10279 = vld [vmem:[%s8 + $0x44] sm:$0xff]
      %v10280 = vld [vmem:[%s8 + $0x4c] sm:$0xf]
      %v10281 = vld [vmem:[%s8 + $0x50] sm:$0xff]
      %v10282 = vld [vmem:[%s8 + $0x58] sm:$0xff]
      %v10283 = vld [vmem:[%s8 + $0x60] sm:$0xf]
      %v10284 = vld [vmem:[%s8 + $0x64] sm:$0xff]
      %v10285 = vld [vmem:[%s8 + $0x6c] sm:$0xff]
      %v10286 = vld [vmem:[%s8 + $0x74] sm:$0xf]
      %v10287 = vld [vmem:[%s8 + $0x78] sm:$0xff]
      %v10288 = vld [vmem:[%s8 + $0x80] sm:$0xff]
      %v10289 = vld [vmem:[%s8 + $0x88] sm:$0xf]
      %v10290 = vld [vmem:[%s8 + $0x8c] sm:$0xff]
      %v10291 = vld [vmem:[%s8 + $0x94] sm:$0xff]
      %v10292 = vld [vmem:[%s8 + $0x9c] sm:$0xf]
      %v10317 = vunpack.c.l.b16 %v10269
      %v10318 = vunpack.c.h.b16 %v10269
      %v10319 = vunpack.c.l.b16 %v10270
      %v10320 = vunpack.c.h.b16 %v10270
      %v10321 = vunpack.c.l.b16 %v10271
      %v10322 = vunpack.c.l.b16 %v10272
      %v10323 = vunpack.c.h.b16 %v10272
      %v10324 = vunpack.c.l.b16 %v10273
      %v10325 = vunpack.c.h.b16 %v10273
      %v10326 = vunpack.c.l.b16 %v10274
      %v10327 = vunpack.c.l.b16 %v10275
      %v10328 = vunpack.c.h.b16 %v10275
      %v10329 = vunpack.c.l.b16 %v10276
      %v10330 = vunpack.c.h.b16 %v10276
      %v10331 = vunpack.c.l.b16 %v10277
      %v10332 = vunpack.c.l.b16 %v10278
      %v10333 = vunpack.c.h.b16 %v10278
      %v10334 = vunpack.c.l.b16 %v10279
      %v10335 = vunpack.c.h.b16 %v10279
      %v10336 = vunpack.c.l.b16 %v10280
      %v10337 = vunpack.c.l.b16 %v10281
      %v10338 = vunpack.c.h.b16 %v10281
      %v10339 = vunpack.c.l.b16 %v10282
      %v10340 = vunpack.c.h.b16 %v10282
      %v10341 = vunpack.c.l.b16 %v10283
      %v10342 = vunpack.c.l.b16 %v10284
      %v10343 = vunpack.c.h.b16 %v10284
      %v10344 = vunpack.c.l.b16 %v10285
      %v10345 = vunpack.c.h.b16 %v10285
      %v10346 = vunpack.c.l.b16 %v10286
      %v10347 = vunpack.c.l.b16 %v10287
      %v10348 = vunpack.c.h.b16 %v10287
      %v10349 = vunpack.c.l.b16 %v10288
      %v10350 = vunpack.c.h.b16 %v10288
      %v10351 = vunpack.c.l.b16 %v10289
      %v10352 = vunpack.c.l.b16 %v10290
      %v10353 = vunpack.c.h.b16 %v10290
      %v10354 = vunpack.c.l.b16 %v10291
      %v10355 = vunpack.c.h.b16 %v10291
      %v10356 = vunpack.c.l.b16 %v10292
      %v10357 = vpack.c.b16 %v10322, %v10317
      %v10358 = vpack.c.b16 %v10323, %v10318
      %v10359 = vpack.c.b16 %v10324, %v10319
      %v10360 = vpack.c.b16 %v10325, %v10320
      %v10361 = vpack.c.b16 %v10326, %v10321
      %v10362 = vpack.c.b16 %v10332, %v10327
      %v10363 = vpack.c.b16 %v10333, %v10328
      %v10364 = vpack.c.b16 %v10334, %v10329
      %v10365 = vpack.c.b16 %v10335, %v10330
      %v10366 = vpack.c.b16 %v10336, %v10331
      %v10367 = vpack.c.b16 %v10342, %v10337
      %v10368 = vpack.c.b16 %v10343, %v10338
      %v10369 = vpack.c.b16 %v10344, %v10339
      %v10370 = vpack.c.b16 %v10345, %v10340
      %v10371 = vpack.c.b16 %v10346, %v10341
      %v10372 = vpack.c.b16 %v10352, %v10347
      %v10373 = vpack.c.b16 %v10353, %v10348
      %v10374 = vpack.c.b16 %v10354, %v10349
      %v10375 = vpack.c.b16 %v10355, %v10350
      %v10376 = vpack.c.b16 %v10356, %v10351
      %10401 = vrot.lane.b32.xlu0 %v9995, 117
      %v10402 = vpop.permute.xlu0 %10401
      %10403 = vrot.lane.b32.xlu0 %v9998, 117
      %v10404 = vpop.permute.xlu0 %10403
      %10405 = vrot.lane.b32.xlu0 %v10003, 117
      %v10406 = vpop.permute.xlu0 %10405
      %10407 = vrot.lane.b32.xlu0 %v10006, 117
      %v10408 = vpop.permute.xlu0 %10407
      %10409 = vrot.lane.b32.xlu0 %v10011, 117
      %v10410 = vpop.permute.xlu0 %10409
      %10411 = vrot.lane.b32.xlu0 %v10014, 117
      %v10412 = vpop.permute.xlu0 %10411
      %10413 = vrot.lane.b32.xlu0 %v10019, 117
      %v10414 = vpop.permute.xlu0 %10413
      %10415 = vrot.lane.b32.xlu0 %v10022, 117
      %v10416 = vpop.permute.xlu0 %10415
      %v10426 = vsel %vm6554, %v10361, 0
      %v10429 = vsel %vm6554, %v10366, 0
      %v10432 = vsel %vm6554, %v10371, 0
      %v10435 = vsel %vm6554, %v10376, 0
      %10437 = vmatprep.subr.bf16.mxu0 0
      %10438 = vmatpush1.bf16.msra.mxu0 %v10233
      %10439 = vmatprep.subr.bf16.mxu0 0
      %10440 = vmatpush1.bf16.msra.mxu0 %v10234
      %10441 = vmatprep.subr.bf16.mxu0 0
      %10442 = vmatpush1.bf16.msra.mxu0 %v10235
      %10443 = vmatprep.subr.bf16.mxu0 0
      %10444 = vmatpush1.bf16.msra.mxu0 %v10236
      %10445 = vmatprep.subr.bf16.mxu0 0
      %10446 = vmatpush1.bf16.msra.mxu0 %v10237
      %10447 = vmatprep.subr.bf16.mxu0 0
      %10448 = vmatpush1.bf16.msra.mxu0 %v10238
      %10449 = vmatprep.subr.bf16.mxu0 0
      %10450 = vmatpush1.bf16.msra.mxu0 %v10239
      %10451 = vmatprep.subr.bf16.mxu0 0
      %10452 = vmatpush1.bf16.msra.mxu0 %v10240
      %10453 = vmatprep.subr.bf16.mxu0 0
      %10454 = vmatpush1.bf16.msra.mxu0 %v10241
      %10455 = vmatprep.subr.bf16.mxu0 0
      %10456 = vmatpush1.bf16.msra.mxu0 %v10242
      %10457 = vmatprep.subr.bf16.mxu0 0
      %10458 = vmatpush1.bf16.msra.mxu0 %v10243
      %10459 = vmatprep.subr.bf16.mxu0 0
      %10460 = vmatpush1.bf16.msra.mxu0 %v10244
      %10461 = vmatprep.subr.bf16.mxu0 0
      %10462 = vmatpush1.bf16.msra.mxu0 %v10245
      %10463 = vmatprep.subr.bf16.mxu0 0
      %10464 = vmatpush1.bf16.msra.mxu0 %v10246
      %10465 = vmatprep.subr.bf16.mxu0 0
      %10466 = vmatpush1.bf16.msra.mxu0 %v10247
      %10467 = vmatprep.subr.bf16.mxu0 0
      %10468 = vmatpush1.bf16.msra.mxu0 %v10248
      %10469 = vmatprep.mubr.bf16.mxu0 %v10358
      %10470 = vmatmul.mubr.bf16.gmra.mrb[0].mxu0 %v10357
      %v10471 = vpop.f32.mrb[0].mxu0
      %v10472 = vadd.f32 %v10402, %v10471
      %v10473 = vpop.f32.mrb[0].mxu0
      %v10474 = vpop.f32.mrb[0].mxu0
      %v10475 = vadd.f32 %v10404, %v10474
      %v10476 = vpop.f32.mrb[0].mxu0
      %10477 = vmatprep.mubr.bf16.mxu0 %v10363
      %10478 = vmatmul.mubr.bf16.gmra.mrb[0].mxu0 %v10362
      %v10479 = vpop.f32.mrb[0].mxu0
      %v10480 = vadd.f32 %v10406, %v10479
      %v10481 = vpop.f32.mrb[0].mxu0
      %v10482 = vpop.f32.mrb[0].mxu0
      %v10483 = vadd.f32 %v10408, %v10482
      %v10484 = vpop.f32.mrb[0].mxu0
      %10485 = vmatprep.mubr.bf16.mxu0 %v10368
      %10486 = vmatmul.mubr.bf16.gmra.mrb[0].mxu0 %v10367
      %v10487 = vpop.f32.mrb[0].mxu0
      %v10488 = vadd.f32 %v10410, %v10487
      %v10489 = vpop.f32.mrb[0].mxu0
      %v10490 = vpop.f32.mrb[0].mxu0
      %v10491 = vadd.f32 %v10412, %v10490
      %v10492 = vpop.f32.mrb[0].mxu0
      %10493 = vmatprep.mubr.bf16.mxu0 %v10373
      %10494 = vmatmul.mubr.bf16.gmra.mrb[0].mxu0 %v10372
      %v10495 = vpop.f32.mrb[0].mxu0
      %v10496 = vadd.f32 %v10414, %v10495
      %v10497 = vpop.f32.mrb[0].mxu0
      %v10498 = vpop.f32.mrb[0].mxu0
      %v10499 = vadd.f32 %v10416, %v10498
      %v10500 = vpop.f32.mrb[0].mxu0
      %10501 = vdwg.mxu0
      %10502 = vmatprep.subr.bf16.mxu0 0
      %10503 = vmatpush1.bf16.msra.mxu0 %v10249
      %10504 = vmatprep.subr.bf16.mxu0 0
      %10505 = vmatpush1.bf16.msra.mxu0 %v10250
      %10506 = vmatprep.subr.bf16.mxu0 0
      %10507 = vmatpush1.bf16.msra.mxu0 %v10251
      %10508 = vmatprep.subr.bf16.mxu0 0
      %10509 = vmatpush1.bf16.msra.mxu0 %v10252
      %10510 = vmatprep.subr.bf16.mxu0 0
      %10511 = vmatpush1.bf16.msra.mxu0 %v10253
      %10512 = vmatprep.subr.bf16.mxu0 0
      %10513 = vmatpush1.bf16.msra.mxu0 %v10254
      %10514 = vmatprep.subr.bf16.mxu0 0
      %10515 = vmatpush1.bf16.msra.mxu0 %v10255
      %10516 = vmatprep.subr.bf16.mxu0 0
      %10517 = vmatpush1.bf16.msra.mxu0 %v10256
      %10518 = vmatprep.subr.bf16.mxu0 0
      %10519 = vmatpush1.bf16.msra.mxu0 %v10257
      %10520 = vmatprep.subr.bf16.mxu0 0
      %10521 = vmatpush1.bf16.msra.mxu0 %v10258
      %10522 = vmatprep.subr.bf16.mxu0 0
      %10523 = vmatpush1.bf16.msra.mxu0 %v10259
      %10524 = vmatprep.subr.bf16.mxu0 0
      %10525 = vmatpush1.bf16.msra.mxu0 %v10260
      %10526 = vmatprep.subr.bf16.mxu0 0
      %10527 = vmatpush1.bf16.msra.mxu0 %v10261
      %10528 = vmatprep.subr.bf16.mxu0 0
      %10529 = vmatpush1.bf16.msra.mxu0 %v10262
      %10530 = vmatprep.subr.bf16.mxu0 0
      %10531 = vmatpush1.bf16.msra.mxu0 %v10263
      %10532 = vmatprep.subr.bf16.mxu0 0
      %10533 = vmatpush1.bf16.msra.mxu0 %v10264
      %10534 = vmatprep.mubr.bf16.mxu0 %v10360
      %10535 = vmatmul.mubr.bf16.gmra.mrb[0].mxu0 %v10359
      %v10536 = vpop.f32.mrb[0].mxu0
      %v10537 = vadd.f32 %v10472, %v10536
      %v10538 = vpop.f32.mrb[0].mxu0
      %v10539 = vpop.f32.mrb[0].mxu0
      %v10540 = vadd.f32 %v10475, %v10539
      %v10541 = vpop.f32.mrb[0].mxu0
      %10542 = vmatprep.mubr.bf16.mxu0 %v10365
      %10543 = vmatmul.mubr.bf16.gmra.mrb[0].mxu0 %v10364
      %v10544 = vpop.f32.mrb[0].mxu0
      %v10545 = vadd.f32 %v10480, %v10544
      %v10546 = vpop.f32.mrb[0].mxu0
      %v10547 = vpop.f32.mrb[0].mxu0
      %v10548 = vadd.f32 %v10483, %v10547
      %v10549 = vpop.f32.mrb[0].mxu0
      %10550 = vmatprep.mubr.bf16.mxu0 %v10370
      %10551 = vmatmul.mubr.bf16.gmra.mrb[0].mxu0 %v10369
      %v10552 = vpop.f32.mrb[0].mxu0
      %v10553 = vadd.f32 %v10488, %v10552
      %v10554 = vpop.f32.mrb[0].mxu0
      %v10555 = vpop.f32.mrb[0].mxu0
      %v10556 = vadd.f32 %v10491, %v10555
      %v10557 = vpop.f32.mrb[0].mxu0
      %10558 = vmatprep.mubr.bf16.mxu0 %v10375
      %10559 = vmatmul.mubr.bf16.gmra.mrb[0].mxu0 %v10374
      %v10560 = vpop.f32.mrb[0].mxu0
      %v10561 = vadd.f32 %v10496, %v10560
      %v10562 = vpop.f32.mrb[0].mxu0
      %v10563 = vpop.f32.mrb[0].mxu0
      %v10564 = vadd.f32 %v10499, %v10563
      %v10565 = vpop.f32.mrb[0].mxu0
      %10566 = vdwg.mxu0
      %10567 = vmatprep.subr.bf16.mxu0 0
      %10568 = vmatpush1.bf16.msra.mxu0 %v10265
      %10569 = vmatprep.subr.bf16.mxu0 0
      %10570 = vmatpush1.bf16.msra.mxu0 %v10266
      %10571 = vmatprep.subr.bf16.mxu0 0
      %10572 = vmatpush1.bf16.msra.mxu0 %v10267
      %10573 = vmatprep.subr.bf16.mxu0 0
      %10574 = vmatpush1.bf16.msra.mxu0 %v10268
      %10575 = vmatprep.subr.bf16.mxu0 0
      %10576 = vmatpush1.bf16.msra.mxu0 0
      %10577 = vmatprep.subr.bf16.mxu0 0
      %10578 = vmatpush1.bf16.msra.mxu0 0
      %10579 = vmatprep.subr.bf16.mxu0 0
      %10580 = vmatpush1.bf16.msra.mxu0 0
      %10581 = vmatprep.subr.bf16.mxu0 0
      %10582 = vmatpush1.bf16.msra.mxu0 0
      %10583 = vmatprep.subr.bf16.mxu0 0
      %10584 = vmatpush1.bf16.msra.mxu0 0
      %10585 = vmatprep.subr.bf16.mxu0 0
      %10586 = vmatpush1.bf16.msra.mxu0 0
      %10587 = vmatprep.subr.bf16.mxu0 0
      %10588 = vmatpush1.bf16.msra.mxu0 0
      %10589 = vmatprep.subr.bf16.mxu0 0
      %10590 = vmatpush1.bf16.msra.mxu0 0
      %10591 = vmatprep.subr.bf16.mxu0 0
      %10592 = vmatpush1.bf16.msra.mxu0 0
      %10593 = vmatprep.subr.bf16.mxu0 0
      %10594 = vmatpush1.bf16.msra.mxu0 0
      %10595 = vmatprep.subr.bf16.mxu0 0
      %10596 = vmatpush1.bf16.msra.mxu0 0
      %10597 = vmatprep.subr.bf16.mxu0 0
      %10598 = vmatpush1.bf16.msra.mxu0 0
      %10599 = vmatprep.mubr.bf16.mxu0 0
      %10600 = vmatmul.mubr.bf16.gmra.mrb[0].mxu0 %v10426
      %v10601 = vpop.f32.mrb[0].mxu0
      %v10602 = vadd.f32 %v10537, %v10601
      %v10603 = vpop.f32.mrb[0].mxu0
      %v10604 = vpop.f32.mrb[0].mxu0
      %v10605 = vadd.f32 %v10540, %v10604
      %v10606 = vpop.f32.mrb[0].mxu0
      %10607 = vmatprep.mubr.bf16.mxu0 0
      %10608 = vmatmul.mubr.bf16.gmra.mrb[0].mxu0 %v10429
      %v10609 = vpop.f32.mrb[0].mxu0
      %v10610 = vadd.f32 %v10545, %v10609
      %v10611 = vpop.f32.mrb[0].mxu0
      %v10612 = vpop.f32.mrb[0].mxu0
      %v10613 = vadd.f32 %v10548, %v10612
      %v10614 = vpop.f32.mrb[0].mxu0
      %10615 = vmatprep.mubr.bf16.mxu0 0
      %10616 = vmatmul.mubr.bf16.gmra.mrb[0].mxu0 %v10432
      %v10617 = vpop.f32.mrb[0].mxu0
      %v10618 = vadd.f32 %v10553, %v10617
      %v10619 = vpop.f32.mrb[0].mxu0
      %v10620 = vpop.f32.mrb[0].mxu0
      %v10621 = vadd.f32 %v10556, %v10620
      %v10622 = vpop.f32.mrb[0].mxu0
      %10623 = vmatprep.mubr.bf16.mxu0 0
      %10624 = vmatmul.mubr.bf16.gmra.mrb[0].mxu0 %v10435
      %v10625 = vpop.f32.mrb[0].mxu0
      %v10626 = vadd.f32 %v10561, %v10625
      %v10627 = vpop.f32.mrb[0].mxu0
      %v10628 = vpop.f32.mrb[0].mxu0
      %v10629 = vadd.f32 %v10564, %v10628
      %v10630 = vpop.f32.mrb[0].mxu0
      %10631 = vdwg.mxu0
      %v10632 = vld [vmem:[%s16] sm:$0xff]
      %v10633 = vld [vmem:[%s16 + $0x8] sm:$0xff]
      %v10634 = vld [vmem:[%s16 + $0x10] sm:$0xff]
      %v10635 = vld [vmem:[%s16 + $0x18] sm:$0xff]
      %v10636 = vld [vmem:[%s16 + $0x20] sm:$0xff]
      %v10637 = vld [vmem:[%s16 + $0x28] sm:$0xff]
      %v10638 = vld [vmem:[%s16 + $0x30] sm:$0xff]
      %v10639 = vld [vmem:[%s16 + $0x38] sm:$0xff]
      %10641 = vset.pattern.permute.xlu0 0
      %10642 = vperm.xlu0 %10641, %v10632
      %v10643 = vpop.permute.xlu0 %10642
      %10646 = vset.pattern.permute.xlu0 0
      %10647 = vperm.xlu0 %10646, %v10633
      %v10648 = vpop.permute.xlu0 %10647
      %10651 = vset.pattern.permute.xlu0 0
      %10652 = vperm.xlu0 %10651, %v10634
      %v10653 = vpop.permute.xlu0 %10652
      %10656 = vset.pattern.permute.xlu0 0
      %10657 = vperm.xlu0 %10656, %v10635
      %v10658 = vpop.permute.xlu0 %10657
      %10661 = vset.pattern.permute.xlu0 0
      %10662 = vperm.xlu0 %10661, %v10636
      %v10663 = vpop.permute.xlu0 %10662
      %10666 = vset.pattern.permute.xlu0 0
      %10667 = vperm.xlu0 %10666, %v10637
      %v10668 = vpop.permute.xlu0 %10667
      %10671 = vset.pattern.permute.xlu0 0
      %10672 = vperm.xlu0 %10671, %v10638
      %v10673 = vpop.permute.xlu0 %10672
      %10676 = vset.pattern.permute.xlu0 0
      %10677 = vperm.xlu0 %10676, %v10639
      %v10678 = vpop.permute.xlu0 %10677
      %v10680 = vmul.f32 %v10602, %v10643
      %v10681 = vmul.f32 %v10605, %v10648
      %v10682 = vmul.f32 %v10610, %v10653
      %v10683 = vmul.f32 %v10613, %v10658
      %v10684 = vmul.f32 %v10618, %v10663
      %v10685 = vmul.f32 %v10621, %v10668
      %v10686 = vmul.f32 %v10626, %v10673
      %v10687 = vmul.f32 %v10629, %v10678
      %10688 = vset.pattern.permute.xlu0 1
      %10689 = vperm.xlu0 %10688, %v10632
      %v10690 = vpop.permute.xlu0 %10689
      %10692 = vset.pattern.permute.xlu0 1
      %10693 = vperm.xlu0 %10692, %v10633
      %v10694 = vpop.permute.xlu0 %10693
      %10696 = vset.pattern.permute.xlu0 1
      %10697 = vperm.xlu0 %10696, %v10634
      %v10698 = vpop.permute.xlu0 %10697
      %10700 = vset.pattern.permute.xlu0 1
      %10701 = vperm.xlu0 %10700, %v10635
      %v10702 = vpop.permute.xlu0 %10701
      %10704 = vset.pattern.permute.xlu0 1
      %10705 = vperm.xlu0 %10704, %v10636
      %v10706 = vpop.permute.xlu0 %10705
      %10708 = vset.pattern.permute.xlu0 1
      %10709 = vperm.xlu0 %10708, %v10637
      %v10710 = vpop.permute.xlu0 %10709
      %10712 = vset.pattern.permute.xlu0 1
      %10713 = vperm.xlu0 %10712, %v10638
      %v10714 = vpop.permute.xlu0 %10713
      %10716 = vset.pattern.permute.xlu0 1
      %10717 = vperm.xlu0 %10716, %v10639
      %v10718 = vpop.permute.xlu0 %10717
      %v10720 = vadd.f32 %v10680, %v10690
      %v10721 = vadd.f32 %v10681, %v10694
      %v10722 = vadd.f32 %v10682, %v10698
      %v10723 = vadd.f32 %v10683, %v10702
      %v10724 = vadd.f32 %v10684, %v10706
      %v10725 = vadd.f32 %v10685, %v10710
      %v10726 = vadd.f32 %v10686, %v10714
      %v10727 = vadd.f32 %v10687, %v10718
      %v10728 = vmax.f32 %v10720, 0.0
      %v10729 = vmax.f32 %v10721, 0.0
      %v10730 = vmax.f32 %v10722, 0.0
      %v10731 = vmax.f32 %v10723, 0.0
      %v10732 = vmax.f32 %v10724, 0.0
      %v10733 = vmax.f32 %v10725, 0.0
      %v10734 = vmax.f32 %v10726, 0.0
      %v10735 = vmax.f32 %v10727, 0.0
      %v10736 = vld [vmem:[%s17] sm:$0xff]
      %v10737 = vld [vmem:[%s17 + $0x8] sm:$0x3]
      %v10739 = vsel %vm6554, %v10736, 0
      %v10742 = vsel %vm6554, %v10737, 0
      %10744 = vmatprep.subr.mxu0 0.0
      %10745 = vmatpush1.msra.mxu0 %v10728
      %10746 = vmatprep.subr.mxu0 0.0
      %10747 = vmatpush1.msra.mxu0 %v10729
      %10748 = vmatprep.subr.mxu0 0.0
      %10749 = vmatpush1.msra.mxu0 %v10730
      %10750 = vmatprep.subr.mxu0 0.0
      %10751 = vmatpush1.msra.mxu0 %v10731
      %10752 = vmatprep.subr.mxu0 0.0
      %10753 = vmatpush1.msra.mxu0 %v10732
      %10754 = vmatprep.subr.mxu0 0.0
      %10755 = vmatpush1.msra.mxu0 %v10733
      %10756 = vmatprep.subr.mxu0 0.0
      %10757 = vmatpush1.msra.mxu0 %v10734
      %10758 = vmatprep.subr.mxu0 0.0
      %10759 = vmatpush1.msra.mxu0 %v10735
      %10760 = vmatprep.subr.mxu0 0.0
      %10761 = vmatpush1.msra.mxu0 0.0
      %10762 = vmatprep.subr.mxu0 0.0
      %10763 = vmatpush1.msra.mxu0 0.0
      %10764 = vmatprep.subr.mxu0 0.0
      %10765 = vmatpush1.msra.mxu0 0.0
      %10766 = vmatprep.subr.mxu0 0.0
      %10767 = vmatpush1.msra.mxu0 0.0
      %10768 = vmatprep.subr.mxu0 0.0
      %10769 = vmatpush1.msra.mxu0 0.0
      %10770 = vmatprep.subr.mxu0 0.0
      %10771 = vmatpush1.msra.mxu0 0.0
      %10772 = vmatprep.subr.mxu0 0.0
      %10773 = vmatpush1.msra.mxu0 0.0
      %10774 = vmatprep.subr.mxu0 0.0
      %10775 = vmatpush1.msra.mxu0 0.0
      %10776 = vmatprep.subr.mxu0 0.0
      %10777 = vmatpush1.msra.mxu0 0.0
      %10778 = vmatprep.subr.mxu0 0.0
      %10779 = vmatpush1.msra.mxu0 0.0
      %10780 = vmatprep.subr.mxu0 0.0
      %10781 = vmatpush1.msra.mxu0 0.0
      %10782 = vmatprep.subr.mxu0 0.0
      %10783 = vmatpush1.msra.mxu0 0.0
      %10784 = vmatprep.subr.mxu0 0.0
      %10785 = vmatpush1.msra.mxu0 0.0
      %10786 = vmatprep.subr.mxu0 0.0
      %10787 = vmatpush1.msra.mxu0 0.0
      %10788 = vmatprep.subr.mxu0 0.0
      %10789 = vmatpush1.msra.mxu0 0.0
      %10790 = vmatprep.subr.mxu0 0.0
      %10791 = vmatpush1.msra.mxu0 0.0
      %10792 = vmatprep.subr.mxu0 0.0
      %10793 = vmatpush1.msra.mxu0 0.0
      %10794 = vmatprep.subr.mxu0 0.0
      %10795 = vmatpush1.msra.mxu0 0.0
      %10796 = vmatprep.subr.mxu0 0.0
      %10797 = vmatpush1.msra.mxu0 0.0
      %10798 = vmatprep.subr.mxu0 0.0
      %10799 = vmatpush1.msra.mxu0 0.0
      %10800 = vmatprep.subr.mxu0 0.0
      %10801 = vmatpush1.msra.mxu0 0.0
      %10802 = vmatprep.subr.mxu0 0.0
      %10803 = vmatpush1.msra.mxu0 0.0
      %10804 = vmatprep.subr.mxu0 0.0
      %10805 = vmatpush1.msra.mxu0 0.0
      %10806 = vmatprep.subr.mxu0 0.0
      %10807 = vmatpush1.msra.mxu0 0.0
      %10808 = vmatprep.mubr.f32.mxu0 0.0
      %10809 = vmatmul.mubr.f32.gmra.mrb[0].mxu0 %v10739
      %v10810 = vpop.f32.mrb[0].mxu0
      %v10811 = vadd.f32 0.0, %v10810
      %v10812 = vpop.f32.mrb[0].mxu0
      %10813 = vmatprep.mubr.f32.mxu0 0.0
      %10814 = vmatmul.mubr.f32.gmra.mrb[0].mxu0 %v10742
      %v10815 = vpop.f32.mrb[0].mxu0
      %v10816 = vadd.f32 0.0, %v10815
      %v10817 = vpop.f32.mrb[0].mxu0
      %10818 = vdwg.mxu0
      %v10819 = vld [vmem:[%s23] sm:$0x1]
      %v10821 = vlaneseq
      %v10822 = vshrl.u32 %v10821, 7
      %v10823 = vsub.s32 0, %v10822
      %v10824 = vrot.slane %v10819, %v10823
      %v10826 = vmul.f32 %v10811, %v10824
      %v10827 = vmul.f32 %v10816, %v10824
      %vm10828 = vcmask 654336
      %v10829 = vsel %vm10828, %v10826, 0.0
      %10830 = vadd.xlane.f32.xlu0 %v10829
      %v10831 = vpop.xlane.xlu0 %10830
      %vm10832 = vcmask 648192
      %v10833 = vsel %vm10832, %v10827, 0.0
      %10834 = vadd.xlane.f32.xlu0 %v10833
      %v10835 = vpop.xlane.xlu0 %10834
      %v10836 = vmul.f32 %v10831, 0.015625
      %v10837 = vmul.f32 %v10835, 0.015625
      %v10838 = vld [vmem:[%s18] sm:$0xff]
      %v10839 = vld [vmem:[%s18 + $0x8] sm:$0x3]
      %v10840 = vadd.f32 %v10836, %v10838
      %v10841 = vadd.f32 %v10837, %v10839
      %vm10842 = vcmask 7168
      %10843 = vst.msk [vmem:[%s737] sm:$0xff] %vm10842, %v10840
      %vm10844 = vcmask 1024
      %10845 = vst.msk [vmem:[%s737 + $0x8] sm:$0x3] %vm10844, %v10841
      %p10846 = scmp.lt.s32.totalorder %s35, 1
      %s10847 = scalar_select %p10846, %s35, 1
      %s10848 = smul.addr %s10847, 2
      %s10849 = smul.addr %s10848, 8
      %s10850 = scalar_lea.vmem %s24, %s10849
      // Predicated region
      $region117: #{wideresnet_forward.1} parent=115 // pred_check
        %p10851 = pneg %p562
      $region118: #{wideresnet_forward.1} parent=115 // pred_check_branch
        %10853 = sbr.rel (%p10851) target = $region120
      $region119: #{wideresnet_forward.1} parent=115 // pred_region
        _
      $region120: #{wideresnet_forward.1} parent=115 // pred_fallthru
        _
    $region116: #{wideresnet_forward.1} parent=5 // pred_fallthru
      _
    %p10854 = scmp.le.s32.totalorder 2, %s30
    // Predicated region
    $region121: #{wideresnet_forward.1} parent=5 // pred_check
      %p10855 = pneg %p10854
    $region122: #{wideresnet_forward.1} parent=5 // pred_check_branch
      %10857 = sbr.rel (%p10855) target = $region124
    $region123: #{wideresnet_forward.1} parent=5 // pred_region
      %s10858 = ssub.s32 %s30, 2
      // Predicated region
      $region125: #{wideresnet_forward.1} parent=123 // pred_check
        %p10859 = pneg %p568
      $region126: #{wideresnet_forward.1} parent=123 // pred_check_branch
        %10861 = sbr.rel (%p10859) target = $region128
      $region127: #{wideresnet_forward.1} parent=123 // pred_region
        %p10862 = scmp.lt.s32.totalorder %s36, 1
        %s10863 = scalar_select %p10862, %s36, 1
        %s10864 = smul.addr %s10863, 2
        %s10865 = smul.addr %s10864, 8
        %s10866 = scalar_lea.vmem %s24, %s10865
      $region128: #{wideresnet_forward.1} parent=123 // pred_fallthru
        _
    $region124: #{wideresnet_forward.1} parent=5 // pred_fallthru
      _
  $region6: #{wideresnet_forward.1} parent=0 // loop_footer
    %s34 = sadd.s32 1, %s30
  $region7: #{wideresnet_forward.1} parent=0 // loop_footer_branch
    %29 = sbr.rel target = $region3
  $region8: #{wideresnet_forward.1} parent=0 // loop_exit
    _

</llo_original>
